<compile_context>
chip_gen: v7x
topology: tpu7x:2x2x1
jax: 0.10.0
libtpu: 0.0.40
codegen_flags: <defaults>
</compile_context>

<pallas_src>
import functools

import jax
import jax.numpy as jnp
from jax.experimental import pallas as pl
from jax.experimental.pallas import tpu as pltpu


# -----------------------------------------------------------------------------
# Kernel 1: conv1 (MXU matmul over prebuilt patches) + ReLU + maxpool(2,2)
#           + conv2 (9 accumulated batched MXU matmuls) + ReLU, per batch tile.
# -----------------------------------------------------------------------------
def _conv_stage_kernel(p_ref, w1_ref, b1_ref, w2_ref, b2_ref, o_ref, *, tb):
    # conv1: one batched MXU matmul over tb images x 4 pooling phases x 144
    # output positions (M = tb*576, K = 32, N = 128).
    patches = p_ref[...].reshape(tb * 4 * 144, 32)               # bf16
    h = jnp.dot(patches, w1_ref[...],
                preferred_element_type=jnp.float32)              # (tb*576, 128) f32
    h = h.reshape(tb, 4, 144, 128)

    # maxpool(2,2) == max over the 4 pooling phases; bias-add and ReLU commute
    # with the max, so they are applied once afterwards.  Incremental maxes
    # keep only one running buffer live (bounded VMEM).
    pooled = jnp.maximum(jnp.maximum(h[:, 0], h[:, 1]),
                         jnp.maximum(h[:, 2], h[:, 3]))          # (tb, 144, 128)
    pooled = jnp.maximum(pooled + b1_ref[...], 0.0)              # f32
    pooled = pooled.reshape(tb, 12, 12, 128)

    # conv2: 9 accumulated matmuls (one per 3x3 tap), each batched over all
    # tb*100 output rows -- no per-image / per-row loops, no lane concats.
    acc = None
    for i in range(3):
        for j in range(3):
            lhs = pooled[:, i:i + 10, j:j + 10, :].reshape(tb * 100, 128)
            part = jnp.dot(lhs.astype(jnp.bfloat16), w2_ref[i * 3 + j],
                           preferred_element_type=jnp.float32)   # (tb*100, 128)
            acc = part if acc is None else acc + part
    out = jnp.maximum(acc + b2_ref[...], 0.0)

    # Single lane-dense full-block store (channel padding is exact zero).
    o_ref[...] = out.reshape(tb, 100, 128).astype(o_ref.dtype)


def _pick_tb(B):
    # Largest tile in {8,4,2,1} dividing B that still leaves >=2 grid steps
    # (keeps both v7x TensorCores busy); B==1 falls back to a single step.
    for tb in (8, 4, 2, 1):
        if B % tb == 0 and B // tb >= 2:
            return tb
    return B


def conv_stage(patches, packed):
    """patches: (B, 4, 144, 32) bf16  ->  (B, 100, 128) bf16 conv2 features."""
    B = patches.shape[0]
    tb = _pick_tb(B)
    kernel = functools.partial(_conv_stage_kernel, tb=tb)
    return pl.pallas_call(
        kernel,
        out_shape=jax.ShapeDtypeStruct((B, 100, 128), jnp.bfloat16),
        grid=(B // tb,),
        in_specs=[
            pl.BlockSpec((tb, 4, 144, 32), lambda n: (n, 0, 0, 0)),
            pl.BlockSpec((32, 128), lambda n: (0, 0)),
            pl.BlockSpec((1, 128), lambda n: (0, 0)),
            pl.BlockSpec((9, 128, 128), lambda n: (0, 0, 0)),
            pl.BlockSpec((1, 128), lambda n: (0, 0)),
        ],
        out_specs=pl.BlockSpec((tb, 100, 128), lambda n: (n, 0, 0)),
        compiler_params=pltpu.CompilerParams(
            dimension_semantics=("parallel",),
            vmem_limit_bytes=48 * 1024 * 1024),
    )(patches, packed["w1"], packed["b1"], packed["w2"], packed["b2"])


# -----------------------------------------------------------------------------
# Kernel 2: fc1 + ReLU + fc2 + log_softmax (fused, M-tiled, K-dense fc1)
# -----------------------------------------------------------------------------
def _fc_kernel(x_ref, wf1_ref, bf1_ref, wf2_ref, bf2_ref, o_ref):
    x = x_ref[...]                                               # (tm, 2000) bf16
    h = jnp.dot(x, wf1_ref[...], preferred_element_type=jnp.float32)
    h = jnp.maximum(h + bf1_ref[...], 0.0)                       # (tm, 512) f32
    logits = jnp.dot(h.astype(jnp.bfloat16), wf2_ref[...],
                     preferred_element_type=jnp.float32) + bf2_ref[...]  # (tm,128)
    # Mask the 118 padded logit lanes so they can't corrupt the normalizer.
    lane = jax.lax.broadcasted_iota(jnp.int32, logits.shape, 1)
    logits = jnp.where(lane < 10, logits, -1e30)
    m = jnp.max(logits, axis=-1, keepdims=True)
    e = jnp.exp(logits - m)
    lse = jnp.log(jnp.sum(e, axis=-1, keepdims=True)) + m
    o_ref[...] = (logits - lse).astype(o_ref.dtype)


def _pick_tm(B):
    if B >= 512:
        return 256                       # fills the 256-row MXU on v6e/v7x
    if B >= 16 and B % 16 == 0:
        return B // 2                    # >=2 grid steps for v7x's 2 TCs
    return B


def fc_stage(feats2d, packed):
    """feats2d: (B, 2000) bf16  ->  (B, 128) f32 log-probs (first 10 valid)."""
    B = feats2d.shape[0]
    tm = _pick_tm(B)
    return pl.pallas_call(
        _fc_kernel,
        out_shape=jax.ShapeDtypeStruct((B, 128), jnp.float32),
        grid=(pl.cdiv(B, tm),),
        in_specs=[
            pl.BlockSpec((tm, 2000), lambda m: (m, 0)),
            pl.BlockSpec((2000, 512), lambda m: (0, 0)),
            pl.BlockSpec((1, 512), lambda m: (0, 0)),
            pl.BlockSpec((512, 128), lambda m: (0, 0)),
            pl.BlockSpec((1, 128), lambda m: (0, 0)),
        ],
        out_specs=pl.BlockSpec((tm, 128), lambda m: (m, 0)),
        compiler_params=pltpu.CompilerParams(
            dimension_semantics=("parallel",),
            vmem_limit_bytes=48 * 1024 * 1024),
    )(feats2d, packed["wf1"], packed["bf1"], packed["wf2"], packed["bf2"])


# -----------------------------------------------------------------------------
# Parameter init (PyTorch-default-style) and one-time packing
# -----------------------------------------------------------------------------
def init_params(key):
    ks = jax.random.split(key, 8)

    def uniform(k, shape, fan_in):
        bound = 1.0 / jnp.sqrt(jnp.float32(fan_in))
        return jax.random.uniform(k, shape, jnp.float32, -bound, bound)

    return {
        "conv1_w": uniform(ks[0], (10, 1, 5, 5), 1 * 5 * 5),     # OIHW
        "conv1_b": uniform(ks[1], (10,), 1 * 5 * 5),
        "conv2_w": uniform(ks[2], (20, 10, 3, 3), 10 * 3 * 3),   # OIHW
        "conv2_b": uniform(ks[3], (20,), 10 * 3 * 3),
        "fc1_w": uniform(ks[4], (500, 2000), 2000),              # (out, in)
        "fc1_b": uniform(ks[5], (500,), 2000),
        "fc2_w": uniform(ks[6], (10, 500), 500),
        "fc2_b": uniform(ks[7], (10,), 500),
    }


def pack_params(p):
    """Pre-transpose / pad / cast all weights once (outside the forward)."""
    f32, bf16 = jnp.float32, jnp.bfloat16

    # conv1: OIHW (10,1,5,5) -> (32, 128) bf16, row = tap i*5+j, col = out ch.
    w1 = p["conv1_w"].reshape(10, 25).T                           # (25, 10)
    w1p = jnp.zeros((32, 128), f32).at[:25, :10].set(w1).astype(bf16)
    b1p = jnp.zeros((1, 128), f32).at[0, :10].set(p["conv1_b"])

    # conv2: OIHW (20,10,3,3) -> (9, 128, 128) bf16, [tap i*3+j, ci, co].
    w2 = jnp.transpose(p["conv2_w"], (2, 3, 1, 0)).reshape(9, 10, 20)
    w2p = jnp.zeros((9, 128, 128), f32).at[:, :10, :20].set(w2).astype(bf16)
    b2p = jnp.zeros((1, 128), f32).at[0, :20].set(p["conv2_b"])

    # fc1: (500, 2000) with input index c*100 + hw  ->  K-dense (2000, 512)
    # bf16 with row = hw*20 + c (matches the compacted conv feature layout and
    # folds PyTorch's channel-major out.view(B, -1) flatten into the packing).
    wf1 = jnp.transpose(p["fc1_w"].reshape(500, 20, 100), (2, 1, 0))  # (100,20,500)
    wf1p = jnp.zeros((2000, 512), f32).at[:, :500].set(
        wf1.reshape(2000, 500)).astype(bf16)
    bf1p = jnp.zeros((1, 512), f32).at[0, :500].set(p["fc1_b"])

    # fc2: (10, 500) -> (512, 128) bf16.
    wf2p = jnp.zeros((512, 128), f32).at[:500, :10].set(p["fc2_w"].T).astype(bf16)
    bf2p = jnp.zeros((1, 128), f32).at[0, :10].set(p["fc2_b"])

    return {"w1": w1p, "b1": b1p, "w2": w2p, "b2": b2p,
            "wf1": wf1p, "bf1": bf1p, "wf2": wf2p, "bf2": bf2p}


# -----------------------------------------------------------------------------
# Forward pass
# -----------------------------------------------------------------------------
def convnet_forward(packed, x_nchw):
    B = x_nchw.shape[0]
    x2 = x_nchw.reshape(B, 28, 28).astype(jnp.float32)

    # Host-side (XLA) im2col for conv1, grouped by pooling phase -- pure data
    # layout on tiny inputs:  patches[b, r*2+s, p*12+q, i*5+j]
    #                           = x[b, 2p + r + i, 2q + s + j].
    cols = jnp.stack([x2[:, i:i + 24, j:j + 24]
                      for i in range(5) for j in range(5)], axis=-1)  # (B,24,24,25)
    cols = cols.reshape(B, 12, 2, 12, 2, 25)                          # (B,p,r,q,s,t)
    cols = cols.transpose(0, 2, 4, 1, 3, 5).reshape(B, 4, 144, 25)
    patches = jnp.pad(cols, ((0, 0), (0, 0), (0, 0), (0, 7))).astype(jnp.bfloat16)

    feats = conv_stage(patches, packed)                # (B, 100, 128) bf16
    # Compact to the K-dense fc1 layout (hw-major, channel-minor): (B, 2000).
    feats2d = feats[:, :, :20].reshape(B, 2000)
    logits = fc_stage(feats2d, packed)                 # (B, 128) f32
    return logits[:, :10]                              # (B, 10) log-probs


if __name__ == "__main__":
    key = jax.random.PRNGKey(0)
    pkey, xkey = jax.random.split(key)
    params = init_params(pkey)
    packed = pack_params(params)                       # packed once, outside jit
    # Input must be (B, 1, 28, 28): fc1 expects 20*10*10 features downstream.
    x = jax.random.normal(xkey, (2, 1, 28, 28), jnp.float32)
    fwd = jax.jit(convnet_forward)
    out = jax.block_until_ready(fwd(packed, x))
    assert out.shape == (2, 10)
    assert bool(jnp.all(jnp.isfinite(out)))
    print("KERNEL_OK")
</pallas_src>

<mosaic_0001>
module attributes {stable_mosaic.version = 11 : i64} {
  func.func @_conv_stage_kernel(%arg0: i32, %arg1: memref<1x4x144x32xbf16, #tpu.memory_space<vmem>>, %arg2: memref<32x128xbf16, #tpu.memory_space<vmem>>, %arg3: memref<1x128xf32, #tpu.memory_space<vmem>>, %arg4: memref<9x128x128xbf16, #tpu.memory_space<vmem>>, %arg5: memref<1x128xf32, #tpu.memory_space<vmem>>, %arg6: memref<1x100x128xbf16, #tpu.memory_space<vmem>>) attributes {dimension_semantics = [#tpu.dimension_semantics<parallel>], iteration_bounds = array<i64: 2>, scalar_prefetch = 0 : i64, scratch_operands = 0 : i64, tpu.core_type = #tpu.core_type<tc>, window_params = [{transform_indices = @transform_0, window_bounds = array<i64: 1, 4, 144, 32>}, {pipeline_mode = #tpu.pipeline_mode<synchronous>, transform_indices = @transform_1, window_bounds = array<i64: 32, 128>}, {pipeline_mode = #tpu.pipeline_mode<synchronous>, transform_indices = @transform_2, window_bounds = array<i64: 1, 128>}, {pipeline_mode = #tpu.pipeline_mode<synchronous>, transform_indices = @transform_3, window_bounds = array<i64: 9, 128, 128>}, {pipeline_mode = #tpu.pipeline_mode<synchronous>, transform_indices = @transform_4, window_bounds = array<i64: 1, 128>}, {transform_indices = @transform_5, window_bounds = array<i64: 1, 100, 128>}]} {
    %c0 = arith.constant 0 : index
    %c0_0 = arith.constant 0 : index
    %c0_1 = arith.constant 0 : index
    %c0_2 = arith.constant 0 : index
    %0 = vector.load %arg1[%c0, %c0_0, %c0_1, %c0_2] : memref<1x4x144x32xbf16, #tpu.memory_space<vmem>>, vector<1x4x144x32xbf16>
    %1 = vector.shape_cast %0 : vector<1x4x144x32xbf16> to vector<576x32xbf16>
    %c0_3 = arith.constant 0 : index
    %c0_4 = arith.constant 0 : index
    %2 = vector.load %arg2[%c0_3, %c0_4] : memref<32x128xbf16, #tpu.memory_space<vmem>>, vector<32x128xbf16>
    %cst = arith.constant dense<0.000000e+00> : vector<576x128xf32>
    %3 = tpu.matmul %1, %2, %cst {dimension_numbers = #tpu.dot_dimension_numbers<[1], [0], [0], [1], [0, 0, 1, 1], [], []>} : vector<576x32xbf16>, vector<32x128xbf16>, vector<576x128xf32> -> vector<576x128xf32>
    %4 = vector.shape_cast %3 : vector<576x128xf32> to vector<1x4x144x128xf32>
    %5 = vector.extract_strided_slice %4 {offsets = [0, 0, 0, 0], sizes = [1, 1, 144, 128], strides = [1, 1, 1, 1]} : vector<1x4x144x128xf32> to vector<1x1x144x128xf32>
    %6 = vector.shape_cast %5 : vector<1x1x144x128xf32> to vector<1x144x128xf32>
    %7 = vector.extract_strided_slice %4 {offsets = [0, 1, 0, 0], sizes = [1, 1, 144, 128], strides = [1, 1, 1, 1]} : vector<1x4x144x128xf32> to vector<1x1x144x128xf32>
    %8 = vector.shape_cast %7 : vector<1x1x144x128xf32> to vector<1x144x128xf32>
    %9 = arith.maximumf %6, %8 : vector<1x144x128xf32>
    %10 = vector.extract_strided_slice %4 {offsets = [0, 2, 0, 0], sizes = [1, 1, 144, 128], strides = [1, 1, 1, 1]} : vector<1x4x144x128xf32> to vector<1x1x144x128xf32>
    %11 = vector.shape_cast %10 : vector<1x1x144x128xf32> to vector<1x144x128xf32>
    %12 = vector.extract_strided_slice %4 {offsets = [0, 3, 0, 0], sizes = [1, 1, 144, 128], strides = [1, 1, 1, 1]} : vector<1x4x144x128xf32> to vector<1x1x144x128xf32>
    %13 = vector.shape_cast %12 : vector<1x1x144x128xf32> to vector<1x144x128xf32>
    %14 = arith.maximumf %11, %13 : vector<1x144x128xf32>
    %15 = arith.maximumf %9, %14 : vector<1x144x128xf32>
    %c0_5 = arith.constant 0 : index
    %c0_6 = arith.constant 0 : index
    %16 = vector.load %arg3[%c0_5, %c0_6] : memref<1x128xf32, #tpu.memory_space<vmem>>, vector<1x128xf32>
    %17 = vector.shape_cast %16 : vector<1x128xf32> to vector<1x1x128xf32>
    %18 = vector.broadcast %17 : vector<1x1x128xf32> to vector<1x144x128xf32>
    %19 = arith.addf %15, %18 : vector<1x144x128xf32>
    %cst_7 = arith.constant 0.000000e+00 : f32
    %20 = vector.broadcast %cst_7 : f32 to vector<1x144x128xf32>
    %21 = arith.maximumf %19, %20 : vector<1x144x128xf32>
    %22 = vector.shape_cast %21 : vector<1x144x128xf32> to vector<1x12x12x128xf32>
    %23 = vector.extract_strided_slice %22 {offsets = [0, 0, 0, 0], sizes = [1, 10, 10, 128], strides = [1, 1, 1, 1]} : vector<1x12x12x128xf32> to vector<1x10x10x128xf32>
    %24 = vector.shape_cast %23 : vector<1x10x10x128xf32> to vector<100x128xf32>
    %25 = arith.truncf %24 : vector<100x128xf32> to vector<100x128xbf16>
    %c0_8 = arith.constant 0 : index
    %c0_9 = arith.constant 0 : index
    %c0_10 = arith.constant 0 : index
    %26 = vector.load %arg4[%c0_8, %c0_9, %c0_10] : memref<9x128x128xbf16, #tpu.memory_space<vmem>>, vector<1x128x128xbf16>
    %27 = vector.shape_cast %26 : vector<1x128x128xbf16> to vector<128x128xbf16>
    %cst_11 = arith.constant dense<0.000000e+00> : vector<100x128xf32>
    %28 = tpu.matmul %25, %27, %cst_11 {dimension_numbers = #tpu.dot_dimension_numbers<[1], [0], [0], [1], [0, 0, 1, 1], [], []>} : vector<100x128xbf16>, vector<128x128xbf16>, vector<100x128xf32> -> vector<100x128xf32>
    %29 = vector.extract_strided_slice %22 {offsets = [0, 0, 1, 0], sizes = [1, 10, 10, 128], strides = [1, 1, 1, 1]} : vector<1x12x12x128xf32> to vector<1x10x10x128xf32>
    %30 = vector.shape_cast %29 : vector<1x10x10x128xf32> to vector<100x128xf32>
    %31 = arith.truncf %30 : vector<100x128xf32> to vector<100x128xbf16>
    %c1 = arith.constant 1 : index
    %c0_12 = arith.constant 0 : index
    %c0_13 = arith.constant 0 : index
    %32 = vector.load %arg4[%c1, %c0_12, %c0_13] : memref<9x128x128xbf16, #tpu.memory_space<vmem>>, vector<1x128x128xbf16>
    %33 = vector.shape_cast %32 : vector<1x128x128xbf16> to vector<128x128xbf16>
    %cst_14 = arith.constant dense<0.000000e+00> : vector<100x128xf32>
    %34 = tpu.matmul %31, %33, %cst_14 {dimension_numbers = #tpu.dot_dimension_numbers<[1], [0], [0], [1], [0, 0, 1, 1], [], []>} : vector<100x128xbf16>, vector<128x128xbf16>, vector<100x128xf32> -> vector<100x128xf32>
    %35 = arith.addf %28, %34 : vector<100x128xf32>
    %36 = vector.extract_strided_slice %22 {offsets = [0, 0, 2, 0], sizes = [1, 10, 10, 128], strides = [1, 1, 1, 1]} : vector<1x12x12x128xf32> to vector<1x10x10x128xf32>
    %37 = vector.shape_cast %36 : vector<1x10x10x128xf32> to vector<100x128xf32>
    %38 = arith.truncf %37 : vector<100x128xf32> to vector<100x128xbf16>
    %c2 = arith.constant 2 : index
    %c0_15 = arith.constant 0 : index
    %c0_16 = arith.constant 0 : index
    %39 = vector.load %arg4[%c2, %c0_15, %c0_16] : memref<9x128x128xbf16, #tpu.memory_space<vmem>>, vector<1x128x128xbf16>
    %40 = vector.shape_cast %39 : vector<1x128x128xbf16> to vector<128x128xbf16>
    %cst_17 = arith.constant dense<0.000000e+00> : vector<100x128xf32>
    %41 = tpu.matmul %38, %40, %cst_17 {dimension_numbers = #tpu.dot_dimension_numbers<[1], [0], [0], [1], [0, 0, 1, 1], [], []>} : vector<100x128xbf16>, vector<128x128xbf16>, vector<100x128xf32> -> vector<100x128xf32>
    %42 = arith.addf %35, %41 : vector<100x128xf32>
    %43 = vector.extract_strided_slice %22 {offsets = [0, 1, 0, 0], sizes = [1, 10, 10, 128], strides = [1, 1, 1, 1]} : vector<1x12x12x128xf32> to vector<1x10x10x128xf32>
    %44 = vector.shape_cast %43 : vector<1x10x10x128xf32> to vector<100x128xf32>
    %45 = arith.truncf %44 : vector<100x128xf32> to vector<100x128xbf16>
    %c3 = arith.constant 3 : index
    %c0_18 = arith.constant 0 : index
    %c0_19 = arith.constant 0 : index
    %46 = vector.load %arg4[%c3, %c0_18, %c0_19] : memref<9x128x128xbf16, #tpu.memory_space<vmem>>, vector<1x128x128xbf16>
    %47 = vector.shape_cast %46 : vector<1x128x128xbf16> to vector<128x128xbf16>
    %cst_20 = arith.constant dense<0.000000e+00> : vector<100x128xf32>
    %48 = tpu.matmul %45, %47, %cst_20 {dimension_numbers = #tpu.dot_dimension_numbers<[1], [0], [0], [1], [0, 0, 1, 1], [], []>} : vector<100x128xbf16>, vector<128x128xbf16>, vector<100x128xf32> -> vector<100x128xf32>
    %49 = arith.addf %42, %48 : vector<100x128xf32>
    %50 = vector.extract_strided_slice %22 {offsets = [0, 1, 1, 0], sizes = [1, 10, 10, 128], strides = [1, 1, 1, 1]} : vector<1x12x12x128xf32> to vector<1x10x10x128xf32>
    %51 = vector.shape_cast %50 : vector<1x10x10x128xf32> to vector<100x128xf32>
    %52 = arith.truncf %51 : vector<100x128xf32> to vector<100x128xbf16>
    %c4 = arith.constant 4 : index
    %c0_21 = arith.constant 0 : index
    %c0_22 = arith.constant 0 : index
    %53 = vector.load %arg4[%c4, %c0_21, %c0_22] : memref<9x128x128xbf16, #tpu.memory_space<vmem>>, vector<1x128x128xbf16>
    %54 = vector.shape_cast %53 : vector<1x128x128xbf16> to vector<128x128xbf16>
    %cst_23 = arith.constant dense<0.000000e+00> : vector<100x128xf32>
    %55 = tpu.matmul %52, %54, %cst_23 {dimension_numbers = #tpu.dot_dimension_numbers<[1], [0], [0], [1], [0, 0, 1, 1], [], []>} : vector<100x128xbf16>, vector<128x128xbf16>, vector<100x128xf32> -> vector<100x128xf32>
    %56 = arith.addf %49, %55 : vector<100x128xf32>
    %57 = vector.extract_strided_slice %22 {offsets = [0, 1, 2, 0], sizes = [1, 10, 10, 128], strides = [1, 1, 1, 1]} : vector<1x12x12x128xf32> to vector<1x10x10x128xf32>
    %58 = vector.shape_cast %57 : vector<1x10x10x128xf32> to vector<100x128xf32>
    %59 = arith.truncf %58 : vector<100x128xf32> to vector<100x128xbf16>
    %c5 = arith.constant 5 : index
    %c0_24 = arith.constant 0 : index
    %c0_25 = arith.constant 0 : index
    %60 = vector.load %arg4[%c5, %c0_24, %c0_25] : memref<9x128x128xbf16, #tpu.memory_space<vmem>>, vector<1x128x128xbf16>
    %61 = vector.shape_cast %60 : vector<1x128x128xbf16> to vector<128x128xbf16>
    %cst_26 = arith.constant dense<0.000000e+00> : vector<100x128xf32>
    %62 = tpu.matmul %59, %61, %cst_26 {dimension_numbers = #tpu.dot_dimension_numbers<[1], [0], [0], [1], [0, 0, 1, 1], [], []>} : vector<100x128xbf16>, vector<128x128xbf16>, vector<100x128xf32> -> vector<100x128xf32>
    %63 = arith.addf %56, %62 : vector<100x128xf32>
    %64 = vector.extract_strided_slice %22 {offsets = [0, 2, 0, 0], sizes = [1, 10, 10, 128], strides = [1, 1, 1, 1]} : vector<1x12x12x128xf32> to vector<1x10x10x128xf32>
    %65 = vector.shape_cast %64 : vector<1x10x10x128xf32> to vector<100x128xf32>
    %66 = arith.truncf %65 : vector<100x128xf32> to vector<100x128xbf16>
    %c6 = arith.constant 6 : index
    %c0_27 = arith.constant 0 : index
    %c0_28 = arith.constant 0 : index
    %67 = vector.load %arg4[%c6, %c0_27, %c0_28] : memref<9x128x128xbf16, #tpu.memory_space<vmem>>, vector<1x128x128xbf16>
    %68 = vector.shape_cast %67 : vector<1x128x128xbf16> to vector<128x128xbf16>
    %cst_29 = arith.constant dense<0.000000e+00> : vector<100x128xf32>
    %69 = tpu.matmul %66, %68, %cst_29 {dimension_numbers = #tpu.dot_dimension_numbers<[1], [0], [0], [1], [0, 0, 1, 1], [], []>} : vector<100x128xbf16>, vector<128x128xbf16>, vector<100x128xf32> -> vector<100x128xf32>
    %70 = arith.addf %63, %69 : vector<100x128xf32>
    %71 = vector.extract_strided_slice %22 {offsets = [0, 2, 1, 0], sizes = [1, 10, 10, 128], strides = [1, 1, 1, 1]} : vector<1x12x12x128xf32> to vector<1x10x10x128xf32>
    %72 = vector.shape_cast %71 : vector<1x10x10x128xf32> to vector<100x128xf32>
    %73 = arith.truncf %72 : vector<100x128xf32> to vector<100x128xbf16>
    %c7 = arith.constant 7 : index
    %c0_30 = arith.constant 0 : index
    %c0_31 = arith.constant 0 : index
    %74 = vector.load %arg4[%c7, %c0_30, %c0_31] : memref<9x128x128xbf16, #tpu.memory_space<vmem>>, vector<1x128x128xbf16>
    %75 = vector.shape_cast %74 : vector<1x128x128xbf16> to vector<128x128xbf16>
    %cst_32 = arith.constant dense<0.000000e+00> : vector<100x128xf32>
    %76 = tpu.matmul %73, %75, %cst_32 {dimension_numbers = #tpu.dot_dimension_numbers<[1], [0], [0], [1], [0, 0, 1, 1], [], []>} : vector<100x128xbf16>, vector<128x128xbf16>, vector<100x128xf32> -> vector<100x128xf32>
    %77 = arith.addf %70, %76 : vector<100x128xf32>
    %78 = vector.extract_strided_slice %22 {offsets = [0, 2, 2, 0], sizes = [1, 10, 10, 128], strides = [1, 1, 1, 1]} : vector<1x12x12x128xf32> to vector<1x10x10x128xf32>
    %79 = vector.shape_cast %78 : vector<1x10x10x128xf32> to vector<100x128xf32>
    %80 = arith.truncf %79 : vector<100x128xf32> to vector<100x128xbf16>
    %c8 = arith.constant 8 : index
    %c0_33 = arith.constant 0 : index
    %c0_34 = arith.constant 0 : index
    %81 = vector.load %arg4[%c8, %c0_33, %c0_34] : memref<9x128x128xbf16, #tpu.memory_space<vmem>>, vector<1x128x128xbf16>
    %82 = vector.shape_cast %81 : vector<1x128x128xbf16> to vector<128x128xbf16>
    %cst_35 = arith.constant dense<0.000000e+00> : vector<100x128xf32>
    %83 = tpu.matmul %80, %82, %cst_35 {dimension_numbers = #tpu.dot_dimension_numbers<[1], [0], [0], [1], [0, 0, 1, 1], [], []>} : vector<100x128xbf16>, vector<128x128xbf16>, vector<100x128xf32> -> vector<100x128xf32>
    %84 = arith.addf %77, %83 : vector<100x128xf32>
    %c0_36 = arith.constant 0 : index
    %c0_37 = arith.constant 0 : index
    %85 = vector.load %arg5[%c0_36, %c0_37] : memref<1x128xf32, #tpu.memory_space<vmem>>, vector<1x128xf32>
    %86 = vector.broadcast %85 : vector<1x128xf32> to vector<100x128xf32>
    %87 = arith.addf %84, %86 : vector<100x128xf32>
    %cst_38 = arith.constant 0.000000e+00 : f32
    %88 = vector.broadcast %cst_38 : f32 to vector<100x128xf32>
    %89 = arith.maximumf %87, %88 : vector<100x128xf32>
    %90 = vector.shape_cast %89 : vector<100x128xf32> to vector<1x100x128xf32>
    %91 = arith.truncf %90 : vector<1x100x128xf32> to vector<1x100x128xbf16>
    %c0_39 = arith.constant 0 : index
    %c0_40 = arith.constant 0 : index
    %c0_41 = arith.constant 0 : index
    %92 = vector.load %arg6[%c0_39, %c0_40, %c0_41] : memref<1x100x128xbf16, #tpu.memory_space<vmem>>, vector<1x100x128xbf16>
    tpu.vector_store %arg6[%c0_39, %c0_40, %c0_41], %91 {strides = array<i32>} : memref<1x100x128xbf16, #tpu.memory_space<vmem>>, vector<1x100x128xbf16>,
    return
  }
  func.func @transform_0(%arg0: i32) -> (i32, i32, i32, i32) {
    %c0_i32 = arith.constant 0 : i32
    %c0_i32_0 = arith.constant 0 : i32
    %c0_i32_1 = arith.constant 0 : i32
    %c0_i32_2 = arith.constant 0 : i32
    return %arg0, %c0_i32, %c0_i32_0, %c0_i32_1 : i32, i32, i32, i32
  }
  func.func @transform_1(%arg0: i32) -> (i32, i32) {
    %c0_i32 = arith.constant 0 : i32
    %c0_i32_0 = arith.constant 0 : i32
    %c0_i32_1 = arith.constant 0 : i32
    return %c0_i32, %c0_i32_0 : i32, i32
  }
  func.func @transform_2(%arg0: i32) -> (i32, i32) {
    %c0_i32 = arith.constant 0 : i32
    %c0_i32_0 = arith.constant 0 : i32
    %c0_i32_1 = arith.constant 0 : i32
    return %c0_i32, %c0_i32_0 : i32, i32
  }
  func.func @transform_3(%arg0: i32) -> (i32, i32, i32) {
    %c0_i32 = arith.constant 0 : i32
    %c0_i32_0 = arith.constant 0 : i32
    %c0_i32_1 = arith.constant 0 : i32
    %c0_i32_2 = arith.constant 0 : i32
    return %c0_i32, %c0_i32_0, %c0_i32_1 : i32, i32, i32
  }
  func.func @transform_4(%arg0: i32) -> (i32, i32) {
    %c0_i32 = arith.constant 0 : i32
    %c0_i32_0 = arith.constant 0 : i32
    %c0_i32_1 = arith.constant 0 : i32
    return %c0_i32, %c0_i32_0 : i32, i32
  }
  func.func @transform_5(%arg0: i32) -> (i32, i32, i32) {
    %c0_i32 = arith.constant 0 : i32
    %c0_i32_0 = arith.constant 0 : i32
    %c0_i32_1 = arith.constant 0 : i32
    return %arg0, %c0_i32, %c0_i32_0 : i32, i32, i32
  }
}

module attributes {stable_mosaic.version = 11 : i64} {
  func.func @_fc_kernel(%arg0: i32, %arg1: memref<2x2000xbf16, #tpu.memory_space<vmem>>, %arg2: memref<2000x512xbf16, #tpu.memory_space<vmem>>, %arg3: memref<1x512xf32, #tpu.memory_space<vmem>>, %arg4: memref<512x128xbf16, #tpu.memory_space<vmem>>, %arg5: memref<1x128xf32, #tpu.memory_space<vmem>>, %arg6: memref<2x128xf32, #tpu.memory_space<vmem>>) attributes {dimension_semantics = [#tpu.dimension_semantics<parallel>], iteration_bounds = array<i64: 1>, scalar_prefetch = 0 : i64, scratch_operands = 0 : i64, tpu.core_type = #tpu.core_type<tc>, window_params = [{transform_indices = @transform_0, window_bounds = array<i64: 2, 2000>}, {pipeline_mode = #tpu.pipeline_mode<synchronous>, transform_indices = @transform_1, window_bounds = array<i64: 2000, 512>}, {pipeline_mode = #tpu.pipeline_mode<synchronous>, transform_indices = @transform_2, window_bounds = array<i64: 1, 512>}, {pipeline_mode = #tpu.pipeline_mode<synchronous>, transform_indices = @transform_3, window_bounds = array<i64: 512, 128>}, {pipeline_mode = #tpu.pipeline_mode<synchronous>, transform_indices = @transform_4, window_bounds = array<i64: 1, 128>}, {transform_indices = @transform_5, window_bounds = array<i64: 2, 128>}]} {
    %c0 = arith.constant 0 : index
    %c0_0 = arith.constant 0 : index
    %0 = vector.load %arg1[%c0, %c0_0] : memref<2x2000xbf16, #tpu.memory_space<vmem>>, vector<2x2000xbf16>
    %c0_1 = arith.constant 0 : index
    %c0_2 = arith.constant 0 : index
    %1 = vector.load %arg2[%c0_1, %c0_2] : memref<2000x512xbf16, #tpu.memory_space<vmem>>, vector<2000x512xbf16>
    %cst = arith.constant dense<0.000000e+00> : vector<2x512xf32>
    %2 = tpu.matmul %0, %1, %cst {dimension_numbers = #tpu.dot_dimension_numbers<[1], [0], [0], [1], [0, 0, 1, 1], [], []>} : vector<2x2000xbf16>, vector<2000x512xbf16>, vector<2x512xf32> -> vector<2x512xf32>
    %c0_3 = arith.constant 0 : index
    %c0_4 = arith.constant 0 : index
    %3 = vector.load %arg3[%c0_3, %c0_4] : memref<1x512xf32, #tpu.memory_space<vmem>>, vector<1x512xf32>
    %4 = vector.broadcast %3 : vector<1x512xf32> to vector<2x512xf32>
    %5 = arith.addf %2, %4 : vector<2x512xf32>
    %cst_5 = arith.constant 0.000000e+00 : f32
    %6 = vector.broadcast %cst_5 : f32 to vector<2x512xf32>
    %7 = arith.maximumf %5, %6 : vector<2x512xf32>
    %8 = arith.truncf %7 : vector<2x512xf32> to vector<2x512xbf16>
    %c0_6 = arith.constant 0 : index
    %c0_7 = arith.constant 0 : index
    %9 = vector.load %arg4[%c0_6, %c0_7] : memref<512x128xbf16, #tpu.memory_space<vmem>>, vector<512x128xbf16>
    %cst_8 = arith.constant dense<0.000000e+00> : vector<2x128xf32>
    %10 = tpu.matmul %8, %9, %cst_8 {dimension_numbers = #tpu.dot_dimension_numbers<[1], [0], [0], [1], [0, 0, 1, 1], [], []>} : vector<2x512xbf16>, vector<512x128xbf16>, vector<2x128xf32> -> vector<2x128xf32>
    %c0_9 = arith.constant 0 : index
    %c0_10 = arith.constant 0 : index
    %11 = vector.load %arg5[%c0_9, %c0_10] : memref<1x128xf32, #tpu.memory_space<vmem>>, vector<1x128xf32>
    %12 = vector.broadcast %11 : vector<1x128xf32> to vector<2x128xf32>
    %13 = arith.addf %10, %12 : vector<2x128xf32>
    %14 = tpu.iota {dimensions = array<i32: 1>} : vector<2x128xi32>
    %c10_i32 = arith.constant 10 : i32
    %15 = vector.broadcast %c10_i32 : i32 to vector<2x128xi32>
    %16 = arith.cmpi slt, %14, %15 : vector<2x128xi32>
    %cst_11 = arith.constant -1.000000e+30 : f32
    %17 = vector.broadcast %cst_11 : f32 to vector<2x128xf32>
    %18 = arith.select %16, %13, %17 : vector<2x128xi1>, vector<2x128xf32>
    %cst_12 = arith.constant dense<0xFF800000> : vector<2xf32>
    %19 = vector.multi_reduction <maximumf>, %18, %cst_12 [1] : vector<2x128xf32> to vector<2xf32>
    %20 = vector.shape_cast %19 : vector<2xf32> to vector<2x1xf32>
    %21 = vector.broadcast %20 : vector<2x1xf32> to vector<2x128xf32>
    %22 = arith.subf %18, %21 : vector<2x128xf32>
    %23 = math.exp %22 : vector<2x128xf32>
    %cst_13 = arith.constant dense<0.000000e+00> : vector<2xf32>
    %24 = vector.multi_reduction <add>, %23, %cst_13 [1] : vector<2x128xf32> to vector<2xf32>
    %25 = vector.shape_cast %24 : vector<2xf32> to vector<2x1xf32>
    %26 = math.log %25 : vector<2x1xf32>
    %27 = arith.addf %26, %20 : vector<2x1xf32>
    %28 = vector.broadcast %27 : vector<2x1xf32> to vector<2x128xf32>
    %29 = arith.subf %18, %28 : vector<2x128xf32>
    %c0_14 = arith.constant 0 : index
    %c0_15 = arith.constant 0 : index
    %30 = vector.load %arg6[%c0_14, %c0_15] : memref<2x128xf32, #tpu.memory_space<vmem>>, vector<2x128xf32>
    tpu.vector_store %arg6[%c0_14, %c0_15], %29 {strides = array<i32>} : memref<2x128xf32, #tpu.memory_space<vmem>>, vector<2x128xf32>,
    return
  }
  func.func @transform_0(%arg0: i32) -> (i32, i32) {
    %c0_i32 = arith.constant 0 : i32
    %c0_i32_0 = arith.constant 0 : i32
    return %arg0, %c0_i32 : i32, i32
  }
  func.func @transform_1(%arg0: i32) -> (i32, i32) {
    %c0_i32 = arith.constant 0 : i32
    %c0_i32_0 = arith.constant 0 : i32
    %c0_i32_1 = arith.constant 0 : i32
    return %c0_i32, %c0_i32_0 : i32, i32
  }
  func.func @transform_2(%arg0: i32) -> (i32, i32) {
    %c0_i32 = arith.constant 0 : i32
    %c0_i32_0 = arith.constant 0 : i32
    %c0_i32_1 = arith.constant 0 : i32
    return %c0_i32, %c0_i32_0 : i32, i32
  }
  func.func @transform_3(%arg0: i32) -> (i32, i32) {
    %c0_i32 = arith.constant 0 : i32
    %c0_i32_0 = arith.constant 0 : i32
    %c0_i32_1 = arith.constant 0 : i32
    return %c0_i32, %c0_i32_0 : i32, i32
  }
  func.func @transform_4(%arg0: i32) -> (i32, i32) {
    %c0_i32 = arith.constant 0 : i32
    %c0_i32_0 = arith.constant 0 : i32
    %c0_i32_1 = arith.constant 0 : i32
    return %c0_i32, %c0_i32_0 : i32, i32
  }
  func.func @transform_5(%arg0: i32) -> (i32, i32) {
    %c0_i32 = arith.constant 0 : i32
    %c0_i32_0 = arith.constant 0 : i32
    return %arg0, %c0_i32 : i32, i32
  }
}

</mosaic_0001>

<llo_original>
// kernel: convnet_forward.2
$region0: #{convnet_forward.2}
  #allocation0 [shape = 'u32[]', space=smem, size = 0x4, offset = 0x4, fixed_abs, tag = 'smem constant byte address 0x4 - core index']
  #allocation1 [shape = 'u32[144,128]{1,0:T(1,128)}', space=vmem, size = 0x12000, scoped, tag = 'internal scratch']
  %s0 = inlined_call_operand.vmem [shape: bf16[2,4,144,32], index: 0, kind: input, shape index: {}]
  %s1 = inlined_call_operand.vmem [shape: bf16[32,128], index: 1, kind: input, shape index: {}]
  %s2 = inlined_call_operand.vmem [shape: f32[1,128], index: 2, kind: input, shape index: {}]
  %s3 = inlined_call_operand.vmem [shape: bf16[9,128,128], index: 3, kind: input, shape index: {}]
  %s4 = inlined_call_operand.vmem [shape: f32[1,128], index: 4, kind: input, shape index: {}]
  %s5 = inlined_call_operand.vmem [shape: bf16[2,100,128], index: 5, kind: output, shape index: {}]
  %s6 = sld [smem:[#allocation0]]
  $region53: #{convnet_forward.2} parent=0
    _
  %s8 = ssub.s32 1, %s6
  %s9 = scalar_select 0, %s8, %s6
  loop: start=0, step=1, limit=4
  $region2: #{convnet_forward.2} parent=0 // loop_pre_header
    _
  $region3: #{convnet_forward.2} parent=0 // loop_header
    %s11 = sphi 0, %s15
    %p12 = scmp.ge.s32.totalorder %s11, 4
    %s21 = sphi 0, %s23
    %s24 = sphi 0, %s21
    %s25 = sphi 0, %s24
    %s41 = sphi 0, %s25
    %s45 = sphi 0, %s45
    %s47 = sphi 0, %s45
    %s48 = sphi 0, %s47
    %s62 = sphi 0, %s48
    %s66 = sphi 0, %s66
    %s68 = sphi 0, %s66
    %s69 = sphi 0, %s68
    %s83 = sphi 0, %s69
    %s87 = sphi 0, %s87
    %s89 = sphi 0, %s87
    %s90 = sphi 0, %s89
    %s104 = sphi 0, %s90
    %s108 = sphi 0, %s108
    %s110 = sphi 0, %s108
    %s111 = sphi 0, %s110
    %s125 = sphi 0, %s111
    %s131 = sphi 0, %s133
    %s134 = sphi 0, %s131
    %s135 = sphi 0, %s134
    %s151 = sphi 0, %s135
  $region4: #{convnet_forward.2} parent=0 // loop_header_branch
    %14 = sbr.rel (%p12) target = $region8
  $region5: #{convnet_forward.2} parent=0 // loop_body
    %s16 = ssub.s32 %s11, 1
    %s17 = ssub.s32 %s11, 2
    %s18 = sadd.s32 %s11, 1
    %s19 = ssub.s32 %s11, %s18
    %p20 = scmp.eq.s32.totalorder %s19, 0
    %s22 = sadd.s32 %s21, 1
    %s23 = scalar_select %p20, %s21, %s22
    %p26 = pneg %p20
    %p27 = scmp.eq.s32.totalorder %s11, 1
    %p28 = por %p26, %p27
    %p29 = scmp.ne.s32.totalorder %s21, %s24
    %p30 = scmp.eq.s32.totalorder %s11, 0
    %p31 = por %p29, %p30
    %p32 = scmp.ne.s32.totalorder %s21, %s24
    %p33 = scmp.eq.s32.totalorder %s16, 1
    %p34 = por %p32, %p33
    %p35 = scmp.ne.s32.totalorder %s24, %s25
    %p36 = scmp.eq.s32.totalorder %s16, 0
    %p37 = por %p35, %p36
    %p38 = scmp.ne.s32.totalorder %s24, %s25
    %p39 = scmp.eq.s32.totalorder %s17, 1
    %p40 = por %p38, %p39
    %p42 = scmp.ne.s32.totalorder %s25, %s41
    %p43 = scmp.eq.s32.totalorder %s17, 0
    %p44 = por %p42, %p43
    %s46 = sadd.s32 %s45, 1
    %p49 = scmp.eq.s32.totalorder %s11, 1
    %p50 = scmp.ne.s32.totalorder %s45, %s47
    %p51 = scmp.eq.s32.totalorder %s11, 0
    %p52 = por %p50, %p51
    %p53 = scmp.ne.s32.totalorder %s45, %s47
    %p54 = scmp.eq.s32.totalorder %s16, 1
    %p55 = por %p53, %p54
    %p56 = scmp.ne.s32.totalorder %s47, %s48
    %p57 = scmp.eq.s32.totalorder %s16, 0
    %p58 = por %p56, %p57
    %p59 = scmp.ne.s32.totalorder %s47, %s48
    %p60 = scmp.eq.s32.totalorder %s17, 1
    %p61 = por %p59, %p60
    %p63 = scmp.ne.s32.totalorder %s48, %s62
    %p64 = scmp.eq.s32.totalorder %s17, 0
    %p65 = por %p63, %p64
    %s67 = sadd.s32 %s66, 1
    %p70 = scmp.eq.s32.totalorder %s11, 1
    %p71 = scmp.ne.s32.totalorder %s66, %s68
    %p72 = scmp.eq.s32.totalorder %s11, 0
    %p73 = por %p71, %p72
    %p74 = scmp.ne.s32.totalorder %s66, %s68
    %p75 = scmp.eq.s32.totalorder %s16, 1
    %p76 = por %p74, %p75
    %p77 = scmp.ne.s32.totalorder %s68, %s69
    %p78 = scmp.eq.s32.totalorder %s16, 0
    %p79 = por %p77, %p78
    %p80 = scmp.ne.s32.totalorder %s68, %s69
    %p81 = scmp.eq.s32.totalorder %s17, 1
    %p82 = por %p80, %p81
    %p84 = scmp.ne.s32.totalorder %s69, %s83
    %p85 = scmp.eq.s32.totalorder %s17, 0
    %p86 = por %p84, %p85
    %s88 = sadd.s32 %s87, 1
    %p91 = scmp.eq.s32.totalorder %s11, 1
    %p92 = scmp.ne.s32.totalorder %s87, %s89
    %p93 = scmp.eq.s32.totalorder %s11, 0
    %p94 = por %p92, %p93
    %p95 = scmp.ne.s32.totalorder %s87, %s89
    %p96 = scmp.eq.s32.totalorder %s16, 1
    %p97 = por %p95, %p96
    %p98 = scmp.ne.s32.totalorder %s89, %s90
    %p99 = scmp.eq.s32.totalorder %s16, 0
    %p100 = por %p98, %p99
    %p101 = scmp.ne.s32.totalorder %s89, %s90
    %p102 = scmp.eq.s32.totalorder %s17, 1
    %p103 = por %p101, %p102
    %p105 = scmp.ne.s32.totalorder %s90, %s104
    %p106 = scmp.eq.s32.totalorder %s17, 0
    %p107 = por %p105, %p106
    %s109 = sadd.s32 %s108, 1
    %p112 = scmp.eq.s32.totalorder %s11, 1
    %p113 = scmp.ne.s32.totalorder %s108, %s110
    %p114 = scmp.eq.s32.totalorder %s11, 0
    %p115 = por %p113, %p114
    %p116 = scmp.ne.s32.totalorder %s108, %s110
    %p117 = scmp.eq.s32.totalorder %s16, 1
    %p118 = por %p116, %p117
    %p119 = scmp.ne.s32.totalorder %s110, %s111
    %p120 = scmp.eq.s32.totalorder %s16, 0
    %p121 = por %p119, %p120
    %p122 = scmp.ne.s32.totalorder %s110, %s111
    %p123 = scmp.eq.s32.totalorder %s17, 1
    %p124 = por %p122, %p123
    %p126 = scmp.ne.s32.totalorder %s111, %s125
    %p127 = scmp.eq.s32.totalorder %s17, 0
    %p128 = por %p126, %p127
    %s129 = ssub.s32 %s11, %s18
    %p130 = scmp.eq.s32.totalorder %s129, 0
    %s132 = sadd.s32 %s131, 1
    %s133 = scalar_select %p130, %s131, %s132
    %p136 = pneg %p130
    %p137 = scmp.eq.s32.totalorder %s11, 1
    %p138 = por %p136, %p137
    %p139 = scmp.ne.s32.totalorder %s131, %s134
    %p140 = scmp.eq.s32.totalorder %s11, 0
    %p141 = por %p139, %p140
    %p142 = scmp.ne.s32.totalorder %s131, %s134
    %p143 = scmp.eq.s32.totalorder %s16, 1
    %p144 = por %p142, %p143
    %p145 = scmp.ne.s32.totalorder %s134, %s135
    %p146 = scmp.eq.s32.totalorder %s16, 0
    %p147 = por %p145, %p146
    %p148 = scmp.ne.s32.totalorder %s134, %s135
    %p149 = scmp.eq.s32.totalorder %s17, 1
    %p150 = por %p148, %p149
    %p152 = scmp.ne.s32.totalorder %s135, %s151
    %p153 = scmp.eq.s32.totalorder %s17, 0
    %p154 = por %p152, %p153
    %p155 = scmp.le.s32.totalorder 1, %s11
    %p156 = scmp.lt.s32.totalorder %s11, 3
    %p157 = pnand %p155, %p156
    %p158 = pneg %p157
    // Predicated region
    $region9: #{convnet_forward.2} parent=5 // pred_check
      _
    $region10: #{convnet_forward.2} parent=5 // pred_check_branch
      %160 = sbr.rel (%p157) target = $region12
    $region11: #{convnet_forward.2} parent=5 // pred_region
      %s161 = ssub.s32 %s11, 1
      // Predicated region
      $region13: #{convnet_forward.2} parent=11 // pred_check
        %p162 = pneg %p58
      $region14: #{convnet_forward.2} parent=11 // pred_check_branch
        %164 = sbr.rel (%p162) target = $region16
      $region15: #{convnet_forward.2} parent=11 // pred_region
        _
      $region16: #{convnet_forward.2} parent=11 // pred_fallthru
        _
      // Predicated region
      $region17: #{convnet_forward.2} parent=11 // pred_check
        %p165 = pneg %p79
      $region18: #{convnet_forward.2} parent=11 // pred_check_branch
        %167 = sbr.rel (%p165) target = $region20
      $region19: #{convnet_forward.2} parent=11 // pred_region
        _
      $region20: #{convnet_forward.2} parent=11 // pred_fallthru
        _
      // Predicated region
      $region21: #{convnet_forward.2} parent=11 // pred_check
        %p168 = pneg %p100
      $region22: #{convnet_forward.2} parent=11 // pred_check_branch
        %170 = sbr.rel (%p168) target = $region24
      $region23: #{convnet_forward.2} parent=11 // pred_region
        _
      $region24: #{convnet_forward.2} parent=11 // pred_fallthru
        _
      // Predicated region
      $region25: #{convnet_forward.2} parent=11 // pred_check
        %p171 = pneg %p121
      $region26: #{convnet_forward.2} parent=11 // pred_check_branch
        %173 = sbr.rel (%p171) target = $region28
      $region27: #{convnet_forward.2} parent=11 // pred_region
        _
      $region28: #{convnet_forward.2} parent=11 // pred_fallthru
        _
    $region12: #{convnet_forward.2} parent=5 // pred_fallthru
      _
    %p174 = scmp.lt.s32.totalorder %s11, 2
    // Predicated region
    $region29: #{convnet_forward.2} parent=5 // pred_check
      %p175 = pneg %p174
    $region30: #{convnet_forward.2} parent=5 // pred_check_branch
      %177 = sbr.rel (%p175) target = $region32
    $region31: #{convnet_forward.2} parent=5 // pred_region
      // Predicated region
      $region33: #{convnet_forward.2} parent=31 // pred_check
        %p178 = pneg %p31
      $region34: #{convnet_forward.2} parent=31 // pred_check_branch
        %180 = sbr.rel (%p178) target = $region36
      $region35: #{convnet_forward.2} parent=31 // pred_region
        %p181 = scmp.lt.s32.totalorder %s11, 1
        %s182 = scalar_select %p181, %s11, 1
        %s183 = smul.addr %s182, 72
        %s184 = smul.addr %s183, 4
        %s185 = scalar_lea.vmem %s0, %s184
      $region36: #{convnet_forward.2} parent=31 // pred_fallthru
        _
    $region32: #{convnet_forward.2} parent=5 // pred_fallthru
      _
    %p186 = scmp.le.s32.totalorder 1, %s11
    %p187 = scmp.lt.s32.totalorder %s11, 3
    %p188 = pnand %p186, %p187
    %p189 = pneg %p188
    // Predicated region
    $region37: #{convnet_forward.2} parent=5 // pred_check
      _
    $region38: #{convnet_forward.2} parent=5 // pred_check_branch
      %191 = sbr.rel (%p188) target = $region40
    $region39: #{convnet_forward.2} parent=5 // pred_region
      %s192 = ssub.s32 %s11, 1
      %p193 = scmp.lt.s32.totalorder %s16, 1
      %s194 = scalar_select %p193, %s16, 1
      %s195 = smul.addr %s194, 72
      %s196 = smul.addr %s195, 4
      %s197 = scalar_lea.vmem %s0, %s196
      %p198 = pneg %p37
      %p199 = pneg %p34
      %p200 = pneg %p58
      %p201 = pneg %p55
      %p202 = pneg %p79
      %p203 = pneg %p76
      %p204 = pneg %p100
      %p205 = pneg %p97
      %p206 = pneg %p121
      %p207 = pneg %p118
      %p208 = pneg %p147
      %p209 = pneg %p144
      %p210 = scmp.lt.s32.totalorder %s16, 1
      %s211 = scalar_select %p210, %s16, 1
      %s212 = smul.addr %s211, 13
      %s213 = smul.addr %s212, 4
      %s214 = scalar_lea.vmem %s5, %s213
      %p215 = scmp.lt.s32.totalorder %s16, 1
      %s216 = scalar_select %p215, %s16, 1
      %s217 = smul.addr %s216, 72
      %s218 = smul.addr %s217, 4
      %s219 = scalar_lea.vmem %s0, %s218
      %p220 = scmp.lt.s32.totalorder %s16, 1
      %s221 = scalar_select %p220, %s16, 1
      %s222 = smul.addr %s221, 13
      %s223 = smul.addr %s222, 4
      %s224 = scalar_lea.vmem %s5, %s223
      %v226 = vld [vmem:[%s219] sm:$0xf]
      %v227 = vld [vmem:[%s219 + $0x4] sm:$0xf]
      %v228 = vld [vmem:[%s219 + $0x8] sm:$0xf]
      %v229 = vld [vmem:[%s219 + $0xc] sm:$0xf]
      %v230 = vld [vmem:[%s219 + $0x10] sm:$0xf]
      %v231 = vld [vmem:[%s219 + $0x14] sm:$0xf]
      %v232 = vld [vmem:[%s219 + $0x18] sm:$0xf]
      %v233 = vld [vmem:[%s219 + $0x1c] sm:$0xf]
      %v234 = vld [vmem:[%s219 + $0x20] sm:$0xf]
      %v235 = vld [vmem:[%s219 + $0x24] sm:$0xf]
      %v236 = vld [vmem:[%s219 + $0x28] sm:$0xf]
      %v237 = vld [vmem:[%s219 + $0x2c] sm:$0xf]
      %v238 = vld [vmem:[%s219 + $0x30] sm:$0xf]
      %v239 = vld [vmem:[%s219 + $0x34] sm:$0xf]
      %v240 = vld [vmem:[%s219 + $0x38] sm:$0xf]
      %v241 = vld [vmem:[%s219 + $0x3c] sm:$0xf]
      %v242 = vld [vmem:[%s219 + $0x40] sm:$0xf]
      %v243 = vld [vmem:[%s219 + $0x44] sm:$0xf]
      %v244 = vld [vmem:[%s219 + $0x48] sm:$0xf]
      %v245 = vld [vmem:[%s219 + $0x4c] sm:$0xf]
      %v246 = vld [vmem:[%s219 + $0x50] sm:$0xf]
      %v247 = vld [vmem:[%s219 + $0x54] sm:$0xf]
      %v248 = vld [vmem:[%s219 + $0x58] sm:$0xf]
      %v249 = vld [vmem:[%s219 + $0x5c] sm:$0xf]
      %v250 = vld [vmem:[%s219 + $0x60] sm:$0xf]
      %v251 = vld [vmem:[%s219 + $0x64] sm:$0xf]
      %v252 = vld [vmem:[%s219 + $0x68] sm:$0xf]
      %v253 = vld [vmem:[%s219 + $0x6c] sm:$0xf]
      %v254 = vld [vmem:[%s219 + $0x70] sm:$0xf]
      %v255 = vld [vmem:[%s219 + $0x74] sm:$0xf]
      %v256 = vld [vmem:[%s219 + $0x78] sm:$0xf]
      %v257 = vld [vmem:[%s219 + $0x7c] sm:$0xf]
      %v258 = vld [vmem:[%s219 + $0x80] sm:$0xf]
      %v259 = vld [vmem:[%s219 + $0x84] sm:$0xf]
      %v260 = vld [vmem:[%s219 + $0x88] sm:$0xf]
      %v261 = vld [vmem:[%s219 + $0x8c] sm:$0xf]
      %v262 = vld [vmem:[%s219 + $0x90] sm:$0xf]
      %v263 = vld [vmem:[%s219 + $0x94] sm:$0xf]
      %v264 = vld [vmem:[%s219 + $0x98] sm:$0xf]
      %v265 = vld [vmem:[%s219 + $0x9c] sm:$0xf]
      %v266 = vld [vmem:[%s219 + $0xa0] sm:$0xf]
      %v267 = vld [vmem:[%s219 + $0xa4] sm:$0xf]
      %v268 = vld [vmem:[%s219 + $0xa8] sm:$0xf]
      %v269 = vld [vmem:[%s219 + $0xac] sm:$0xf]
      %v270 = vld [vmem:[%s219 + $0xb0] sm:$0xf]
      %v271 = vld [vmem:[%s219 + $0xb4] sm:$0xf]
      %v272 = vld [vmem:[%s219 + $0xb8] sm:$0xf]
      %v273 = vld [vmem:[%s219 + $0xbc] sm:$0xf]
      %v274 = vld [vmem:[%s219 + $0xc0] sm:$0xf]
      %v275 = vld [vmem:[%s219 + $0xc4] sm:$0xf]
      %v276 = vld [vmem:[%s219 + $0xc8] sm:$0xf]
      %v277 = vld [vmem:[%s219 + $0xcc] sm:$0xf]
      %v278 = vld [vmem:[%s219 + $0xd0] sm:$0xf]
      %v279 = vld [vmem:[%s219 + $0xd4] sm:$0xf]
      %v280 = vld [vmem:[%s219 + $0xd8] sm:$0xf]
      %v281 = vld [vmem:[%s219 + $0xdc] sm:$0xf]
      %v282 = vld [vmem:[%s219 + $0xe0] sm:$0xf]
      %v283 = vld [vmem:[%s219 + $0xe4] sm:$0xf]
      %v284 = vld [vmem:[%s219 + $0xe8] sm:$0xf]
      %v285 = vld [vmem:[%s219 + $0xec] sm:$0xf]
      %v286 = vld [vmem:[%s219 + $0xf0] sm:$0xf]
      %v287 = vld [vmem:[%s219 + $0xf4] sm:$0xf]
      %v288 = vld [vmem:[%s219 + $0xf8] sm:$0xf]
      %v289 = vld [vmem:[%s219 + $0xfc] sm:$0xf]
      %v290 = vld [vmem:[%s219 + $0x100] sm:$0xf]
      %v291 = vld [vmem:[%s219 + $0x104] sm:$0xf]
      %v292 = vld [vmem:[%s219 + $0x108] sm:$0xf]
      %v293 = vld [vmem:[%s219 + $0x10c] sm:$0xf]
      %v294 = vld [vmem:[%s219 + $0x110] sm:$0xf]
      %v295 = vld [vmem:[%s219 + $0x114] sm:$0xf]
      %v296 = vld [vmem:[%s219 + $0x118] sm:$0xf]
      %v297 = vld [vmem:[%s219 + $0x11c] sm:$0xf]
      %v298 = vld [vmem:[%s1] sm:$0xf]
      %v299 = vld [vmem:[%s1 + $0x4] sm:$0xf]
      %v300 = vld [vmem:[%s1 + $0x8] sm:$0xf]
      %v301 = vld [vmem:[%s1 + $0xc] sm:$0xf]
      %v374 = vunpack.c.l.b16 %v226
      %v375 = vunpack.c.l.b16 %v227
      %v376 = vunpack.c.l.b16 %v228
      %v377 = vunpack.c.l.b16 %v229
      %v378 = vunpack.c.l.b16 %v230
      %v379 = vunpack.c.l.b16 %v231
      %v380 = vunpack.c.l.b16 %v232
      %v381 = vunpack.c.l.b16 %v233
      %v382 = vunpack.c.l.b16 %v234
      %v383 = vunpack.c.l.b16 %v235
      %v384 = vunpack.c.l.b16 %v236
      %v385 = vunpack.c.l.b16 %v237
      %v386 = vunpack.c.l.b16 %v238
      %v387 = vunpack.c.l.b16 %v239
      %v388 = vunpack.c.l.b16 %v240
      %v389 = vunpack.c.l.b16 %v241
      %v390 = vunpack.c.l.b16 %v242
      %v391 = vunpack.c.l.b16 %v243
      %v392 = vunpack.c.l.b16 %v244
      %v393 = vunpack.c.l.b16 %v245
      %v394 = vunpack.c.l.b16 %v246
      %v395 = vunpack.c.l.b16 %v247
      %v396 = vunpack.c.l.b16 %v248
      %v397 = vunpack.c.l.b16 %v249
      %v398 = vunpack.c.l.b16 %v250
      %v399 = vunpack.c.l.b16 %v251
      %v400 = vunpack.c.l.b16 %v252
      %v401 = vunpack.c.l.b16 %v253
      %v402 = vunpack.c.l.b16 %v254
      %v403 = vunpack.c.l.b16 %v255
      %v404 = vunpack.c.l.b16 %v256
      %v405 = vunpack.c.l.b16 %v257
      %v406 = vunpack.c.l.b16 %v258
      %v407 = vunpack.c.l.b16 %v259
      %v408 = vunpack.c.l.b16 %v260
      %v409 = vunpack.c.l.b16 %v261
      %v410 = vunpack.c.l.b16 %v262
      %v411 = vunpack.c.l.b16 %v263
      %v412 = vunpack.c.l.b16 %v264
      %v413 = vunpack.c.l.b16 %v265
      %v414 = vunpack.c.l.b16 %v266
      %v415 = vunpack.c.l.b16 %v267
      %v416 = vunpack.c.l.b16 %v268
      %v417 = vunpack.c.l.b16 %v269
      %v418 = vunpack.c.l.b16 %v270
      %v419 = vunpack.c.l.b16 %v271
      %v420 = vunpack.c.l.b16 %v272
      %v421 = vunpack.c.l.b16 %v273
      %v422 = vunpack.c.l.b16 %v274
      %v423 = vunpack.c.l.b16 %v275
      %v424 = vunpack.c.l.b16 %v276
      %v425 = vunpack.c.l.b16 %v277
      %v426 = vunpack.c.l.b16 %v278
      %v427 = vunpack.c.l.b16 %v279
      %v428 = vunpack.c.l.b16 %v280
      %v429 = vunpack.c.l.b16 %v281
      %v430 = vunpack.c.l.b16 %v282
      %v431 = vunpack.c.l.b16 %v283
      %v432 = vunpack.c.l.b16 %v284
      %v433 = vunpack.c.l.b16 %v285
      %v434 = vunpack.c.l.b16 %v286
      %v435 = vunpack.c.l.b16 %v287
      %v436 = vunpack.c.l.b16 %v288
      %v437 = vunpack.c.l.b16 %v289
      %v438 = vunpack.c.l.b16 %v290
      %v439 = vunpack.c.l.b16 %v291
      %v440 = vunpack.c.l.b16 %v292
      %v441 = vunpack.c.l.b16 %v293
      %v442 = vunpack.c.l.b16 %v294
      %v443 = vunpack.c.l.b16 %v295
      %v444 = vunpack.c.l.b16 %v296
      %v445 = vunpack.c.l.b16 %v297
      %v446 = vpack.c.b16 %v375, %v374
      %v447 = vpack.c.b16 %v377, %v376
      %v448 = vpack.c.b16 %v379, %v378
      %v449 = vpack.c.b16 %v381, %v380
      %v450 = vpack.c.b16 %v383, %v382
      %v451 = vpack.c.b16 %v385, %v384
      %v452 = vpack.c.b16 %v387, %v386
      %v453 = vpack.c.b16 %v389, %v388
      %v454 = vpack.c.b16 %v391, %v390
      %v455 = vpack.c.b16 %v393, %v392
      %v456 = vpack.c.b16 %v395, %v394
      %v457 = vpack.c.b16 %v397, %v396
      %v458 = vpack.c.b16 %v399, %v398
      %v459 = vpack.c.b16 %v401, %v400
      %v460 = vpack.c.b16 %v403, %v402
      %v461 = vpack.c.b16 %v405, %v404
      %v462 = vpack.c.b16 %v407, %v406
      %v463 = vpack.c.b16 %v409, %v408
      %v464 = vpack.c.b16 %v411, %v410
      %v465 = vpack.c.b16 %v413, %v412
      %v466 = vpack.c.b16 %v415, %v414
      %v467 = vpack.c.b16 %v417, %v416
      %v468 = vpack.c.b16 %v419, %v418
      %v469 = vpack.c.b16 %v421, %v420
      %v470 = vpack.c.b16 %v423, %v422
      %v471 = vpack.c.b16 %v425, %v424
      %v472 = vpack.c.b16 %v427, %v426
      %v473 = vpack.c.b16 %v429, %v428
      %v474 = vpack.c.b16 %v431, %v430
      %v475 = vpack.c.b16 %v433, %v432
      %v476 = vpack.c.b16 %v435, %v434
      %v477 = vpack.c.b16 %v437, %v436
      %v478 = vpack.c.b16 %v439, %v438
      %v479 = vpack.c.b16 %v441, %v440
      %v480 = vpack.c.b16 %v443, %v442
      %v481 = vpack.c.b16 %v445, %v444
      %v486 = vunpack.c.l.b16 %v298
      %v487 = vunpack.c.l.b16 %v299
      %v488 = vunpack.c.l.b16 %v300
      %v489 = vunpack.c.l.b16 %v301
      %v490 = vpack.c.b16 %v487, %v486
      %v491 = vpack.c.b16 %v489, %v488
      %vm494 = vcmask 261120
      %v496 = vsel %vm494, %v446, 0
      %v499 = vsel %vm494, %v447, 0
      %v502 = vsel %vm494, %v448, 0
      %v505 = vsel %vm494, %v449, 0
      %v508 = vsel %vm494, %v450, 0
      %v511 = vsel %vm494, %v451, 0
      %v514 = vsel %vm494, %v452, 0
      %v517 = vsel %vm494, %v453, 0
      %v520 = vsel %vm494, %v454, 0
      %v523 = vsel %vm494, %v455, 0
      %v526 = vsel %vm494, %v456, 0
      %v529 = vsel %vm494, %v457, 0
      %v532 = vsel %vm494, %v458, 0
      %v535 = vsel %vm494, %v459, 0
      %v538 = vsel %vm494, %v460, 0
      %v541 = vsel %vm494, %v461, 0
      %v544 = vsel %vm494, %v462, 0
      %v547 = vsel %vm494, %v463, 0
      %v550 = vsel %vm494, %v464, 0
      %v553 = vsel %vm494, %v465, 0
      %v556 = vsel %vm494, %v466, 0
      %v559 = vsel %vm494, %v467, 0
      %v562 = vsel %vm494, %v468, 0
      %v565 = vsel %vm494, %v469, 0
      %v568 = vsel %vm494, %v470, 0
      %v571 = vsel %vm494, %v471, 0
      %v574 = vsel %vm494, %v472, 0
      %v577 = vsel %vm494, %v473, 0
      %v580 = vsel %vm494, %v474, 0
      %v583 = vsel %vm494, %v475, 0
      %v586 = vsel %vm494, %v476, 0
      %v589 = vsel %vm494, %v477, 0
      %v592 = vsel %vm494, %v478, 0
      %v595 = vsel %vm494, %v479, 0
      %v598 = vsel %vm494, %v480, 0
      %v601 = vsel %vm494, %v481, 0
      %603 = vmatprep.subr.bf16.mxu0 0
      %604 = vmatpush1.bf16.msra.mxu0 %v490
      %605 = vmatprep.subr.bf16.mxu0 0
      %606 = vmatpush1.bf16.msra.mxu0 %v491
      %607 = vmatprep.subr.bf16.mxu0 0
      %608 = vmatpush1.bf16.msra.mxu0 0
      %609 = vmatprep.subr.bf16.mxu0 0
      %610 = vmatpush1.bf16.msra.mxu0 0
      %611 = vmatprep.subr.bf16.mxu0 0
      %612 = vmatpush1.bf16.msra.mxu0 0
      %613 = vmatprep.subr.bf16.mxu0 0
      %614 = vmatpush1.bf16.msra.mxu0 0
      %615 = vmatprep.subr.bf16.mxu0 0
      %616 = vmatpush1.bf16.msra.mxu0 0
      %617 = vmatprep.subr.bf16.mxu0 0
      %618 = vmatpush1.bf16.msra.mxu0 0
      %619 = vmatprep.subr.bf16.mxu0 0
      %620 = vmatpush1.bf16.msra.mxu0 0
      %621 = vmatprep.subr.bf16.mxu0 0
      %622 = vmatpush1.bf16.msra.mxu0 0
      %623 = vmatprep.subr.bf16.mxu0 0
      %624 = vmatpush1.bf16.msra.mxu0 0
      %625 = vmatprep.subr.bf16.mxu0 0
      %626 = vmatpush1.bf16.msra.mxu0 0
      %627 = vmatprep.subr.bf16.mxu0 0
      %628 = vmatpush1.bf16.msra.mxu0 0
      %629 = vmatprep.subr.bf16.mxu0 0
      %630 = vmatpush1.bf16.msra.mxu0 0
      %631 = vmatprep.subr.bf16.mxu0 0
      %632 = vmatpush1.bf16.msra.mxu0 0
      %633 = vmatprep.subr.bf16.mxu0 0
      %634 = vmatpush1.bf16.msra.mxu0 0
      %635 = vmatprep.mubr.bf16.mxu0 0
      %636 = vmatmul.mubr.bf16.gmra.mrb[0].mxu0 %v496
      %v637 = vpop.f32.mrb[0].mxu0
      %v638 = vadd.f32 0.0, %v637
      %v639 = vpop.f32.mrb[0].mxu0
      %v640 = vpop.f32.mrb[0].mxu0
      %v641 = vadd.f32 0.0, %v640
      %v642 = vpop.f32.mrb[0].mxu0
      %643 = vmatprep.mubr.bf16.mxu0 0
      %644 = vmatmul.mubr.bf16.gmra.mrb[0].mxu0 %v499
      %v645 = vpop.f32.mrb[0].mxu0
      %v646 = vadd.f32 0.0, %v645
      %v647 = vpop.f32.mrb[0].mxu0
      %v648 = vpop.f32.mrb[0].mxu0
      %v649 = vadd.f32 0.0, %v648
      %v650 = vpop.f32.mrb[0].mxu0
      %651 = vmatprep.mubr.bf16.mxu0 0
      %652 = vmatmul.mubr.bf16.gmra.mrb[0].mxu0 %v502
      %v653 = vpop.f32.mrb[0].mxu0
      %v654 = vadd.f32 0.0, %v653
      %v655 = vpop.f32.mrb[0].mxu0
      %v656 = vpop.f32.mrb[0].mxu0
      %v657 = vadd.f32 0.0, %v656
      %v658 = vpop.f32.mrb[0].mxu0
      %659 = vmatprep.mubr.bf16.mxu0 0
      %660 = vmatmul.mubr.bf16.gmra.mrb[0].mxu0 %v505
      %v661 = vpop.f32.mrb[0].mxu0
      %v662 = vadd.f32 0.0, %v661
      %v663 = vpop.f32.mrb[0].mxu0
      %v664 = vpop.f32.mrb[0].mxu0
      %v665 = vadd.f32 0.0, %v664
      %v666 = vpop.f32.mrb[0].mxu0
      %667 = vmatprep.mubr.bf16.mxu0 0
      %668 = vmatmul.mubr.bf16.gmra.mrb[0].mxu0 %v508
      %v669 = vpop.f32.mrb[0].mxu0
      %v670 = vadd.f32 0.0, %v669
      %v671 = vpop.f32.mrb[0].mxu0
      %v672 = vpop.f32.mrb[0].mxu0
      %v673 = vadd.f32 0.0, %v672
      %v674 = vpop.f32.mrb[0].mxu0
      %675 = vmatprep.mubr.bf16.mxu0 0
      %676 = vmatmul.mubr.bf16.gmra.mrb[0].mxu0 %v511
      %v677 = vpop.f32.mrb[0].mxu0
      %v678 = vadd.f32 0.0, %v677
      %v679 = vpop.f32.mrb[0].mxu0
      %v680 = vpop.f32.mrb[0].mxu0
      %v681 = vadd.f32 0.0, %v680
      %v682 = vpop.f32.mrb[0].mxu0
      %683 = vmatprep.mubr.bf16.mxu0 0
      %684 = vmatmul.mubr.bf16.gmra.mrb[0].mxu0 %v514
      %v685 = vpop.f32.mrb[0].mxu0
      %v686 = vadd.f32 0.0, %v685
      %v687 = vpop.f32.mrb[0].mxu0
      %v688 = vpop.f32.mrb[0].mxu0
      %v689 = vadd.f32 0.0, %v688
      %v690 = vpop.f32.mrb[0].mxu0
      %691 = vmatprep.mubr.bf16.mxu0 0
      %692 = vmatmul.mubr.bf16.gmra.mrb[0].mxu0 %v517
      %v693 = vpop.f32.mrb[0].mxu0
      %v694 = vadd.f32 0.0, %v693
      %v695 = vpop.f32.mrb[0].mxu0
      %v696 = vpop.f32.mrb[0].mxu0
      %v697 = vadd.f32 0.0, %v696
      %v698 = vpop.f32.mrb[0].mxu0
      %699 = vmatprep.mubr.bf16.mxu0 0
      %700 = vmatmul.mubr.bf16.gmra.mrb[0].mxu0 %v520
      %v701 = vpop.f32.mrb[0].mxu0
      %v702 = vadd.f32 0.0, %v701
      %v703 = vpop.f32.mrb[0].mxu0
      %v704 = vpop.f32.mrb[0].mxu0
      %v705 = vadd.f32 0.0, %v704
      %v706 = vpop.f32.mrb[0].mxu0
      %707 = vmatprep.mubr.bf16.mxu0 0
      %708 = vmatmul.mubr.bf16.gmra.mrb[0].mxu0 %v523
      %v709 = vpop.f32.mrb[0].mxu0
      %v710 = vadd.f32 0.0, %v709
      %v711 = vpop.f32.mrb[0].mxu0
      %v712 = vpop.f32.mrb[0].mxu0
      %v713 = vadd.f32 0.0, %v712
      %v714 = vpop.f32.mrb[0].mxu0
      %715 = vmatprep.mubr.bf16.mxu0 0
      %716 = vmatmul.mubr.bf16.gmra.mrb[0].mxu0 %v526
      %v717 = vpop.f32.mrb[0].mxu0
      %v718 = vadd.f32 0.0, %v717
      %v719 = vpop.f32.mrb[0].mxu0
      %v720 = vpop.f32.mrb[0].mxu0
      %v721 = vadd.f32 0.0, %v720
      %v722 = vpop.f32.mrb[0].mxu0
      %723 = vmatprep.mubr.bf16.mxu0 0
      %724 = vmatmul.mubr.bf16.gmra.mrb[0].mxu0 %v529
      %v725 = vpop.f32.mrb[0].mxu0
      %v726 = vadd.f32 0.0, %v725
      %v727 = vpop.f32.mrb[0].mxu0
      %v728 = vpop.f32.mrb[0].mxu0
      %v729 = vadd.f32 0.0, %v728
      %v730 = vpop.f32.mrb[0].mxu0
      %731 = vmatprep.mubr.bf16.mxu0 0
      %732 = vmatmul.mubr.bf16.gmra.mrb[0].mxu0 %v532
      %v733 = vpop.f32.mrb[0].mxu0
      %v734 = vadd.f32 0.0, %v733
      %v735 = vpop.f32.mrb[0].mxu0
      %v736 = vpop.f32.mrb[0].mxu0
      %v737 = vadd.f32 0.0, %v736
      %v738 = vpop.f32.mrb[0].mxu0
      %739 = vmatprep.mubr.bf16.mxu0 0
      %740 = vmatmul.mubr.bf16.gmra.mrb[0].mxu0 %v535
      %v741 = vpop.f32.mrb[0].mxu0
      %v742 = vadd.f32 0.0, %v741
      %v743 = vpop.f32.mrb[0].mxu0
      %v744 = vpop.f32.mrb[0].mxu0
      %v745 = vadd.f32 0.0, %v744
      %v746 = vpop.f32.mrb[0].mxu0
      %747 = vmatprep.mubr.bf16.mxu0 0
      %748 = vmatmul.mubr.bf16.gmra.mrb[0].mxu0 %v538
      %v749 = vpop.f32.mrb[0].mxu0
      %v750 = vadd.f32 0.0, %v749
      %v751 = vpop.f32.mrb[0].mxu0
      %v752 = vpop.f32.mrb[0].mxu0
      %v753 = vadd.f32 0.0, %v752
      %v754 = vpop.f32.mrb[0].mxu0
      %755 = vmatprep.mubr.bf16.mxu0 0
      %756 = vmatmul.mubr.bf16.gmra.mrb[0].mxu0 %v541
      %v757 = vpop.f32.mrb[0].mxu0
      %v758 = vadd.f32 0.0, %v757
      %v759 = vpop.f32.mrb[0].mxu0
      %v760 = vpop.f32.mrb[0].mxu0
      %v761 = vadd.f32 0.0, %v760
      %v762 = vpop.f32.mrb[0].mxu0
      %763 = vmatprep.mubr.bf16.mxu0 0
      %764 = vmatmul.mubr.bf16.gmra.mrb[0].mxu0 %v544
      %v765 = vpop.f32.mrb[0].mxu0
      %v766 = vadd.f32 0.0, %v765
      %v767 = vpop.f32.mrb[0].mxu0
      %v768 = vpop.f32.mrb[0].mxu0
      %v769 = vadd.f32 0.0, %v768
      %v770 = vpop.f32.mrb[0].mxu0
      %771 = vmatprep.mubr.bf16.mxu0 0
      %772 = vmatmul.mubr.bf16.gmra.mrb[0].mxu0 %v547
      %v773 = vpop.f32.mrb[0].mxu0
      %v774 = vadd.f32 0.0, %v773
      %v775 = vpop.f32.mrb[0].mxu0
      %v776 = vpop.f32.mrb[0].mxu0
      %v777 = vadd.f32 0.0, %v776
      %v778 = vpop.f32.mrb[0].mxu0
      %779 = vmatprep.mubr.bf16.mxu0 0
      %780 = vmatmul.mubr.bf16.gmra.mrb[0].mxu0 %v550
      %v781 = vpop.f32.mrb[0].mxu0
      %v782 = vadd.f32 0.0, %v781
      %v783 = vpop.f32.mrb[0].mxu0
      %v784 = vpop.f32.mrb[0].mxu0
      %v785 = vadd.f32 0.0, %v784
      %v786 = vpop.f32.mrb[0].mxu0
      %787 = vmatprep.mubr.bf16.mxu0 0
      %788 = vmatmul.mubr.bf16.gmra.mrb[0].mxu0 %v553
      %v789 = vpop.f32.mrb[0].mxu0
      %v790 = vadd.f32 0.0, %v789
      %v791 = vpop.f32.mrb[0].mxu0
      %v792 = vpop.f32.mrb[0].mxu0
      %v793 = vadd.f32 0.0, %v792
      %v794 = vpop.f32.mrb[0].mxu0
      %795 = vmatprep.mubr.bf16.mxu0 0
      %796 = vmatmul.mubr.bf16.gmra.mrb[0].mxu0 %v556
      %v797 = vpop.f32.mrb[0].mxu0
      %v798 = vadd.f32 0.0, %v797
      %v799 = vpop.f32.mrb[0].mxu0
      %v800 = vpop.f32.mrb[0].mxu0
      %v801 = vadd.f32 0.0, %v800
      %v802 = vpop.f32.mrb[0].mxu0
      %803 = vmatprep.mubr.bf16.mxu0 0
      %804 = vmatmul.mubr.bf16.gmra.mrb[0].mxu0 %v559
      %v805 = vpop.f32.mrb[0].mxu0
      %v806 = vadd.f32 0.0, %v805
      %v807 = vpop.f32.mrb[0].mxu0
      %v808 = vpop.f32.mrb[0].mxu0
      %v809 = vadd.f32 0.0, %v808
      %v810 = vpop.f32.mrb[0].mxu0
      %811 = vmatprep.mubr.bf16.mxu0 0
      %812 = vmatmul.mubr.bf16.gmra.mrb[0].mxu0 %v562
      %v813 = vpop.f32.mrb[0].mxu0
      %v814 = vadd.f32 0.0, %v813
      %v815 = vpop.f32.mrb[0].mxu0
      %v816 = vpop.f32.mrb[0].mxu0
      %v817 = vadd.f32 0.0, %v816
      %v818 = vpop.f32.mrb[0].mxu0
      %819 = vmatprep.mubr.bf16.mxu0 0
      %820 = vmatmul.mubr.bf16.gmra.mrb[0].mxu0 %v565
      %v821 = vpop.f32.mrb[0].mxu0
      %v822 = vadd.f32 0.0, %v821
      %v823 = vpop.f32.mrb[0].mxu0
      %v824 = vpop.f32.mrb[0].mxu0
      %v825 = vadd.f32 0.0, %v824
      %v826 = vpop.f32.mrb[0].mxu0
      %827 = vmatprep.mubr.bf16.mxu0 0
      %828 = vmatmul.mubr.bf16.gmra.mrb[0].mxu0 %v568
      %v829 = vpop.f32.mrb[0].mxu0
      %v830 = vadd.f32 0.0, %v829
      %v831 = vpop.f32.mrb[0].mxu0
      %v832 = vpop.f32.mrb[0].mxu0
      %v833 = vadd.f32 0.0, %v832
      %v834 = vpop.f32.mrb[0].mxu0
      %835 = vmatprep.mubr.bf16.mxu0 0
      %836 = vmatmul.mubr.bf16.gmra.mrb[0].mxu0 %v571
      %v837 = vpop.f32.mrb[0].mxu0
      %v838 = vadd.f32 0.0, %v837
      %v839 = vpop.f32.mrb[0].mxu0
      %v840 = vpop.f32.mrb[0].mxu0
      %v841 = vadd.f32 0.0, %v840
      %v842 = vpop.f32.mrb[0].mxu0
      %843 = vmatprep.mubr.bf16.mxu0 0
      %844 = vmatmul.mubr.bf16.gmra.mrb[0].mxu0 %v574
      %v845 = vpop.f32.mrb[0].mxu0
      %v846 = vadd.f32 0.0, %v845
      %v847 = vpop.f32.mrb[0].mxu0
      %v848 = vpop.f32.mrb[0].mxu0
      %v849 = vadd.f32 0.0, %v848
      %v850 = vpop.f32.mrb[0].mxu0
      %851 = vmatprep.mubr.bf16.mxu0 0
      %852 = vmatmul.mubr.bf16.gmra.mrb[0].mxu0 %v577
      %v853 = vpop.f32.mrb[0].mxu0
      %v854 = vadd.f32 0.0, %v853
      %v855 = vpop.f32.mrb[0].mxu0
      %v856 = vpop.f32.mrb[0].mxu0
      %v857 = vadd.f32 0.0, %v856
      %v858 = vpop.f32.mrb[0].mxu0
      %859 = vmatprep.mubr.bf16.mxu0 0
      %860 = vmatmul.mubr.bf16.gmra.mrb[0].mxu0 %v580
      %v861 = vpop.f32.mrb[0].mxu0
      %v862 = vadd.f32 0.0, %v861
      %v863 = vpop.f32.mrb[0].mxu0
      %v864 = vpop.f32.mrb[0].mxu0
      %v865 = vadd.f32 0.0, %v864
      %v866 = vpop.f32.mrb[0].mxu0
      %867 = vmatprep.mubr.bf16.mxu0 0
      %868 = vmatmul.mubr.bf16.gmra.mrb[0].mxu0 %v583
      %v869 = vpop.f32.mrb[0].mxu0
      %v870 = vadd.f32 0.0, %v869
      %v871 = vpop.f32.mrb[0].mxu0
      %v872 = vpop.f32.mrb[0].mxu0
      %v873 = vadd.f32 0.0, %v872
      %v874 = vpop.f32.mrb[0].mxu0
      %875 = vmatprep.mubr.bf16.mxu0 0
      %876 = vmatmul.mubr.bf16.gmra.mrb[0].mxu0 %v586
      %v877 = vpop.f32.mrb[0].mxu0
      %v878 = vadd.f32 0.0, %v877
      %v879 = vpop.f32.mrb[0].mxu0
      %v880 = vpop.f32.mrb[0].mxu0
      %v881 = vadd.f32 0.0, %v880
      %v882 = vpop.f32.mrb[0].mxu0
      %883 = vmatprep.mubr.bf16.mxu0 0
      %884 = vmatmul.mubr.bf16.gmra.mrb[0].mxu0 %v589
      %v885 = vpop.f32.mrb[0].mxu0
      %v886 = vadd.f32 0.0, %v885
      %v887 = vpop.f32.mrb[0].mxu0
      %v888 = vpop.f32.mrb[0].mxu0
      %v889 = vadd.f32 0.0, %v888
      %v890 = vpop.f32.mrb[0].mxu0
      %891 = vmatprep.mubr.bf16.mxu0 0
      %892 = vmatmul.mubr.bf16.gmra.mrb[0].mxu0 %v592
      %v893 = vpop.f32.mrb[0].mxu0
      %v894 = vadd.f32 0.0, %v893
      %v895 = vpop.f32.mrb[0].mxu0
      %v896 = vpop.f32.mrb[0].mxu0
      %v897 = vadd.f32 0.0, %v896
      %v898 = vpop.f32.mrb[0].mxu0
      %899 = vmatprep.mubr.bf16.mxu0 0
      %900 = vmatmul.mubr.bf16.gmra.mrb[0].mxu0 %v595
      %v901 = vpop.f32.mrb[0].mxu0
      %v902 = vadd.f32 0.0, %v901
      %v903 = vpop.f32.mrb[0].mxu0
      %v904 = vpop.f32.mrb[0].mxu0
      %v905 = vadd.f32 0.0, %v904
      %v906 = vpop.f32.mrb[0].mxu0
      %907 = vmatprep.mubr.bf16.mxu0 0
      %908 = vmatmul.mubr.bf16.gmra.mrb[0].mxu0 %v598
      %v909 = vpop.f32.mrb[0].mxu0
      %v910 = vadd.f32 0.0, %v909
      %v911 = vpop.f32.mrb[0].mxu0
      %v912 = vpop.f32.mrb[0].mxu0
      %v913 = vadd.f32 0.0, %v912
      %v914 = vpop.f32.mrb[0].mxu0
      %915 = vmatprep.mubr.bf16.mxu0 0
      %916 = vmatmul.mubr.bf16.gmra.mrb[0].mxu0 %v601
      %v917 = vpop.f32.mrb[0].mxu0
      %v918 = vadd.f32 0.0, %v917
      %v919 = vpop.f32.mrb[0].mxu0
      %v920 = vpop.f32.mrb[0].mxu0
      %v921 = vadd.f32 0.0, %v920
      %v922 = vpop.f32.mrb[0].mxu0
      %923 = vdwg.mxu0
      %v924 = vmax.f32 %v638, %v710
      %v925 = vmax.f32 %v641, %v713
      %v926 = vmax.f32 %v646, %v718
      %v927 = vmax.f32 %v649, %v721
      %v928 = vmax.f32 %v654, %v726
      %v929 = vmax.f32 %v657, %v729
      %v930 = vmax.f32 %v662, %v734
      %v931 = vmax.f32 %v665, %v737
      %v932 = vmax.f32 %v670, %v742
      %v933 = vmax.f32 %v673, %v745
      %v934 = vmax.f32 %v678, %v750
      %v935 = vmax.f32 %v681, %v753
      %v936 = vmax.f32 %v686, %v758
      %v937 = vmax.f32 %v689, %v761
      %v938 = vmax.f32 %v694, %v766
      %v939 = vmax.f32 %v697, %v769
      %v940 = vmax.f32 %v702, %v774
      %v941 = vmax.f32 %v705, %v777
      %v942 = vmax.f32 %v782, %v854
      %v943 = vmax.f32 %v785, %v857
      %v944 = vmax.f32 %v790, %v862
      %v945 = vmax.f32 %v793, %v865
      %v946 = vmax.f32 %v798, %v870
      %v947 = vmax.f32 %v801, %v873
      %v948 = vmax.f32 %v806, %v878
      %v949 = vmax.f32 %v809, %v881
      %v950 = vmax.f32 %v814, %v886
      %v951 = vmax.f32 %v817, %v889
      %v952 = vmax.f32 %v822, %v894
      %v953 = vmax.f32 %v825, %v897
      %v954 = vmax.f32 %v830, %v902
      %v955 = vmax.f32 %v833, %v905
      %v956 = vmax.f32 %v838, %v910
      %v957 = vmax.f32 %v841, %v913
      %v958 = vmax.f32 %v846, %v918
      %v959 = vmax.f32 %v849, %v921
      %v960 = vmax.f32 %v924, %v942
      %v961 = vmax.f32 %v925, %v943
      %v962 = vmax.f32 %v926, %v944
      %v963 = vmax.f32 %v927, %v945
      %v964 = vmax.f32 %v928, %v946
      %v965 = vmax.f32 %v929, %v947
      %v966 = vmax.f32 %v930, %v948
      %v967 = vmax.f32 %v931, %v949
      %v968 = vmax.f32 %v932, %v950
      %v969 = vmax.f32 %v933, %v951
      %v970 = vmax.f32 %v934, %v952
      %v971 = vmax.f32 %v935, %v953
      %v972 = vmax.f32 %v936, %v954
      %v973 = vmax.f32 %v937, %v955
      %v974 = vmax.f32 %v938, %v956
      %v975 = vmax.f32 %v939, %v957
      %v976 = vmax.f32 %v940, %v958
      %v977 = vmax.f32 %v941, %v959
      %v978 = vld [vmem:[%s2] sm:$0x1]
      %v980 = vlaneseq
      %v981 = vshrl.u32 %v980, 7
      %v982 = vsub.s32 0, %v981
      %v983 = vrot.slane %v978, %v982
      %v985 = vadd.f32 %v960, %v983
      %v986 = vadd.f32 %v961, %v983
      %v987 = vadd.f32 %v962, %v983
      %v988 = vadd.f32 %v963, %v983
      %v989 = vadd.f32 %v964, %v983
      %v990 = vadd.f32 %v965, %v983
      %v991 = vadd.f32 %v966, %v983
      %v992 = vadd.f32 %v967, %v983
      %v993 = vadd.f32 %v968, %v983
      %v994 = vadd.f32 %v969, %v983
      %v995 = vadd.f32 %v970, %v983
      %v996 = vadd.f32 %v971, %v983
      %v997 = vadd.f32 %v972, %v983
      %v998 = vadd.f32 %v973, %v983
      %v999 = vadd.f32 %v974, %v983
      %v1000 = vadd.f32 %v975, %v983
      %v1001 = vadd.f32 %v976, %v983
      %v1002 = vadd.f32 %v977, %v983
      %v1003 = vmax.f32 %v985, 0.0
      %v1004 = vmax.f32 %v986, 0.0
      %v1005 = vmax.f32 %v987, 0.0
      %v1006 = vmax.f32 %v988, 0.0
      %v1007 = vmax.f32 %v989, 0.0
      %v1008 = vmax.f32 %v990, 0.0
      %v1009 = vmax.f32 %v991, 0.0
      %v1010 = vmax.f32 %v992, 0.0
      %v1011 = vmax.f32 %v993, 0.0
      %v1012 = vmax.f32 %v994, 0.0
      %v1013 = vmax.f32 %v995, 0.0
      %v1014 = vmax.f32 %v996, 0.0
      %v1015 = vmax.f32 %v997, 0.0
      %v1016 = vmax.f32 %v998, 0.0
      %v1017 = vmax.f32 %v999, 0.0
      %v1018 = vmax.f32 %v1000, 0.0
      %v1019 = vmax.f32 %v1001, 0.0
      %v1020 = vmax.f32 %v1002, 0.0
      %v1039 = vcombine.high %v1003, %v1003
      %v1040 = vcombine.high %v1004, %v1004
      %v1041 = vcombine.high %v1005, %v1005
      %v1042 = vcombine.high %v1006, %v1006
      %v1043 = vcombine.high %v1007, %v1007
      %v1044 = vcombine.high %v1008, %v1008
      %v1045 = vcombine.high %v1009, %v1009
      %v1046 = vcombine.high %v1010, %v1010
      %v1047 = vcombine.high %v1011, %v1011
      %v1048 = vcombine.high %v1012, %v1012
      %v1049 = vcombine.high %v1013, %v1013
      %v1050 = vcombine.high %v1014, %v1014
      %v1051 = vcombine.high %v1015, %v1015
      %v1052 = vcombine.high %v1016, %v1016
      %v1053 = vcombine.high %v1017, %v1017
      %v1054 = vcombine.high %v1018, %v1018
      %v1055 = vcombine.high %v1019, %v1019
      %v1056 = vcombine.high %v1020, %v1020
      %v1058 = vunpack.c.l.s4 1983009808
      %v1059 = vunpack.c.0.s8 %v1058
      %v1060 = vlaneseq
      %v1061 = vshrl.u32 %v1060, 7
      %v1062 = vsub.s32 %v1059, %v1061
      %v1063 = vrot.slane %v1003, %v1062
      %v1064 = vcombine.high %v1063, %v1063
      %v1066 = vunpack.c.l.s4 1983009808
      %v1067 = vunpack.c.0.s8 %v1066
      %v1068 = vlaneseq
      %v1069 = vshrl.u32 %v1068, 7
      %v1070 = vsub.s32 %v1067, %v1069
      %v1071 = vrot.slane %v1039, %v1070
      %v1072 = vcombine.high %v1071, %v1071
      %v1074 = vunpack.c.l.s4 1983009808
      %v1075 = vunpack.c.0.s8 %v1074
      %v1076 = vlaneseq
      %v1077 = vshrl.u32 %v1076, 7
      %v1078 = vsub.s32 %v1075, %v1077
      %v1079 = vrot.slane %v1004, %v1078
      %v1081 = vunpack.c.l.s4 1983009808
      %v1082 = vunpack.c.0.s8 %v1081
      %v1083 = vlaneseq
      %v1084 = vshrl.u32 %v1083, 7
      %v1085 = vsub.s32 %v1082, %v1084
      %v1086 = vrot.slane %v1040, %v1085
      %v1087 = vcombine.high %v1086, %v1086
      %v1089 = vunpack.c.l.s4 1983009808
      %v1090 = vunpack.c.0.s8 %v1089
      %v1091 = vlaneseq
      %v1092 = vshrl.u32 %v1091, 7
      %v1093 = vsub.s32 %v1090, %v1092
      %v1094 = vrot.slane %v1005, %v1093
      %v1095 = vcombine.high %v1094, %v1094
      %v1097 = vunpack.c.l.s4 1983009808
      %v1098 = vunpack.c.0.s8 %v1097
      %v1099 = vlaneseq
      %v1100 = vshrl.u32 %v1099, 7
      %v1101 = vsub.s32 %v1098, %v1100
      %v1102 = vrot.slane %v1041, %v1101
      %v1104 = vunpack.c.l.s4 1983009808
      %v1105 = vunpack.c.0.s8 %v1104
      %v1106 = vlaneseq
      %v1107 = vshrl.u32 %v1106, 7
      %v1108 = vsub.s32 %v1105, %v1107
      %v1109 = vrot.slane %v1006, %v1108
      %v1110 = vcombine.high %v1109, %v1109
      %v1112 = vunpack.c.l.s4 1983009808
      %v1113 = vunpack.c.0.s8 %v1112
      %v1114 = vlaneseq
      %v1115 = vshrl.u32 %v1114, 7
      %v1116 = vsub.s32 %v1113, %v1115
      %v1117 = vrot.slane %v1042, %v1116
      %v1118 = vcombine.high %v1117, %v1117
      %v1120 = vunpack.c.l.s4 1983009808
      %v1121 = vunpack.c.0.s8 %v1120
      %v1122 = vlaneseq
      %v1123 = vshrl.u32 %v1122, 7
      %v1124 = vsub.s32 %v1121, %v1123
      %v1125 = vrot.slane %v1007, %v1124
      %v1127 = vunpack.c.l.s4 1983009808
      %v1128 = vunpack.c.0.s8 %v1127
      %v1129 = vlaneseq
      %v1130 = vshrl.u32 %v1129, 7
      %v1131 = vsub.s32 %v1128, %v1130
      %v1132 = vrot.slane %v1043, %v1131
      %v1133 = vcombine.high %v1132, %v1132
      %v1135 = vunpack.c.l.s4 1983009808
      %v1136 = vunpack.c.0.s8 %v1135
      %v1137 = vlaneseq
      %v1138 = vshrl.u32 %v1137, 7
      %v1139 = vsub.s32 %v1136, %v1138
      %v1140 = vrot.slane %v1008, %v1139
      %v1141 = vcombine.high %v1140, %v1140
      %v1143 = vunpack.c.l.s4 1983009808
      %v1144 = vunpack.c.0.s8 %v1143
      %v1145 = vlaneseq
      %v1146 = vshrl.u32 %v1145, 7
      %v1147 = vsub.s32 %v1144, %v1146
      %v1148 = vrot.slane %v1044, %v1147
      %v1150 = vunpack.c.l.s4 1983009808
      %v1151 = vunpack.c.0.s8 %v1150
      %v1152 = vlaneseq
      %v1153 = vshrl.u32 %v1152, 7
      %v1154 = vsub.s32 %v1151, %v1153
      %v1155 = vrot.slane %v1009, %v1154
      %v1156 = vcombine.high %v1155, %v1155
      %v1158 = vunpack.c.l.s4 1983009808
      %v1159 = vunpack.c.0.s8 %v1158
      %v1160 = vlaneseq
      %v1161 = vshrl.u32 %v1160, 7
      %v1162 = vsub.s32 %v1159, %v1161
      %v1163 = vrot.slane %v1045, %v1162
      %v1164 = vcombine.high %v1163, %v1163
      %v1166 = vunpack.c.l.s4 1983009808
      %v1167 = vunpack.c.0.s8 %v1166
      %v1168 = vlaneseq
      %v1169 = vshrl.u32 %v1168, 7
      %v1170 = vsub.s32 %v1167, %v1169
      %v1171 = vrot.slane %v1010, %v1170
      %v1173 = vunpack.c.l.s4 1983009808
      %v1174 = vunpack.c.0.s8 %v1173
      %v1175 = vlaneseq
      %v1176 = vshrl.u32 %v1175, 7
      %v1177 = vsub.s32 %v1174, %v1176
      %v1178 = vrot.slane %v1046, %v1177
      %v1179 = vcombine.high %v1178, %v1178
      %v1181 = vunpack.c.l.s4 1983009808
      %v1182 = vunpack.c.0.s8 %v1181
      %v1183 = vlaneseq
      %v1184 = vshrl.u32 %v1183, 7
      %v1185 = vsub.s32 %v1182, %v1184
      %v1186 = vrot.slane %v1011, %v1185
      %v1187 = vcombine.high %v1186, %v1186
      %v1189 = vunpack.c.l.s4 1983009808
      %v1190 = vunpack.c.0.s8 %v1189
      %v1191 = vlaneseq
      %v1192 = vshrl.u32 %v1191, 7
      %v1193 = vsub.s32 %v1190, %v1192
      %v1194 = vrot.slane %v1047, %v1193
      %v1196 = vunpack.c.l.s4 1983009808
      %v1197 = vunpack.c.0.s8 %v1196
      %v1198 = vlaneseq
      %v1199 = vshrl.u32 %v1198, 7
      %v1200 = vsub.s32 %v1197, %v1199
      %v1201 = vrot.slane %v1012, %v1200
      %v1202 = vcombine.high %v1201, %v1201
      %v1204 = vunpack.c.l.s4 1983009808
      %v1205 = vunpack.c.0.s8 %v1204
      %v1206 = vlaneseq
      %v1207 = vshrl.u32 %v1206, 7
      %v1208 = vsub.s32 %v1205, %v1207
      %v1209 = vrot.slane %v1048, %v1208
      %v1210 = vcombine.high %v1209, %v1209
      %v1212 = vunpack.c.l.s4 1983009808
      %v1213 = vunpack.c.0.s8 %v1212
      %v1214 = vlaneseq
      %v1215 = vshrl.u32 %v1214, 7
      %v1216 = vsub.s32 %v1213, %v1215
      %v1217 = vrot.slane %v1013, %v1216
      %v1219 = vunpack.c.l.s4 1983009808
      %v1220 = vunpack.c.0.s8 %v1219
      %v1221 = vlaneseq
      %v1222 = vshrl.u32 %v1221, 7
      %v1223 = vsub.s32 %v1220, %v1222
      %v1224 = vrot.slane %v1049, %v1223
      %v1225 = vcombine.high %v1224, %v1224
      %v1227 = vunpack.c.l.s4 1983009808
      %v1228 = vunpack.c.0.s8 %v1227
      %v1229 = vlaneseq
      %v1230 = vshrl.u32 %v1229, 7
      %v1231 = vsub.s32 %v1228, %v1230
      %v1232 = vrot.slane %v1014, %v1231
      %v1233 = vcombine.high %v1232, %v1232
      %v1235 = vunpack.c.l.s4 1983009808
      %v1236 = vunpack.c.0.s8 %v1235
      %v1237 = vlaneseq
      %v1238 = vshrl.u32 %v1237, 7
      %v1239 = vsub.s32 %v1236, %v1238
      %v1240 = vrot.slane %v1050, %v1239
      %v1242 = vunpack.c.l.s4 1983009808
      %v1243 = vunpack.c.0.s8 %v1242
      %v1244 = vlaneseq
      %v1245 = vshrl.u32 %v1244, 7
      %v1246 = vsub.s32 %v1243, %v1245
      %v1247 = vrot.slane %v1015, %v1246
      %v1248 = vcombine.high %v1247, %v1247
      %v1250 = vunpack.c.l.s4 1983009808
      %v1251 = vunpack.c.0.s8 %v1250
      %v1252 = vlaneseq
      %v1253 = vshrl.u32 %v1252, 7
      %v1254 = vsub.s32 %v1251, %v1253
      %v1255 = vrot.slane %v1051, %v1254
      %v1256 = vcombine.high %v1255, %v1255
      %v1258 = vunpack.c.l.s4 1983009808
      %v1259 = vunpack.c.0.s8 %v1258
      %v1260 = vlaneseq
      %v1261 = vshrl.u32 %v1260, 7
      %v1262 = vsub.s32 %v1259, %v1261
      %v1263 = vrot.slane %v1016, %v1262
      %v1265 = vunpack.c.l.s4 1983009808
      %v1266 = vunpack.c.0.s8 %v1265
      %v1267 = vlaneseq
      %v1268 = vshrl.u32 %v1267, 7
      %v1269 = vsub.s32 %v1266, %v1268
      %v1270 = vrot.slane %v1052, %v1269
      %v1271 = vcombine.high %v1270, %v1270
      %v1273 = vunpack.c.l.s4 1983009808
      %v1274 = vunpack.c.0.s8 %v1273
      %v1275 = vlaneseq
      %v1276 = vshrl.u32 %v1275, 7
      %v1277 = vsub.s32 %v1274, %v1276
      %v1278 = vrot.slane %v1017, %v1277
      %v1279 = vcombine.high %v1278, %v1278
      %v1281 = vunpack.c.l.s4 1983009808
      %v1282 = vunpack.c.0.s8 %v1281
      %v1283 = vlaneseq
      %v1284 = vshrl.u32 %v1283, 7
      %v1285 = vsub.s32 %v1282, %v1284
      %v1286 = vrot.slane %v1053, %v1285
      %v1287 = vcombine.low %v1063, %v1064
      %v1288 = vcombine.low %v1071, %v1072
      %v1290 = vunpack.c.l.s4 1983009808
      %v1291 = vunpack.c.0.s8 %v1290
      %v1292 = vlaneseq
      %v1293 = vshrl.u32 %v1292, 7
      %v1294 = vsub.s32 %v1291, %v1293
      %v1295 = vrot.slane %v1287, %v1294
      %v1297 = vunpack.c.l.s4 1983009808
      %v1298 = vunpack.c.0.s8 %v1297
      %v1299 = vlaneseq
      %v1300 = vshrl.u32 %v1299, 7
      %v1301 = vsub.s32 %v1298, %v1300
      %v1302 = vrot.slane %v1288, %v1301
      %v1303 = vcombine.low %v1295, %v1302
      %v1304 = vcombine.low %v1079, %v1086
      %v1305 = vcombine.low %v1087, %v1094
      %v1307 = vunpack.c.l.s4 1983009808
      %v1308 = vunpack.c.0.s8 %v1307
      %v1309 = vlaneseq
      %v1310 = vshrl.u32 %v1309, 7
      %v1311 = vsub.s32 %v1308, %v1310
      %v1312 = vrot.slane %v1304, %v1311
      %v1314 = vunpack.c.l.s4 1983009808
      %v1315 = vunpack.c.0.s8 %v1314
      %v1316 = vlaneseq
      %v1317 = vshrl.u32 %v1316, 7
      %v1318 = vsub.s32 %v1315, %v1317
      %v1319 = vrot.slane %v1305, %v1318
      %v1320 = vcombine.low %v1312, %v1319
      %v1321 = vcombine.low %v1095, %v1102
      %v1322 = vcombine.low %v1109, %v1110
      %v1324 = vunpack.c.l.s4 1983009808
      %v1325 = vunpack.c.0.s8 %v1324
      %v1326 = vlaneseq
      %v1327 = vshrl.u32 %v1326, 7
      %v1328 = vsub.s32 %v1325, %v1327
      %v1329 = vrot.slane %v1321, %v1328
      %v1331 = vunpack.c.l.s4 1983009808
      %v1332 = vunpack.c.0.s8 %v1331
      %v1333 = vlaneseq
      %v1334 = vshrl.u32 %v1333, 7
      %v1335 = vsub.s32 %v1332, %v1334
      %v1336 = vrot.slane %v1322, %v1335
      %v1337 = vcombine.low %v1329, %v1336
      %v1338 = vcombine.low %v1117, %v1118
      %v1339 = vcombine.low %v1125, %v1132
      %v1341 = vunpack.c.l.s4 1983009808
      %v1342 = vunpack.c.0.s8 %v1341
      %v1343 = vlaneseq
      %v1344 = vshrl.u32 %v1343, 7
      %v1345 = vsub.s32 %v1342, %v1344
      %v1346 = vrot.slane %v1338, %v1345
      %v1348 = vunpack.c.l.s4 1983009808
      %v1349 = vunpack.c.0.s8 %v1348
      %v1350 = vlaneseq
      %v1351 = vshrl.u32 %v1350, 7
      %v1352 = vsub.s32 %v1349, %v1351
      %v1353 = vrot.slane %v1339, %v1352
      %v1354 = vcombine.low %v1346, %v1353
      %v1355 = vcombine.low %v1133, %v1140
      %v1356 = vcombine.low %v1141, %v1148
      %v1358 = vunpack.c.l.s4 1983009808
      %v1359 = vunpack.c.0.s8 %v1358
      %v1360 = vlaneseq
      %v1361 = vshrl.u32 %v1360, 7
      %v1362 = vsub.s32 %v1359, %v1361
      %v1363 = vrot.slane %v1355, %v1362
      %v1365 = vunpack.c.l.s4 1983009808
      %v1366 = vunpack.c.0.s8 %v1365
      %v1367 = vlaneseq
      %v1368 = vshrl.u32 %v1367, 7
      %v1369 = vsub.s32 %v1366, %v1368
      %v1370 = vrot.slane %v1356, %v1369
      %v1371 = vcombine.low %v1363, %v1370
      %v1372 = vcombine.low %v1155, %v1156
      %v1373 = vcombine.low %v1163, %v1164
      %v1375 = vunpack.c.l.s4 1983009808
      %v1376 = vunpack.c.0.s8 %v1375
      %v1377 = vlaneseq
      %v1378 = vshrl.u32 %v1377, 7
      %v1379 = vsub.s32 %v1376, %v1378
      %v1380 = vrot.slane %v1372, %v1379
      %v1382 = vunpack.c.l.s4 1983009808
      %v1383 = vunpack.c.0.s8 %v1382
      %v1384 = vlaneseq
      %v1385 = vshrl.u32 %v1384, 7
      %v1386 = vsub.s32 %v1383, %v1385
      %v1387 = vrot.slane %v1373, %v1386
      %v1388 = vcombine.low %v1380, %v1387
      %v1389 = vcombine.low %v1171, %v1178
      %v1390 = vcombine.low %v1179, %v1186
      %v1392 = vunpack.c.l.s4 1983009808
      %v1393 = vunpack.c.0.s8 %v1392
      %v1394 = vlaneseq
      %v1395 = vshrl.u32 %v1394, 7
      %v1396 = vsub.s32 %v1393, %v1395
      %v1397 = vrot.slane %v1389, %v1396
      %v1399 = vunpack.c.l.s4 1983009808
      %v1400 = vunpack.c.0.s8 %v1399
      %v1401 = vlaneseq
      %v1402 = vshrl.u32 %v1401, 7
      %v1403 = vsub.s32 %v1400, %v1402
      %v1404 = vrot.slane %v1390, %v1403
      %v1405 = vcombine.low %v1397, %v1404
      %v1406 = vcombine.low %v1187, %v1194
      %v1407 = vcombine.low %v1201, %v1202
      %v1409 = vunpack.c.l.s4 1983009808
      %v1410 = vunpack.c.0.s8 %v1409
      %v1411 = vlaneseq
      %v1412 = vshrl.u32 %v1411, 7
      %v1413 = vsub.s32 %v1410, %v1412
      %v1414 = vrot.slane %v1406, %v1413
      %v1416 = vunpack.c.l.s4 1983009808
      %v1417 = vunpack.c.0.s8 %v1416
      %v1418 = vlaneseq
      %v1419 = vshrl.u32 %v1418, 7
      %v1420 = vsub.s32 %v1417, %v1419
      %v1421 = vrot.slane %v1407, %v1420
      %v1422 = vcombine.low %v1414, %v1421
      %v1423 = vcombine.low %v1209, %v1210
      %v1424 = vcombine.low %v1217, %v1224
      %v1426 = vunpack.c.l.s4 1983009808
      %v1427 = vunpack.c.0.s8 %v1426
      %v1428 = vlaneseq
      %v1429 = vshrl.u32 %v1428, 7
      %v1430 = vsub.s32 %v1427, %v1429
      %v1431 = vrot.slane %v1423, %v1430
      %v1433 = vunpack.c.l.s4 1983009808
      %v1434 = vunpack.c.0.s8 %v1433
      %v1435 = vlaneseq
      %v1436 = vshrl.u32 %v1435, 7
      %v1437 = vsub.s32 %v1434, %v1436
      %v1438 = vrot.slane %v1424, %v1437
      %v1439 = vcombine.low %v1431, %v1438
      %v1440 = vcombine.low %v1225, %v1232
      %v1441 = vcombine.low %v1233, %v1240
      %v1443 = vunpack.c.l.s4 1983009808
      %v1444 = vunpack.c.0.s8 %v1443
      %v1445 = vlaneseq
      %v1446 = vshrl.u32 %v1445, 7
      %v1447 = vsub.s32 %v1444, %v1446
      %v1448 = vrot.slane %v1440, %v1447
      %v1450 = vunpack.c.l.s4 1983009808
      %v1451 = vunpack.c.0.s8 %v1450
      %v1452 = vlaneseq
      %v1453 = vshrl.u32 %v1452, 7
      %v1454 = vsub.s32 %v1451, %v1453
      %v1455 = vrot.slane %v1441, %v1454
      %v1456 = vcombine.low %v1448, %v1455
      %v1457 = vcombine.low %v1247, %v1248
      %v1458 = vcombine.low %v1255, %v1256
      %v1460 = vunpack.c.l.s4 1983009808
      %v1461 = vunpack.c.0.s8 %v1460
      %v1462 = vlaneseq
      %v1463 = vshrl.u32 %v1462, 7
      %v1464 = vsub.s32 %v1461, %v1463
      %v1465 = vrot.slane %v1457, %v1464
      %v1467 = vunpack.c.l.s4 1983009808
      %v1468 = vunpack.c.0.s8 %v1467
      %v1469 = vlaneseq
      %v1470 = vshrl.u32 %v1469, 7
      %v1471 = vsub.s32 %v1468, %v1470
      %v1472 = vrot.slane %v1458, %v1471
      %v1473 = vcombine.low %v1465, %v1472
      %v1474 = vcombine.low %v1263, %v1270
      %v1475 = vcombine.low %v1271, %v1278
      %v1477 = vunpack.c.l.s4 1983009808
      %v1478 = vunpack.c.0.s8 %v1477
      %v1479 = vlaneseq
      %v1480 = vshrl.u32 %v1479, 7
      %v1481 = vsub.s32 %v1478, %v1480
      %v1482 = vrot.slane %v1474, %v1481
      %v1484 = vunpack.c.l.s4 1983009808
      %v1485 = vunpack.c.0.s8 %v1484
      %v1486 = vlaneseq
      %v1487 = vshrl.u32 %v1486, 7
      %v1488 = vsub.s32 %v1485, %v1487
      %v1489 = vrot.slane %v1475, %v1488
      %v1490 = vcombine.low %v1482, %v1489
      %v1491 = vcombine.low %v1279, %v1286
      %v1493 = vunpack.c.l.s4 1983009808
      %v1494 = vunpack.c.0.s8 %v1493
      %v1495 = vlaneseq
      %v1496 = vshrl.u32 %v1495, 7
      %v1497 = vsub.s32 %v1494, %v1496
      %v1498 = vrot.slane %v1491, %v1497
      %v1512 = vpack.c.bf16 %v1320, %v1303
      %v1513 = vpack.c.bf16 %v1354, %v1337
      %v1514 = vpack.c.bf16 %v1388, %v1371
      %v1515 = vpack.c.bf16 %v1422, %v1405
      %v1516 = vpack.c.bf16 %v1456, %v1439
      %v1517 = vpack.c.bf16 %v1490, %v1473
      %v1518 = vpack.c.bf16 %v1498, %v1498
      %v1519 = vld [vmem:[%s3] sm:$0xf]
      %v1520 = vld [vmem:[%s3 + $0x4] sm:$0xf]
      %v1521 = vld [vmem:[%s3 + $0x8] sm:$0xf]
      %v1522 = vld [vmem:[%s3 + $0xc] sm:$0xf]
      %v1523 = vld [vmem:[%s3 + $0x10] sm:$0xf]
      %v1524 = vld [vmem:[%s3 + $0x14] sm:$0xf]
      %v1525 = vld [vmem:[%s3 + $0x18] sm:$0xf]
      %v1526 = vld [vmem:[%s3 + $0x1c] sm:$0xf]
      %v1527 = vld [vmem:[%s3 + $0x20] sm:$0xf]
      %v1528 = vld [vmem:[%s3 + $0x24] sm:$0xf]
      %v1529 = vld [vmem:[%s3 + $0x28] sm:$0xf]
      %v1530 = vld [vmem:[%s3 + $0x2c] sm:$0xf]
      %v1531 = vld [vmem:[%s3 + $0x30] sm:$0xf]
      %v1532 = vld [vmem:[%s3 + $0x34] sm:$0xf]
      %v1533 = vld [vmem:[%s3 + $0x38] sm:$0xf]
      %v1534 = vld [vmem:[%s3 + $0x3c] sm:$0xf]
      %v1535 = vcombine.high %v1079, %v1079
      %v1536 = vcombine.high %v1102, %v1102
      %v1537 = vcombine.high %v1125, %v1125
      %v1538 = vcombine.high %v1148, %v1148
      %v1539 = vcombine.high %v1171, %v1171
      %v1540 = vcombine.high %v1194, %v1194
      %v1541 = vcombine.high %v1217, %v1217
      %v1542 = vcombine.high %v1240, %v1240
      %v1543 = vcombine.high %v1263, %v1263
      %v1544 = vcombine.high %v1286, %v1286
      %vm1545 = vcmask 1040384
      %vm1546 = vcmask 1042434
      %vm1547 = vmor %vm1545, %vm1546
      %vm1548 = vcmask 1044484
      %vm1549 = vmor %vm1547, %vm1548
      %vm1550 = vcmask 1046534
      %vm1551 = vmor %vm1549, %vm1550
      %v1552 = vrot.slane %v1063, 7
      %v1553 = vrot.slane %v1552, 2
      %v1554 = vrot.slane %v1064, 7
      %v1555 = vsel %vm1551, %v1553, %v1554
      %v1556 = vrot.slane %v1554, 2
      %v1557 = vrot.slane %v1071, 7
      %v1558 = vsel %vm1551, %v1556, %v1557
      %v1559 = vrot.slane %v1557, 2
      %v1560 = vrot.slane %v1072, 7
      %v1561 = vsel %vm1551, %v1559, %v1560
      %v1562 = vrot.slane %v1560, 2
      %v1563 = vrot.slane %v1079, 7
      %v1564 = vsel %vm1551, %v1562, %v1563
      %v1565 = vrot.slane %v1563, 2
      %v1566 = vrot.slane %v1535, 7
      %v1567 = vsel %vm1551, %v1565, %v1566
      %v1568 = vrot.slane %v1086, 7
      %v1569 = vrot.slane %v1568, 2
      %v1570 = vrot.slane %v1087, 7
      %v1571 = vsel %vm1551, %v1569, %v1570
      %v1572 = vrot.slane %v1570, 2
      %v1573 = vrot.slane %v1094, 7
      %v1574 = vsel %vm1551, %v1572, %v1573
      %v1575 = vrot.slane %v1573, 2
      %v1576 = vrot.slane %v1095, 7
      %v1577 = vsel %vm1551, %v1575, %v1576
      %v1578 = vrot.slane %v1576, 2
      %v1579 = vrot.slane %v1102, 7
      %v1580 = vsel %vm1551, %v1578, %v1579
      %v1581 = vrot.slane %v1579, 2
      %v1582 = vrot.slane %v1536, 7
      %v1583 = vsel %vm1551, %v1581, %v1582
      %v1584 = vrot.slane %v1109, 7
      %v1585 = vrot.slane %v1584, 2
      %v1586 = vrot.slane %v1110, 7
      %v1587 = vsel %vm1551, %v1585, %v1586
      %v1588 = vrot.slane %v1586, 2
      %v1589 = vrot.slane %v1117, 7
      %v1590 = vsel %vm1551, %v1588, %v1589
      %v1591 = vrot.slane %v1589, 2
      %v1592 = vrot.slane %v1118, 7
      %v1593 = vsel %vm1551, %v1591, %v1592
      %v1594 = vrot.slane %v1592, 2
      %v1595 = vrot.slane %v1125, 7
      %v1596 = vsel %vm1551, %v1594, %v1595
      %v1597 = vrot.slane %v1595, 2
      %v1598 = vrot.slane %v1537, 7
      %v1599 = vsel %vm1551, %v1597, %v1598
      %v1600 = vrot.slane %v1132, 7
      %v1601 = vrot.slane %v1600, 2
      %v1602 = vrot.slane %v1133, 7
      %v1603 = vsel %vm1551, %v1601, %v1602
      %v1604 = vrot.slane %v1602, 2
      %v1605 = vrot.slane %v1140, 7
      %v1606 = vsel %vm1551, %v1604, %v1605
      %v1607 = vrot.slane %v1605, 2
      %v1608 = vrot.slane %v1141, 7
      %v1609 = vsel %vm1551, %v1607, %v1608
      %v1610 = vrot.slane %v1608, 2
      %v1611 = vrot.slane %v1148, 7
      %v1612 = vsel %vm1551, %v1610, %v1611
      %v1613 = vrot.slane %v1611, 2
      %v1614 = vrot.slane %v1538, 7
      %v1615 = vsel %vm1551, %v1613, %v1614
      %v1616 = vrot.slane %v1155, 7
      %v1617 = vrot.slane %v1616, 2
      %v1618 = vrot.slane %v1156, 7
      %v1619 = vsel %vm1551, %v1617, %v1618
      %v1620 = vrot.slane %v1618, 2
      %v1621 = vrot.slane %v1163, 7
      %v1622 = vsel %vm1551, %v1620, %v1621
      %v1623 = vrot.slane %v1621, 2
      %v1624 = vrot.slane %v1164, 7
      %v1625 = vsel %vm1551, %v1623, %v1624
      %v1626 = vrot.slane %v1624, 2
      %v1627 = vrot.slane %v1171, 7
      %v1628 = vsel %vm1551, %v1626, %v1627
      %v1629 = vrot.slane %v1627, 2
      %v1630 = vrot.slane %v1539, 7
      %v1631 = vsel %vm1551, %v1629, %v1630
      %v1632 = vrot.slane %v1178, 7
      %v1633 = vrot.slane %v1632, 2
      %v1634 = vrot.slane %v1179, 7
      %v1635 = vsel %vm1551, %v1633, %v1634
      %v1636 = vrot.slane %v1634, 2
      %v1637 = vrot.slane %v1186, 7
      %v1638 = vsel %vm1551, %v1636, %v1637
      %v1639 = vrot.slane %v1637, 2
      %v1640 = vrot.slane %v1187, 7
      %v1641 = vsel %vm1551, %v1639, %v1640
      %v1642 = vrot.slane %v1640, 2
      %v1643 = vrot.slane %v1194, 7
      %v1644 = vsel %vm1551, %v1642, %v1643
      %v1645 = vrot.slane %v1643, 2
      %v1646 = vrot.slane %v1540, 7
      %v1647 = vsel %vm1551, %v1645, %v1646
      %v1648 = vrot.slane %v1201, 7
      %v1649 = vrot.slane %v1648, 2
      %v1650 = vrot.slane %v1202, 7
      %v1651 = vsel %vm1551, %v1649, %v1650
      %v1652 = vrot.slane %v1650, 2
      %v1653 = vrot.slane %v1209, 7
      %v1654 = vsel %vm1551, %v1652, %v1653
      %v1655 = vrot.slane %v1653, 2
      %v1656 = vrot.slane %v1210, 7
      %v1657 = vsel %vm1551, %v1655, %v1656
      %v1658 = vrot.slane %v1656, 2
      %v1659 = vrot.slane %v1217, 7
      %v1660 = vsel %vm1551, %v1658, %v1659
      %v1661 = vrot.slane %v1659, 2
      %v1662 = vrot.slane %v1541, 7
      %v1663 = vsel %vm1551, %v1661, %v1662
      %v1664 = vrot.slane %v1224, 7
      %v1665 = vrot.slane %v1664, 2
      %v1666 = vrot.slane %v1225, 7
      %v1667 = vsel %vm1551, %v1665, %v1666
      %v1668 = vrot.slane %v1666, 2
      %v1669 = vrot.slane %v1232, 7
      %v1670 = vsel %vm1551, %v1668, %v1669
      %v1671 = vrot.slane %v1669, 2
      %v1672 = vrot.slane %v1233, 7
      %v1673 = vsel %vm1551, %v1671, %v1672
      %v1674 = vrot.slane %v1672, 2
      %v1675 = vrot.slane %v1240, 7
      %v1676 = vsel %vm1551, %v1674, %v1675
      %v1677 = vrot.slane %v1675, 2
      %v1678 = vrot.slane %v1542, 7
      %v1679 = vsel %vm1551, %v1677, %v1678
      %v1680 = vrot.slane %v1247, 7
      %v1681 = vrot.slane %v1680, 2
      %v1682 = vrot.slane %v1248, 7
      %v1683 = vsel %vm1551, %v1681, %v1682
      %v1684 = vrot.slane %v1682, 2
      %v1685 = vrot.slane %v1255, 7
      %v1686 = vsel %vm1551, %v1684, %v1685
      %v1687 = vrot.slane %v1685, 2
      %v1688 = vrot.slane %v1256, 7
      %v1689 = vsel %vm1551, %v1687, %v1688
      %v1690 = vrot.slane %v1688, 2
      %v1691 = vrot.slane %v1263, 7
      %v1692 = vsel %vm1551, %v1690, %v1691
      %v1693 = vrot.slane %v1691, 2
      %v1694 = vrot.slane %v1543, 7
      %v1695 = vsel %vm1551, %v1693, %v1694
      %v1696 = vrot.slane %v1270, 7
      %v1697 = vrot.slane %v1696, 2
      %v1698 = vrot.slane %v1271, 7
      %v1699 = vsel %vm1551, %v1697, %v1698
      %v1700 = vrot.slane %v1698, 2
      %v1701 = vrot.slane %v1278, 7
      %v1702 = vsel %vm1551, %v1700, %v1701
      %v1703 = vrot.slane %v1701, 2
      %v1704 = vrot.slane %v1279, 7
      %v1705 = vsel %vm1551, %v1703, %v1704
      %v1706 = vrot.slane %v1704, 2
      %v1707 = vrot.slane %v1286, 7
      %v1708 = vsel %vm1551, %v1706, %v1707
      %v1709 = vrot.slane %v1707, 2
      %v1710 = vrot.slane %v1544, 7
      %v1711 = vsel %vm1551, %v1709, %v1710
      %v1712 = vcombine.low %v1555, %v1558
      %v1713 = vcombine.low %v1561, %v1564
      %v1715 = vunpack.c.l.s4 1983009808
      %v1716 = vunpack.c.0.s8 %v1715
      %v1717 = vlaneseq
      %v1718 = vshrl.u32 %v1717, 7
      %v1719 = vsub.s32 %v1716, %v1718
      %v1720 = vrot.slane %v1712, %v1719
      %v1722 = vunpack.c.l.s4 1983009808
      %v1723 = vunpack.c.0.s8 %v1722
      %v1724 = vlaneseq
      %v1725 = vshrl.u32 %v1724, 7
      %v1726 = vsub.s32 %v1723, %v1725
      %v1727 = vrot.slane %v1713, %v1726
      %v1728 = vcombine.low %v1720, %v1727
      %v1729 = vcombine.low %v1567, %v1571
      %v1730 = vcombine.low %v1574, %v1577
      %v1732 = vunpack.c.l.s4 1983009808
      %v1733 = vunpack.c.0.s8 %v1732
      %v1734 = vlaneseq
      %v1735 = vshrl.u32 %v1734, 7
      %v1736 = vsub.s32 %v1733, %v1735
      %v1737 = vrot.slane %v1729, %v1736
      %v1739 = vunpack.c.l.s4 1983009808
      %v1740 = vunpack.c.0.s8 %v1739
      %v1741 = vlaneseq
      %v1742 = vshrl.u32 %v1741, 7
      %v1743 = vsub.s32 %v1740, %v1742
      %v1744 = vrot.slane %v1730, %v1743
      %v1745 = vcombine.low %v1737, %v1744
      %v1746 = vcombine.low %v1580, %v1583
      %v1747 = vcombine.low %v1587, %v1590
      %v1749 = vunpack.c.l.s4 1983009808
      %v1750 = vunpack.c.0.s8 %v1749
      %v1751 = vlaneseq
      %v1752 = vshrl.u32 %v1751, 7
      %v1753 = vsub.s32 %v1750, %v1752
      %v1754 = vrot.slane %v1746, %v1753
      %v1756 = vunpack.c.l.s4 1983009808
      %v1757 = vunpack.c.0.s8 %v1756
      %v1758 = vlaneseq
      %v1759 = vshrl.u32 %v1758, 7
      %v1760 = vsub.s32 %v1757, %v1759
      %v1761 = vrot.slane %v1747, %v1760
      %v1762 = vcombine.low %v1754, %v1761
      %v1763 = vcombine.low %v1593, %v1596
      %v1764 = vcombine.low %v1599, %v1603
      %v1766 = vunpack.c.l.s4 1983009808
      %v1767 = vunpack.c.0.s8 %v1766
      %v1768 = vlaneseq
      %v1769 = vshrl.u32 %v1768, 7
      %v1770 = vsub.s32 %v1767, %v1769
      %v1771 = vrot.slane %v1763, %v1770
      %v1773 = vunpack.c.l.s4 1983009808
      %v1774 = vunpack.c.0.s8 %v1773
      %v1775 = vlaneseq
      %v1776 = vshrl.u32 %v1775, 7
      %v1777 = vsub.s32 %v1774, %v1776
      %v1778 = vrot.slane %v1764, %v1777
      %v1779 = vcombine.low %v1771, %v1778
      %v1780 = vcombine.low %v1606, %v1609
      %v1781 = vcombine.low %v1612, %v1615
      %v1783 = vunpack.c.l.s4 1983009808
      %v1784 = vunpack.c.0.s8 %v1783
      %v1785 = vlaneseq
      %v1786 = vshrl.u32 %v1785, 7
      %v1787 = vsub.s32 %v1784, %v1786
      %v1788 = vrot.slane %v1780, %v1787
      %v1790 = vunpack.c.l.s4 1983009808
      %v1791 = vunpack.c.0.s8 %v1790
      %v1792 = vlaneseq
      %v1793 = vshrl.u32 %v1792, 7
      %v1794 = vsub.s32 %v1791, %v1793
      %v1795 = vrot.slane %v1781, %v1794
      %v1796 = vcombine.low %v1788, %v1795
      %v1797 = vcombine.low %v1619, %v1622
      %v1798 = vcombine.low %v1625, %v1628
      %v1800 = vunpack.c.l.s4 1983009808
      %v1801 = vunpack.c.0.s8 %v1800
      %v1802 = vlaneseq
      %v1803 = vshrl.u32 %v1802, 7
      %v1804 = vsub.s32 %v1801, %v1803
      %v1805 = vrot.slane %v1797, %v1804
      %v1807 = vunpack.c.l.s4 1983009808
      %v1808 = vunpack.c.0.s8 %v1807
      %v1809 = vlaneseq
      %v1810 = vshrl.u32 %v1809, 7
      %v1811 = vsub.s32 %v1808, %v1810
      %v1812 = vrot.slane %v1798, %v1811
      %v1813 = vcombine.low %v1805, %v1812
      %v1814 = vcombine.low %v1631, %v1635
      %v1815 = vcombine.low %v1638, %v1641
      %v1817 = vunpack.c.l.s4 1983009808
      %v1818 = vunpack.c.0.s8 %v1817
      %v1819 = vlaneseq
      %v1820 = vshrl.u32 %v1819, 7
      %v1821 = vsub.s32 %v1818, %v1820
      %v1822 = vrot.slane %v1814, %v1821
      %v1824 = vunpack.c.l.s4 1983009808
      %v1825 = vunpack.c.0.s8 %v1824
      %v1826 = vlaneseq
      %v1827 = vshrl.u32 %v1826, 7
      %v1828 = vsub.s32 %v1825, %v1827
      %v1829 = vrot.slane %v1815, %v1828
      %v1830 = vcombine.low %v1822, %v1829
      %v1831 = vcombine.low %v1644, %v1647
      %v1832 = vcombine.low %v1651, %v1654
      %v1834 = vunpack.c.l.s4 1983009808
      %v1835 = vunpack.c.0.s8 %v1834
      %v1836 = vlaneseq
      %v1837 = vshrl.u32 %v1836, 7
      %v1838 = vsub.s32 %v1835, %v1837
      %v1839 = vrot.slane %v1831, %v1838
      %v1841 = vunpack.c.l.s4 1983009808
      %v1842 = vunpack.c.0.s8 %v1841
      %v1843 = vlaneseq
      %v1844 = vshrl.u32 %v1843, 7
      %v1845 = vsub.s32 %v1842, %v1844
      %v1846 = vrot.slane %v1832, %v1845
      %v1847 = vcombine.low %v1839, %v1846
      %v1848 = vcombine.low %v1657, %v1660
      %v1849 = vcombine.low %v1663, %v1667
      %v1851 = vunpack.c.l.s4 1983009808
      %v1852 = vunpack.c.0.s8 %v1851
      %v1853 = vlaneseq
      %v1854 = vshrl.u32 %v1853, 7
      %v1855 = vsub.s32 %v1852, %v1854
      %v1856 = vrot.slane %v1848, %v1855
      %v1858 = vunpack.c.l.s4 1983009808
      %v1859 = vunpack.c.0.s8 %v1858
      %v1860 = vlaneseq
      %v1861 = vshrl.u32 %v1860, 7
      %v1862 = vsub.s32 %v1859, %v1861
      %v1863 = vrot.slane %v1849, %v1862
      %v1864 = vcombine.low %v1856, %v1863
      %v1865 = vcombine.low %v1670, %v1673
      %v1866 = vcombine.low %v1676, %v1679
      %v1868 = vunpack.c.l.s4 1983009808
      %v1869 = vunpack.c.0.s8 %v1868
      %v1870 = vlaneseq
      %v1871 = vshrl.u32 %v1870, 7
      %v1872 = vsub.s32 %v1869, %v1871
      %v1873 = vrot.slane %v1865, %v1872
      %v1875 = vunpack.c.l.s4 1983009808
      %v1876 = vunpack.c.0.s8 %v1875
      %v1877 = vlaneseq
      %v1878 = vshrl.u32 %v1877, 7
      %v1879 = vsub.s32 %v1876, %v1878
      %v1880 = vrot.slane %v1866, %v1879
      %v1881 = vcombine.low %v1873, %v1880
      %v1882 = vcombine.low %v1683, %v1686
      %v1883 = vcombine.low %v1689, %v1692
      %v1885 = vunpack.c.l.s4 1983009808
      %v1886 = vunpack.c.0.s8 %v1885
      %v1887 = vlaneseq
      %v1888 = vshrl.u32 %v1887, 7
      %v1889 = vsub.s32 %v1886, %v1888
      %v1890 = vrot.slane %v1882, %v1889
      %v1892 = vunpack.c.l.s4 1983009808
      %v1893 = vunpack.c.0.s8 %v1892
      %v1894 = vlaneseq
      %v1895 = vshrl.u32 %v1894, 7
      %v1896 = vsub.s32 %v1893, %v1895
      %v1897 = vrot.slane %v1883, %v1896
      %v1898 = vcombine.low %v1890, %v1897
      %v1899 = vcombine.low %v1695, %v1699
      %v1900 = vcombine.low %v1702, %v1705
      %v1902 = vunpack.c.l.s4 1983009808
      %v1903 = vunpack.c.0.s8 %v1902
      %v1904 = vlaneseq
      %v1905 = vshrl.u32 %v1904, 7
      %v1906 = vsub.s32 %v1903, %v1905
      %v1907 = vrot.slane %v1899, %v1906
      %v1909 = vunpack.c.l.s4 1983009808
      %v1910 = vunpack.c.0.s8 %v1909
      %v1911 = vlaneseq
      %v1912 = vshrl.u32 %v1911, 7
      %v1913 = vsub.s32 %v1910, %v1912
      %v1914 = vrot.slane %v1900, %v1913
      %v1915 = vcombine.low %v1907, %v1914
      %v1916 = vcombine.low %v1708, %v1711
      %v1918 = vunpack.c.l.s4 1983009808
      %v1919 = vunpack.c.0.s8 %v1918
      %v1920 = vlaneseq
      %v1921 = vshrl.u32 %v1920, 7
      %v1922 = vsub.s32 %v1919, %v1921
      %v1923 = vrot.slane %v1916, %v1922
      %v1937 = vpack.c.bf16 %v1745, %v1728
      %v1938 = vpack.c.bf16 %v1779, %v1762
      %v1939 = vpack.c.bf16 %v1813, %v1796
      %v1940 = vpack.c.bf16 %v1847, %v1830
      %v1941 = vpack.c.bf16 %v1881, %v1864
      %v1942 = vpack.c.bf16 %v1915, %v1898
      %v1943 = vpack.c.bf16 %v1923, %v1923
      %s1944 = scalar_lea.vmem %s3, 64
      %v1945 = vld [vmem:[%s1944] sm:$0xf]
      %v1946 = vld [vmem:[%s1944 + $0x4] sm:$0xf]
      %v1947 = vld [vmem:[%s1944 + $0x8] sm:$0xf]
      %v1948 = vld [vmem:[%s1944 + $0xc] sm:$0xf]
      %v1949 = vld [vmem:[%s1944 + $0x10] sm:$0xf]
      %v1950 = vld [vmem:[%s1944 + $0x14] sm:$0xf]
      %v1951 = vld [vmem:[%s1944 + $0x18] sm:$0xf]
      %v1952 = vld [vmem:[%s1944 + $0x1c] sm:$0xf]
      %v1953 = vld [vmem:[%s1944 + $0x20] sm:$0xf]
      %v1954 = vld [vmem:[%s1944 + $0x24] sm:$0xf]
      %v1955 = vld [vmem:[%s1944 + $0x28] sm:$0xf]
      %v1956 = vld [vmem:[%s1944 + $0x2c] sm:$0xf]
      %v1957 = vld [vmem:[%s1944 + $0x30] sm:$0xf]
      %v1958 = vld [vmem:[%s1944 + $0x34] sm:$0xf]
      %v1959 = vld [vmem:[%s1944 + $0x38] sm:$0xf]
      %v1960 = vld [vmem:[%s1944 + $0x3c] sm:$0xf]
      %v1977 = vunpack.c.l.b16 %v1945
      %v1978 = vunpack.c.l.b16 %v1946
      %v1979 = vunpack.c.l.b16 %v1947
      %v1980 = vunpack.c.l.b16 %v1948
      %v1981 = vunpack.c.l.b16 %v1949
      %v1982 = vunpack.c.l.b16 %v1950
      %v1983 = vunpack.c.l.b16 %v1951
      %v1984 = vunpack.c.l.b16 %v1952
      %v1985 = vunpack.c.l.b16 %v1953
      %v1986 = vunpack.c.l.b16 %v1954
      %v1987 = vunpack.c.l.b16 %v1955
      %v1988 = vunpack.c.l.b16 %v1956
      %v1989 = vunpack.c.l.b16 %v1957
      %v1990 = vunpack.c.l.b16 %v1958
      %v1991 = vunpack.c.l.b16 %v1959
      %v1992 = vunpack.c.l.b16 %v1960
      %v1993 = vpack.c.b16 %v1978, %v1977
      %v1994 = vpack.c.b16 %v1980, %v1979
      %v1995 = vpack.c.b16 %v1982, %v1981
      %v1996 = vpack.c.b16 %v1984, %v1983
      %v1997 = vpack.c.b16 %v1986, %v1985
      %v1998 = vpack.c.b16 %v1988, %v1987
      %v1999 = vpack.c.b16 %v1990, %v1989
      %v2000 = vpack.c.b16 %v1992, %v1991
      %2009 = vmatprep.subr.bf16.mxu0 0
      %2010 = vmatpush1.bf16.msra.mxu0 %v1993
      %2011 = vmatprep.subr.bf16.mxu0 0
      %2012 = vmatpush1.bf16.msra.mxu0 %v1994
      %2013 = vmatprep.subr.bf16.mxu0 0
      %2014 = vmatpush1.bf16.msra.mxu0 %v1995
      %2015 = vmatprep.subr.bf16.mxu0 0
      %2016 = vmatpush1.bf16.msra.mxu0 %v1996
      %2017 = vmatprep.subr.bf16.mxu0 0
      %2018 = vmatpush1.bf16.msra.mxu0 %v1997
      %2019 = vmatprep.subr.bf16.mxu0 0
      %2020 = vmatpush1.bf16.msra.mxu0 %v1998
      %2021 = vmatprep.subr.bf16.mxu0 0
      %2022 = vmatpush1.bf16.msra.mxu0 %v1999
      %2023 = vmatprep.subr.bf16.mxu0 0
      %2024 = vmatpush1.bf16.msra.mxu0 %v2000
      %2025 = vmatprep.subr.bf16.mxu0 0
      %2026 = vmatpush1.bf16.msra.mxu0 0
      %2027 = vmatprep.subr.bf16.mxu0 0
      %2028 = vmatpush1.bf16.msra.mxu0 0
      %2029 = vmatprep.subr.bf16.mxu0 0
      %2030 = vmatpush1.bf16.msra.mxu0 0
      %2031 = vmatprep.subr.bf16.mxu0 0
      %2032 = vmatpush1.bf16.msra.mxu0 0
      %2033 = vmatprep.subr.bf16.mxu0 0
      %2034 = vmatpush1.bf16.msra.mxu0 0
      %2035 = vmatprep.subr.bf16.mxu0 0
      %2036 = vmatpush1.bf16.msra.mxu0 0
      %2037 = vmatprep.subr.bf16.mxu0 0
      %2038 = vmatpush1.bf16.msra.mxu0 0
      %2039 = vmatprep.subr.bf16.mxu0 0
      %2040 = vmatpush1.bf16.msra.mxu0 0
      %2041 = vmatprep.mubr.bf16.mxu0 0
      %2042 = vmatmul.mubr.bf16.gmra.mrb[0].mxu0 %v1937
      %v2043 = vpop.f32.mrb[0].mxu0
      %v2044 = vadd.f32 0.0, %v2043
      %v2045 = vpop.f32.mrb[0].mxu0
      %v2046 = vpop.f32.mrb[0].mxu0
      %v2047 = vadd.f32 0.0, %v2046
      %v2048 = vpop.f32.mrb[0].mxu0
      %2049 = vmatprep.mubr.bf16.mxu0 0
      %2050 = vmatmul.mubr.bf16.gmra.mrb[0].mxu0 %v1938
      %v2051 = vpop.f32.mrb[0].mxu0
      %v2052 = vadd.f32 0.0, %v2051
      %v2053 = vpop.f32.mrb[0].mxu0
      %v2054 = vpop.f32.mrb[0].mxu0
      %v2055 = vadd.f32 0.0, %v2054
      %v2056 = vpop.f32.mrb[0].mxu0
      %2057 = vmatprep.mubr.bf16.mxu0 0
      %2058 = vmatmul.mubr.bf16.gmra.mrb[0].mxu0 %v1939
      %v2059 = vpop.f32.mrb[0].mxu0
      %v2060 = vadd.f32 0.0, %v2059
      %v2061 = vpop.f32.mrb[0].mxu0
      %v2062 = vpop.f32.mrb[0].mxu0
      %v2063 = vadd.f32 0.0, %v2062
      %v2064 = vpop.f32.mrb[0].mxu0
      %2065 = vmatprep.mubr.bf16.mxu0 0
      %2066 = vmatmul.mubr.bf16.gmra.mrb[0].mxu0 %v1940
      %v2067 = vpop.f32.mrb[0].mxu0
      %v2068 = vadd.f32 0.0, %v2067
      %v2069 = vpop.f32.mrb[0].mxu0
      %v2070 = vpop.f32.mrb[0].mxu0
      %v2071 = vadd.f32 0.0, %v2070
      %v2072 = vpop.f32.mrb[0].mxu0
      %2073 = vmatprep.mubr.bf16.mxu0 0
      %2074 = vmatmul.mubr.bf16.gmra.mrb[0].mxu0 %v1941
      %v2075 = vpop.f32.mrb[0].mxu0
      %v2076 = vadd.f32 0.0, %v2075
      %v2077 = vpop.f32.mrb[0].mxu0
      %v2078 = vpop.f32.mrb[0].mxu0
      %v2079 = vadd.f32 0.0, %v2078
      %v2080 = vpop.f32.mrb[0].mxu0
      %2081 = vmatprep.mubr.bf16.mxu0 0
      %2082 = vmatmul.mubr.bf16.gmra.mrb[0].mxu0 %v1942
      %v2083 = vpop.f32.mrb[0].mxu0
      %v2084 = vadd.f32 0.0, %v2083
      %v2085 = vpop.f32.mrb[0].mxu0
      %v2086 = vpop.f32.mrb[0].mxu0
      %v2087 = vadd.f32 0.0, %v2086
      %v2088 = vpop.f32.mrb[0].mxu0
      %2089 = vmatprep.mubr.bf16.mxu0 0
      %2090 = vmatmul.mubr.bf16.gmra.mrb[0].mxu0 %v1943
      %v2091 = vpop.f32.mrb[0].mxu0
      %v2092 = vadd.f32 0.0, %v2091
      %v2093 = vpop.f32.mrb[0].mxu0
      %v2094 = vpop.f32.mrb[0].mxu0
      %v2095 = vpop.f32.mrb[0].mxu0
      %2096 = vdwg.mxu0
      %v2113 = vunpack.c.l.b16 %v1519
      %v2114 = vunpack.c.l.b16 %v1520
      %v2115 = vunpack.c.l.b16 %v1521
      %v2116 = vunpack.c.l.b16 %v1522
      %v2117 = vunpack.c.l.b16 %v1523
      %v2118 = vunpack.c.l.b16 %v1524
      %v2119 = vunpack.c.l.b16 %v1525
      %v2120 = vunpack.c.l.b16 %v1526
      %v2121 = vunpack.c.l.b16 %v1527
      %v2122 = vunpack.c.l.b16 %v1528
      %v2123 = vunpack.c.l.b16 %v1529
      %v2124 = vunpack.c.l.b16 %v1530
      %v2125 = vunpack.c.l.b16 %v1531
      %v2126 = vunpack.c.l.b16 %v1532
      %v2127 = vunpack.c.l.b16 %v1533
      %v2128 = vunpack.c.l.b16 %v1534
      %v2129 = vpack.c.b16 %v2114, %v2113
      %v2130 = vpack.c.b16 %v2116, %v2115
      %v2131 = vpack.c.b16 %v2118, %v2117
      %v2132 = vpack.c.b16 %v2120, %v2119
      %v2133 = vpack.c.b16 %v2122, %v2121
      %v2134 = vpack.c.b16 %v2124, %v2123
      %v2135 = vpack.c.b16 %v2126, %v2125
      %v2136 = vpack.c.b16 %v2128, %v2127
      %2145 = vmatprep.subr.bf16.mxu0 0
      %2146 = vmatpush1.bf16.msra.mxu0 %v2129
      %2147 = vmatprep.subr.bf16.mxu0 0
      %2148 = vmatpush1.bf16.msra.mxu0 %v2130
      %2149 = vmatprep.subr.bf16.mxu0 0
      %2150 = vmatpush1.bf16.msra.mxu0 %v2131
      %2151 = vmatprep.subr.bf16.mxu0 0
      %2152 = vmatpush1.bf16.msra.mxu0 %v2132
      %2153 = vmatprep.subr.bf16.mxu0 0
      %2154 = vmatpush1.bf16.msra.mxu0 %v2133
      %2155 = vmatprep.subr.bf16.mxu0 0
      %2156 = vmatpush1.bf16.msra.mxu0 %v2134
      %2157 = vmatprep.subr.bf16.mxu0 0
      %2158 = vmatpush1.bf16.msra.mxu0 %v2135
      %2159 = vmatprep.subr.bf16.mxu0 0
      %2160 = vmatpush1.bf16.msra.mxu0 %v2136
      %2161 = vmatprep.subr.bf16.mxu0 0
      %2162 = vmatpush1.bf16.msra.mxu0 0
      %2163 = vmatprep.subr.bf16.mxu0 0
      %2164 = vmatpush1.bf16.msra.mxu0 0
      %2165 = vmatprep.subr.bf16.mxu0 0
      %2166 = vmatpush1.bf16.msra.mxu0 0
      %2167 = vmatprep.subr.bf16.mxu0 0
      %2168 = vmatpush1.bf16.msra.mxu0 0
      %2169 = vmatprep.subr.bf16.mxu0 0
      %2170 = vmatpush1.bf16.msra.mxu0 0
      %2171 = vmatprep.subr.bf16.mxu0 0
      %2172 = vmatpush1.bf16.msra.mxu0 0
      %2173 = vmatprep.subr.bf16.mxu0 0
      %2174 = vmatpush1.bf16.msra.mxu0 0
      %2175 = vmatprep.subr.bf16.mxu0 0
      %2176 = vmatpush1.bf16.msra.mxu0 0
      %2177 = vmatprep.mubr.bf16.mxu0 0
      %2178 = vmatmul.mubr.bf16.gmra.mrb[0].mxu0 %v1512
      %v2179 = vpop.f32.mrb[0].mxu0
      %v2180 = vadd.f32 %v2044, %v2179
      %v2181 = vpop.f32.mrb[0].mxu0
      %v2182 = vpop.f32.mrb[0].mxu0
      %v2183 = vadd.f32 %v2047, %v2182
      %v2184 = vpop.f32.mrb[0].mxu0
      %2185 = vmatprep.mubr.bf16.mxu0 0
      %2186 = vmatmul.mubr.bf16.gmra.mrb[0].mxu0 %v1513
      %v2187 = vpop.f32.mrb[0].mxu0
      %v2188 = vadd.f32 %v2052, %v2187
      %v2189 = vpop.f32.mrb[0].mxu0
      %v2190 = vpop.f32.mrb[0].mxu0
      %v2191 = vadd.f32 %v2055, %v2190
      %v2192 = vpop.f32.mrb[0].mxu0
      %2193 = vmatprep.mubr.bf16.mxu0 0
      %2194 = vmatmul.mubr.bf16.gmra.mrb[0].mxu0 %v1514
      %v2195 = vpop.f32.mrb[0].mxu0
      %v2196 = vadd.f32 %v2060, %v2195
      %v2197 = vpop.f32.mrb[0].mxu0
      %v2198 = vpop.f32.mrb[0].mxu0
      %v2199 = vadd.f32 %v2063, %v2198
      %v2200 = vpop.f32.mrb[0].mxu0
      %2201 = vmatprep.mubr.bf16.mxu0 0
      %2202 = vmatmul.mubr.bf16.gmra.mrb[0].mxu0 %v1515
      %v2203 = vpop.f32.mrb[0].mxu0
      %v2204 = vadd.f32 %v2068, %v2203
      %v2205 = vpop.f32.mrb[0].mxu0
      %v2206 = vpop.f32.mrb[0].mxu0
      %v2207 = vadd.f32 %v2071, %v2206
      %v2208 = vpop.f32.mrb[0].mxu0
      %2209 = vmatprep.mubr.bf16.mxu0 0
      %2210 = vmatmul.mubr.bf16.gmra.mrb[0].mxu0 %v1516
      %v2211 = vpop.f32.mrb[0].mxu0
      %v2212 = vadd.f32 %v2076, %v2211
      %v2213 = vpop.f32.mrb[0].mxu0
      %v2214 = vpop.f32.mrb[0].mxu0
      %v2215 = vadd.f32 %v2079, %v2214
      %v2216 = vpop.f32.mrb[0].mxu0
      %2217 = vmatprep.mubr.bf16.mxu0 0
      %2218 = vmatmul.mubr.bf16.gmra.mrb[0].mxu0 %v1517
      %v2219 = vpop.f32.mrb[0].mxu0
      %v2220 = vadd.f32 %v2084, %v2219
      %v2221 = vpop.f32.mrb[0].mxu0
      %v2222 = vpop.f32.mrb[0].mxu0
      %v2223 = vadd.f32 %v2087, %v2222
      %v2224 = vpop.f32.mrb[0].mxu0
      %2225 = vmatprep.mubr.bf16.mxu0 0
      %2226 = vmatmul.mubr.bf16.gmra.mrb[0].mxu0 %v1518
      %v2227 = vpop.f32.mrb[0].mxu0
      %v2228 = vadd.f32 %v2092, %v2227
      %v2229 = vpop.f32.mrb[0].mxu0
      %v2230 = vpop.f32.mrb[0].mxu0
      %v2231 = vpop.f32.mrb[0].mxu0
      %2232 = vdwg.mxu0
      %v2233 = vcombine.low %v1064, %v1071
      %v2234 = vcombine.low %v1072, %v1079
      %v2236 = vunpack.c.l.s4 1983009808
      %v2237 = vunpack.c.0.s8 %v2236
      %v2238 = vlaneseq
      %v2239 = vshrl.u32 %v2238, 7
      %v2240 = vsub.s32 %v2237, %v2239
      %v2241 = vrot.slane %v2233, %v2240
      %v2243 = vunpack.c.l.s4 1983009808
      %v2244 = vunpack.c.0.s8 %v2243
      %v2245 = vlaneseq
      %v2246 = vshrl.u32 %v2245, 7
      %v2247 = vsub.s32 %v2244, %v2246
      %v2248 = vrot.slane %v2234, %v2247
      %v2249 = vcombine.low %v2241, %v2248
      %v2250 = vcombine.low %v1535, %v1087
      %v2251 = vcombine.low %v1094, %v1095
      %v2253 = vunpack.c.l.s4 1983009808
      %v2254 = vunpack.c.0.s8 %v2253
      %v2255 = vlaneseq
      %v2256 = vshrl.u32 %v2255, 7
      %v2257 = vsub.s32 %v2254, %v2256
      %v2258 = vrot.slane %v2250, %v2257
      %v2260 = vunpack.c.l.s4 1983009808
      %v2261 = vunpack.c.0.s8 %v2260
      %v2262 = vlaneseq
      %v2263 = vshrl.u32 %v2262, 7
      %v2264 = vsub.s32 %v2261, %v2263
      %v2265 = vrot.slane %v2251, %v2264
      %v2266 = vcombine.low %v2258, %v2265
      %v2267 = vcombine.low %v1102, %v1536
      %v2268 = vcombine.low %v1110, %v1117
      %v2270 = vunpack.c.l.s4 1983009808
      %v2271 = vunpack.c.0.s8 %v2270
      %v2272 = vlaneseq
      %v2273 = vshrl.u32 %v2272, 7
      %v2274 = vsub.s32 %v2271, %v2273
      %v2275 = vrot.slane %v2267, %v2274
      %v2277 = vunpack.c.l.s4 1983009808
      %v2278 = vunpack.c.0.s8 %v2277
      %v2279 = vlaneseq
      %v2280 = vshrl.u32 %v2279, 7
      %v2281 = vsub.s32 %v2278, %v2280
      %v2282 = vrot.slane %v2268, %v2281
      %v2283 = vcombine.low %v2275, %v2282
      %v2284 = vcombine.low %v1118, %v1125
      %v2285 = vcombine.low %v1537, %v1133
      %v2287 = vunpack.c.l.s4 1983009808
      %v2288 = vunpack.c.0.s8 %v2287
      %v2289 = vlaneseq
      %v2290 = vshrl.u32 %v2289, 7
      %v2291 = vsub.s32 %v2288, %v2290
      %v2292 = vrot.slane %v2284, %v2291
      %v2294 = vunpack.c.l.s4 1983009808
      %v2295 = vunpack.c.0.s8 %v2294
      %v2296 = vlaneseq
      %v2297 = vshrl.u32 %v2296, 7
      %v2298 = vsub.s32 %v2295, %v2297
      %v2299 = vrot.slane %v2285, %v2298
      %v2300 = vcombine.low %v2292, %v2299
      %v2301 = vcombine.low %v1140, %v1141
      %v2302 = vcombine.low %v1148, %v1538
      %v2304 = vunpack.c.l.s4 1983009808
      %v2305 = vunpack.c.0.s8 %v2304
      %v2306 = vlaneseq
      %v2307 = vshrl.u32 %v2306, 7
      %v2308 = vsub.s32 %v2305, %v2307
      %v2309 = vrot.slane %v2301, %v2308
      %v2311 = vunpack.c.l.s4 1983009808
      %v2312 = vunpack.c.0.s8 %v2311
      %v2313 = vlaneseq
      %v2314 = vshrl.u32 %v2313, 7
      %v2315 = vsub.s32 %v2312, %v2314
      %v2316 = vrot.slane %v2302, %v2315
      %v2317 = vcombine.low %v2309, %v2316
      %v2318 = vcombine.low %v1156, %v1163
      %v2319 = vcombine.low %v1164, %v1171
      %v2321 = vunpack.c.l.s4 1983009808
      %v2322 = vunpack.c.0.s8 %v2321
      %v2323 = vlaneseq
      %v2324 = vshrl.u32 %v2323, 7
      %v2325 = vsub.s32 %v2322, %v2324
      %v2326 = vrot.slane %v2318, %v2325
      %v2328 = vunpack.c.l.s4 1983009808
      %v2329 = vunpack.c.0.s8 %v2328
      %v2330 = vlaneseq
      %v2331 = vshrl.u32 %v2330, 7
      %v2332 = vsub.s32 %v2329, %v2331
      %v2333 = vrot.slane %v2319, %v2332
      %v2334 = vcombine.low %v2326, %v2333
      %v2335 = vcombine.low %v1539, %v1179
      %v2336 = vcombine.low %v1186, %v1187
      %v2338 = vunpack.c.l.s4 1983009808
      %v2339 = vunpack.c.0.s8 %v2338
      %v2340 = vlaneseq
      %v2341 = vshrl.u32 %v2340, 7
      %v2342 = vsub.s32 %v2339, %v2341
      %v2343 = vrot.slane %v2335, %v2342
      %v2345 = vunpack.c.l.s4 1983009808
      %v2346 = vunpack.c.0.s8 %v2345
      %v2347 = vlaneseq
      %v2348 = vshrl.u32 %v2347, 7
      %v2349 = vsub.s32 %v2346, %v2348
      %v2350 = vrot.slane %v2336, %v2349
      %v2351 = vcombine.low %v2343, %v2350
      %v2352 = vcombine.low %v1194, %v1540
      %v2353 = vcombine.low %v1202, %v1209
      %v2355 = vunpack.c.l.s4 1983009808
      %v2356 = vunpack.c.0.s8 %v2355
      %v2357 = vlaneseq
      %v2358 = vshrl.u32 %v2357, 7
      %v2359 = vsub.s32 %v2356, %v2358
      %v2360 = vrot.slane %v2352, %v2359
      %v2362 = vunpack.c.l.s4 1983009808
      %v2363 = vunpack.c.0.s8 %v2362
      %v2364 = vlaneseq
      %v2365 = vshrl.u32 %v2364, 7
      %v2366 = vsub.s32 %v2363, %v2365
      %v2367 = vrot.slane %v2353, %v2366
      %v2368 = vcombine.low %v2360, %v2367
      %v2369 = vcombine.low %v1210, %v1217
      %v2370 = vcombine.low %v1541, %v1225
      %v2372 = vunpack.c.l.s4 1983009808
      %v2373 = vunpack.c.0.s8 %v2372
      %v2374 = vlaneseq
      %v2375 = vshrl.u32 %v2374, 7
      %v2376 = vsub.s32 %v2373, %v2375
      %v2377 = vrot.slane %v2369, %v2376
      %v2379 = vunpack.c.l.s4 1983009808
      %v2380 = vunpack.c.0.s8 %v2379
      %v2381 = vlaneseq
      %v2382 = vshrl.u32 %v2381, 7
      %v2383 = vsub.s32 %v2380, %v2382
      %v2384 = vrot.slane %v2370, %v2383
      %v2385 = vcombine.low %v2377, %v2384
      %v2386 = vcombine.low %v1232, %v1233
      %v2387 = vcombine.low %v1240, %v1542
      %v2389 = vunpack.c.l.s4 1983009808
      %v2390 = vunpack.c.0.s8 %v2389
      %v2391 = vlaneseq
      %v2392 = vshrl.u32 %v2391, 7
      %v2393 = vsub.s32 %v2390, %v2392
      %v2394 = vrot.slane %v2386, %v2393
      %v2396 = vunpack.c.l.s4 1983009808
      %v2397 = vunpack.c.0.s8 %v2396
      %v2398 = vlaneseq
      %v2399 = vshrl.u32 %v2398, 7
      %v2400 = vsub.s32 %v2397, %v2399
      %v2401 = vrot.slane %v2387, %v2400
      %v2402 = vcombine.low %v2394, %v2401
      %v2403 = vcombine.low %v1248, %v1255
      %v2404 = vcombine.low %v1256, %v1263
      %v2406 = vunpack.c.l.s4 1983009808
      %v2407 = vunpack.c.0.s8 %v2406
      %v2408 = vlaneseq
      %v2409 = vshrl.u32 %v2408, 7
      %v2410 = vsub.s32 %v2407, %v2409
      %v2411 = vrot.slane %v2403, %v2410
      %v2413 = vunpack.c.l.s4 1983009808
      %v2414 = vunpack.c.0.s8 %v2413
      %v2415 = vlaneseq
      %v2416 = vshrl.u32 %v2415, 7
      %v2417 = vsub.s32 %v2414, %v2416
      %v2418 = vrot.slane %v2404, %v2417
      %v2419 = vcombine.low %v2411, %v2418
      %v2420 = vcombine.low %v1543, %v1271
      %v2421 = vcombine.low %v1278, %v1279
      %v2423 = vunpack.c.l.s4 1983009808
      %v2424 = vunpack.c.0.s8 %v2423
      %v2425 = vlaneseq
      %v2426 = vshrl.u32 %v2425, 7
      %v2427 = vsub.s32 %v2424, %v2426
      %v2428 = vrot.slane %v2420, %v2427
      %v2430 = vunpack.c.l.s4 1983009808
      %v2431 = vunpack.c.0.s8 %v2430
      %v2432 = vlaneseq
      %v2433 = vshrl.u32 %v2432, 7
      %v2434 = vsub.s32 %v2431, %v2433
      %v2435 = vrot.slane %v2421, %v2434
      %v2436 = vcombine.low %v2428, %v2435
      %v2437 = vcombine.low %v1286, %v1544
      %v2439 = vunpack.c.l.s4 1983009808
      %v2440 = vunpack.c.0.s8 %v2439
      %v2441 = vlaneseq
      %v2442 = vshrl.u32 %v2441, 7
      %v2443 = vsub.s32 %v2440, %v2442
      %v2444 = vrot.slane %v2437, %v2443
      %v2458 = vpack.c.bf16 %v2266, %v2249
      %v2459 = vpack.c.bf16 %v2300, %v2283
      %v2460 = vpack.c.bf16 %v2334, %v2317
      %v2461 = vpack.c.bf16 %v2368, %v2351
      %v2462 = vpack.c.bf16 %v2402, %v2385
      %v2463 = vpack.c.bf16 %v2436, %v2419
      %v2464 = vpack.c.bf16 %v2444, %v2444
      %s2465 = scalar_lea.vmem %s3, 128
      %v2466 = vld [vmem:[%s2465] sm:$0xf]
      %v2467 = vld [vmem:[%s2465 + $0x4] sm:$0xf]
      %v2468 = vld [vmem:[%s2465 + $0x8] sm:$0xf]
      %v2469 = vld [vmem:[%s2465 + $0xc] sm:$0xf]
      %v2470 = vld [vmem:[%s2465 + $0x10] sm:$0xf]
      %v2471 = vld [vmem:[%s2465 + $0x14] sm:$0xf]
      %v2472 = vld [vmem:[%s2465 + $0x18] sm:$0xf]
      %v2473 = vld [vmem:[%s2465 + $0x1c] sm:$0xf]
      %v2474 = vld [vmem:[%s2465 + $0x20] sm:$0xf]
      %v2475 = vld [vmem:[%s2465 + $0x24] sm:$0xf]
      %v2476 = vld [vmem:[%s2465 + $0x28] sm:$0xf]
      %v2477 = vld [vmem:[%s2465 + $0x2c] sm:$0xf]
      %v2478 = vld [vmem:[%s2465 + $0x30] sm:$0xf]
      %v2479 = vld [vmem:[%s2465 + $0x34] sm:$0xf]
      %v2480 = vld [vmem:[%s2465 + $0x38] sm:$0xf]
      %v2481 = vld [vmem:[%s2465 + $0x3c] sm:$0xf]
      %v2498 = vunpack.c.l.b16 %v2466
      %v2499 = vunpack.c.l.b16 %v2467
      %v2500 = vunpack.c.l.b16 %v2468
      %v2501 = vunpack.c.l.b16 %v2469
      %v2502 = vunpack.c.l.b16 %v2470
      %v2503 = vunpack.c.l.b16 %v2471
      %v2504 = vunpack.c.l.b16 %v2472
      %v2505 = vunpack.c.l.b16 %v2473
      %v2506 = vunpack.c.l.b16 %v2474
      %v2507 = vunpack.c.l.b16 %v2475
      %v2508 = vunpack.c.l.b16 %v2476
      %v2509 = vunpack.c.l.b16 %v2477
      %v2510 = vunpack.c.l.b16 %v2478
      %v2511 = vunpack.c.l.b16 %v2479
      %v2512 = vunpack.c.l.b16 %v2480
      %v2513 = vunpack.c.l.b16 %v2481
      %v2514 = vpack.c.b16 %v2499, %v2498
      %v2515 = vpack.c.b16 %v2501, %v2500
      %v2516 = vpack.c.b16 %v2503, %v2502
      %v2517 = vpack.c.b16 %v2505, %v2504
      %v2518 = vpack.c.b16 %v2507, %v2506
      %v2519 = vpack.c.b16 %v2509, %v2508
      %v2520 = vpack.c.b16 %v2511, %v2510
      %v2521 = vpack.c.b16 %v2513, %v2512
      %2530 = vmatprep.subr.bf16.mxu0 0
      %2531 = vmatpush1.bf16.msra.mxu0 %v2514
      %2532 = vmatprep.subr.bf16.mxu0 0
      %2533 = vmatpush1.bf16.msra.mxu0 %v2515
      %2534 = vmatprep.subr.bf16.mxu0 0
      %2535 = vmatpush1.bf16.msra.mxu0 %v2516
      %2536 = vmatprep.subr.bf16.mxu0 0
      %2537 = vmatpush1.bf16.msra.mxu0 %v2517
      %2538 = vmatprep.subr.bf16.mxu0 0
      %2539 = vmatpush1.bf16.msra.mxu0 %v2518
      %2540 = vmatprep.subr.bf16.mxu0 0
      %2541 = vmatpush1.bf16.msra.mxu0 %v2519
      %2542 = vmatprep.subr.bf16.mxu0 0
      %2543 = vmatpush1.bf16.msra.mxu0 %v2520
      %2544 = vmatprep.subr.bf16.mxu0 0
      %2545 = vmatpush1.bf16.msra.mxu0 %v2521
      %2546 = vmatprep.subr.bf16.mxu0 0
      %2547 = vmatpush1.bf16.msra.mxu0 0
      %2548 = vmatprep.subr.bf16.mxu0 0
      %2549 = vmatpush1.bf16.msra.mxu0 0
      %2550 = vmatprep.subr.bf16.mxu0 0
      %2551 = vmatpush1.bf16.msra.mxu0 0
      %2552 = vmatprep.subr.bf16.mxu0 0
      %2553 = vmatpush1.bf16.msra.mxu0 0
      %2554 = vmatprep.subr.bf16.mxu0 0
      %2555 = vmatpush1.bf16.msra.mxu0 0
      %2556 = vmatprep.subr.bf16.mxu0 0
      %2557 = vmatpush1.bf16.msra.mxu0 0
      %2558 = vmatprep.subr.bf16.mxu0 0
      %2559 = vmatpush1.bf16.msra.mxu0 0
      %2560 = vmatprep.subr.bf16.mxu0 0
      %2561 = vmatpush1.bf16.msra.mxu0 0
      %2562 = vmatprep.mubr.bf16.mxu0 0
      %2563 = vmatmul.mubr.bf16.gmra.mrb[0].mxu0 %v2458
      %v2564 = vpop.f32.mrb[0].mxu0
      %v2565 = vadd.f32 0.0, %v2564
      %v2566 = vpop.f32.mrb[0].mxu0
      %v2567 = vpop.f32.mrb[0].mxu0
      %v2568 = vadd.f32 0.0, %v2567
      %v2569 = vpop.f32.mrb[0].mxu0
      %2570 = vmatprep.mubr.bf16.mxu0 0
      %2571 = vmatmul.mubr.bf16.gmra.mrb[0].mxu0 %v2459
      %v2572 = vpop.f32.mrb[0].mxu0
      %v2573 = vadd.f32 0.0, %v2572
      %v2574 = vpop.f32.mrb[0].mxu0
      %v2575 = vpop.f32.mrb[0].mxu0
      %v2576 = vadd.f32 0.0, %v2575
      %v2577 = vpop.f32.mrb[0].mxu0
      %2578 = vmatprep.mubr.bf16.mxu0 0
      %2579 = vmatmul.mubr.bf16.gmra.mrb[0].mxu0 %v2460
      %v2580 = vpop.f32.mrb[0].mxu0
      %v2581 = vadd.f32 0.0, %v2580
      %v2582 = vpop.f32.mrb[0].mxu0
      %v2583 = vpop.f32.mrb[0].mxu0
      %v2584 = vadd.f32 0.0, %v2583
      %v2585 = vpop.f32.mrb[0].mxu0
      %2586 = vmatprep.mubr.bf16.mxu0 0
      %2587 = vmatmul.mubr.bf16.gmra.mrb[0].mxu0 %v2461
      %v2588 = vpop.f32.mrb[0].mxu0
      %v2589 = vadd.f32 0.0, %v2588
      %v2590 = vpop.f32.mrb[0].mxu0
      %v2591 = vpop.f32.mrb[0].mxu0
      %v2592 = vadd.f32 0.0, %v2591
      %v2593 = vpop.f32.mrb[0].mxu0
      %2594 = vmatprep.mubr.bf16.mxu0 0
      %2595 = vmatmul.mubr.bf16.gmra.mrb[0].mxu0 %v2462
      %v2596 = vpop.f32.mrb[0].mxu0
      %v2597 = vadd.f32 0.0, %v2596
      %v2598 = vpop.f32.mrb[0].mxu0
      %v2599 = vpop.f32.mrb[0].mxu0
      %v2600 = vadd.f32 0.0, %v2599
      %v2601 = vpop.f32.mrb[0].mxu0
      %2602 = vmatprep.mubr.bf16.mxu0 0
      %2603 = vmatmul.mubr.bf16.gmra.mrb[0].mxu0 %v2463
      %v2604 = vpop.f32.mrb[0].mxu0
      %v2605 = vadd.f32 0.0, %v2604
      %v2606 = vpop.f32.mrb[0].mxu0
      %v2607 = vpop.f32.mrb[0].mxu0
      %v2608 = vadd.f32 0.0, %v2607
      %v2609 = vpop.f32.mrb[0].mxu0
      %2610 = vmatprep.mubr.bf16.mxu0 0
      %2611 = vmatmul.mubr.bf16.gmra.mrb[0].mxu0 %v2464
      %v2612 = vpop.f32.mrb[0].mxu0
      %v2613 = vadd.f32 0.0, %v2612
      %v2614 = vpop.f32.mrb[0].mxu0
      %v2615 = vpop.f32.mrb[0].mxu0
      %v2616 = vpop.f32.mrb[0].mxu0
      %2617 = vdwg.mxu0
      %v2618 = vadd.f32 %v2180, %v2565
      %v2619 = vadd.f32 %v2183, %v2568
      %v2620 = vadd.f32 %v2188, %v2573
      %v2621 = vadd.f32 %v2191, %v2576
      %v2622 = vadd.f32 %v2196, %v2581
      %v2623 = vadd.f32 %v2199, %v2584
      %v2624 = vadd.f32 %v2204, %v2589
      %v2625 = vadd.f32 %v2207, %v2592
      %v2626 = vadd.f32 %v2212, %v2597
      %v2627 = vadd.f32 %v2215, %v2600
      %v2628 = vadd.f32 %v2220, %v2605
      %v2629 = vadd.f32 %v2223, %v2608
      %v2630 = vadd.f32 %v2228, %v2613
      %v2632 = vunpack.c.l.s4 1983009808
      %v2633 = vunpack.c.0.s8 %v2632
      %v2634 = vlaneseq
      %v2635 = vshrl.u32 %v2634, 7
      %v2636 = vsub.s32 %v2633, %v2635
      %v2637 = vrot.slane %v1018, %v2636
      %v2638 = vcombine.high %v2637, %v2637
      %v2640 = vunpack.c.l.s4 1983009808
      %v2641 = vunpack.c.0.s8 %v2640
      %v2642 = vlaneseq
      %v2643 = vshrl.u32 %v2642, 7
      %v2644 = vsub.s32 %v2641, %v2643
      %v2645 = vrot.slane %v1054, %v2644
      %v2646 = vcombine.high %v2645, %v2645
      %v2648 = vunpack.c.l.s4 1983009808
      %v2649 = vunpack.c.0.s8 %v2648
      %v2650 = vlaneseq
      %v2651 = vshrl.u32 %v2650, 7
      %v2652 = vsub.s32 %v2649, %v2651
      %v2653 = vrot.slane %v1019, %v2652
      %v2654 = vcombine.low %v1086, %v1087
      %v2656 = vunpack.c.l.s4 1983009808
      %v2657 = vunpack.c.0.s8 %v2656
      %v2658 = vlaneseq
      %v2659 = vshrl.u32 %v2658, 7
      %v2660 = vsub.s32 %v2657, %v2659
      %v2661 = vrot.slane %v2654, %v2660
      %v2662 = vcombine.low %v2661, %v2265
      %v2663 = vcombine.low %v1102, %v1109
      %v2665 = vunpack.c.l.s4 1983009808
      %v2666 = vunpack.c.0.s8 %v2665
      %v2667 = vlaneseq
      %v2668 = vshrl.u32 %v2667, 7
      %v2669 = vsub.s32 %v2666, %v2668
      %v2670 = vrot.slane %v2663, %v2669
      %v2671 = vcombine.low %v2670, %v2282
      %v2672 = vcombine.low %v1132, %v1133
      %v2674 = vunpack.c.l.s4 1983009808
      %v2675 = vunpack.c.0.s8 %v2674
      %v2676 = vlaneseq
      %v2677 = vshrl.u32 %v2676, 7
      %v2678 = vsub.s32 %v2675, %v2677
      %v2679 = vrot.slane %v2672, %v2678
      %v2680 = vcombine.low %v2292, %v2679
      %v2681 = vcombine.low %v1148, %v1155
      %v2683 = vunpack.c.l.s4 1983009808
      %v2684 = vunpack.c.0.s8 %v2683
      %v2685 = vlaneseq
      %v2686 = vshrl.u32 %v2685, 7
      %v2687 = vsub.s32 %v2684, %v2686
      %v2688 = vrot.slane %v2681, %v2687
      %v2689 = vcombine.low %v2309, %v2688
      %v2690 = vcombine.low %v1178, %v1179
      %v2692 = vunpack.c.l.s4 1983009808
      %v2693 = vunpack.c.0.s8 %v2692
      %v2694 = vlaneseq
      %v2695 = vshrl.u32 %v2694, 7
      %v2696 = vsub.s32 %v2693, %v2695
      %v2697 = vrot.slane %v2690, %v2696
      %v2698 = vcombine.low %v2697, %v2350
      %v2699 = vcombine.low %v1194, %v1201
      %v2701 = vunpack.c.l.s4 1983009808
      %v2702 = vunpack.c.0.s8 %v2701
      %v2703 = vlaneseq
      %v2704 = vshrl.u32 %v2703, 7
      %v2705 = vsub.s32 %v2702, %v2704
      %v2706 = vrot.slane %v2699, %v2705
      %v2707 = vcombine.low %v2706, %v2367
      %v2708 = vcombine.low %v1224, %v1225
      %v2710 = vunpack.c.l.s4 1983009808
      %v2711 = vunpack.c.0.s8 %v2710
      %v2712 = vlaneseq
      %v2713 = vshrl.u32 %v2712, 7
      %v2714 = vsub.s32 %v2711, %v2713
      %v2715 = vrot.slane %v2708, %v2714
      %v2716 = vcombine.low %v2377, %v2715
      %v2717 = vcombine.low %v1240, %v1247
      %v2719 = vunpack.c.l.s4 1983009808
      %v2720 = vunpack.c.0.s8 %v2719
      %v2721 = vlaneseq
      %v2722 = vshrl.u32 %v2721, 7
      %v2723 = vsub.s32 %v2720, %v2722
      %v2724 = vrot.slane %v2717, %v2723
      %v2725 = vcombine.low %v2394, %v2724
      %v2726 = vcombine.low %v1270, %v1271
      %v2728 = vunpack.c.l.s4 1983009808
      %v2729 = vunpack.c.0.s8 %v2728
      %v2730 = vlaneseq
      %v2731 = vshrl.u32 %v2730, 7
      %v2732 = vsub.s32 %v2729, %v2731
      %v2733 = vrot.slane %v2726, %v2732
      %v2734 = vcombine.low %v2733, %v2435
      %v2735 = vcombine.low %v1286, %v2637
      %v2736 = vcombine.low %v2638, %v2645
      %v2738 = vunpack.c.l.s4 1983009808
      %v2739 = vunpack.c.0.s8 %v2738
      %v2740 = vlaneseq
      %v2741 = vshrl.u32 %v2740, 7
      %v2742 = vsub.s32 %v2739, %v2741
      %v2743 = vrot.slane %v2735, %v2742
      %v2745 = vunpack.c.l.s4 1983009808
      %v2746 = vunpack.c.0.s8 %v2745
      %v2747 = vlaneseq
      %v2748 = vshrl.u32 %v2747, 7
      %v2749 = vsub.s32 %v2746, %v2748
      %v2750 = vrot.slane %v2736, %v2749
      %v2751 = vcombine.low %v2743, %v2750
      %v2752 = vcombine.low %v2646, %v2653
      %v2754 = vunpack.c.l.s4 1983009808
      %v2755 = vunpack.c.0.s8 %v2754
      %v2756 = vlaneseq
      %v2757 = vshrl.u32 %v2756, 7
      %v2758 = vsub.s32 %v2755, %v2757
      %v2759 = vrot.slane %v2752, %v2758
      %v2771 = vpack.c.bf16 %v2671, %v2662
      %v2772 = vpack.c.bf16 %v2689, %v2680
      %v2773 = vpack.c.bf16 %v2698, %v2334
      %v2774 = vpack.c.bf16 %v2716, %v2707
      %v2775 = vpack.c.bf16 %v2419, %v2725
      %v2776 = vpack.c.bf16 %v2751, %v2734
      %v2777 = vpack.c.bf16 %v2759, %v2759
      %s2778 = scalar_lea.vmem %s3, 192
      %v2779 = vld [vmem:[%s2778] sm:$0xf]
      %v2780 = vld [vmem:[%s2778 + $0x4] sm:$0xf]
      %v2781 = vld [vmem:[%s2778 + $0x8] sm:$0xf]
      %v2782 = vld [vmem:[%s2778 + $0xc] sm:$0xf]
      %v2783 = vld [vmem:[%s2778 + $0x10] sm:$0xf]
      %v2784 = vld [vmem:[%s2778 + $0x14] sm:$0xf]
      %v2785 = vld [vmem:[%s2778 + $0x18] sm:$0xf]
      %v2786 = vld [vmem:[%s2778 + $0x1c] sm:$0xf]
      %v2787 = vld [vmem:[%s2778 + $0x20] sm:$0xf]
      %v2788 = vld [vmem:[%s2778 + $0x24] sm:$0xf]
      %v2789 = vld [vmem:[%s2778 + $0x28] sm:$0xf]
      %v2790 = vld [vmem:[%s2778 + $0x2c] sm:$0xf]
      %v2791 = vld [vmem:[%s2778 + $0x30] sm:$0xf]
      %v2792 = vld [vmem:[%s2778 + $0x34] sm:$0xf]
      %v2793 = vld [vmem:[%s2778 + $0x38] sm:$0xf]
      %v2794 = vld [vmem:[%s2778 + $0x3c] sm:$0xf]
      %v2811 = vunpack.c.l.b16 %v2779
      %v2812 = vunpack.c.l.b16 %v2780
      %v2813 = vunpack.c.l.b16 %v2781
      %v2814 = vunpack.c.l.b16 %v2782
      %v2815 = vunpack.c.l.b16 %v2783
      %v2816 = vunpack.c.l.b16 %v2784
      %v2817 = vunpack.c.l.b16 %v2785
      %v2818 = vunpack.c.l.b16 %v2786
      %v2819 = vunpack.c.l.b16 %v2787
      %v2820 = vunpack.c.l.b16 %v2788
      %v2821 = vunpack.c.l.b16 %v2789
      %v2822 = vunpack.c.l.b16 %v2790
      %v2823 = vunpack.c.l.b16 %v2791
      %v2824 = vunpack.c.l.b16 %v2792
      %v2825 = vunpack.c.l.b16 %v2793
      %v2826 = vunpack.c.l.b16 %v2794
      %v2827 = vpack.c.b16 %v2812, %v2811
      %v2828 = vpack.c.b16 %v2814, %v2813
      %v2829 = vpack.c.b16 %v2816, %v2815
      %v2830 = vpack.c.b16 %v2818, %v2817
      %v2831 = vpack.c.b16 %v2820, %v2819
      %v2832 = vpack.c.b16 %v2822, %v2821
      %v2833 = vpack.c.b16 %v2824, %v2823
      %v2834 = vpack.c.b16 %v2826, %v2825
      %2843 = vmatprep.subr.bf16.mxu0 0
      %2844 = vmatpush1.bf16.msra.mxu0 %v2827
      %2845 = vmatprep.subr.bf16.mxu0 0
      %2846 = vmatpush1.bf16.msra.mxu0 %v2828
      %2847 = vmatprep.subr.bf16.mxu0 0
      %2848 = vmatpush1.bf16.msra.mxu0 %v2829
      %2849 = vmatprep.subr.bf16.mxu0 0
      %2850 = vmatpush1.bf16.msra.mxu0 %v2830
      %2851 = vmatprep.subr.bf16.mxu0 0
      %2852 = vmatpush1.bf16.msra.mxu0 %v2831
      %2853 = vmatprep.subr.bf16.mxu0 0
      %2854 = vmatpush1.bf16.msra.mxu0 %v2832
      %2855 = vmatprep.subr.bf16.mxu0 0
      %2856 = vmatpush1.bf16.msra.mxu0 %v2833
      %2857 = vmatprep.subr.bf16.mxu0 0
      %2858 = vmatpush1.bf16.msra.mxu0 %v2834
      %2859 = vmatprep.subr.bf16.mxu0 0
      %2860 = vmatpush1.bf16.msra.mxu0 0
      %2861 = vmatprep.subr.bf16.mxu0 0
      %2862 = vmatpush1.bf16.msra.mxu0 0
      %2863 = vmatprep.subr.bf16.mxu0 0
      %2864 = vmatpush1.bf16.msra.mxu0 0
      %2865 = vmatprep.subr.bf16.mxu0 0
      %2866 = vmatpush1.bf16.msra.mxu0 0
      %2867 = vmatprep.subr.bf16.mxu0 0
      %2868 = vmatpush1.bf16.msra.mxu0 0
      %2869 = vmatprep.subr.bf16.mxu0 0
      %2870 = vmatpush1.bf16.msra.mxu0 0
      %2871 = vmatprep.subr.bf16.mxu0 0
      %2872 = vmatpush1.bf16.msra.mxu0 0
      %2873 = vmatprep.subr.bf16.mxu0 0
      %2874 = vmatpush1.bf16.msra.mxu0 0
      %2875 = vmatprep.mubr.bf16.mxu0 0
      %2876 = vmatmul.mubr.bf16.gmra.mrb[0].mxu0 %v2771
      %v2877 = vpop.f32.mrb[0].mxu0
      %v2878 = vadd.f32 0.0, %v2877
      %v2879 = vpop.f32.mrb[0].mxu0
      %v2880 = vpop.f32.mrb[0].mxu0
      %v2881 = vadd.f32 0.0, %v2880
      %v2882 = vpop.f32.mrb[0].mxu0
      %2883 = vmatprep.mubr.bf16.mxu0 0
      %2884 = vmatmul.mubr.bf16.gmra.mrb[0].mxu0 %v2772
      %v2885 = vpop.f32.mrb[0].mxu0
      %v2886 = vadd.f32 0.0, %v2885
      %v2887 = vpop.f32.mrb[0].mxu0
      %v2888 = vpop.f32.mrb[0].mxu0
      %v2889 = vadd.f32 0.0, %v2888
      %v2890 = vpop.f32.mrb[0].mxu0
      %2891 = vmatprep.mubr.bf16.mxu0 0
      %2892 = vmatmul.mubr.bf16.gmra.mrb[0].mxu0 %v2773
      %v2893 = vpop.f32.mrb[0].mxu0
      %v2894 = vadd.f32 0.0, %v2893
      %v2895 = vpop.f32.mrb[0].mxu0
      %v2896 = vpop.f32.mrb[0].mxu0
      %v2897 = vadd.f32 0.0, %v2896
      %v2898 = vpop.f32.mrb[0].mxu0
      %2899 = vmatprep.mubr.bf16.mxu0 0
      %2900 = vmatmul.mubr.bf16.gmra.mrb[0].mxu0 %v2774
      %v2901 = vpop.f32.mrb[0].mxu0
      %v2902 = vadd.f32 0.0, %v2901
      %v2903 = vpop.f32.mrb[0].mxu0
      %v2904 = vpop.f32.mrb[0].mxu0
      %v2905 = vadd.f32 0.0, %v2904
      %v2906 = vpop.f32.mrb[0].mxu0
      %2907 = vmatprep.mubr.bf16.mxu0 0
      %2908 = vmatmul.mubr.bf16.gmra.mrb[0].mxu0 %v2775
      %v2909 = vpop.f32.mrb[0].mxu0
      %v2910 = vadd.f32 0.0, %v2909
      %v2911 = vpop.f32.mrb[0].mxu0
      %v2912 = vpop.f32.mrb[0].mxu0
      %v2913 = vadd.f32 0.0, %v2912
      %v2914 = vpop.f32.mrb[0].mxu0
      %2915 = vmatprep.mubr.bf16.mxu0 0
      %2916 = vmatmul.mubr.bf16.gmra.mrb[0].mxu0 %v2776
      %v2917 = vpop.f32.mrb[0].mxu0
      %v2918 = vadd.f32 0.0, %v2917
      %v2919 = vpop.f32.mrb[0].mxu0
      %v2920 = vpop.f32.mrb[0].mxu0
      %v2921 = vadd.f32 0.0, %v2920
      %v2922 = vpop.f32.mrb[0].mxu0
      %2923 = vmatprep.mubr.bf16.mxu0 0
      %2924 = vmatmul.mubr.bf16.gmra.mrb[0].mxu0 %v2777
      %v2925 = vpop.f32.mrb[0].mxu0
      %v2926 = vadd.f32 0.0, %v2925
      %v2927 = vpop.f32.mrb[0].mxu0
      %v2928 = vpop.f32.mrb[0].mxu0
      %v2929 = vpop.f32.mrb[0].mxu0
      %2930 = vdwg.mxu0
      %v2931 = vadd.f32 %v2618, %v2878
      %v2932 = vadd.f32 %v2619, %v2881
      %v2933 = vadd.f32 %v2620, %v2886
      %v2934 = vadd.f32 %v2621, %v2889
      %v2935 = vadd.f32 %v2622, %v2894
      %v2936 = vadd.f32 %v2623, %v2897
      %v2937 = vadd.f32 %v2624, %v2902
      %v2938 = vadd.f32 %v2625, %v2905
      %v2939 = vadd.f32 %v2626, %v2910
      %v2940 = vadd.f32 %v2627, %v2913
      %v2941 = vadd.f32 %v2628, %v2918
      %v2942 = vadd.f32 %v2629, %v2921
      %v2943 = vadd.f32 %v2630, %v2926
      %v2944 = vcombine.high %v2653, %v2653
      %v2945 = vrot.slane %v2637, 7
      %v2946 = vrot.slane %v2945, 2
      %v2947 = vrot.slane %v2638, 7
      %v2948 = vsel %vm1551, %v2946, %v2947
      %v2949 = vrot.slane %v2947, 2
      %v2950 = vrot.slane %v2645, 7
      %v2951 = vsel %vm1551, %v2949, %v2950
      %v2952 = vrot.slane %v2950, 2
      %v2953 = vrot.slane %v2646, 7
      %v2954 = vsel %vm1551, %v2952, %v2953
      %v2955 = vrot.slane %v2953, 2
      %v2956 = vrot.slane %v2653, 7
      %v2957 = vsel %vm1551, %v2955, %v2956
      %v2958 = vrot.slane %v2956, 2
      %v2959 = vrot.slane %v2944, 7
      %v2960 = vsel %vm1551, %v2958, %v2959
      %v2961 = vcombine.low %v1571, %v1574
      %v2962 = vcombine.low %v1577, %v1580
      %v2964 = vunpack.c.l.s4 1983009808
      %v2965 = vunpack.c.0.s8 %v2964
      %v2966 = vlaneseq
      %v2967 = vshrl.u32 %v2966, 7
      %v2968 = vsub.s32 %v2965, %v2967
      %v2969 = vrot.slane %v2961, %v2968
      %v2971 = vunpack.c.l.s4 1983009808
      %v2972 = vunpack.c.0.s8 %v2971
      %v2973 = vlaneseq
      %v2974 = vshrl.u32 %v2973, 7
      %v2975 = vsub.s32 %v2972, %v2974
      %v2976 = vrot.slane %v2962, %v2975
      %v2977 = vcombine.low %v2969, %v2976
      %v2978 = vcombine.low %v1583, %v1587
      %v2979 = vcombine.low %v1590, %v1593
      %v2981 = vunpack.c.l.s4 1983009808
      %v2982 = vunpack.c.0.s8 %v2981
      %v2983 = vlaneseq
      %v2984 = vshrl.u32 %v2983, 7
      %v2985 = vsub.s32 %v2982, %v2984
      %v2986 = vrot.slane %v2978, %v2985
      %v2988 = vunpack.c.l.s4 1983009808
      %v2989 = vunpack.c.0.s8 %v2988
      %v2990 = vlaneseq
      %v2991 = vshrl.u32 %v2990, 7
      %v2992 = vsub.s32 %v2989, %v2991
      %v2993 = vrot.slane %v2979, %v2992
      %v2994 = vcombine.low %v2986, %v2993
      %v2995 = vcombine.low %v1596, %v1599
      %v2996 = vcombine.low %v1603, %v1606
      %v2998 = vunpack.c.l.s4 1983009808
      %v2999 = vunpack.c.0.s8 %v2998
      %v3000 = vlaneseq
      %v3001 = vshrl.u32 %v3000, 7
      %v3002 = vsub.s32 %v2999, %v3001
      %v3003 = vrot.slane %v2995, %v3002
      %v3005 = vunpack.c.l.s4 1983009808
      %v3006 = vunpack.c.0.s8 %v3005
      %v3007 = vlaneseq
      %v3008 = vshrl.u32 %v3007, 7
      %v3009 = vsub.s32 %v3006, %v3008
      %v3010 = vrot.slane %v2996, %v3009
      %v3011 = vcombine.low %v3003, %v3010
      %v3012 = vcombine.low %v1609, %v1612
      %v3013 = vcombine.low %v1615, %v1619
      %v3015 = vunpack.c.l.s4 1983009808
      %v3016 = vunpack.c.0.s8 %v3015
      %v3017 = vlaneseq
      %v3018 = vshrl.u32 %v3017, 7
      %v3019 = vsub.s32 %v3016, %v3018
      %v3020 = vrot.slane %v3012, %v3019
      %v3022 = vunpack.c.l.s4 1983009808
      %v3023 = vunpack.c.0.s8 %v3022
      %v3024 = vlaneseq
      %v3025 = vshrl.u32 %v3024, 7
      %v3026 = vsub.s32 %v3023, %v3025
      %v3027 = vrot.slane %v3013, %v3026
      %v3028 = vcombine.low %v3020, %v3027
      %v3029 = vcombine.low %v1622, %v1625
      %v3030 = vcombine.low %v1628, %v1631
      %v3032 = vunpack.c.l.s4 1983009808
      %v3033 = vunpack.c.0.s8 %v3032
      %v3034 = vlaneseq
      %v3035 = vshrl.u32 %v3034, 7
      %v3036 = vsub.s32 %v3033, %v3035
      %v3037 = vrot.slane %v3029, %v3036
      %v3039 = vunpack.c.l.s4 1983009808
      %v3040 = vunpack.c.0.s8 %v3039
      %v3041 = vlaneseq
      %v3042 = vshrl.u32 %v3041, 7
      %v3043 = vsub.s32 %v3040, %v3042
      %v3044 = vrot.slane %v3030, %v3043
      %v3045 = vcombine.low %v3037, %v3044
      %v3046 = vcombine.low %v1635, %v1638
      %v3047 = vcombine.low %v1641, %v1644
      %v3049 = vunpack.c.l.s4 1983009808
      %v3050 = vunpack.c.0.s8 %v3049
      %v3051 = vlaneseq
      %v3052 = vshrl.u32 %v3051, 7
      %v3053 = vsub.s32 %v3050, %v3052
      %v3054 = vrot.slane %v3046, %v3053
      %v3056 = vunpack.c.l.s4 1983009808
      %v3057 = vunpack.c.0.s8 %v3056
      %v3058 = vlaneseq
      %v3059 = vshrl.u32 %v3058, 7
      %v3060 = vsub.s32 %v3057, %v3059
      %v3061 = vrot.slane %v3047, %v3060
      %v3062 = vcombine.low %v3054, %v3061
      %v3063 = vcombine.low %v1647, %v1651
      %v3064 = vcombine.low %v1654, %v1657
      %v3066 = vunpack.c.l.s4 1983009808
      %v3067 = vunpack.c.0.s8 %v3066
      %v3068 = vlaneseq
      %v3069 = vshrl.u32 %v3068, 7
      %v3070 = vsub.s32 %v3067, %v3069
      %v3071 = vrot.slane %v3063, %v3070
      %v3073 = vunpack.c.l.s4 1983009808
      %v3074 = vunpack.c.0.s8 %v3073
      %v3075 = vlaneseq
      %v3076 = vshrl.u32 %v3075, 7
      %v3077 = vsub.s32 %v3074, %v3076
      %v3078 = vrot.slane %v3064, %v3077
      %v3079 = vcombine.low %v3071, %v3078
      %v3080 = vcombine.low %v1660, %v1663
      %v3081 = vcombine.low %v1667, %v1670
      %v3083 = vunpack.c.l.s4 1983009808
      %v3084 = vunpack.c.0.s8 %v3083
      %v3085 = vlaneseq
      %v3086 = vshrl.u32 %v3085, 7
      %v3087 = vsub.s32 %v3084, %v3086
      %v3088 = vrot.slane %v3080, %v3087
      %v3090 = vunpack.c.l.s4 1983009808
      %v3091 = vunpack.c.0.s8 %v3090
      %v3092 = vlaneseq
      %v3093 = vshrl.u32 %v3092, 7
      %v3094 = vsub.s32 %v3091, %v3093
      %v3095 = vrot.slane %v3081, %v3094
      %v3096 = vcombine.low %v3088, %v3095
      %v3097 = vcombine.low %v1673, %v1676
      %v3098 = vcombine.low %v1679, %v1683
      %v3100 = vunpack.c.l.s4 1983009808
      %v3101 = vunpack.c.0.s8 %v3100
      %v3102 = vlaneseq
      %v3103 = vshrl.u32 %v3102, 7
      %v3104 = vsub.s32 %v3101, %v3103
      %v3105 = vrot.slane %v3097, %v3104
      %v3107 = vunpack.c.l.s4 1983009808
      %v3108 = vunpack.c.0.s8 %v3107
      %v3109 = vlaneseq
      %v3110 = vshrl.u32 %v3109, 7
      %v3111 = vsub.s32 %v3108, %v3110
      %v3112 = vrot.slane %v3098, %v3111
      %v3113 = vcombine.low %v3105, %v3112
      %v3114 = vcombine.low %v1686, %v1689
      %v3115 = vcombine.low %v1692, %v1695
      %v3117 = vunpack.c.l.s4 1983009808
      %v3118 = vunpack.c.0.s8 %v3117
      %v3119 = vlaneseq
      %v3120 = vshrl.u32 %v3119, 7
      %v3121 = vsub.s32 %v3118, %v3120
      %v3122 = vrot.slane %v3114, %v3121
      %v3124 = vunpack.c.l.s4 1983009808
      %v3125 = vunpack.c.0.s8 %v3124
      %v3126 = vlaneseq
      %v3127 = vshrl.u32 %v3126, 7
      %v3128 = vsub.s32 %v3125, %v3127
      %v3129 = vrot.slane %v3115, %v3128
      %v3130 = vcombine.low %v3122, %v3129
      %v3131 = vcombine.low %v1699, %v1702
      %v3132 = vcombine.low %v1705, %v1708
      %v3134 = vunpack.c.l.s4 1983009808
      %v3135 = vunpack.c.0.s8 %v3134
      %v3136 = vlaneseq
      %v3137 = vshrl.u32 %v3136, 7
      %v3138 = vsub.s32 %v3135, %v3137
      %v3139 = vrot.slane %v3131, %v3138
      %v3141 = vunpack.c.l.s4 1983009808
      %v3142 = vunpack.c.0.s8 %v3141
      %v3143 = vlaneseq
      %v3144 = vshrl.u32 %v3143, 7
      %v3145 = vsub.s32 %v3142, %v3144
      %v3146 = vrot.slane %v3132, %v3145
      %v3147 = vcombine.low %v3139, %v3146
      %v3148 = vcombine.low %v1711, %v2948
      %v3149 = vcombine.low %v2951, %v2954
      %v3151 = vunpack.c.l.s4 1983009808
      %v3152 = vunpack.c.0.s8 %v3151
      %v3153 = vlaneseq
      %v3154 = vshrl.u32 %v3153, 7
      %v3155 = vsub.s32 %v3152, %v3154
      %v3156 = vrot.slane %v3148, %v3155
      %v3158 = vunpack.c.l.s4 1983009808
      %v3159 = vunpack.c.0.s8 %v3158
      %v3160 = vlaneseq
      %v3161 = vshrl.u32 %v3160, 7
      %v3162 = vsub.s32 %v3159, %v3161
      %v3163 = vrot.slane %v3149, %v3162
      %v3164 = vcombine.low %v3156, %v3163
      %v3165 = vcombine.low %v2957, %v2960
      %v3167 = vunpack.c.l.s4 1983009808
      %v3168 = vunpack.c.0.s8 %v3167
      %v3169 = vlaneseq
      %v3170 = vshrl.u32 %v3169, 7
      %v3171 = vsub.s32 %v3168, %v3170
      %v3172 = vrot.slane %v3165, %v3171
      %v3186 = vpack.c.bf16 %v2994, %v2977
      %v3187 = vpack.c.bf16 %v3028, %v3011
      %v3188 = vpack.c.bf16 %v3062, %v3045
      %v3189 = vpack.c.bf16 %v3096, %v3079
      %v3190 = vpack.c.bf16 %v3130, %v3113
      %v3191 = vpack.c.bf16 %v3164, %v3147
      %v3192 = vpack.c.bf16 %v3172, %v3172
      %s3193 = scalar_lea.vmem %s3, 256
      %v3194 = vld [vmem:[%s3193] sm:$0xf]
      %v3195 = vld [vmem:[%s3193 + $0x4] sm:$0xf]
      %v3196 = vld [vmem:[%s3193 + $0x8] sm:$0xf]
      %v3197 = vld [vmem:[%s3193 + $0xc] sm:$0xf]
      %v3198 = vld [vmem:[%s3193 + $0x10] sm:$0xf]
      %v3199 = vld [vmem:[%s3193 + $0x14] sm:$0xf]
      %v3200 = vld [vmem:[%s3193 + $0x18] sm:$0xf]
      %v3201 = vld [vmem:[%s3193 + $0x1c] sm:$0xf]
      %v3202 = vld [vmem:[%s3193 + $0x20] sm:$0xf]
      %v3203 = vld [vmem:[%s3193 + $0x24] sm:$0xf]
      %v3204 = vld [vmem:[%s3193 + $0x28] sm:$0xf]
      %v3205 = vld [vmem:[%s3193 + $0x2c] sm:$0xf]
      %v3206 = vld [vmem:[%s3193 + $0x30] sm:$0xf]
      %v3207 = vld [vmem:[%s3193 + $0x34] sm:$0xf]
      %v3208 = vld [vmem:[%s3193 + $0x38] sm:$0xf]
      %v3209 = vld [vmem:[%s3193 + $0x3c] sm:$0xf]
      %v3226 = vunpack.c.l.b16 %v3194
      %v3227 = vunpack.c.l.b16 %v3195
      %v3228 = vunpack.c.l.b16 %v3196
      %v3229 = vunpack.c.l.b16 %v3197
      %v3230 = vunpack.c.l.b16 %v3198
      %v3231 = vunpack.c.l.b16 %v3199
      %v3232 = vunpack.c.l.b16 %v3200
      %v3233 = vunpack.c.l.b16 %v3201
      %v3234 = vunpack.c.l.b16 %v3202
      %v3235 = vunpack.c.l.b16 %v3203
      %v3236 = vunpack.c.l.b16 %v3204
      %v3237 = vunpack.c.l.b16 %v3205
      %v3238 = vunpack.c.l.b16 %v3206
      %v3239 = vunpack.c.l.b16 %v3207
      %v3240 = vunpack.c.l.b16 %v3208
      %v3241 = vunpack.c.l.b16 %v3209
      %v3242 = vpack.c.b16 %v3227, %v3226
      %v3243 = vpack.c.b16 %v3229, %v3228
      %v3244 = vpack.c.b16 %v3231, %v3230
      %v3245 = vpack.c.b16 %v3233, %v3232
      %v3246 = vpack.c.b16 %v3235, %v3234
      %v3247 = vpack.c.b16 %v3237, %v3236
      %v3248 = vpack.c.b16 %v3239, %v3238
      %v3249 = vpack.c.b16 %v3241, %v3240
      %3258 = vmatprep.subr.bf16.mxu0 0
      %3259 = vmatpush1.bf16.msra.mxu0 %v3242
      %3260 = vmatprep.subr.bf16.mxu0 0
      %3261 = vmatpush1.bf16.msra.mxu0 %v3243
      %3262 = vmatprep.subr.bf16.mxu0 0
      %3263 = vmatpush1.bf16.msra.mxu0 %v3244
      %3264 = vmatprep.subr.bf16.mxu0 0
      %3265 = vmatpush1.bf16.msra.mxu0 %v3245
      %3266 = vmatprep.subr.bf16.mxu0 0
      %3267 = vmatpush1.bf16.msra.mxu0 %v3246
      %3268 = vmatprep.subr.bf16.mxu0 0
      %3269 = vmatpush1.bf16.msra.mxu0 %v3247
      %3270 = vmatprep.subr.bf16.mxu0 0
      %3271 = vmatpush1.bf16.msra.mxu0 %v3248
      %3272 = vmatprep.subr.bf16.mxu0 0
      %3273 = vmatpush1.bf16.msra.mxu0 %v3249
      %3274 = vmatprep.subr.bf16.mxu0 0
      %3275 = vmatpush1.bf16.msra.mxu0 0
      %3276 = vmatprep.subr.bf16.mxu0 0
      %3277 = vmatpush1.bf16.msra.mxu0 0
      %3278 = vmatprep.subr.bf16.mxu0 0
      %3279 = vmatpush1.bf16.msra.mxu0 0
      %3280 = vmatprep.subr.bf16.mxu0 0
      %3281 = vmatpush1.bf16.msra.mxu0 0
      %3282 = vmatprep.subr.bf16.mxu0 0
      %3283 = vmatpush1.bf16.msra.mxu0 0
      %3284 = vmatprep.subr.bf16.mxu0 0
      %3285 = vmatpush1.bf16.msra.mxu0 0
      %3286 = vmatprep.subr.bf16.mxu0 0
      %3287 = vmatpush1.bf16.msra.mxu0 0
      %3288 = vmatprep.subr.bf16.mxu0 0
      %3289 = vmatpush1.bf16.msra.mxu0 0
      %3290 = vmatprep.mubr.bf16.mxu0 0
      %3291 = vmatmul.mubr.bf16.gmra.mrb[0].mxu0 %v3186
      %v3292 = vpop.f32.mrb[0].mxu0
      %v3293 = vadd.f32 0.0, %v3292
      %v3294 = vpop.f32.mrb[0].mxu0
      %v3295 = vpop.f32.mrb[0].mxu0
      %v3296 = vadd.f32 0.0, %v3295
      %v3297 = vpop.f32.mrb[0].mxu0
      %3298 = vmatprep.mubr.bf16.mxu0 0
      %3299 = vmatmul.mubr.bf16.gmra.mrb[0].mxu0 %v3187
      %v3300 = vpop.f32.mrb[0].mxu0
      %v3301 = vadd.f32 0.0, %v3300
      %v3302 = vpop.f32.mrb[0].mxu0
      %v3303 = vpop.f32.mrb[0].mxu0
      %v3304 = vadd.f32 0.0, %v3303
      %v3305 = vpop.f32.mrb[0].mxu0
      %3306 = vmatprep.mubr.bf16.mxu0 0
      %3307 = vmatmul.mubr.bf16.gmra.mrb[0].mxu0 %v3188
      %v3308 = vpop.f32.mrb[0].mxu0
      %v3309 = vadd.f32 0.0, %v3308
      %v3310 = vpop.f32.mrb[0].mxu0
      %v3311 = vpop.f32.mrb[0].mxu0
      %v3312 = vadd.f32 0.0, %v3311
      %v3313 = vpop.f32.mrb[0].mxu0
      %3314 = vmatprep.mubr.bf16.mxu0 0
      %3315 = vmatmul.mubr.bf16.gmra.mrb[0].mxu0 %v3189
      %v3316 = vpop.f32.mrb[0].mxu0
      %v3317 = vadd.f32 0.0, %v3316
      %v3318 = vpop.f32.mrb[0].mxu0
      %v3319 = vpop.f32.mrb[0].mxu0
      %v3320 = vadd.f32 0.0, %v3319
      %v3321 = vpop.f32.mrb[0].mxu0
      %3322 = vmatprep.mubr.bf16.mxu0 0
      %3323 = vmatmul.mubr.bf16.gmra.mrb[0].mxu0 %v3190
      %v3324 = vpop.f32.mrb[0].mxu0
      %v3325 = vadd.f32 0.0, %v3324
      %v3326 = vpop.f32.mrb[0].mxu0
      %v3327 = vpop.f32.mrb[0].mxu0
      %v3328 = vadd.f32 0.0, %v3327
      %v3329 = vpop.f32.mrb[0].mxu0
      %3330 = vmatprep.mubr.bf16.mxu0 0
      %3331 = vmatmul.mubr.bf16.gmra.mrb[0].mxu0 %v3191
      %v3332 = vpop.f32.mrb[0].mxu0
      %v3333 = vadd.f32 0.0, %v3332
      %v3334 = vpop.f32.mrb[0].mxu0
      %v3335 = vpop.f32.mrb[0].mxu0
      %v3336 = vadd.f32 0.0, %v3335
      %v3337 = vpop.f32.mrb[0].mxu0
      %3338 = vmatprep.mubr.bf16.mxu0 0
      %3339 = vmatmul.mubr.bf16.gmra.mrb[0].mxu0 %v3192
      %v3340 = vpop.f32.mrb[0].mxu0
      %v3341 = vadd.f32 0.0, %v3340
      %v3342 = vpop.f32.mrb[0].mxu0
      %v3343 = vpop.f32.mrb[0].mxu0
      %v3344 = vpop.f32.mrb[0].mxu0
      %3345 = vdwg.mxu0
      %v3346 = vadd.f32 %v2931, %v3293
      %v3347 = vadd.f32 %v2932, %v3296
      %v3348 = vadd.f32 %v2933, %v3301
      %v3349 = vadd.f32 %v2934, %v3304
      %v3350 = vadd.f32 %v2935, %v3309
      %v3351 = vadd.f32 %v2936, %v3312
      %v3352 = vadd.f32 %v2937, %v3317
      %v3353 = vadd.f32 %v2938, %v3320
      %v3354 = vadd.f32 %v2939, %v3325
      %v3355 = vadd.f32 %v2940, %v3328
      %v3356 = vadd.f32 %v2941, %v3333
      %v3357 = vadd.f32 %v2942, %v3336
      %v3358 = vadd.f32 %v2943, %v3341
      %v3359 = vcombine.low %v1319, %v1329
      %v3360 = vcombine.low %v1536, %v1110
      %v3362 = vunpack.c.l.s4 1983009808
      %v3363 = vunpack.c.0.s8 %v3362
      %v3364 = vlaneseq
      %v3365 = vshrl.u32 %v3364, 7
      %v3366 = vsub.s32 %v3363, %v3365
      %v3367 = vrot.slane %v3360, %v3366
      %v3368 = vcombine.low %v3367, %v1346
      %v3369 = vcombine.low %v1125, %v1537
      %v3371 = vunpack.c.l.s4 1983009808
      %v3372 = vunpack.c.0.s8 %v3371
      %v3373 = vlaneseq
      %v3374 = vshrl.u32 %v3373, 7
      %v3375 = vsub.s32 %v3372, %v3374
      %v3376 = vrot.slane %v3369, %v3375
      %v3377 = vcombine.low %v3376, %v1363
      %v3378 = vcombine.low %v1538, %v1156
      %v3380 = vunpack.c.l.s4 1983009808
      %v3381 = vunpack.c.0.s8 %v3380
      %v3382 = vlaneseq
      %v3383 = vshrl.u32 %v3382, 7
      %v3384 = vsub.s32 %v3381, %v3383
      %v3385 = vrot.slane %v3378, %v3384
      %v3386 = vcombine.low %v1370, %v3385
      %v3387 = vcombine.low %v1171, %v1539
      %v3389 = vunpack.c.l.s4 1983009808
      %v3390 = vunpack.c.0.s8 %v3389
      %v3391 = vlaneseq
      %v3392 = vshrl.u32 %v3391, 7
      %v3393 = vsub.s32 %v3390, %v3392
      %v3394 = vrot.slane %v3387, %v3393
      %v3395 = vcombine.low %v1387, %v3394
      %v3396 = vcombine.low %v1404, %v1414
      %v3397 = vcombine.low %v1540, %v1202
      %v3399 = vunpack.c.l.s4 1983009808
      %v3400 = vunpack.c.0.s8 %v3399
      %v3401 = vlaneseq
      %v3402 = vshrl.u32 %v3401, 7
      %v3403 = vsub.s32 %v3400, %v3402
      %v3404 = vrot.slane %v3397, %v3403
      %v3405 = vcombine.low %v3404, %v1431
      %v3406 = vcombine.low %v1217, %v1541
      %v3408 = vunpack.c.l.s4 1983009808
      %v3409 = vunpack.c.0.s8 %v3408
      %v3410 = vlaneseq
      %v3411 = vshrl.u32 %v3410, 7
      %v3412 = vsub.s32 %v3409, %v3411
      %v3413 = vrot.slane %v3406, %v3412
      %v3414 = vcombine.low %v3413, %v1448
      %v3415 = vcombine.low %v1542, %v1248
      %v3417 = vunpack.c.l.s4 1983009808
      %v3418 = vunpack.c.0.s8 %v3417
      %v3419 = vlaneseq
      %v3420 = vshrl.u32 %v3419, 7
      %v3421 = vsub.s32 %v3418, %v3420
      %v3422 = vrot.slane %v3415, %v3421
      %v3423 = vcombine.low %v1455, %v3422
      %v3424 = vcombine.low %v1263, %v1543
      %v3426 = vunpack.c.l.s4 1983009808
      %v3427 = vunpack.c.0.s8 %v3426
      %v3428 = vlaneseq
      %v3429 = vshrl.u32 %v3428, 7
      %v3430 = vsub.s32 %v3427, %v3429
      %v3431 = vrot.slane %v3424, %v3430
      %v3432 = vcombine.low %v1472, %v3431
      %v3433 = vcombine.low %v1489, %v1498
      %v3434 = vcombine.low %v1544, %v2638
      %v3435 = vcombine.low %v2645, %v2646
      %v3437 = vunpack.c.l.s4 1983009808
      %v3438 = vunpack.c.0.s8 %v3437
      %v3439 = vlaneseq
      %v3440 = vshrl.u32 %v3439, 7
      %v3441 = vsub.s32 %v3438, %v3440
      %v3442 = vrot.slane %v3434, %v3441
      %v3444 = vunpack.c.l.s4 1983009808
      %v3445 = vunpack.c.0.s8 %v3444
      %v3446 = vlaneseq
      %v3447 = vshrl.u32 %v3446, 7
      %v3448 = vsub.s32 %v3445, %v3447
      %v3449 = vrot.slane %v3435, %v3448
      %v3450 = vcombine.low %v3442, %v3449
      %v3451 = vcombine.low %v2653, %v2944
      %v3453 = vunpack.c.l.s4 1983009808
      %v3454 = vunpack.c.0.s8 %v3453
      %v3455 = vlaneseq
      %v3456 = vshrl.u32 %v3455, 7
      %v3457 = vsub.s32 %v3454, %v3456
      %v3458 = vrot.slane %v3451, %v3457
      %v3472 = vpack.c.bf16 %v3368, %v3359
      %v3473 = vpack.c.bf16 %v3386, %v3377
      %v3474 = vpack.c.bf16 %v3396, %v3395
      %v3475 = vpack.c.bf16 %v3414, %v3405
      %v3476 = vpack.c.bf16 %v3432, %v3423
      %v3477 = vpack.c.bf16 %v3450, %v3433
      %v3478 = vpack.c.bf16 %v3458, %v3458
      %s3479 = scalar_lea.vmem %s3, 320
      %v3480 = vld [vmem:[%s3479] sm:$0xf]
      %v3481 = vld [vmem:[%s3479 + $0x4] sm:$0xf]
      %v3482 = vld [vmem:[%s3479 + $0x8] sm:$0xf]
      %v3483 = vld [vmem:[%s3479 + $0xc] sm:$0xf]
      %v3484 = vld [vmem:[%s3479 + $0x10] sm:$0xf]
      %v3485 = vld [vmem:[%s3479 + $0x14] sm:$0xf]
      %v3486 = vld [vmem:[%s3479 + $0x18] sm:$0xf]
      %v3487 = vld [vmem:[%s3479 + $0x1c] sm:$0xf]
      %v3488 = vld [vmem:[%s3479 + $0x20] sm:$0xf]
      %v3489 = vld [vmem:[%s3479 + $0x24] sm:$0xf]
      %v3490 = vld [vmem:[%s3479 + $0x28] sm:$0xf]
      %v3491 = vld [vmem:[%s3479 + $0x2c] sm:$0xf]
      %v3492 = vld [vmem:[%s3479 + $0x30] sm:$0xf]
      %v3493 = vld [vmem:[%s3479 + $0x34] sm:$0xf]
      %v3494 = vld [vmem:[%s3479 + $0x38] sm:$0xf]
      %v3495 = vld [vmem:[%s3479 + $0x3c] sm:$0xf]
      %v3512 = vunpack.c.l.b16 %v3480
      %v3513 = vunpack.c.l.b16 %v3481
      %v3514 = vunpack.c.l.b16 %v3482
      %v3515 = vunpack.c.l.b16 %v3483
      %v3516 = vunpack.c.l.b16 %v3484
      %v3517 = vunpack.c.l.b16 %v3485
      %v3518 = vunpack.c.l.b16 %v3486
      %v3519 = vunpack.c.l.b16 %v3487
      %v3520 = vunpack.c.l.b16 %v3488
      %v3521 = vunpack.c.l.b16 %v3489
      %v3522 = vunpack.c.l.b16 %v3490
      %v3523 = vunpack.c.l.b16 %v3491
      %v3524 = vunpack.c.l.b16 %v3492
      %v3525 = vunpack.c.l.b16 %v3493
      %v3526 = vunpack.c.l.b16 %v3494
      %v3527 = vunpack.c.l.b16 %v3495
      %v3528 = vpack.c.b16 %v3513, %v3512
      %v3529 = vpack.c.b16 %v3515, %v3514
      %v3530 = vpack.c.b16 %v3517, %v3516
      %v3531 = vpack.c.b16 %v3519, %v3518
      %v3532 = vpack.c.b16 %v3521, %v3520
      %v3533 = vpack.c.b16 %v3523, %v3522
      %v3534 = vpack.c.b16 %v3525, %v3524
      %v3535 = vpack.c.b16 %v3527, %v3526
      %3544 = vmatprep.subr.bf16.mxu0 0
      %3545 = vmatpush1.bf16.msra.mxu0 %v3528
      %3546 = vmatprep.subr.bf16.mxu0 0
      %3547 = vmatpush1.bf16.msra.mxu0 %v3529
      %3548 = vmatprep.subr.bf16.mxu0 0
      %3549 = vmatpush1.bf16.msra.mxu0 %v3530
      %3550 = vmatprep.subr.bf16.mxu0 0
      %3551 = vmatpush1.bf16.msra.mxu0 %v3531
      %3552 = vmatprep.subr.bf16.mxu0 0
      %3553 = vmatpush1.bf16.msra.mxu0 %v3532
      %3554 = vmatprep.subr.bf16.mxu0 0
      %3555 = vmatpush1.bf16.msra.mxu0 %v3533
      %3556 = vmatprep.subr.bf16.mxu0 0
      %3557 = vmatpush1.bf16.msra.mxu0 %v3534
      %3558 = vmatprep.subr.bf16.mxu0 0
      %3559 = vmatpush1.bf16.msra.mxu0 %v3535
      %3560 = vmatprep.subr.bf16.mxu0 0
      %3561 = vmatpush1.bf16.msra.mxu0 0
      %3562 = vmatprep.subr.bf16.mxu0 0
      %3563 = vmatpush1.bf16.msra.mxu0 0
      %3564 = vmatprep.subr.bf16.mxu0 0
      %3565 = vmatpush1.bf16.msra.mxu0 0
      %3566 = vmatprep.subr.bf16.mxu0 0
      %3567 = vmatpush1.bf16.msra.mxu0 0
      %3568 = vmatprep.subr.bf16.mxu0 0
      %3569 = vmatpush1.bf16.msra.mxu0 0
      %3570 = vmatprep.subr.bf16.mxu0 0
      %3571 = vmatpush1.bf16.msra.mxu0 0
      %3572 = vmatprep.subr.bf16.mxu0 0
      %3573 = vmatpush1.bf16.msra.mxu0 0
      %3574 = vmatprep.subr.bf16.mxu0 0
      %3575 = vmatpush1.bf16.msra.mxu0 0
      %3576 = vmatprep.mubr.bf16.mxu0 0
      %3577 = vmatmul.mubr.bf16.gmra.mrb[0].mxu0 %v3472
      %v3578 = vpop.f32.mrb[0].mxu0
      %v3579 = vadd.f32 0.0, %v3578
      %v3580 = vpop.f32.mrb[0].mxu0
      %v3581 = vpop.f32.mrb[0].mxu0
      %v3582 = vadd.f32 0.0, %v3581
      %v3583 = vpop.f32.mrb[0].mxu0
      %3584 = vmatprep.mubr.bf16.mxu0 0
      %3585 = vmatmul.mubr.bf16.gmra.mrb[0].mxu0 %v3473
      %v3586 = vpop.f32.mrb[0].mxu0
      %v3587 = vadd.f32 0.0, %v3586
      %v3588 = vpop.f32.mrb[0].mxu0
      %v3589 = vpop.f32.mrb[0].mxu0
      %v3590 = vadd.f32 0.0, %v3589
      %v3591 = vpop.f32.mrb[0].mxu0
      %3592 = vmatprep.mubr.bf16.mxu0 0
      %3593 = vmatmul.mubr.bf16.gmra.mrb[0].mxu0 %v3474
      %v3594 = vpop.f32.mrb[0].mxu0
      %v3595 = vadd.f32 0.0, %v3594
      %v3596 = vpop.f32.mrb[0].mxu0
      %v3597 = vpop.f32.mrb[0].mxu0
      %v3598 = vadd.f32 0.0, %v3597
      %v3599 = vpop.f32.mrb[0].mxu0
      %3600 = vmatprep.mubr.bf16.mxu0 0
      %3601 = vmatmul.mubr.bf16.gmra.mrb[0].mxu0 %v3475
      %v3602 = vpop.f32.mrb[0].mxu0
      %v3603 = vadd.f32 0.0, %v3602
      %v3604 = vpop.f32.mrb[0].mxu0
      %v3605 = vpop.f32.mrb[0].mxu0
      %v3606 = vadd.f32 0.0, %v3605
      %v3607 = vpop.f32.mrb[0].mxu0
      %3608 = vmatprep.mubr.bf16.mxu0 0
      %3609 = vmatmul.mubr.bf16.gmra.mrb[0].mxu0 %v3476
      %v3610 = vpop.f32.mrb[0].mxu0
      %v3611 = vadd.f32 0.0, %v3610
      %v3612 = vpop.f32.mrb[0].mxu0
      %v3613 = vpop.f32.mrb[0].mxu0
      %v3614 = vadd.f32 0.0, %v3613
      %v3615 = vpop.f32.mrb[0].mxu0
      %3616 = vmatprep.mubr.bf16.mxu0 0
      %3617 = vmatmul.mubr.bf16.gmra.mrb[0].mxu0 %v3477
      %v3618 = vpop.f32.mrb[0].mxu0
      %v3619 = vadd.f32 0.0, %v3618
      %v3620 = vpop.f32.mrb[0].mxu0
      %v3621 = vpop.f32.mrb[0].mxu0
      %v3622 = vadd.f32 0.0, %v3621
      %v3623 = vpop.f32.mrb[0].mxu0
      %3624 = vmatprep.mubr.bf16.mxu0 0
      %3625 = vmatmul.mubr.bf16.gmra.mrb[0].mxu0 %v3478
      %v3626 = vpop.f32.mrb[0].mxu0
      %v3627 = vadd.f32 0.0, %v3626
      %v3628 = vpop.f32.mrb[0].mxu0
      %v3629 = vpop.f32.mrb[0].mxu0
      %v3630 = vpop.f32.mrb[0].mxu0
      %3631 = vdwg.mxu0
      %v3632 = vadd.f32 %v3346, %v3579
      %v3633 = vadd.f32 %v3347, %v3582
      %v3634 = vadd.f32 %v3348, %v3587
      %v3635 = vadd.f32 %v3349, %v3590
      %v3636 = vadd.f32 %v3350, %v3595
      %v3637 = vadd.f32 %v3351, %v3598
      %v3638 = vadd.f32 %v3352, %v3603
      %v3639 = vadd.f32 %v3353, %v3606
      %v3640 = vadd.f32 %v3354, %v3611
      %v3641 = vadd.f32 %v3355, %v3614
      %v3642 = vadd.f32 %v3356, %v3619
      %v3643 = vadd.f32 %v3357, %v3622
      %v3644 = vadd.f32 %v3358, %v3627
      %v3646 = vunpack.c.l.s4 1983009808
      %v3647 = vunpack.c.0.s8 %v3646
      %v3648 = vlaneseq
      %v3649 = vshrl.u32 %v3648, 7
      %v3650 = vsub.s32 %v3647, %v3649
      %v3651 = vrot.slane %v1055, %v3650
      %v3652 = vcombine.high %v3651, %v3651
      %v3654 = vunpack.c.l.s4 1983009808
      %v3655 = vunpack.c.0.s8 %v3654
      %v3656 = vlaneseq
      %v3657 = vshrl.u32 %v3656, 7
      %v3658 = vsub.s32 %v3655, %v3657
      %v3659 = vrot.slane %v1020, %v3658
      %v3660 = vcombine.high %v3659, %v3659
      %v3662 = vunpack.c.l.s4 1983009808
      %v3663 = vunpack.c.0.s8 %v3662
      %v3664 = vlaneseq
      %v3665 = vshrl.u32 %v3664, 7
      %v3666 = vsub.s32 %v3663, %v3665
      %v3667 = vrot.slane %v1056, %v3666
      %v3668 = vcombine.low %v1336, %v1346
      %v3669 = vcombine.low %v1353, %v1363
      %v3670 = vcombine.low %v1370, %v1380
      %v3671 = vcombine.low %v1387, %v1397
      %v3672 = vcombine.low %v1421, %v1431
      %v3673 = vcombine.low %v1438, %v1448
      %v3674 = vcombine.low %v1455, %v1465
      %v3675 = vcombine.low %v1472, %v1482
      %v3676 = vcombine.low %v2637, %v2638
      %v3678 = vunpack.c.l.s4 1983009808
      %v3679 = vunpack.c.0.s8 %v3678
      %v3680 = vlaneseq
      %v3681 = vshrl.u32 %v3680, 7
      %v3682 = vsub.s32 %v3679, %v3681
      %v3683 = vrot.slane %v3676, %v3682
      %v3684 = vcombine.low %v3683, %v3449
      %v3685 = vcombine.low %v2653, %v3651
      %v3686 = vcombine.low %v3652, %v3659
      %v3688 = vunpack.c.l.s4 1983009808
      %v3689 = vunpack.c.0.s8 %v3688
      %v3690 = vlaneseq
      %v3691 = vshrl.u32 %v3690, 7
      %v3692 = vsub.s32 %v3689, %v3691
      %v3693 = vrot.slane %v3685, %v3692
      %v3695 = vunpack.c.l.s4 1983009808
      %v3696 = vunpack.c.0.s8 %v3695
      %v3697 = vlaneseq
      %v3698 = vshrl.u32 %v3697, 7
      %v3699 = vsub.s32 %v3696, %v3698
      %v3700 = vrot.slane %v3686, %v3699
      %v3701 = vcombine.low %v3693, %v3700
      %v3702 = vcombine.low %v3660, %v3667
      %v3704 = vunpack.c.l.s4 1983009808
      %v3705 = vunpack.c.0.s8 %v3704
      %v3706 = vlaneseq
      %v3707 = vshrl.u32 %v3706, 7
      %v3708 = vsub.s32 %v3705, %v3707
      %v3709 = vrot.slane %v3702, %v3708
      %v3721 = vpack.c.bf16 %v3669, %v3668
      %v3722 = vpack.c.bf16 %v3671, %v3670
      %v3723 = vpack.c.bf16 %v3672, %v3396
      %v3724 = vpack.c.bf16 %v3674, %v3673
      %v3725 = vpack.c.bf16 %v3433, %v3675
      %v3726 = vpack.c.bf16 %v3701, %v3684
      %v3727 = vpack.c.bf16 %v3709, %v3709
      %s3728 = scalar_lea.vmem %s3, 384
      %v3729 = vld [vmem:[%s3728] sm:$0xf]
      %v3730 = vld [vmem:[%s3728 + $0x4] sm:$0xf]
      %v3731 = vld [vmem:[%s3728 + $0x8] sm:$0xf]
      %v3732 = vld [vmem:[%s3728 + $0xc] sm:$0xf]
      %v3733 = vld [vmem:[%s3728 + $0x10] sm:$0xf]
      %v3734 = vld [vmem:[%s3728 + $0x14] sm:$0xf]
      %v3735 = vld [vmem:[%s3728 + $0x18] sm:$0xf]
      %v3736 = vld [vmem:[%s3728 + $0x1c] sm:$0xf]
      %v3737 = vld [vmem:[%s3728 + $0x20] sm:$0xf]
      %v3738 = vld [vmem:[%s3728 + $0x24] sm:$0xf]
      %v3739 = vld [vmem:[%s3728 + $0x28] sm:$0xf]
      %v3740 = vld [vmem:[%s3728 + $0x2c] sm:$0xf]
      %v3741 = vld [vmem:[%s3728 + $0x30] sm:$0xf]
      %v3742 = vld [vmem:[%s3728 + $0x34] sm:$0xf]
      %v3743 = vld [vmem:[%s3728 + $0x38] sm:$0xf]
      %v3744 = vld [vmem:[%s3728 + $0x3c] sm:$0xf]
      %v3761 = vunpack.c.l.b16 %v3729
      %v3762 = vunpack.c.l.b16 %v3730
      %v3763 = vunpack.c.l.b16 %v3731
      %v3764 = vunpack.c.l.b16 %v3732
      %v3765 = vunpack.c.l.b16 %v3733
      %v3766 = vunpack.c.l.b16 %v3734
      %v3767 = vunpack.c.l.b16 %v3735
      %v3768 = vunpack.c.l.b16 %v3736
      %v3769 = vunpack.c.l.b16 %v3737
      %v3770 = vunpack.c.l.b16 %v3738
      %v3771 = vunpack.c.l.b16 %v3739
      %v3772 = vunpack.c.l.b16 %v3740
      %v3773 = vunpack.c.l.b16 %v3741
      %v3774 = vunpack.c.l.b16 %v3742
      %v3775 = vunpack.c.l.b16 %v3743
      %v3776 = vunpack.c.l.b16 %v3744
      %v3777 = vpack.c.b16 %v3762, %v3761
      %v3778 = vpack.c.b16 %v3764, %v3763
      %v3779 = vpack.c.b16 %v3766, %v3765
      %v3780 = vpack.c.b16 %v3768, %v3767
      %v3781 = vpack.c.b16 %v3770, %v3769
      %v3782 = vpack.c.b16 %v3772, %v3771
      %v3783 = vpack.c.b16 %v3774, %v3773
      %v3784 = vpack.c.b16 %v3776, %v3775
      %3793 = vmatprep.subr.bf16.mxu0 0
      %3794 = vmatpush1.bf16.msra.mxu0 %v3777
      %3795 = vmatprep.subr.bf16.mxu0 0
      %3796 = vmatpush1.bf16.msra.mxu0 %v3778
      %3797 = vmatprep.subr.bf16.mxu0 0
      %3798 = vmatpush1.bf16.msra.mxu0 %v3779
      %3799 = vmatprep.subr.bf16.mxu0 0
      %3800 = vmatpush1.bf16.msra.mxu0 %v3780
      %3801 = vmatprep.subr.bf16.mxu0 0
      %3802 = vmatpush1.bf16.msra.mxu0 %v3781
      %3803 = vmatprep.subr.bf16.mxu0 0
      %3804 = vmatpush1.bf16.msra.mxu0 %v3782
      %3805 = vmatprep.subr.bf16.mxu0 0
      %3806 = vmatpush1.bf16.msra.mxu0 %v3783
      %3807 = vmatprep.subr.bf16.mxu0 0
      %3808 = vmatpush1.bf16.msra.mxu0 %v3784
      %3809 = vmatprep.subr.bf16.mxu0 0
      %3810 = vmatpush1.bf16.msra.mxu0 0
      %3811 = vmatprep.subr.bf16.mxu0 0
      %3812 = vmatpush1.bf16.msra.mxu0 0
      %3813 = vmatprep.subr.bf16.mxu0 0
      %3814 = vmatpush1.bf16.msra.mxu0 0
      %3815 = vmatprep.subr.bf16.mxu0 0
      %3816 = vmatpush1.bf16.msra.mxu0 0
      %3817 = vmatprep.subr.bf16.mxu0 0
      %3818 = vmatpush1.bf16.msra.mxu0 0
      %3819 = vmatprep.subr.bf16.mxu0 0
      %3820 = vmatpush1.bf16.msra.mxu0 0
      %3821 = vmatprep.subr.bf16.mxu0 0
      %3822 = vmatpush1.bf16.msra.mxu0 0
      %3823 = vmatprep.subr.bf16.mxu0 0
      %3824 = vmatpush1.bf16.msra.mxu0 0
      %3825 = vmatprep.mubr.bf16.mxu0 0
      %3826 = vmatmul.mubr.bf16.gmra.mrb[0].mxu0 %v3721
      %v3827 = vpop.f32.mrb[0].mxu0
      %v3828 = vadd.f32 0.0, %v3827
      %v3829 = vpop.f32.mrb[0].mxu0
      %v3830 = vpop.f32.mrb[0].mxu0
      %v3831 = vadd.f32 0.0, %v3830
      %v3832 = vpop.f32.mrb[0].mxu0
      %3833 = vmatprep.mubr.bf16.mxu0 0
      %3834 = vmatmul.mubr.bf16.gmra.mrb[0].mxu0 %v3722
      %v3835 = vpop.f32.mrb[0].mxu0
      %v3836 = vadd.f32 0.0, %v3835
      %v3837 = vpop.f32.mrb[0].mxu0
      %v3838 = vpop.f32.mrb[0].mxu0
      %v3839 = vadd.f32 0.0, %v3838
      %v3840 = vpop.f32.mrb[0].mxu0
      %3841 = vmatprep.mubr.bf16.mxu0 0
      %3842 = vmatmul.mubr.bf16.gmra.mrb[0].mxu0 %v3723
      %v3843 = vpop.f32.mrb[0].mxu0
      %v3844 = vadd.f32 0.0, %v3843
      %v3845 = vpop.f32.mrb[0].mxu0
      %v3846 = vpop.f32.mrb[0].mxu0
      %v3847 = vadd.f32 0.0, %v3846
      %v3848 = vpop.f32.mrb[0].mxu0
      %3849 = vmatprep.mubr.bf16.mxu0 0
      %3850 = vmatmul.mubr.bf16.gmra.mrb[0].mxu0 %v3724
      %v3851 = vpop.f32.mrb[0].mxu0
      %v3852 = vadd.f32 0.0, %v3851
      %v3853 = vpop.f32.mrb[0].mxu0
      %v3854 = vpop.f32.mrb[0].mxu0
      %v3855 = vadd.f32 0.0, %v3854
      %v3856 = vpop.f32.mrb[0].mxu0
      %3857 = vmatprep.mubr.bf16.mxu0 0
      %3858 = vmatmul.mubr.bf16.gmra.mrb[0].mxu0 %v3725
      %v3859 = vpop.f32.mrb[0].mxu0
      %v3860 = vadd.f32 0.0, %v3859
      %v3861 = vpop.f32.mrb[0].mxu0
      %v3862 = vpop.f32.mrb[0].mxu0
      %v3863 = vadd.f32 0.0, %v3862
      %v3864 = vpop.f32.mrb[0].mxu0
      %3865 = vmatprep.mubr.bf16.mxu0 0
      %3866 = vmatmul.mubr.bf16.gmra.mrb[0].mxu0 %v3726
      %v3867 = vpop.f32.mrb[0].mxu0
      %v3868 = vadd.f32 0.0, %v3867
      %v3869 = vpop.f32.mrb[0].mxu0
      %v3870 = vpop.f32.mrb[0].mxu0
      %v3871 = vadd.f32 0.0, %v3870
      %v3872 = vpop.f32.mrb[0].mxu0
      %3873 = vmatprep.mubr.bf16.mxu0 0
      %3874 = vmatmul.mubr.bf16.gmra.mrb[0].mxu0 %v3727
      %v3875 = vpop.f32.mrb[0].mxu0
      %v3876 = vadd.f32 0.0, %v3875
      %v3877 = vpop.f32.mrb[0].mxu0
      %v3878 = vpop.f32.mrb[0].mxu0
      %v3879 = vpop.f32.mrb[0].mxu0
      %3880 = vdwg.mxu0
      %v3881 = vadd.f32 %v3632, %v3828
      %v3882 = vadd.f32 %v3633, %v3831
      %v3883 = vadd.f32 %v3634, %v3836
      %v3884 = vadd.f32 %v3635, %v3839
      %v3885 = vadd.f32 %v3636, %v3844
      %v3886 = vadd.f32 %v3637, %v3847
      %v3887 = vadd.f32 %v3638, %v3852
      %v3888 = vadd.f32 %v3639, %v3855
      %v3889 = vadd.f32 %v3640, %v3860
      %v3890 = vadd.f32 %v3641, %v3863
      %v3891 = vadd.f32 %v3642, %v3868
      %v3892 = vadd.f32 %v3643, %v3871
      %v3893 = vadd.f32 %v3644, %v3876
      %v3894 = vcombine.high %v3667, %v3667
      %v3895 = vrot.slane %v3651, 7
      %v3896 = vrot.slane %v3895, 2
      %v3897 = vrot.slane %v3652, 7
      %v3898 = vsel %vm1551, %v3896, %v3897
      %v3899 = vrot.slane %v3897, 2
      %v3900 = vrot.slane %v3659, 7
      %v3901 = vsel %vm1551, %v3899, %v3900
      %v3902 = vrot.slane %v3900, 2
      %v3903 = vrot.slane %v3660, 7
      %v3904 = vsel %vm1551, %v3902, %v3903
      %v3905 = vrot.slane %v3903, 2
      %v3906 = vrot.slane %v3667, 7
      %v3907 = vsel %vm1551, %v3905, %v3906
      %v3908 = vrot.slane %v3906, 2
      %v3909 = vrot.slane %v3894, 7
      %v3910 = vsel %vm1551, %v3908, %v3909
      %v3911 = vcombine.low %v1761, %v1771
      %v3912 = vcombine.low %v1778, %v1788
      %v3913 = vcombine.low %v1795, %v1805
      %v3914 = vcombine.low %v1812, %v1822
      %v3915 = vcombine.low %v1829, %v1839
      %v3916 = vcombine.low %v1846, %v1856
      %v3917 = vcombine.low %v1863, %v1873
      %v3918 = vcombine.low %v1880, %v1890
      %v3919 = vcombine.low %v1897, %v1907
      %v3920 = vcombine.low %v1914, %v1923
      %v3921 = vcombine.low %v2948, %v2951
      %v3922 = vcombine.low %v2954, %v2957
      %v3924 = vunpack.c.l.s4 1983009808
      %v3925 = vunpack.c.0.s8 %v3924
      %v3926 = vlaneseq
      %v3927 = vshrl.u32 %v3926, 7
      %v3928 = vsub.s32 %v3925, %v3927
      %v3929 = vrot.slane %v3921, %v3928
      %v3931 = vunpack.c.l.s4 1983009808
      %v3932 = vunpack.c.0.s8 %v3931
      %v3933 = vlaneseq
      %v3934 = vshrl.u32 %v3933, 7
      %v3935 = vsub.s32 %v3932, %v3934
      %v3936 = vrot.slane %v3922, %v3935
      %v3937 = vcombine.low %v3929, %v3936
      %v3938 = vcombine.low %v2960, %v3898
      %v3939 = vcombine.low %v3901, %v3904
      %v3941 = vunpack.c.l.s4 1983009808
      %v3942 = vunpack.c.0.s8 %v3941
      %v3943 = vlaneseq
      %v3944 = vshrl.u32 %v3943, 7
      %v3945 = vsub.s32 %v3942, %v3944
      %v3946 = vrot.slane %v3938, %v3945
      %v3948 = vunpack.c.l.s4 1983009808
      %v3949 = vunpack.c.0.s8 %v3948
      %v3950 = vlaneseq
      %v3951 = vshrl.u32 %v3950, 7
      %v3952 = vsub.s32 %v3949, %v3951
      %v3953 = vrot.slane %v3939, %v3952
      %v3954 = vcombine.low %v3946, %v3953
      %v3955 = vcombine.low %v3907, %v3910
      %v3957 = vunpack.c.l.s4 1983009808
      %v3958 = vunpack.c.0.s8 %v3957
      %v3959 = vlaneseq
      %v3960 = vshrl.u32 %v3959, 7
      %v3961 = vsub.s32 %v3958, %v3960
      %v3962 = vrot.slane %v3955, %v3961
      %v3976 = vpack.c.bf16 %v3912, %v3911
      %v3977 = vpack.c.bf16 %v3914, %v3913
      %v3978 = vpack.c.bf16 %v3916, %v3915
      %v3979 = vpack.c.bf16 %v3918, %v3917
      %v3980 = vpack.c.bf16 %v3920, %v3919
      %v3981 = vpack.c.bf16 %v3954, %v3937
      %v3982 = vpack.c.bf16 %v3962, %v3962
      %s3983 = scalar_lea.vmem %s3, 448
      %v3984 = vld [vmem:[%s3983] sm:$0xf]
      %v3985 = vld [vmem:[%s3983 + $0x4] sm:$0xf]
      %v3986 = vld [vmem:[%s3983 + $0x8] sm:$0xf]
      %v3987 = vld [vmem:[%s3983 + $0xc] sm:$0xf]
      %v3988 = vld [vmem:[%s3983 + $0x10] sm:$0xf]
      %v3989 = vld [vmem:[%s3983 + $0x14] sm:$0xf]
      %v3990 = vld [vmem:[%s3983 + $0x18] sm:$0xf]
      %v3991 = vld [vmem:[%s3983 + $0x1c] sm:$0xf]
      %v3992 = vld [vmem:[%s3983 + $0x20] sm:$0xf]
      %v3993 = vld [vmem:[%s3983 + $0x24] sm:$0xf]
      %v3994 = vld [vmem:[%s3983 + $0x28] sm:$0xf]
      %v3995 = vld [vmem:[%s3983 + $0x2c] sm:$0xf]
      %v3996 = vld [vmem:[%s3983 + $0x30] sm:$0xf]
      %v3997 = vld [vmem:[%s3983 + $0x34] sm:$0xf]
      %v3998 = vld [vmem:[%s3983 + $0x38] sm:$0xf]
      %v3999 = vld [vmem:[%s3983 + $0x3c] sm:$0xf]
      %v4016 = vunpack.c.l.b16 %v3984
      %v4017 = vunpack.c.l.b16 %v3985
      %v4018 = vunpack.c.l.b16 %v3986
      %v4019 = vunpack.c.l.b16 %v3987
      %v4020 = vunpack.c.l.b16 %v3988
      %v4021 = vunpack.c.l.b16 %v3989
      %v4022 = vunpack.c.l.b16 %v3990
      %v4023 = vunpack.c.l.b16 %v3991
      %v4024 = vunpack.c.l.b16 %v3992
      %v4025 = vunpack.c.l.b16 %v3993
      %v4026 = vunpack.c.l.b16 %v3994
      %v4027 = vunpack.c.l.b16 %v3995
      %v4028 = vunpack.c.l.b16 %v3996
      %v4029 = vunpack.c.l.b16 %v3997
      %v4030 = vunpack.c.l.b16 %v3998
      %v4031 = vunpack.c.l.b16 %v3999
      %v4032 = vpack.c.b16 %v4017, %v4016
      %v4033 = vpack.c.b16 %v4019, %v4018
      %v4034 = vpack.c.b16 %v4021, %v4020
      %v4035 = vpack.c.b16 %v4023, %v4022
      %v4036 = vpack.c.b16 %v4025, %v4024
      %v4037 = vpack.c.b16 %v4027, %v4026
      %v4038 = vpack.c.b16 %v4029, %v4028
      %v4039 = vpack.c.b16 %v4031, %v4030
      %4048 = vmatprep.subr.bf16.mxu0 0
      %4049 = vmatpush1.bf16.msra.mxu0 %v4032
      %4050 = vmatprep.subr.bf16.mxu0 0
      %4051 = vmatpush1.bf16.msra.mxu0 %v4033
      %4052 = vmatprep.subr.bf16.mxu0 0
      %4053 = vmatpush1.bf16.msra.mxu0 %v4034
      %4054 = vmatprep.subr.bf16.mxu0 0
      %4055 = vmatpush1.bf16.msra.mxu0 %v4035
      %4056 = vmatprep.subr.bf16.mxu0 0
      %4057 = vmatpush1.bf16.msra.mxu0 %v4036
      %4058 = vmatprep.subr.bf16.mxu0 0
      %4059 = vmatpush1.bf16.msra.mxu0 %v4037
      %4060 = vmatprep.subr.bf16.mxu0 0
      %4061 = vmatpush1.bf16.msra.mxu0 %v4038
      %4062 = vmatprep.subr.bf16.mxu0 0
      %4063 = vmatpush1.bf16.msra.mxu0 %v4039
      %4064 = vmatprep.subr.bf16.mxu0 0
      %4065 = vmatpush1.bf16.msra.mxu0 0
      %4066 = vmatprep.subr.bf16.mxu0 0
      %4067 = vmatpush1.bf16.msra.mxu0 0
      %4068 = vmatprep.subr.bf16.mxu0 0
      %4069 = vmatpush1.bf16.msra.mxu0 0
      %4070 = vmatprep.subr.bf16.mxu0 0
      %4071 = vmatpush1.bf16.msra.mxu0 0
      %4072 = vmatprep.subr.bf16.mxu0 0
      %4073 = vmatpush1.bf16.msra.mxu0 0
      %4074 = vmatprep.subr.bf16.mxu0 0
      %4075 = vmatpush1.bf16.msra.mxu0 0
      %4076 = vmatprep.subr.bf16.mxu0 0
      %4077 = vmatpush1.bf16.msra.mxu0 0
      %4078 = vmatprep.subr.bf16.mxu0 0
      %4079 = vmatpush1.bf16.msra.mxu0 0
      %4080 = vmatprep.mubr.bf16.mxu0 0
      %4081 = vmatmul.mubr.bf16.gmra.mrb[0].mxu0 %v3976
      %v4082 = vpop.f32.mrb[0].mxu0
      %v4083 = vadd.f32 0.0, %v4082
      %v4084 = vpop.f32.mrb[0].mxu0
      %v4085 = vpop.f32.mrb[0].mxu0
      %v4086 = vadd.f32 0.0, %v4085
      %v4087 = vpop.f32.mrb[0].mxu0
      %4088 = vmatprep.mubr.bf16.mxu0 0
      %4089 = vmatmul.mubr.bf16.gmra.mrb[0].mxu0 %v3977
      %v4090 = vpop.f32.mrb[0].mxu0
      %v4091 = vadd.f32 0.0, %v4090
      %v4092 = vpop.f32.mrb[0].mxu0
      %v4093 = vpop.f32.mrb[0].mxu0
      %v4094 = vadd.f32 0.0, %v4093
      %v4095 = vpop.f32.mrb[0].mxu0
      %4096 = vmatprep.mubr.bf16.mxu0 0
      %4097 = vmatmul.mubr.bf16.gmra.mrb[0].mxu0 %v3978
      %v4098 = vpop.f32.mrb[0].mxu0
      %v4099 = vadd.f32 0.0, %v4098
      %v4100 = vpop.f32.mrb[0].mxu0
      %v4101 = vpop.f32.mrb[0].mxu0
      %v4102 = vadd.f32 0.0, %v4101
      %v4103 = vpop.f32.mrb[0].mxu0
      %4104 = vmatprep.mubr.bf16.mxu0 0
      %4105 = vmatmul.mubr.bf16.gmra.mrb[0].mxu0 %v3979
      %v4106 = vpop.f32.mrb[0].mxu0
      %v4107 = vadd.f32 0.0, %v4106
      %v4108 = vpop.f32.mrb[0].mxu0
      %v4109 = vpop.f32.mrb[0].mxu0
      %v4110 = vadd.f32 0.0, %v4109
      %v4111 = vpop.f32.mrb[0].mxu0
      %4112 = vmatprep.mubr.bf16.mxu0 0
      %4113 = vmatmul.mubr.bf16.gmra.mrb[0].mxu0 %v3980
      %v4114 = vpop.f32.mrb[0].mxu0
      %v4115 = vadd.f32 0.0, %v4114
      %v4116 = vpop.f32.mrb[0].mxu0
      %v4117 = vpop.f32.mrb[0].mxu0
      %v4118 = vadd.f32 0.0, %v4117
      %v4119 = vpop.f32.mrb[0].mxu0
      %4120 = vmatprep.mubr.bf16.mxu0 0
      %4121 = vmatmul.mubr.bf16.gmra.mrb[0].mxu0 %v3981
      %v4122 = vpop.f32.mrb[0].mxu0
      %v4123 = vadd.f32 0.0, %v4122
      %v4124 = vpop.f32.mrb[0].mxu0
      %v4125 = vpop.f32.mrb[0].mxu0
      %v4126 = vadd.f32 0.0, %v4125
      %v4127 = vpop.f32.mrb[0].mxu0
      %4128 = vmatprep.mubr.bf16.mxu0 0
      %4129 = vmatmul.mubr.bf16.gmra.mrb[0].mxu0 %v3982
      %v4130 = vpop.f32.mrb[0].mxu0
      %v4131 = vadd.f32 0.0, %v4130
      %v4132 = vpop.f32.mrb[0].mxu0
      %v4133 = vpop.f32.mrb[0].mxu0
      %v4134 = vpop.f32.mrb[0].mxu0
      %4135 = vdwg.mxu0
      %v4136 = vadd.f32 %v3881, %v4083
      %v4137 = vadd.f32 %v3882, %v4086
      %v4138 = vadd.f32 %v3883, %v4091
      %v4139 = vadd.f32 %v3884, %v4094
      %v4140 = vadd.f32 %v3885, %v4099
      %v4141 = vadd.f32 %v3886, %v4102
      %v4142 = vadd.f32 %v3887, %v4107
      %v4143 = vadd.f32 %v3888, %v4110
      %v4144 = vadd.f32 %v3889, %v4115
      %v4145 = vadd.f32 %v3890, %v4118
      %v4146 = vadd.f32 %v3891, %v4123
      %v4147 = vadd.f32 %v3892, %v4126
      %v4148 = vadd.f32 %v3893, %v4131
      %v4149 = vcombine.low %v2282, %v2292
      %v4150 = vcombine.low %v2299, %v2309
      %v4151 = vcombine.low %v2316, %v2326
      %v4152 = vcombine.low %v2333, %v2343
      %v4153 = vcombine.low %v2350, %v2360
      %v4154 = vcombine.low %v2367, %v2377
      %v4155 = vcombine.low %v2384, %v2394
      %v4156 = vcombine.low %v2401, %v2411
      %v4157 = vcombine.low %v2418, %v2428
      %v4158 = vcombine.low %v2435, %v2444
      %v4159 = vcombine.low %v2750, %v2759
      %v4160 = vcombine.low %v2944, %v3652
      %v4161 = vcombine.low %v3659, %v3660
      %v4163 = vunpack.c.l.s4 1983009808
      %v4164 = vunpack.c.0.s8 %v4163
      %v4165 = vlaneseq
      %v4166 = vshrl.u32 %v4165, 7
      %v4167 = vsub.s32 %v4164, %v4166
      %v4168 = vrot.slane %v4160, %v4167
      %v4170 = vunpack.c.l.s4 1983009808
      %v4171 = vunpack.c.0.s8 %v4170
      %v4172 = vlaneseq
      %v4173 = vshrl.u32 %v4172, 7
      %v4174 = vsub.s32 %v4171, %v4173
      %v4175 = vrot.slane %v4161, %v4174
      %v4176 = vcombine.low %v4168, %v4175
      %v4177 = vcombine.low %v3667, %v3894
      %v4179 = vunpack.c.l.s4 1983009808
      %v4180 = vunpack.c.0.s8 %v4179
      %v4181 = vlaneseq
      %v4182 = vshrl.u32 %v4181, 7
      %v4183 = vsub.s32 %v4180, %v4182
      %v4184 = vrot.slane %v4177, %v4183
      %v4198 = vpack.c.bf16 %v4150, %v4149
      %v4199 = vpack.c.bf16 %v4152, %v4151
      %v4200 = vpack.c.bf16 %v4154, %v4153
      %v4201 = vpack.c.bf16 %v4156, %v4155
      %v4202 = vpack.c.bf16 %v4158, %v4157
      %v4203 = vpack.c.bf16 %v4176, %v4159
      %v4204 = vpack.c.bf16 %v4184, %v4184
      %s4205 = scalar_lea.vmem %s3, 512
      %v4206 = vld [vmem:[%s4205] sm:$0xf]
      %v4207 = vld [vmem:[%s4205 + $0x4] sm:$0xf]
      %v4208 = vld [vmem:[%s4205 + $0x8] sm:$0xf]
      %v4209 = vld [vmem:[%s4205 + $0xc] sm:$0xf]
      %v4210 = vld [vmem:[%s4205 + $0x10] sm:$0xf]
      %v4211 = vld [vmem:[%s4205 + $0x14] sm:$0xf]
      %v4212 = vld [vmem:[%s4205 + $0x18] sm:$0xf]
      %v4213 = vld [vmem:[%s4205 + $0x1c] sm:$0xf]
      %v4214 = vld [vmem:[%s4205 + $0x20] sm:$0xf]
      %v4215 = vld [vmem:[%s4205 + $0x24] sm:$0xf]
      %v4216 = vld [vmem:[%s4205 + $0x28] sm:$0xf]
      %v4217 = vld [vmem:[%s4205 + $0x2c] sm:$0xf]
      %v4218 = vld [vmem:[%s4205 + $0x30] sm:$0xf]
      %v4219 = vld [vmem:[%s4205 + $0x34] sm:$0xf]
      %v4220 = vld [vmem:[%s4205 + $0x38] sm:$0xf]
      %v4221 = vld [vmem:[%s4205 + $0x3c] sm:$0xf]
      %v4238 = vunpack.c.l.b16 %v4206
      %v4239 = vunpack.c.l.b16 %v4207
      %v4240 = vunpack.c.l.b16 %v4208
      %v4241 = vunpack.c.l.b16 %v4209
      %v4242 = vunpack.c.l.b16 %v4210
      %v4243 = vunpack.c.l.b16 %v4211
      %v4244 = vunpack.c.l.b16 %v4212
      %v4245 = vunpack.c.l.b16 %v4213
      %v4246 = vunpack.c.l.b16 %v4214
      %v4247 = vunpack.c.l.b16 %v4215
      %v4248 = vunpack.c.l.b16 %v4216
      %v4249 = vunpack.c.l.b16 %v4217
      %v4250 = vunpack.c.l.b16 %v4218
      %v4251 = vunpack.c.l.b16 %v4219
      %v4252 = vunpack.c.l.b16 %v4220
      %v4253 = vunpack.c.l.b16 %v4221
      %v4254 = vpack.c.b16 %v4239, %v4238
      %v4255 = vpack.c.b16 %v4241, %v4240
      %v4256 = vpack.c.b16 %v4243, %v4242
      %v4257 = vpack.c.b16 %v4245, %v4244
      %v4258 = vpack.c.b16 %v4247, %v4246
      %v4259 = vpack.c.b16 %v4249, %v4248
      %v4260 = vpack.c.b16 %v4251, %v4250
      %v4261 = vpack.c.b16 %v4253, %v4252
      %4270 = vmatprep.subr.bf16.mxu0 0
      %4271 = vmatpush1.bf16.msra.mxu0 %v4254
      %4272 = vmatprep.subr.bf16.mxu0 0
      %4273 = vmatpush1.bf16.msra.mxu0 %v4255
      %4274 = vmatprep.subr.bf16.mxu0 0
      %4275 = vmatpush1.bf16.msra.mxu0 %v4256
      %4276 = vmatprep.subr.bf16.mxu0 0
      %4277 = vmatpush1.bf16.msra.mxu0 %v4257
      %4278 = vmatprep.subr.bf16.mxu0 0
      %4279 = vmatpush1.bf16.msra.mxu0 %v4258
      %4280 = vmatprep.subr.bf16.mxu0 0
      %4281 = vmatpush1.bf16.msra.mxu0 %v4259
      %4282 = vmatprep.subr.bf16.mxu0 0
      %4283 = vmatpush1.bf16.msra.mxu0 %v4260
      %4284 = vmatprep.subr.bf16.mxu0 0
      %4285 = vmatpush1.bf16.msra.mxu0 %v4261
      %4286 = vmatprep.subr.bf16.mxu0 0
      %4287 = vmatpush1.bf16.msra.mxu0 0
      %4288 = vmatprep.subr.bf16.mxu0 0
      %4289 = vmatpush1.bf16.msra.mxu0 0
      %4290 = vmatprep.subr.bf16.mxu0 0
      %4291 = vmatpush1.bf16.msra.mxu0 0
      %4292 = vmatprep.subr.bf16.mxu0 0
      %4293 = vmatpush1.bf16.msra.mxu0 0
      %4294 = vmatprep.subr.bf16.mxu0 0
      %4295 = vmatpush1.bf16.msra.mxu0 0
      %4296 = vmatprep.subr.bf16.mxu0 0
      %4297 = vmatpush1.bf16.msra.mxu0 0
      %4298 = vmatprep.subr.bf16.mxu0 0
      %4299 = vmatpush1.bf16.msra.mxu0 0
      %4300 = vmatprep.subr.bf16.mxu0 0
      %4301 = vmatpush1.bf16.msra.mxu0 0
      %4302 = vmatprep.mubr.bf16.mxu0 0
      %4303 = vmatmul.mubr.bf16.gmra.mrb[0].mxu0 %v4198
      %v4304 = vpop.f32.mrb[0].mxu0
      %v4305 = vadd.f32 0.0, %v4304
      %v4306 = vpop.f32.mrb[0].mxu0
      %v4307 = vpop.f32.mrb[0].mxu0
      %v4308 = vadd.f32 0.0, %v4307
      %v4309 = vpop.f32.mrb[0].mxu0
      %4310 = vmatprep.mubr.bf16.mxu0 0
      %4311 = vmatmul.mubr.bf16.gmra.mrb[0].mxu0 %v4199
      %v4312 = vpop.f32.mrb[0].mxu0
      %v4313 = vadd.f32 0.0, %v4312
      %v4314 = vpop.f32.mrb[0].mxu0
      %v4315 = vpop.f32.mrb[0].mxu0
      %v4316 = vadd.f32 0.0, %v4315
      %v4317 = vpop.f32.mrb[0].mxu0
      %4318 = vmatprep.mubr.bf16.mxu0 0
      %4319 = vmatmul.mubr.bf16.gmra.mrb[0].mxu0 %v4200
      %v4320 = vpop.f32.mrb[0].mxu0
      %v4321 = vadd.f32 0.0, %v4320
      %v4322 = vpop.f32.mrb[0].mxu0
      %v4323 = vpop.f32.mrb[0].mxu0
      %v4324 = vadd.f32 0.0, %v4323
      %v4325 = vpop.f32.mrb[0].mxu0
      %4326 = vmatprep.mubr.bf16.mxu0 0
      %4327 = vmatmul.mubr.bf16.gmra.mrb[0].mxu0 %v4201
      %v4328 = vpop.f32.mrb[0].mxu0
      %v4329 = vadd.f32 0.0, %v4328
      %v4330 = vpop.f32.mrb[0].mxu0
      %v4331 = vpop.f32.mrb[0].mxu0
      %v4332 = vadd.f32 0.0, %v4331
      %v4333 = vpop.f32.mrb[0].mxu0
      %4334 = vmatprep.mubr.bf16.mxu0 0
      %4335 = vmatmul.mubr.bf16.gmra.mrb[0].mxu0 %v4202
      %v4336 = vpop.f32.mrb[0].mxu0
      %v4337 = vadd.f32 0.0, %v4336
      %v4338 = vpop.f32.mrb[0].mxu0
      %v4339 = vpop.f32.mrb[0].mxu0
      %v4340 = vadd.f32 0.0, %v4339
      %v4341 = vpop.f32.mrb[0].mxu0
      %4342 = vmatprep.mubr.bf16.mxu0 0
      %4343 = vmatmul.mubr.bf16.gmra.mrb[0].mxu0 %v4203
      %v4344 = vpop.f32.mrb[0].mxu0
      %v4345 = vadd.f32 0.0, %v4344
      %v4346 = vpop.f32.mrb[0].mxu0
      %v4347 = vpop.f32.mrb[0].mxu0
      %v4348 = vadd.f32 0.0, %v4347
      %v4349 = vpop.f32.mrb[0].mxu0
      %4350 = vmatprep.mubr.bf16.mxu0 0
      %4351 = vmatmul.mubr.bf16.gmra.mrb[0].mxu0 %v4204
      %v4352 = vpop.f32.mrb[0].mxu0
      %v4353 = vadd.f32 0.0, %v4352
      %v4354 = vpop.f32.mrb[0].mxu0
      %v4355 = vpop.f32.mrb[0].mxu0
      %v4356 = vpop.f32.mrb[0].mxu0
      %4357 = vdwg.mxu0
      %v4358 = vadd.f32 %v4136, %v4305
      %v4359 = vadd.f32 %v4137, %v4308
      %v4360 = vadd.f32 %v4138, %v4313
      %v4361 = vadd.f32 %v4139, %v4316
      %v4362 = vadd.f32 %v4140, %v4321
      %v4363 = vadd.f32 %v4141, %v4324
      %v4364 = vadd.f32 %v4142, %v4329
      %v4365 = vadd.f32 %v4143, %v4332
      %v4366 = vadd.f32 %v4144, %v4337
      %v4367 = vadd.f32 %v4145, %v4340
      %v4368 = vadd.f32 %v4146, %v4345
      %v4369 = vadd.f32 %v4147, %v4348
      %v4370 = vadd.f32 %v4148, %v4353
      %v4371 = vld [vmem:[%s4] sm:$0x1]
      %v4373 = vlaneseq
      %v4374 = vshrl.u32 %v4373, 7
      %v4375 = vsub.s32 0, %v4374
      %v4376 = vrot.slane %v4371, %v4375
      %v4378 = vadd.f32 %v4358, %v4376
      %v4379 = vadd.f32 %v4359, %v4376
      %v4380 = vadd.f32 %v4360, %v4376
      %v4381 = vadd.f32 %v4361, %v4376
      %v4382 = vadd.f32 %v4362, %v4376
      %v4383 = vadd.f32 %v4363, %v4376
      %v4384 = vadd.f32 %v4364, %v4376
      %v4385 = vadd.f32 %v4365, %v4376
      %v4386 = vadd.f32 %v4366, %v4376
      %v4387 = vadd.f32 %v4367, %v4376
      %v4388 = vadd.f32 %v4368, %v4376
      %v4389 = vadd.f32 %v4369, %v4376
      %v4390 = vadd.f32 %v4370, %v4376
      %v4391 = vmax.f32 %v4378, 0.0
      %v4392 = vmax.f32 %v4379, 0.0
      %v4393 = vmax.f32 %v4380, 0.0
      %v4394 = vmax.f32 %v4381, 0.0
      %v4395 = vmax.f32 %v4382, 0.0
      %v4396 = vmax.f32 %v4383, 0.0
      %v4397 = vmax.f32 %v4384, 0.0
      %v4398 = vmax.f32 %v4385, 0.0
      %v4399 = vmax.f32 %v4386, 0.0
      %v4400 = vmax.f32 %v4387, 0.0
      %v4401 = vmax.f32 %v4388, 0.0
      %v4402 = vmax.f32 %v4389, 0.0
      %v4403 = vmax.f32 %v4390, 0.0
      %v4404 = vpack.c.bf16 %v4392, %v4391
      %v4405 = vpack.c.bf16 %v4394, %v4393
      %v4406 = vpack.c.bf16 %v4396, %v4395
      %v4407 = vpack.c.bf16 %v4398, %v4397
      %v4408 = vpack.c.bf16 %v4400, %v4399
      %v4409 = vpack.c.bf16 %v4402, %v4401
      %v4410 = vpack.c.bf16 %v4403, %v4403
      %v4418 = vunpack.c.l.b16 %v4404
      %v4419 = vunpack.c.h.b16 %v4404
      %v4420 = vunpack.c.l.b16 %v4405
      %v4421 = vunpack.c.h.b16 %v4405
      %v4422 = vunpack.c.l.b16 %v4406
      %v4423 = vunpack.c.h.b16 %v4406
      %v4424 = vunpack.c.l.b16 %v4407
      %v4425 = vunpack.c.h.b16 %v4407
      %v4426 = vunpack.c.l.b16 %v4408
      %v4427 = vunpack.c.h.b16 %v4408
      %v4428 = vunpack.c.l.b16 %v4409
      %v4429 = vunpack.c.h.b16 %v4409
      %v4430 = vunpack.c.l.b16 %v4410
      %v4431 = vpack.c.b16 %v4418, %v4418
      %v4432 = vpack.c.b16 %v4419, %v4419
      %v4433 = vpack.c.b16 %v4420, %v4420
      %v4434 = vpack.c.b16 %v4421, %v4421
      %v4435 = vpack.c.b16 %v4422, %v4422
      %v4436 = vpack.c.b16 %v4423, %v4423
      %v4437 = vpack.c.b16 %v4424, %v4424
      %v4438 = vpack.c.b16 %v4425, %v4425
      %v4439 = vpack.c.b16 %v4426, %v4426
      %v4440 = vpack.c.b16 %v4427, %v4427
      %v4441 = vpack.c.b16 %v4428, %v4428
      %v4442 = vpack.c.b16 %v4429, %v4429
      %v4443 = vpack.c.b16 %v4430, %v4430
      %4457 = vst [vmem:[%s224] sm:$0xf] %v4431
      %4458 = vst [vmem:[%s224 + $0x4] sm:$0xf] %v4432
      %4459 = vst [vmem:[%s224 + $0x8] sm:$0xf] %v4433
      %4460 = vst [vmem:[%s224 + $0xc] sm:$0xf] %v4434
      %4461 = vst [vmem:[%s224 + $0x10] sm:$0xf] %v4435
      %4462 = vst [vmem:[%s224 + $0x14] sm:$0xf] %v4436
      %4463 = vst [vmem:[%s224 + $0x18] sm:$0xf] %v4437
      %4464 = vst [vmem:[%s224 + $0x1c] sm:$0xf] %v4438
      %4465 = vst [vmem:[%s224 + $0x20] sm:$0xf] %v4439
      %4466 = vst [vmem:[%s224 + $0x24] sm:$0xf] %v4440
      %4467 = vst [vmem:[%s224 + $0x28] sm:$0xf] %v4441
      %4468 = vst [vmem:[%s224 + $0x2c] sm:$0xf] %v4442
      %4469 = vst [vmem:[%s224 + $0x30] sm:$0x3] %v4443
      %p4470 = scmp.lt.s32.totalorder %s16, 1
      %s4471 = scalar_select %p4470, %s16, 1
      %s4472 = smul.addr %s4471, 13
      %s4473 = smul.addr %s4472, 4
      %s4474 = scalar_lea.vmem %s5, %s4473
      // Predicated region
      $region41: #{convnet_forward.2} parent=39 // pred_check
        %p4475 = pneg %p144
      $region42: #{convnet_forward.2} parent=39 // pred_check_branch
        %4477 = sbr.rel (%p4475) target = $region44
      $region43: #{convnet_forward.2} parent=39 // pred_region
        _
      $region44: #{convnet_forward.2} parent=39 // pred_fallthru
        _
    $region40: #{convnet_forward.2} parent=5 // pred_fallthru
      _
    %p4478 = scmp.le.s32.totalorder 2, %s11
    // Predicated region
    $region45: #{convnet_forward.2} parent=5 // pred_check
      %p4479 = pneg %p4478
    $region46: #{convnet_forward.2} parent=5 // pred_check_branch
      %4481 = sbr.rel (%p4479) target = $region48
    $region47: #{convnet_forward.2} parent=5 // pred_region
      %s4482 = ssub.s32 %s11, 2
      // Predicated region
      $region49: #{convnet_forward.2} parent=47 // pred_check
        %p4483 = pneg %p150
      $region50: #{convnet_forward.2} parent=47 // pred_check_branch
        %4485 = sbr.rel (%p4483) target = $region52
      $region51: #{convnet_forward.2} parent=47 // pred_region
        %p4486 = scmp.lt.s32.totalorder %s17, 1
        %s4487 = scalar_select %p4486, %s17, 1
        %s4488 = smul.addr %s4487, 13
        %s4489 = smul.addr %s4488, 4
        %s4490 = scalar_lea.vmem %s5, %s4489
      $region52: #{convnet_forward.2} parent=47 // pred_fallthru
        _
    $region48: #{convnet_forward.2} parent=5 // pred_fallthru
      _
  $region6: #{convnet_forward.2} parent=0 // loop_footer
    %s15 = sadd.s32 1, %s11
  $region7: #{convnet_forward.2} parent=0 // loop_footer_branch
    %10 = sbr.rel target = $region3
  $region8: #{convnet_forward.2} parent=0 // loop_exit
    _

// kernel: convnet_forward.3
$region0: #{convnet_forward.3}
  #allocation0 [shape = 'u32[]', space=smem, size = 0x4, offset = 0x4, fixed_abs, tag = 'smem constant byte address 0x4 - core index']
  #allocation1 [shape = 'u32[144,128]{1,0:T(1,128)}', space=vmem, size = 0x12000, scoped, tag = 'internal scratch']
  %s0 = inlined_call_operand.vmem [shape: bf16[2,2000], index: 0, kind: input, shape index: {}]
  %s1 = inlined_call_operand.vmem [shape: bf16[2000,512], index: 1, kind: input, shape index: {}]
  %s2 = inlined_call_operand.vmem [shape: f32[1,512], index: 2, kind: input, shape index: {}]
  %s3 = inlined_call_operand.vmem [shape: bf16[512,128], index: 3, kind: input, shape index: {}]
  %s4 = inlined_call_operand.vmem [shape: f32[1,128], index: 4, kind: input, shape index: {}]
  %s5 = inlined_call_operand.hbm [shape: f32[2,128], index: 5, kind: output, shape index: {}]
  %s6 = sld [smem:[#allocation0]]
  $region30: #{convnet_forward.3} parent=0
    _
  %s8 = ssub.s32 1, %s6
  %s9 = scalar_select 0, %s8, %s6
  $region1: #{convnet_forward.3} parent=0
    #allocation2 [shape = 'u8[1024]{0}', space=vmem, size = 0x400, scoped, tag = 'output window, operand 0, single buffered']
    #allocation3 [shape = 's32[1]{0}', space=sflag, size = 0x4, scoped, tag = 'scoped memory for convnet_forward.3']
    %10 = vsyncpa [#allocation3], 0
    // Predicated region
    $region2: #{convnet_forward.3} parent=1 // pred_check
      _
    $region3: #{convnet_forward.3} parent=1 // pred_check_branch
      %12 = sbr.rel (0) target = $region5
    $region4: #{convnet_forward.3} parent=1 // pred_region
      _
    $region5: #{convnet_forward.3} parent=1 // pred_fallthru
      _
    // Predicated region
    $region6: #{convnet_forward.3} parent=1 // pred_check
      _
    $region7: #{convnet_forward.3} parent=1 // pred_check_branch
      %14 = sbr.rel (0) target = $region9
    $region8: #{convnet_forward.3} parent=1 // pred_region
      _
    $region9: #{convnet_forward.3} parent=1 // pred_fallthru
      _
    // Predicated region
    $region10: #{convnet_forward.3} parent=1 // pred_check
      _
    $region11: #{convnet_forward.3} parent=1 // pred_check_branch
      %16 = sbr.rel (0) target = $region13
    $region12: #{convnet_forward.3} parent=1 // pred_region
      _
    $region13: #{convnet_forward.3} parent=1 // pred_fallthru
      _
    // Predicated region
    $region14: #{convnet_forward.3} parent=1 // pred_check
      _
    $region15: #{convnet_forward.3} parent=1 // pred_check_branch
      %18 = sbr.rel (0) target = $region17
    $region16: #{convnet_forward.3} parent=1 // pred_region
      _
    $region17: #{convnet_forward.3} parent=1 // pred_fallthru
      _
    // Predicated region
    $region18: #{convnet_forward.3} parent=1 // pred_check
      _
    $region19: #{convnet_forward.3} parent=1 // pred_check_branch
      %20 = sbr.rel (0) target = $region21
    $region20: #{convnet_forward.3} parent=1 // pred_region
      _
    $region21: #{convnet_forward.3} parent=1 // pred_fallthru
      _
    %v22 = vld [vmem:[%s0] sm:$0xff]
    %v23 = vld [vmem:[%s0 + $0x8] sm:$0xff]
    %v24 = vld [vmem:[%s1] sm:$0xff]
    %v25 = vld [vmem:[%s1 + $0x8] sm:$0xff]
    %v26 = vld [vmem:[%s1 + $0x10] sm:$0xff]
    %v27 = vld [vmem:[%s1 + $0x18] sm:$0xff]
    %v28 = vld [vmem:[%s1 + $0x20] sm:$0xff]
    %v29 = vld [vmem:[%s1 + $0x28] sm:$0xff]
    %v30 = vld [vmem:[%s1 + $0x30] sm:$0xff]
    %v31 = vld [vmem:[%s1 + $0x38] sm:$0xff]
    %v32 = vld [vmem:[%s1 + $0x40] sm:$0xff]
    %v33 = vld [vmem:[%s1 + $0x48] sm:$0xff]
    %v34 = vld [vmem:[%s1 + $0x50] sm:$0xff]
    %v35 = vld [vmem:[%s1 + $0x58] sm:$0xff]
    %v36 = vld [vmem:[%s1 + $0x60] sm:$0xff]
    %v37 = vld [vmem:[%s1 + $0x68] sm:$0xff]
    %v38 = vld [vmem:[%s1 + $0x70] sm:$0xff]
    %v39 = vld [vmem:[%s1 + $0x78] sm:$0xff]
    %v40 = vld [vmem:[%s1 + $0x80] sm:$0xff]
    %v41 = vld [vmem:[%s1 + $0x88] sm:$0xff]
    %v42 = vld [vmem:[%s1 + $0x90] sm:$0xff]
    %v43 = vld [vmem:[%s1 + $0x98] sm:$0xff]
    %v44 = vld [vmem:[%s1 + $0xa0] sm:$0xff]
    %v45 = vld [vmem:[%s1 + $0xa8] sm:$0xff]
    %v46 = vld [vmem:[%s1 + $0xb0] sm:$0xff]
    %v47 = vld [vmem:[%s1 + $0xb8] sm:$0xff]
    %v48 = vld [vmem:[%s1 + $0xc0] sm:$0xff]
    %v49 = vld [vmem:[%s1 + $0xc8] sm:$0xff]
    %v50 = vld [vmem:[%s1 + $0xd0] sm:$0xff]
    %v51 = vld [vmem:[%s1 + $0xd8] sm:$0xff]
    %v52 = vld [vmem:[%s1 + $0xe0] sm:$0xff]
    %v53 = vld [vmem:[%s1 + $0xe8] sm:$0xff]
    %v54 = vld [vmem:[%s1 + $0xf0] sm:$0xff]
    %v55 = vld [vmem:[%s1 + $0xf8] sm:$0xff]
    %v56 = vld [vmem:[%s1 + $0x100] sm:$0xff]
    %v57 = vld [vmem:[%s1 + $0x108] sm:$0xff]
    %v58 = vld [vmem:[%s1 + $0x110] sm:$0xff]
    %v59 = vld [vmem:[%s1 + $0x118] sm:$0xff]
    %v60 = vld [vmem:[%s1 + $0x120] sm:$0xff]
    %v61 = vld [vmem:[%s1 + $0x128] sm:$0xff]
    %v62 = vld [vmem:[%s1 + $0x130] sm:$0xff]
    %v63 = vld [vmem:[%s1 + $0x138] sm:$0xff]
    %v64 = vld [vmem:[%s1 + $0x140] sm:$0xff]
    %v65 = vld [vmem:[%s1 + $0x148] sm:$0xff]
    %v66 = vld [vmem:[%s1 + $0x150] sm:$0xff]
    %v67 = vld [vmem:[%s1 + $0x158] sm:$0xff]
    %v68 = vld [vmem:[%s1 + $0x160] sm:$0xff]
    %v69 = vld [vmem:[%s1 + $0x168] sm:$0xff]
    %v70 = vld [vmem:[%s1 + $0x170] sm:$0xff]
    %v71 = vld [vmem:[%s1 + $0x178] sm:$0xff]
    %v72 = vld [vmem:[%s1 + $0x180] sm:$0xff]
    %v73 = vld [vmem:[%s1 + $0x188] sm:$0xff]
    %v74 = vld [vmem:[%s1 + $0x190] sm:$0xff]
    %v75 = vld [vmem:[%s1 + $0x198] sm:$0xff]
    %v76 = vld [vmem:[%s1 + $0x1a0] sm:$0xff]
    %v77 = vld [vmem:[%s1 + $0x1a8] sm:$0xff]
    %v78 = vld [vmem:[%s1 + $0x1b0] sm:$0xff]
    %v79 = vld [vmem:[%s1 + $0x1b8] sm:$0xff]
    %v80 = vld [vmem:[%s1 + $0x1c0] sm:$0xff]
    %v81 = vld [vmem:[%s1 + $0x1c8] sm:$0xff]
    %v82 = vld [vmem:[%s1 + $0x1d0] sm:$0xff]
    %v83 = vld [vmem:[%s1 + $0x1d8] sm:$0xff]
    %v84 = vld [vmem:[%s1 + $0x1e0] sm:$0xff]
    %v85 = vld [vmem:[%s1 + $0x1e8] sm:$0xff]
    %v86 = vld [vmem:[%s1 + $0x1f0] sm:$0xff]
    %v87 = vld [vmem:[%s1 + $0x1f8] sm:$0xff]
    %v88 = vld [vmem:[%s1 + $0x200] sm:$0xff]
    %v89 = vld [vmem:[%s1 + $0x208] sm:$0xff]
    %v90 = vld [vmem:[%s1 + $0x210] sm:$0xff]
    %v91 = vld [vmem:[%s1 + $0x218] sm:$0xff]
    %v92 = vld [vmem:[%s1 + $0x220] sm:$0xff]
    %v93 = vld [vmem:[%s1 + $0x228] sm:$0xff]
    %v94 = vld [vmem:[%s1 + $0x230] sm:$0xff]
    %v95 = vld [vmem:[%s1 + $0x238] sm:$0xff]
    %v96 = vld [vmem:[%s1 + $0x240] sm:$0xff]
    %v97 = vld [vmem:[%s1 + $0x248] sm:$0xff]
    %v98 = vld [vmem:[%s1 + $0x250] sm:$0xff]
    %v99 = vld [vmem:[%s1 + $0x258] sm:$0xff]
    %v100 = vld [vmem:[%s1 + $0x260] sm:$0xff]
    %v101 = vld [vmem:[%s1 + $0x268] sm:$0xff]
    %v102 = vld [vmem:[%s1 + $0x270] sm:$0xff]
    %v103 = vld [vmem:[%s1 + $0x278] sm:$0xff]
    %v104 = vld [vmem:[%s1 + $0x280] sm:$0xff]
    %v105 = vld [vmem:[%s1 + $0x288] sm:$0xff]
    %v106 = vld [vmem:[%s1 + $0x290] sm:$0xff]
    %v107 = vld [vmem:[%s1 + $0x298] sm:$0xff]
    %v108 = vld [vmem:[%s1 + $0x2a0] sm:$0xff]
    %v109 = vld [vmem:[%s1 + $0x2a8] sm:$0xff]
    %v110 = vld [vmem:[%s1 + $0x2b0] sm:$0xff]
    %v111 = vld [vmem:[%s1 + $0x2b8] sm:$0xff]
    %v112 = vld [vmem:[%s1 + $0x2c0] sm:$0xff]
    %v113 = vld [vmem:[%s1 + $0x2c8] sm:$0xff]
    %v114 = vld [vmem:[%s1 + $0x2d0] sm:$0xff]
    %v115 = vld [vmem:[%s1 + $0x2d8] sm:$0xff]
    %v116 = vld [vmem:[%s1 + $0x2e0] sm:$0xff]
    %v117 = vld [vmem:[%s1 + $0x2e8] sm:$0xff]
    %v118 = vld [vmem:[%s1 + $0x2f0] sm:$0xff]
    %v119 = vld [vmem:[%s1 + $0x2f8] sm:$0xff]
    %v120 = vld [vmem:[%s1 + $0x300] sm:$0xff]
    %v121 = vld [vmem:[%s1 + $0x308] sm:$0xff]
    %v122 = vld [vmem:[%s1 + $0x310] sm:$0xff]
    %v123 = vld [vmem:[%s1 + $0x318] sm:$0xff]
    %v124 = vld [vmem:[%s1 + $0x320] sm:$0xff]
    %v125 = vld [vmem:[%s1 + $0x328] sm:$0xff]
    %v126 = vld [vmem:[%s1 + $0x330] sm:$0xff]
    %v127 = vld [vmem:[%s1 + $0x338] sm:$0xff]
    %v128 = vld [vmem:[%s1 + $0x340] sm:$0xff]
    %v129 = vld [vmem:[%s1 + $0x348] sm:$0xff]
    %v130 = vld [vmem:[%s1 + $0x350] sm:$0xff]
    %v131 = vld [vmem:[%s1 + $0x358] sm:$0xff]
    %v132 = vld [vmem:[%s1 + $0x360] sm:$0xff]
    %v133 = vld [vmem:[%s1 + $0x368] sm:$0xff]
    %v134 = vld [vmem:[%s1 + $0x370] sm:$0xff]
    %v135 = vld [vmem:[%s1 + $0x378] sm:$0xff]
    %v136 = vld [vmem:[%s1 + $0x380] sm:$0xff]
    %v137 = vld [vmem:[%s1 + $0x388] sm:$0xff]
    %v138 = vld [vmem:[%s1 + $0x390] sm:$0xff]
    %v139 = vld [vmem:[%s1 + $0x398] sm:$0xff]
    %v140 = vld [vmem:[%s1 + $0x3a0] sm:$0xff]
    %v141 = vld [vmem:[%s1 + $0x3a8] sm:$0xff]
    %v142 = vld [vmem:[%s1 + $0x3b0] sm:$0xff]
    %v143 = vld [vmem:[%s1 + $0x3b8] sm:$0xff]
    %v144 = vld [vmem:[%s1 + $0x3c0] sm:$0xff]
    %v145 = vld [vmem:[%s1 + $0x3c8] sm:$0xff]
    %v146 = vld [vmem:[%s1 + $0x3d0] sm:$0xff]
    %v147 = vld [vmem:[%s1 + $0x3d8] sm:$0xff]
    %v148 = vld [vmem:[%s1 + $0x3e0] sm:$0xff]
    %v149 = vld [vmem:[%s1 + $0x3e8] sm:$0xff]
    %v150 = vld [vmem:[%s1 + $0x3f0] sm:$0xff]
    %v151 = vld [vmem:[%s1 + $0x3f8] sm:$0xff]
    %v152 = vld [vmem:[%s1 + $0x400] sm:$0xff]
    %v153 = vld [vmem:[%s1 + $0x408] sm:$0xff]
    %v154 = vld [vmem:[%s1 + $0x410] sm:$0xff]
    %v155 = vld [vmem:[%s1 + $0x418] sm:$0xff]
    %v156 = vld [vmem:[%s1 + $0x420] sm:$0xff]
    %v157 = vld [vmem:[%s1 + $0x428] sm:$0xff]
    %v158 = vld [vmem:[%s1 + $0x430] sm:$0xff]
    %v159 = vld [vmem:[%s1 + $0x438] sm:$0xff]
    %v160 = vld [vmem:[%s1 + $0x440] sm:$0xff]
    %v161 = vld [vmem:[%s1 + $0x448] sm:$0xff]
    %v162 = vld [vmem:[%s1 + $0x450] sm:$0xff]
    %v163 = vld [vmem:[%s1 + $0x458] sm:$0xff]
    %v164 = vld [vmem:[%s1 + $0x460] sm:$0xff]
    %v165 = vld [vmem:[%s1 + $0x468] sm:$0xff]
    %v166 = vld [vmem:[%s1 + $0x470] sm:$0xff]
    %v167 = vld [vmem:[%s1 + $0x478] sm:$0xff]
    %v168 = vld [vmem:[%s1 + $0x480] sm:$0xff]
    %v169 = vld [vmem:[%s1 + $0x488] sm:$0xff]
    %v170 = vld [vmem:[%s1 + $0x490] sm:$0xff]
    %v171 = vld [vmem:[%s1 + $0x498] sm:$0xff]
    %v172 = vld [vmem:[%s1 + $0x4a0] sm:$0xff]
    %v173 = vld [vmem:[%s1 + $0x4a8] sm:$0xff]
    %v174 = vld [vmem:[%s1 + $0x4b0] sm:$0xff]
    %v175 = vld [vmem:[%s1 + $0x4b8] sm:$0xff]
    %v176 = vld [vmem:[%s1 + $0x4c0] sm:$0xff]
    %v177 = vld [vmem:[%s1 + $0x4c8] sm:$0xff]
    %v178 = vld [vmem:[%s1 + $0x4d0] sm:$0xff]
    %v179 = vld [vmem:[%s1 + $0x4d8] sm:$0xff]
    %v180 = vld [vmem:[%s1 + $0x4e0] sm:$0xff]
    %v181 = vld [vmem:[%s1 + $0x4e8] sm:$0xff]
    %v182 = vld [vmem:[%s1 + $0x4f0] sm:$0xff]
    %v183 = vld [vmem:[%s1 + $0x4f8] sm:$0xff]
    %v184 = vld [vmem:[%s1 + $0x500] sm:$0xff]
    %v185 = vld [vmem:[%s1 + $0x508] sm:$0xff]
    %v186 = vld [vmem:[%s1 + $0x510] sm:$0xff]
    %v187 = vld [vmem:[%s1 + $0x518] sm:$0xff]
    %v188 = vld [vmem:[%s1 + $0x520] sm:$0xff]
    %v189 = vld [vmem:[%s1 + $0x528] sm:$0xff]
    %v190 = vld [vmem:[%s1 + $0x530] sm:$0xff]
    %v191 = vld [vmem:[%s1 + $0x538] sm:$0xff]
    %v192 = vld [vmem:[%s1 + $0x540] sm:$0xff]
    %v193 = vld [vmem:[%s1 + $0x548] sm:$0xff]
    %v194 = vld [vmem:[%s1 + $0x550] sm:$0xff]
    %v195 = vld [vmem:[%s1 + $0x558] sm:$0xff]
    %v196 = vld [vmem:[%s1 + $0x560] sm:$0xff]
    %v197 = vld [vmem:[%s1 + $0x568] sm:$0xff]
    %v198 = vld [vmem:[%s1 + $0x570] sm:$0xff]
    %v199 = vld [vmem:[%s1 + $0x578] sm:$0xff]
    %v200 = vld [vmem:[%s1 + $0x580] sm:$0xff]
    %v201 = vld [vmem:[%s1 + $0x588] sm:$0xff]
    %v202 = vld [vmem:[%s1 + $0x590] sm:$0xff]
    %v203 = vld [vmem:[%s1 + $0x598] sm:$0xff]
    %v204 = vld [vmem:[%s1 + $0x5a0] sm:$0xff]
    %v205 = vld [vmem:[%s1 + $0x5a8] sm:$0xff]
    %v206 = vld [vmem:[%s1 + $0x5b0] sm:$0xff]
    %v207 = vld [vmem:[%s1 + $0x5b8] sm:$0xff]
    %v208 = vld [vmem:[%s1 + $0x5c0] sm:$0xff]
    %v209 = vld [vmem:[%s1 + $0x5c8] sm:$0xff]
    %v210 = vld [vmem:[%s1 + $0x5d0] sm:$0xff]
    %v211 = vld [vmem:[%s1 + $0x5d8] sm:$0xff]
    %v212 = vld [vmem:[%s1 + $0x5e0] sm:$0xff]
    %v213 = vld [vmem:[%s1 + $0x5e8] sm:$0xff]
    %v214 = vld [vmem:[%s1 + $0x5f0] sm:$0xff]
    %v215 = vld [vmem:[%s1 + $0x5f8] sm:$0xff]
    %v216 = vld [vmem:[%s1 + $0x600] sm:$0xff]
    %v217 = vld [vmem:[%s1 + $0x608] sm:$0xff]
    %v218 = vld [vmem:[%s1 + $0x610] sm:$0xff]
    %v219 = vld [vmem:[%s1 + $0x618] sm:$0xff]
    %v220 = vld [vmem:[%s1 + $0x620] sm:$0xff]
    %v221 = vld [vmem:[%s1 + $0x628] sm:$0xff]
    %v222 = vld [vmem:[%s1 + $0x630] sm:$0xff]
    %v223 = vld [vmem:[%s1 + $0x638] sm:$0xff]
    %v224 = vld [vmem:[%s1 + $0x640] sm:$0xff]
    %v225 = vld [vmem:[%s1 + $0x648] sm:$0xff]
    %v226 = vld [vmem:[%s1 + $0x650] sm:$0xff]
    %v227 = vld [vmem:[%s1 + $0x658] sm:$0xff]
    %v228 = vld [vmem:[%s1 + $0x660] sm:$0xff]
    %v229 = vld [vmem:[%s1 + $0x668] sm:$0xff]
    %v230 = vld [vmem:[%s1 + $0x670] sm:$0xff]
    %v231 = vld [vmem:[%s1 + $0x678] sm:$0xff]
    %v232 = vld [vmem:[%s1 + $0x680] sm:$0xff]
    %v233 = vld [vmem:[%s1 + $0x688] sm:$0xff]
    %v234 = vld [vmem:[%s1 + $0x690] sm:$0xff]
    %v235 = vld [vmem:[%s1 + $0x698] sm:$0xff]
    %v236 = vld [vmem:[%s1 + $0x6a0] sm:$0xff]
    %v237 = vld [vmem:[%s1 + $0x6a8] sm:$0xff]
    %v238 = vld [vmem:[%s1 + $0x6b0] sm:$0xff]
    %v239 = vld [vmem:[%s1 + $0x6b8] sm:$0xff]
    %v240 = vld [vmem:[%s1 + $0x6c0] sm:$0xff]
    %v241 = vld [vmem:[%s1 + $0x6c8] sm:$0xff]
    %v242 = vld [vmem:[%s1 + $0x6d0] sm:$0xff]
    %v243 = vld [vmem:[%s1 + $0x6d8] sm:$0xff]
    %v244 = vld [vmem:[%s1 + $0x6e0] sm:$0xff]
    %v245 = vld [vmem:[%s1 + $0x6e8] sm:$0xff]
    %v246 = vld [vmem:[%s1 + $0x6f0] sm:$0xff]
    %v247 = vld [vmem:[%s1 + $0x6f8] sm:$0xff]
    %v248 = vld [vmem:[%s1 + $0x700] sm:$0xff]
    %v249 = vld [vmem:[%s1 + $0x708] sm:$0xff]
    %v250 = vld [vmem:[%s1 + $0x710] sm:$0xff]
    %v251 = vld [vmem:[%s1 + $0x718] sm:$0xff]
    %v252 = vld [vmem:[%s1 + $0x720] sm:$0xff]
    %v253 = vld [vmem:[%s1 + $0x728] sm:$0xff]
    %v254 = vld [vmem:[%s1 + $0x730] sm:$0xff]
    %v255 = vld [vmem:[%s1 + $0x738] sm:$0xff]
    %v256 = vld [vmem:[%s1 + $0x740] sm:$0xff]
    %v257 = vld [vmem:[%s1 + $0x748] sm:$0xff]
    %v258 = vld [vmem:[%s1 + $0x750] sm:$0xff]
    %v259 = vld [vmem:[%s1 + $0x758] sm:$0xff]
    %v260 = vld [vmem:[%s1 + $0x760] sm:$0xff]
    %v261 = vld [vmem:[%s1 + $0x768] sm:$0xff]
    %v262 = vld [vmem:[%s1 + $0x770] sm:$0xff]
    %v263 = vld [vmem:[%s1 + $0x778] sm:$0xff]
    %v264 = vld [vmem:[%s1 + $0x780] sm:$0xff]
    %v265 = vld [vmem:[%s1 + $0x788] sm:$0xff]
    %v266 = vld [vmem:[%s1 + $0x790] sm:$0xff]
    %v267 = vld [vmem:[%s1 + $0x798] sm:$0xff]
    %v268 = vld [vmem:[%s1 + $0x7a0] sm:$0xff]
    %v269 = vld [vmem:[%s1 + $0x7a8] sm:$0xff]
    %v270 = vld [vmem:[%s1 + $0x7b0] sm:$0xff]
    %v271 = vld [vmem:[%s1 + $0x7b8] sm:$0xff]
    %v272 = vld [vmem:[%s1 + $0x7c0] sm:$0xff]
    %v273 = vld [vmem:[%s1 + $0x7c8] sm:$0xff]
    %v274 = vld [vmem:[%s1 + $0x7d0] sm:$0xff]
    %v275 = vld [vmem:[%s1 + $0x7d8] sm:$0xff]
    %v276 = vld [vmem:[%s1 + $0x7e0] sm:$0xff]
    %v277 = vld [vmem:[%s1 + $0x7e8] sm:$0xff]
    %v278 = vld [vmem:[%s1 + $0x7f0] sm:$0xff]
    %v279 = vld [vmem:[%s1 + $0x7f8] sm:$0xff]
    %v280 = vld [vmem:[%s1 + $0x800] sm:$0xff]
    %v281 = vld [vmem:[%s1 + $0x808] sm:$0xff]
    %v282 = vld [vmem:[%s1 + $0x810] sm:$0xff]
    %v283 = vld [vmem:[%s1 + $0x818] sm:$0xff]
    %v284 = vld [vmem:[%s1 + $0x820] sm:$0xff]
    %v285 = vld [vmem:[%s1 + $0x828] sm:$0xff]
    %v286 = vld [vmem:[%s1 + $0x830] sm:$0xff]
    %v287 = vld [vmem:[%s1 + $0x838] sm:$0xff]
    %v288 = vld [vmem:[%s1 + $0x840] sm:$0xff]
    %v289 = vld [vmem:[%s1 + $0x848] sm:$0xff]
    %v290 = vld [vmem:[%s1 + $0x850] sm:$0xff]
    %v291 = vld [vmem:[%s1 + $0x858] sm:$0xff]
    %v292 = vld [vmem:[%s1 + $0x860] sm:$0xff]
    %v293 = vld [vmem:[%s1 + $0x868] sm:$0xff]
    %v294 = vld [vmem:[%s1 + $0x870] sm:$0xff]
    %v295 = vld [vmem:[%s1 + $0x878] sm:$0xff]
    %v296 = vld [vmem:[%s1 + $0x880] sm:$0xff]
    %v297 = vld [vmem:[%s1 + $0x888] sm:$0xff]
    %v298 = vld [vmem:[%s1 + $0x890] sm:$0xff]
    %v299 = vld [vmem:[%s1 + $0x898] sm:$0xff]
    %v300 = vld [vmem:[%s1 + $0x8a0] sm:$0xff]
    %v301 = vld [vmem:[%s1 + $0x8a8] sm:$0xff]
    %v302 = vld [vmem:[%s1 + $0x8b0] sm:$0xff]
    %v303 = vld [vmem:[%s1 + $0x8b8] sm:$0xff]
    %v304 = vld [vmem:[%s1 + $0x8c0] sm:$0xff]
    %v305 = vld [vmem:[%s1 + $0x8c8] sm:$0xff]
    %v306 = vld [vmem:[%s1 + $0x8d0] sm:$0xff]
    %v307 = vld [vmem:[%s1 + $0x8d8] sm:$0xff]
    %v308 = vld [vmem:[%s1 + $0x8e0] sm:$0xff]
    %v309 = vld [vmem:[%s1 + $0x8e8] sm:$0xff]
    %v310 = vld [vmem:[%s1 + $0x8f0] sm:$0xff]
    %v311 = vld [vmem:[%s1 + $0x8f8] sm:$0xff]
    %v312 = vld [vmem:[%s1 + $0x900] sm:$0xff]
    %v313 = vld [vmem:[%s1 + $0x908] sm:$0xff]
    %v314 = vld [vmem:[%s1 + $0x910] sm:$0xff]
    %v315 = vld [vmem:[%s1 + $0x918] sm:$0xff]
    %v316 = vld [vmem:[%s1 + $0x920] sm:$0xff]
    %v317 = vld [vmem:[%s1 + $0x928] sm:$0xff]
    %v318 = vld [vmem:[%s1 + $0x930] sm:$0xff]
    %v319 = vld [vmem:[%s1 + $0x938] sm:$0xff]
    %v320 = vld [vmem:[%s1 + $0x940] sm:$0xff]
    %v321 = vld [vmem:[%s1 + $0x948] sm:$0xff]
    %v322 = vld [vmem:[%s1 + $0x950] sm:$0xff]
    %v323 = vld [vmem:[%s1 + $0x958] sm:$0xff]
    %v324 = vld [vmem:[%s1 + $0x960] sm:$0xff]
    %v325 = vld [vmem:[%s1 + $0x968] sm:$0xff]
    %v326 = vld [vmem:[%s1 + $0x970] sm:$0xff]
    %v327 = vld [vmem:[%s1 + $0x978] sm:$0xff]
    %v328 = vld [vmem:[%s1 + $0x980] sm:$0xff]
    %v329 = vld [vmem:[%s1 + $0x988] sm:$0xff]
    %v330 = vld [vmem:[%s1 + $0x990] sm:$0xff]
    %v331 = vld [vmem:[%s1 + $0x998] sm:$0xff]
    %v332 = vld [vmem:[%s1 + $0x9a0] sm:$0xff]
    %v333 = vld [vmem:[%s1 + $0x9a8] sm:$0xff]
    %v334 = vld [vmem:[%s1 + $0x9b0] sm:$0xff]
    %v335 = vld [vmem:[%s1 + $0x9b8] sm:$0xff]
    %v336 = vld [vmem:[%s1 + $0x9c0] sm:$0xff]
    %v337 = vld [vmem:[%s1 + $0x9c8] sm:$0xff]
    %v338 = vld [vmem:[%s1 + $0x9d0] sm:$0xff]
    %v339 = vld [vmem:[%s1 + $0x9d8] sm:$0xff]
    %v340 = vld [vmem:[%s1 + $0x9e0] sm:$0xff]
    %v341 = vld [vmem:[%s1 + $0x9e8] sm:$0xff]
    %v342 = vld [vmem:[%s1 + $0x9f0] sm:$0xff]
    %v343 = vld [vmem:[%s1 + $0x9f8] sm:$0xff]
    %v344 = vld [vmem:[%s1 + $0xa00] sm:$0xff]
    %v345 = vld [vmem:[%s1 + $0xa08] sm:$0xff]
    %v346 = vld [vmem:[%s1 + $0xa10] sm:$0xff]
    %v347 = vld [vmem:[%s1 + $0xa18] sm:$0xff]
    %v348 = vld [vmem:[%s1 + $0xa20] sm:$0xff]
    %v349 = vld [vmem:[%s1 + $0xa28] sm:$0xff]
    %v350 = vld [vmem:[%s1 + $0xa30] sm:$0xff]
    %v351 = vld [vmem:[%s1 + $0xa38] sm:$0xff]
    %v352 = vld [vmem:[%s1 + $0xa40] sm:$0xff]
    %v353 = vld [vmem:[%s1 + $0xa48] sm:$0xff]
    %v354 = vld [vmem:[%s1 + $0xa50] sm:$0xff]
    %v355 = vld [vmem:[%s1 + $0xa58] sm:$0xff]
    %v356 = vld [vmem:[%s1 + $0xa60] sm:$0xff]
    %v357 = vld [vmem:[%s1 + $0xa68] sm:$0xff]
    %v358 = vld [vmem:[%s1 + $0xa70] sm:$0xff]
    %v359 = vld [vmem:[%s1 + $0xa78] sm:$0xff]
    %v360 = vld [vmem:[%s1 + $0xa80] sm:$0xff]
    %v361 = vld [vmem:[%s1 + $0xa88] sm:$0xff]
    %v362 = vld [vmem:[%s1 + $0xa90] sm:$0xff]
    %v363 = vld [vmem:[%s1 + $0xa98] sm:$0xff]
    %v364 = vld [vmem:[%s1 + $0xaa0] sm:$0xff]
    %v365 = vld [vmem:[%s1 + $0xaa8] sm:$0xff]
    %v366 = vld [vmem:[%s1 + $0xab0] sm:$0xff]
    %v367 = vld [vmem:[%s1 + $0xab8] sm:$0xff]
    %v368 = vld [vmem:[%s1 + $0xac0] sm:$0xff]
    %v369 = vld [vmem:[%s1 + $0xac8] sm:$0xff]
    %v370 = vld [vmem:[%s1 + $0xad0] sm:$0xff]
    %v371 = vld [vmem:[%s1 + $0xad8] sm:$0xff]
    %v372 = vld [vmem:[%s1 + $0xae0] sm:$0xff]
    %v373 = vld [vmem:[%s1 + $0xae8] sm:$0xff]
    %v374 = vld [vmem:[%s1 + $0xaf0] sm:$0xff]
    %v375 = vld [vmem:[%s1 + $0xaf8] sm:$0xff]
    %v376 = vld [vmem:[%s1 + $0xb00] sm:$0xff]
    %v377 = vld [vmem:[%s1 + $0xb08] sm:$0xff]
    %v378 = vld [vmem:[%s1 + $0xb10] sm:$0xff]
    %v379 = vld [vmem:[%s1 + $0xb18] sm:$0xff]
    %v380 = vld [vmem:[%s1 + $0xb20] sm:$0xff]
    %v381 = vld [vmem:[%s1 + $0xb28] sm:$0xff]
    %v382 = vld [vmem:[%s1 + $0xb30] sm:$0xff]
    %v383 = vld [vmem:[%s1 + $0xb38] sm:$0xff]
    %v384 = vld [vmem:[%s1 + $0xb40] sm:$0xff]
    %v385 = vld [vmem:[%s1 + $0xb48] sm:$0xff]
    %v386 = vld [vmem:[%s1 + $0xb50] sm:$0xff]
    %v387 = vld [vmem:[%s1 + $0xb58] sm:$0xff]
    %v388 = vld [vmem:[%s1 + $0xb60] sm:$0xff]
    %v389 = vld [vmem:[%s1 + $0xb68] sm:$0xff]
    %v390 = vld [vmem:[%s1 + $0xb70] sm:$0xff]
    %v391 = vld [vmem:[%s1 + $0xb78] sm:$0xff]
    %v392 = vld [vmem:[%s1 + $0xb80] sm:$0xff]
    %v393 = vld [vmem:[%s1 + $0xb88] sm:$0xff]
    %v394 = vld [vmem:[%s1 + $0xb90] sm:$0xff]
    %v395 = vld [vmem:[%s1 + $0xb98] sm:$0xff]
    %v396 = vld [vmem:[%s1 + $0xba0] sm:$0xff]
    %v397 = vld [vmem:[%s1 + $0xba8] sm:$0xff]
    %v398 = vld [vmem:[%s1 + $0xbb0] sm:$0xff]
    %v399 = vld [vmem:[%s1 + $0xbb8] sm:$0xff]
    %v400 = vld [vmem:[%s1 + $0xbc0] sm:$0xff]
    %v401 = vld [vmem:[%s1 + $0xbc8] sm:$0xff]
    %v402 = vld [vmem:[%s1 + $0xbd0] sm:$0xff]
    %v403 = vld [vmem:[%s1 + $0xbd8] sm:$0xff]
    %v404 = vld [vmem:[%s1 + $0xbe0] sm:$0xff]
    %v405 = vld [vmem:[%s1 + $0xbe8] sm:$0xff]
    %v406 = vld [vmem:[%s1 + $0xbf0] sm:$0xff]
    %v407 = vld [vmem:[%s1 + $0xbf8] sm:$0xff]
    %v408 = vld [vmem:[%s1 + $0xc00] sm:$0xff]
    %v409 = vld [vmem:[%s1 + $0xc08] sm:$0xff]
    %v410 = vld [vmem:[%s1 + $0xc10] sm:$0xff]
    %v411 = vld [vmem:[%s1 + $0xc18] sm:$0xff]
    %v412 = vld [vmem:[%s1 + $0xc20] sm:$0xff]
    %v413 = vld [vmem:[%s1 + $0xc28] sm:$0xff]
    %v414 = vld [vmem:[%s1 + $0xc30] sm:$0xff]
    %v415 = vld [vmem:[%s1 + $0xc38] sm:$0xff]
    %v416 = vld [vmem:[%s1 + $0xc40] sm:$0xff]
    %v417 = vld [vmem:[%s1 + $0xc48] sm:$0xff]
    %v418 = vld [vmem:[%s1 + $0xc50] sm:$0xff]
    %v419 = vld [vmem:[%s1 + $0xc58] sm:$0xff]
    %v420 = vld [vmem:[%s1 + $0xc60] sm:$0xff]
    %v421 = vld [vmem:[%s1 + $0xc68] sm:$0xff]
    %v422 = vld [vmem:[%s1 + $0xc70] sm:$0xff]
    %v423 = vld [vmem:[%s1 + $0xc78] sm:$0xff]
    %v424 = vld [vmem:[%s1 + $0xc80] sm:$0xff]
    %v425 = vld [vmem:[%s1 + $0xc88] sm:$0xff]
    %v426 = vld [vmem:[%s1 + $0xc90] sm:$0xff]
    %v427 = vld [vmem:[%s1 + $0xc98] sm:$0xff]
    %v428 = vld [vmem:[%s1 + $0xca0] sm:$0xff]
    %v429 = vld [vmem:[%s1 + $0xca8] sm:$0xff]
    %v430 = vld [vmem:[%s1 + $0xcb0] sm:$0xff]
    %v431 = vld [vmem:[%s1 + $0xcb8] sm:$0xff]
    %v432 = vld [vmem:[%s1 + $0xcc0] sm:$0xff]
    %v433 = vld [vmem:[%s1 + $0xcc8] sm:$0xff]
    %v434 = vld [vmem:[%s1 + $0xcd0] sm:$0xff]
    %v435 = vld [vmem:[%s1 + $0xcd8] sm:$0xff]
    %v436 = vld [vmem:[%s1 + $0xce0] sm:$0xff]
    %v437 = vld [vmem:[%s1 + $0xce8] sm:$0xff]
    %v438 = vld [vmem:[%s1 + $0xcf0] sm:$0xff]
    %v439 = vld [vmem:[%s1 + $0xcf8] sm:$0xff]
    %v440 = vld [vmem:[%s1 + $0xd00] sm:$0xff]
    %v441 = vld [vmem:[%s1 + $0xd08] sm:$0xff]
    %v442 = vld [vmem:[%s1 + $0xd10] sm:$0xff]
    %v443 = vld [vmem:[%s1 + $0xd18] sm:$0xff]
    %v444 = vld [vmem:[%s1 + $0xd20] sm:$0xff]
    %v445 = vld [vmem:[%s1 + $0xd28] sm:$0xff]
    %v446 = vld [vmem:[%s1 + $0xd30] sm:$0xff]
    %v447 = vld [vmem:[%s1 + $0xd38] sm:$0xff]
    %v448 = vld [vmem:[%s1 + $0xd40] sm:$0xff]
    %v449 = vld [vmem:[%s1 + $0xd48] sm:$0xff]
    %v450 = vld [vmem:[%s1 + $0xd50] sm:$0xff]
    %v451 = vld [vmem:[%s1 + $0xd58] sm:$0xff]
    %v452 = vld [vmem:[%s1 + $0xd60] sm:$0xff]
    %v453 = vld [vmem:[%s1 + $0xd68] sm:$0xff]
    %v454 = vld [vmem:[%s1 + $0xd70] sm:$0xff]
    %v455 = vld [vmem:[%s1 + $0xd78] sm:$0xff]
    %v456 = vld [vmem:[%s1 + $0xd80] sm:$0xff]
    %v457 = vld [vmem:[%s1 + $0xd88] sm:$0xff]
    %v458 = vld [vmem:[%s1 + $0xd90] sm:$0xff]
    %v459 = vld [vmem:[%s1 + $0xd98] sm:$0xff]
    %v460 = vld [vmem:[%s1 + $0xda0] sm:$0xff]
    %v461 = vld [vmem:[%s1 + $0xda8] sm:$0xff]
    %v462 = vld [vmem:[%s1 + $0xdb0] sm:$0xff]
    %v463 = vld [vmem:[%s1 + $0xdb8] sm:$0xff]
    %v464 = vld [vmem:[%s1 + $0xdc0] sm:$0xff]
    %v465 = vld [vmem:[%s1 + $0xdc8] sm:$0xff]
    %v466 = vld [vmem:[%s1 + $0xdd0] sm:$0xff]
    %v467 = vld [vmem:[%s1 + $0xdd8] sm:$0xff]
    %v468 = vld [vmem:[%s1 + $0xde0] sm:$0xff]
    %v469 = vld [vmem:[%s1 + $0xde8] sm:$0xff]
    %v470 = vld [vmem:[%s1 + $0xdf0] sm:$0xff]
    %v471 = vld [vmem:[%s1 + $0xdf8] sm:$0xff]
    %v472 = vld [vmem:[%s1 + $0xe00] sm:$0xff]
    %v473 = vld [vmem:[%s1 + $0xe08] sm:$0xff]
    %v474 = vld [vmem:[%s1 + $0xe10] sm:$0xff]
    %v475 = vld [vmem:[%s1 + $0xe18] sm:$0xff]
    %v476 = vld [vmem:[%s1 + $0xe20] sm:$0xff]
    %v477 = vld [vmem:[%s1 + $0xe28] sm:$0xff]
    %v478 = vld [vmem:[%s1 + $0xe30] sm:$0xff]
    %v479 = vld [vmem:[%s1 + $0xe38] sm:$0xff]
    %v480 = vld [vmem:[%s1 + $0xe40] sm:$0xff]
    %v481 = vld [vmem:[%s1 + $0xe48] sm:$0xff]
    %v482 = vld [vmem:[%s1 + $0xe50] sm:$0xff]
    %v483 = vld [vmem:[%s1 + $0xe58] sm:$0xff]
    %v484 = vld [vmem:[%s1 + $0xe60] sm:$0xff]
    %v485 = vld [vmem:[%s1 + $0xe68] sm:$0xff]
    %v486 = vld [vmem:[%s1 + $0xe70] sm:$0xff]
    %v487 = vld [vmem:[%s1 + $0xe78] sm:$0xff]
    %v488 = vld [vmem:[%s1 + $0xe80] sm:$0xff]
    %v489 = vld [vmem:[%s1 + $0xe88] sm:$0xff]
    %v490 = vld [vmem:[%s1 + $0xe90] sm:$0xff]
    %v491 = vld [vmem:[%s1 + $0xe98] sm:$0xff]
    %v492 = vld [vmem:[%s1 + $0xea0] sm:$0xff]
    %v493 = vld [vmem:[%s1 + $0xea8] sm:$0xff]
    %v494 = vld [vmem:[%s1 + $0xeb0] sm:$0xff]
    %v495 = vld [vmem:[%s1 + $0xeb8] sm:$0xff]
    %v496 = vld [vmem:[%s1 + $0xec0] sm:$0xff]
    %v497 = vld [vmem:[%s1 + $0xec8] sm:$0xff]
    %v498 = vld [vmem:[%s1 + $0xed0] sm:$0xff]
    %v499 = vld [vmem:[%s1 + $0xed8] sm:$0xff]
    %v500 = vld [vmem:[%s1 + $0xee0] sm:$0xff]
    %v501 = vld [vmem:[%s1 + $0xee8] sm:$0xff]
    %v502 = vld [vmem:[%s1 + $0xef0] sm:$0xff]
    %v503 = vld [vmem:[%s1 + $0xef8] sm:$0xff]
    %v504 = vld [vmem:[%s1 + $0xf00] sm:$0xff]
    %v505 = vld [vmem:[%s1 + $0xf08] sm:$0xff]
    %v506 = vld [vmem:[%s1 + $0xf10] sm:$0xff]
    %v507 = vld [vmem:[%s1 + $0xf18] sm:$0xff]
    %v508 = vld [vmem:[%s1 + $0xf20] sm:$0xff]
    %v509 = vld [vmem:[%s1 + $0xf28] sm:$0xff]
    %v510 = vld [vmem:[%s1 + $0xf30] sm:$0xff]
    %v511 = vld [vmem:[%s1 + $0xf38] sm:$0xff]
    %v512 = vld [vmem:[%s1 + $0xf40] sm:$0xff]
    %v513 = vld [vmem:[%s1 + $0xf48] sm:$0xff]
    %v514 = vld [vmem:[%s1 + $0xf50] sm:$0xff]
    %v515 = vld [vmem:[%s1 + $0xf58] sm:$0xff]
    %v516 = vld [vmem:[%s1 + $0xf60] sm:$0xff]
    %v517 = vld [vmem:[%s1 + $0xf68] sm:$0xff]
    %v518 = vld [vmem:[%s1 + $0xf70] sm:$0xff]
    %v519 = vld [vmem:[%s1 + $0xf78] sm:$0xff]
    %v520 = vld [vmem:[%s1 + $0xf80] sm:$0xff]
    %v521 = vld [vmem:[%s1 + $0xf88] sm:$0xff]
    %v522 = vld [vmem:[%s1 + $0xf90] sm:$0xff]
    %v523 = vld [vmem:[%s1 + $0xf98] sm:$0xff]
    %v524 = vld [vmem:[%s2] sm:$0xf]
    %v526 = vlaneseq
    %v527 = vshrl.u32 %v526, 7
    %v528 = vsub.s32 0, %v527
    %v529 = vrot.slane %v524, %v528
    %v530 = vlaneseq
    %v531 = vshrl.u32 %v530, 7
    %v532 = vsub.s32 1, %v531
    %v533 = vrot.slane %v524, %v532
    %v534 = vlaneseq
    %v535 = vshrl.u32 %v534, 7
    %v536 = vsub.s32 2, %v535
    %v537 = vrot.slane %v524, %v536
    %v538 = vlaneseq
    %v539 = vshrl.u32 %v538, 7
    %v540 = vsub.s32 3, %v539
    %v541 = vrot.slane %v524, %v540
    %v548 = vcombine.high %v22, %v22
    %v550 = vunpack.c.l.s4 1966171168
    %v551 = vunpack.c.0.s8 %v550
    %v552 = vlaneseq
    %v553 = vshrl.u32 %v552, 7
    %v554 = vsub.s32 %v551, %v553
    %v555 = vrot.slane %v22, %v554
    %v557 = vunpack.c.l.s4 1966171168
    %v558 = vunpack.c.0.s8 %v557
    %v559 = vlaneseq
    %v560 = vshrl.u32 %v559, 7
    %v561 = vsub.s32 %v558, %v560
    %v562 = vrot.slane %v548, %v561
    %v563 = vcombine.high %v555, %v555
    %v564 = vcombine.high %v562, %v562
    %v566 = vunpack.c.l.s4 1966171168
    %v567 = vunpack.c.0.s8 %v566
    %v568 = vlaneseq
    %v569 = vshrl.u32 %v568, 7
    %v570 = vsub.s32 %v567, %v569
    %v571 = vrot.slane %v555, %v570
    %v573 = vunpack.c.l.s4 1966171168
    %v574 = vunpack.c.0.s8 %v573
    %v575 = vlaneseq
    %v576 = vshrl.u32 %v575, 7
    %v577 = vsub.s32 %v574, %v576
    %v578 = vrot.slane %v562, %v577
    %v580 = vunpack.c.l.s4 1966171168
    %v581 = vunpack.c.0.s8 %v580
    %v582 = vlaneseq
    %v583 = vshrl.u32 %v582, 7
    %v584 = vsub.s32 %v581, %v583
    %v585 = vrot.slane %v563, %v584
    %v587 = vunpack.c.l.s4 1966171168
    %v588 = vunpack.c.0.s8 %v587
    %v589 = vlaneseq
    %v590 = vshrl.u32 %v589, 7
    %v591 = vsub.s32 %v588, %v590
    %v592 = vrot.slane %v564, %v591
    %v593 = vcombine.high %v571, %v571
    %v594 = vcombine.high %v578, %v578
    %v595 = vcombine.high %v585, %v585
    %v596 = vcombine.high %v592, %v592
    %v597 = vcombine.high %v23, %v23
    %v599 = vunpack.c.l.s4 1966171168
    %v600 = vunpack.c.0.s8 %v599
    %v601 = vlaneseq
    %v602 = vshrl.u32 %v601, 7
    %v603 = vsub.s32 %v600, %v602
    %v604 = vrot.slane %v23, %v603
    %v606 = vunpack.c.l.s4 1966171168
    %v607 = vunpack.c.0.s8 %v606
    %v608 = vlaneseq
    %v609 = vshrl.u32 %v608, 7
    %v610 = vsub.s32 %v607, %v609
    %v611 = vrot.slane %v597, %v610
    %v612 = vcombine.high %v604, %v604
    %v613 = vcombine.high %v611, %v611
    %v615 = vunpack.c.l.s4 1966171168
    %v616 = vunpack.c.0.s8 %v615
    %v617 = vlaneseq
    %v618 = vshrl.u32 %v617, 7
    %v619 = vsub.s32 %v616, %v618
    %v620 = vrot.slane %v604, %v619
    %v622 = vunpack.c.l.s4 1966171168
    %v623 = vunpack.c.0.s8 %v622
    %v624 = vlaneseq
    %v625 = vshrl.u32 %v624, 7
    %v626 = vsub.s32 %v623, %v625
    %v627 = vrot.slane %v611, %v626
    %v629 = vunpack.c.l.s4 1966171168
    %v630 = vunpack.c.0.s8 %v629
    %v631 = vlaneseq
    %v632 = vshrl.u32 %v631, 7
    %v633 = vsub.s32 %v630, %v632
    %v634 = vrot.slane %v612, %v633
    %v636 = vunpack.c.l.s4 1966171168
    %v637 = vunpack.c.0.s8 %v636
    %v638 = vlaneseq
    %v639 = vshrl.u32 %v638, 7
    %v640 = vsub.s32 %v637, %v639
    %v641 = vrot.slane %v613, %v640
    %v642 = vcombine.high %v620, %v620
    %v643 = vcombine.high %v627, %v627
    %v644 = vcombine.high %v634, %v634
    %v645 = vcombine.high %v641, %v641
    %v1161 = vunpack.c.l.b16 %v24
    %v1162 = vunpack.c.h.b16 %v24
    %v1163 = vunpack.c.l.b16 %v25
    %v1164 = vunpack.c.h.b16 %v25
    %v1165 = vunpack.c.l.b16 %v26
    %v1166 = vunpack.c.h.b16 %v26
    %v1167 = vunpack.c.l.b16 %v27
    %v1168 = vunpack.c.h.b16 %v27
    %v1169 = vunpack.c.l.b16 %v28
    %v1170 = vunpack.c.h.b16 %v28
    %v1171 = vunpack.c.l.b16 %v29
    %v1172 = vunpack.c.h.b16 %v29
    %v1173 = vunpack.c.l.b16 %v30
    %v1174 = vunpack.c.h.b16 %v30
    %v1175 = vunpack.c.l.b16 %v31
    %v1176 = vunpack.c.h.b16 %v31
    %v1177 = vunpack.c.l.b16 %v32
    %v1178 = vunpack.c.h.b16 %v32
    %v1179 = vunpack.c.l.b16 %v33
    %v1180 = vunpack.c.h.b16 %v33
    %v1181 = vunpack.c.l.b16 %v34
    %v1182 = vunpack.c.h.b16 %v34
    %v1183 = vunpack.c.l.b16 %v35
    %v1184 = vunpack.c.h.b16 %v35
    %v1185 = vunpack.c.l.b16 %v36
    %v1186 = vunpack.c.h.b16 %v36
    %v1187 = vunpack.c.l.b16 %v37
    %v1188 = vunpack.c.h.b16 %v37
    %v1189 = vunpack.c.l.b16 %v38
    %v1190 = vunpack.c.h.b16 %v38
    %v1191 = vunpack.c.l.b16 %v39
    %v1192 = vunpack.c.h.b16 %v39
    %v1193 = vunpack.c.l.b16 %v40
    %v1194 = vunpack.c.h.b16 %v40
    %v1195 = vunpack.c.l.b16 %v41
    %v1196 = vunpack.c.h.b16 %v41
    %v1197 = vunpack.c.l.b16 %v42
    %v1198 = vunpack.c.h.b16 %v42
    %v1199 = vunpack.c.l.b16 %v43
    %v1200 = vunpack.c.h.b16 %v43
    %v1201 = vunpack.c.l.b16 %v44
    %v1202 = vunpack.c.h.b16 %v44
    %v1203 = vunpack.c.l.b16 %v45
    %v1204 = vunpack.c.h.b16 %v45
    %v1205 = vunpack.c.l.b16 %v46
    %v1206 = vunpack.c.h.b16 %v46
    %v1207 = vunpack.c.l.b16 %v47
    %v1208 = vunpack.c.h.b16 %v47
    %v1209 = vunpack.c.l.b16 %v48
    %v1210 = vunpack.c.h.b16 %v48
    %v1211 = vunpack.c.l.b16 %v49
    %v1212 = vunpack.c.h.b16 %v49
    %v1213 = vunpack.c.l.b16 %v50
    %v1214 = vunpack.c.h.b16 %v50
    %v1215 = vunpack.c.l.b16 %v51
    %v1216 = vunpack.c.h.b16 %v51
    %v1217 = vunpack.c.l.b16 %v52
    %v1218 = vunpack.c.h.b16 %v52
    %v1219 = vunpack.c.l.b16 %v53
    %v1220 = vunpack.c.h.b16 %v53
    %v1221 = vunpack.c.l.b16 %v54
    %v1222 = vunpack.c.h.b16 %v54
    %v1223 = vunpack.c.l.b16 %v55
    %v1224 = vunpack.c.h.b16 %v55
    %v1225 = vunpack.c.l.b16 %v56
    %v1226 = vunpack.c.h.b16 %v56
    %v1227 = vunpack.c.l.b16 %v57
    %v1228 = vunpack.c.h.b16 %v57
    %v1229 = vunpack.c.l.b16 %v58
    %v1230 = vunpack.c.h.b16 %v58
    %v1231 = vunpack.c.l.b16 %v59
    %v1232 = vunpack.c.h.b16 %v59
    %v1233 = vunpack.c.l.b16 %v60
    %v1234 = vunpack.c.h.b16 %v60
    %v1235 = vunpack.c.l.b16 %v61
    %v1236 = vunpack.c.h.b16 %v61
    %v1237 = vunpack.c.l.b16 %v62
    %v1238 = vunpack.c.h.b16 %v62
    %v1239 = vunpack.c.l.b16 %v63
    %v1240 = vunpack.c.h.b16 %v63
    %v1241 = vunpack.c.l.b16 %v64
    %v1242 = vunpack.c.h.b16 %v64
    %v1243 = vunpack.c.l.b16 %v65
    %v1244 = vunpack.c.h.b16 %v65
    %v1245 = vunpack.c.l.b16 %v66
    %v1246 = vunpack.c.h.b16 %v66
    %v1247 = vunpack.c.l.b16 %v67
    %v1248 = vunpack.c.h.b16 %v67
    %v1249 = vunpack.c.l.b16 %v68
    %v1250 = vunpack.c.h.b16 %v68
    %v1251 = vunpack.c.l.b16 %v69
    %v1252 = vunpack.c.h.b16 %v69
    %v1253 = vunpack.c.l.b16 %v70
    %v1254 = vunpack.c.h.b16 %v70
    %v1255 = vunpack.c.l.b16 %v71
    %v1256 = vunpack.c.h.b16 %v71
    %v1257 = vunpack.c.l.b16 %v72
    %v1258 = vunpack.c.h.b16 %v72
    %v1259 = vunpack.c.l.b16 %v73
    %v1260 = vunpack.c.h.b16 %v73
    %v1261 = vunpack.c.l.b16 %v74
    %v1262 = vunpack.c.h.b16 %v74
    %v1263 = vunpack.c.l.b16 %v75
    %v1264 = vunpack.c.h.b16 %v75
    %v1265 = vunpack.c.l.b16 %v76
    %v1266 = vunpack.c.h.b16 %v76
    %v1267 = vunpack.c.l.b16 %v77
    %v1268 = vunpack.c.h.b16 %v77
    %v1269 = vunpack.c.l.b16 %v78
    %v1270 = vunpack.c.h.b16 %v78
    %v1271 = vunpack.c.l.b16 %v79
    %v1272 = vunpack.c.h.b16 %v79
    %v1273 = vunpack.c.l.b16 %v80
    %v1274 = vunpack.c.h.b16 %v80
    %v1275 = vunpack.c.l.b16 %v81
    %v1276 = vunpack.c.h.b16 %v81
    %v1277 = vunpack.c.l.b16 %v82
    %v1278 = vunpack.c.h.b16 %v82
    %v1279 = vunpack.c.l.b16 %v83
    %v1280 = vunpack.c.h.b16 %v83
    %v1281 = vunpack.c.l.b16 %v84
    %v1282 = vunpack.c.h.b16 %v84
    %v1283 = vunpack.c.l.b16 %v85
    %v1284 = vunpack.c.h.b16 %v85
    %v1285 = vunpack.c.l.b16 %v86
    %v1286 = vunpack.c.h.b16 %v86
    %v1287 = vunpack.c.l.b16 %v87
    %v1288 = vunpack.c.h.b16 %v87
    %v1289 = vunpack.c.l.b16 %v88
    %v1290 = vunpack.c.h.b16 %v88
    %v1291 = vunpack.c.l.b16 %v89
    %v1292 = vunpack.c.h.b16 %v89
    %v1293 = vunpack.c.l.b16 %v90
    %v1294 = vunpack.c.h.b16 %v90
    %v1295 = vunpack.c.l.b16 %v91
    %v1296 = vunpack.c.h.b16 %v91
    %v1297 = vunpack.c.l.b16 %v92
    %v1298 = vunpack.c.h.b16 %v92
    %v1299 = vunpack.c.l.b16 %v93
    %v1300 = vunpack.c.h.b16 %v93
    %v1301 = vunpack.c.l.b16 %v94
    %v1302 = vunpack.c.h.b16 %v94
    %v1303 = vunpack.c.l.b16 %v95
    %v1304 = vunpack.c.h.b16 %v95
    %v1305 = vunpack.c.l.b16 %v96
    %v1306 = vunpack.c.h.b16 %v96
    %v1307 = vunpack.c.l.b16 %v97
    %v1308 = vunpack.c.h.b16 %v97
    %v1309 = vunpack.c.l.b16 %v98
    %v1310 = vunpack.c.h.b16 %v98
    %v1311 = vunpack.c.l.b16 %v99
    %v1312 = vunpack.c.h.b16 %v99
    %v1313 = vunpack.c.l.b16 %v100
    %v1314 = vunpack.c.h.b16 %v100
    %v1315 = vunpack.c.l.b16 %v101
    %v1316 = vunpack.c.h.b16 %v101
    %v1317 = vunpack.c.l.b16 %v102
    %v1318 = vunpack.c.h.b16 %v102
    %v1319 = vunpack.c.l.b16 %v103
    %v1320 = vunpack.c.h.b16 %v103
    %v1321 = vunpack.c.l.b16 %v104
    %v1322 = vunpack.c.h.b16 %v104
    %v1323 = vunpack.c.l.b16 %v105
    %v1324 = vunpack.c.h.b16 %v105
    %v1325 = vunpack.c.l.b16 %v106
    %v1326 = vunpack.c.h.b16 %v106
    %v1327 = vunpack.c.l.b16 %v107
    %v1328 = vunpack.c.h.b16 %v107
    %v1329 = vunpack.c.l.b16 %v108
    %v1330 = vunpack.c.h.b16 %v108
    %v1331 = vunpack.c.l.b16 %v109
    %v1332 = vunpack.c.h.b16 %v109
    %v1333 = vunpack.c.l.b16 %v110
    %v1334 = vunpack.c.h.b16 %v110
    %v1335 = vunpack.c.l.b16 %v111
    %v1336 = vunpack.c.h.b16 %v111
    %v1337 = vunpack.c.l.b16 %v112
    %v1338 = vunpack.c.h.b16 %v112
    %v1339 = vunpack.c.l.b16 %v113
    %v1340 = vunpack.c.h.b16 %v113
    %v1341 = vunpack.c.l.b16 %v114
    %v1342 = vunpack.c.h.b16 %v114
    %v1343 = vunpack.c.l.b16 %v115
    %v1344 = vunpack.c.h.b16 %v115
    %v1345 = vunpack.c.l.b16 %v116
    %v1346 = vunpack.c.h.b16 %v116
    %v1347 = vunpack.c.l.b16 %v117
    %v1348 = vunpack.c.h.b16 %v117
    %v1349 = vunpack.c.l.b16 %v118
    %v1350 = vunpack.c.h.b16 %v118
    %v1351 = vunpack.c.l.b16 %v119
    %v1352 = vunpack.c.h.b16 %v119
    %v1353 = vunpack.c.l.b16 %v120
    %v1354 = vunpack.c.h.b16 %v120
    %v1355 = vunpack.c.l.b16 %v121
    %v1356 = vunpack.c.h.b16 %v121
    %v1357 = vunpack.c.l.b16 %v122
    %v1358 = vunpack.c.h.b16 %v122
    %v1359 = vunpack.c.l.b16 %v123
    %v1360 = vunpack.c.h.b16 %v123
    %v1361 = vunpack.c.l.b16 %v124
    %v1362 = vunpack.c.h.b16 %v124
    %v1363 = vunpack.c.l.b16 %v125
    %v1364 = vunpack.c.h.b16 %v125
    %v1365 = vunpack.c.l.b16 %v126
    %v1366 = vunpack.c.h.b16 %v126
    %v1367 = vunpack.c.l.b16 %v127
    %v1368 = vunpack.c.h.b16 %v127
    %v1369 = vunpack.c.l.b16 %v128
    %v1370 = vunpack.c.h.b16 %v128
    %v1371 = vunpack.c.l.b16 %v129
    %v1372 = vunpack.c.h.b16 %v129
    %v1373 = vunpack.c.l.b16 %v130
    %v1374 = vunpack.c.h.b16 %v130
    %v1375 = vunpack.c.l.b16 %v131
    %v1376 = vunpack.c.h.b16 %v131
    %v1377 = vunpack.c.l.b16 %v132
    %v1378 = vunpack.c.h.b16 %v132
    %v1379 = vunpack.c.l.b16 %v133
    %v1380 = vunpack.c.h.b16 %v133
    %v1381 = vunpack.c.l.b16 %v134
    %v1382 = vunpack.c.h.b16 %v134
    %v1383 = vunpack.c.l.b16 %v135
    %v1384 = vunpack.c.h.b16 %v135
    %v1385 = vunpack.c.l.b16 %v136
    %v1386 = vunpack.c.h.b16 %v136
    %v1387 = vunpack.c.l.b16 %v137
    %v1388 = vunpack.c.h.b16 %v137
    %v1389 = vunpack.c.l.b16 %v138
    %v1390 = vunpack.c.h.b16 %v138
    %v1391 = vunpack.c.l.b16 %v139
    %v1392 = vunpack.c.h.b16 %v139
    %v1393 = vunpack.c.l.b16 %v140
    %v1394 = vunpack.c.h.b16 %v140
    %v1395 = vunpack.c.l.b16 %v141
    %v1396 = vunpack.c.h.b16 %v141
    %v1397 = vunpack.c.l.b16 %v142
    %v1398 = vunpack.c.h.b16 %v142
    %v1399 = vunpack.c.l.b16 %v143
    %v1400 = vunpack.c.h.b16 %v143
    %v1401 = vunpack.c.l.b16 %v144
    %v1402 = vunpack.c.h.b16 %v144
    %v1403 = vunpack.c.l.b16 %v145
    %v1404 = vunpack.c.h.b16 %v145
    %v1405 = vunpack.c.l.b16 %v146
    %v1406 = vunpack.c.h.b16 %v146
    %v1407 = vunpack.c.l.b16 %v147
    %v1408 = vunpack.c.h.b16 %v147
    %v1409 = vunpack.c.l.b16 %v148
    %v1410 = vunpack.c.h.b16 %v148
    %v1411 = vunpack.c.l.b16 %v149
    %v1412 = vunpack.c.h.b16 %v149
    %v1413 = vunpack.c.l.b16 %v150
    %v1414 = vunpack.c.h.b16 %v150
    %v1415 = vunpack.c.l.b16 %v151
    %v1416 = vunpack.c.h.b16 %v151
    %v1417 = vunpack.c.l.b16 %v152
    %v1418 = vunpack.c.h.b16 %v152
    %v1419 = vunpack.c.l.b16 %v153
    %v1420 = vunpack.c.h.b16 %v153
    %v1421 = vunpack.c.l.b16 %v154
    %v1422 = vunpack.c.h.b16 %v154
    %v1423 = vunpack.c.l.b16 %v155
    %v1424 = vunpack.c.h.b16 %v155
    %v1425 = vunpack.c.l.b16 %v156
    %v1426 = vunpack.c.h.b16 %v156
    %v1427 = vunpack.c.l.b16 %v157
    %v1428 = vunpack.c.h.b16 %v157
    %v1429 = vunpack.c.l.b16 %v158
    %v1430 = vunpack.c.h.b16 %v158
    %v1431 = vunpack.c.l.b16 %v159
    %v1432 = vunpack.c.h.b16 %v159
    %v1433 = vunpack.c.l.b16 %v160
    %v1434 = vunpack.c.h.b16 %v160
    %v1435 = vunpack.c.l.b16 %v161
    %v1436 = vunpack.c.h.b16 %v161
    %v1437 = vunpack.c.l.b16 %v162
    %v1438 = vunpack.c.h.b16 %v162
    %v1439 = vunpack.c.l.b16 %v163
    %v1440 = vunpack.c.h.b16 %v163
    %v1441 = vunpack.c.l.b16 %v164
    %v1442 = vunpack.c.h.b16 %v164
    %v1443 = vunpack.c.l.b16 %v165
    %v1444 = vunpack.c.h.b16 %v165
    %v1445 = vunpack.c.l.b16 %v166
    %v1446 = vunpack.c.h.b16 %v166
    %v1447 = vunpack.c.l.b16 %v167
    %v1448 = vunpack.c.h.b16 %v167
    %v1449 = vunpack.c.l.b16 %v168
    %v1450 = vunpack.c.h.b16 %v168
    %v1451 = vunpack.c.l.b16 %v169
    %v1452 = vunpack.c.h.b16 %v169
    %v1453 = vunpack.c.l.b16 %v170
    %v1454 = vunpack.c.h.b16 %v170
    %v1455 = vunpack.c.l.b16 %v171
    %v1456 = vunpack.c.h.b16 %v171
    %v1457 = vunpack.c.l.b16 %v172
    %v1458 = vunpack.c.h.b16 %v172
    %v1459 = vunpack.c.l.b16 %v173
    %v1460 = vunpack.c.h.b16 %v173
    %v1461 = vunpack.c.l.b16 %v174
    %v1462 = vunpack.c.h.b16 %v174
    %v1463 = vunpack.c.l.b16 %v175
    %v1464 = vunpack.c.h.b16 %v175
    %v1465 = vunpack.c.l.b16 %v176
    %v1466 = vunpack.c.h.b16 %v176
    %v1467 = vunpack.c.l.b16 %v177
    %v1468 = vunpack.c.h.b16 %v177
    %v1469 = vunpack.c.l.b16 %v178
    %v1470 = vunpack.c.h.b16 %v178
    %v1471 = vunpack.c.l.b16 %v179
    %v1472 = vunpack.c.h.b16 %v179
    %v1473 = vunpack.c.l.b16 %v180
    %v1474 = vunpack.c.h.b16 %v180
    %v1475 = vunpack.c.l.b16 %v181
    %v1476 = vunpack.c.h.b16 %v181
    %v1477 = vunpack.c.l.b16 %v182
    %v1478 = vunpack.c.h.b16 %v182
    %v1479 = vunpack.c.l.b16 %v183
    %v1480 = vunpack.c.h.b16 %v183
    %v1481 = vunpack.c.l.b16 %v184
    %v1482 = vunpack.c.h.b16 %v184
    %v1483 = vunpack.c.l.b16 %v185
    %v1484 = vunpack.c.h.b16 %v185
    %v1485 = vunpack.c.l.b16 %v186
    %v1486 = vunpack.c.h.b16 %v186
    %v1487 = vunpack.c.l.b16 %v187
    %v1488 = vunpack.c.h.b16 %v187
    %v1489 = vunpack.c.l.b16 %v188
    %v1490 = vunpack.c.h.b16 %v188
    %v1491 = vunpack.c.l.b16 %v189
    %v1492 = vunpack.c.h.b16 %v189
    %v1493 = vunpack.c.l.b16 %v190
    %v1494 = vunpack.c.h.b16 %v190
    %v1495 = vunpack.c.l.b16 %v191
    %v1496 = vunpack.c.h.b16 %v191
    %v1497 = vunpack.c.l.b16 %v192
    %v1498 = vunpack.c.h.b16 %v192
    %v1499 = vunpack.c.l.b16 %v193
    %v1500 = vunpack.c.h.b16 %v193
    %v1501 = vunpack.c.l.b16 %v194
    %v1502 = vunpack.c.h.b16 %v194
    %v1503 = vunpack.c.l.b16 %v195
    %v1504 = vunpack.c.h.b16 %v195
    %v1505 = vunpack.c.l.b16 %v196
    %v1506 = vunpack.c.h.b16 %v196
    %v1507 = vunpack.c.l.b16 %v197
    %v1508 = vunpack.c.h.b16 %v197
    %v1509 = vunpack.c.l.b16 %v198
    %v1510 = vunpack.c.h.b16 %v198
    %v1511 = vunpack.c.l.b16 %v199
    %v1512 = vunpack.c.h.b16 %v199
    %v1513 = vunpack.c.l.b16 %v200
    %v1514 = vunpack.c.h.b16 %v200
    %v1515 = vunpack.c.l.b16 %v201
    %v1516 = vunpack.c.h.b16 %v201
    %v1517 = vunpack.c.l.b16 %v202
    %v1518 = vunpack.c.h.b16 %v202
    %v1519 = vunpack.c.l.b16 %v203
    %v1520 = vunpack.c.h.b16 %v203
    %v1521 = vunpack.c.l.b16 %v204
    %v1522 = vunpack.c.h.b16 %v204
    %v1523 = vunpack.c.l.b16 %v205
    %v1524 = vunpack.c.h.b16 %v205
    %v1525 = vunpack.c.l.b16 %v206
    %v1526 = vunpack.c.h.b16 %v206
    %v1527 = vunpack.c.l.b16 %v207
    %v1528 = vunpack.c.h.b16 %v207
    %v1529 = vunpack.c.l.b16 %v208
    %v1530 = vunpack.c.h.b16 %v208
    %v1531 = vunpack.c.l.b16 %v209
    %v1532 = vunpack.c.h.b16 %v209
    %v1533 = vunpack.c.l.b16 %v210
    %v1534 = vunpack.c.h.b16 %v210
    %v1535 = vunpack.c.l.b16 %v211
    %v1536 = vunpack.c.h.b16 %v211
    %v1537 = vunpack.c.l.b16 %v212
    %v1538 = vunpack.c.h.b16 %v212
    %v1539 = vunpack.c.l.b16 %v213
    %v1540 = vunpack.c.h.b16 %v213
    %v1541 = vunpack.c.l.b16 %v214
    %v1542 = vunpack.c.h.b16 %v214
    %v1543 = vunpack.c.l.b16 %v215
    %v1544 = vunpack.c.h.b16 %v215
    %v1545 = vunpack.c.l.b16 %v216
    %v1546 = vunpack.c.h.b16 %v216
    %v1547 = vunpack.c.l.b16 %v217
    %v1548 = vunpack.c.h.b16 %v217
    %v1549 = vunpack.c.l.b16 %v218
    %v1550 = vunpack.c.h.b16 %v218
    %v1551 = vunpack.c.l.b16 %v219
    %v1552 = vunpack.c.h.b16 %v219
    %v1553 = vunpack.c.l.b16 %v220
    %v1554 = vunpack.c.h.b16 %v220
    %v1555 = vunpack.c.l.b16 %v221
    %v1556 = vunpack.c.h.b16 %v221
    %v1557 = vunpack.c.l.b16 %v222
    %v1558 = vunpack.c.h.b16 %v222
    %v1559 = vunpack.c.l.b16 %v223
    %v1560 = vunpack.c.h.b16 %v223
    %v1561 = vunpack.c.l.b16 %v224
    %v1562 = vunpack.c.h.b16 %v224
    %v1563 = vunpack.c.l.b16 %v225
    %v1564 = vunpack.c.h.b16 %v225
    %v1565 = vunpack.c.l.b16 %v226
    %v1566 = vunpack.c.h.b16 %v226
    %v1567 = vunpack.c.l.b16 %v227
    %v1568 = vunpack.c.h.b16 %v227
    %v1569 = vunpack.c.l.b16 %v228
    %v1570 = vunpack.c.h.b16 %v228
    %v1571 = vunpack.c.l.b16 %v229
    %v1572 = vunpack.c.h.b16 %v229
    %v1573 = vunpack.c.l.b16 %v230
    %v1574 = vunpack.c.h.b16 %v230
    %v1575 = vunpack.c.l.b16 %v231
    %v1576 = vunpack.c.h.b16 %v231
    %v1577 = vunpack.c.l.b16 %v232
    %v1578 = vunpack.c.h.b16 %v232
    %v1579 = vunpack.c.l.b16 %v233
    %v1580 = vunpack.c.h.b16 %v233
    %v1581 = vunpack.c.l.b16 %v234
    %v1582 = vunpack.c.h.b16 %v234
    %v1583 = vunpack.c.l.b16 %v235
    %v1584 = vunpack.c.h.b16 %v235
    %v1585 = vunpack.c.l.b16 %v236
    %v1586 = vunpack.c.h.b16 %v236
    %v1587 = vunpack.c.l.b16 %v237
    %v1588 = vunpack.c.h.b16 %v237
    %v1589 = vunpack.c.l.b16 %v238
    %v1590 = vunpack.c.h.b16 %v238
    %v1591 = vunpack.c.l.b16 %v239
    %v1592 = vunpack.c.h.b16 %v239
    %v1593 = vunpack.c.l.b16 %v240
    %v1594 = vunpack.c.h.b16 %v240
    %v1595 = vunpack.c.l.b16 %v241
    %v1596 = vunpack.c.h.b16 %v241
    %v1597 = vunpack.c.l.b16 %v242
    %v1598 = vunpack.c.h.b16 %v242
    %v1599 = vunpack.c.l.b16 %v243
    %v1600 = vunpack.c.h.b16 %v243
    %v1601 = vunpack.c.l.b16 %v244
    %v1602 = vunpack.c.h.b16 %v244
    %v1603 = vunpack.c.l.b16 %v245
    %v1604 = vunpack.c.h.b16 %v245
    %v1605 = vunpack.c.l.b16 %v246
    %v1606 = vunpack.c.h.b16 %v246
    %v1607 = vunpack.c.l.b16 %v247
    %v1608 = vunpack.c.h.b16 %v247
    %v1609 = vunpack.c.l.b16 %v248
    %v1610 = vunpack.c.h.b16 %v248
    %v1611 = vunpack.c.l.b16 %v249
    %v1612 = vunpack.c.h.b16 %v249
    %v1613 = vunpack.c.l.b16 %v250
    %v1614 = vunpack.c.h.b16 %v250
    %v1615 = vunpack.c.l.b16 %v251
    %v1616 = vunpack.c.h.b16 %v251
    %v1617 = vunpack.c.l.b16 %v252
    %v1618 = vunpack.c.h.b16 %v252
    %v1619 = vunpack.c.l.b16 %v253
    %v1620 = vunpack.c.h.b16 %v253
    %v1621 = vunpack.c.l.b16 %v254
    %v1622 = vunpack.c.h.b16 %v254
    %v1623 = vunpack.c.l.b16 %v255
    %v1624 = vunpack.c.h.b16 %v255
    %v1625 = vunpack.c.l.b16 %v256
    %v1626 = vunpack.c.h.b16 %v256
    %v1627 = vunpack.c.l.b16 %v257
    %v1628 = vunpack.c.h.b16 %v257
    %v1629 = vunpack.c.l.b16 %v258
    %v1630 = vunpack.c.h.b16 %v258
    %v1631 = vunpack.c.l.b16 %v259
    %v1632 = vunpack.c.h.b16 %v259
    %v1633 = vunpack.c.l.b16 %v260
    %v1634 = vunpack.c.h.b16 %v260
    %v1635 = vunpack.c.l.b16 %v261
    %v1636 = vunpack.c.h.b16 %v261
    %v1637 = vunpack.c.l.b16 %v262
    %v1638 = vunpack.c.h.b16 %v262
    %v1639 = vunpack.c.l.b16 %v263
    %v1640 = vunpack.c.h.b16 %v263
    %v1641 = vunpack.c.l.b16 %v264
    %v1642 = vunpack.c.h.b16 %v264
    %v1643 = vunpack.c.l.b16 %v265
    %v1644 = vunpack.c.h.b16 %v265
    %v1645 = vunpack.c.l.b16 %v266
    %v1646 = vunpack.c.h.b16 %v266
    %v1647 = vunpack.c.l.b16 %v267
    %v1648 = vunpack.c.h.b16 %v267
    %v1649 = vunpack.c.l.b16 %v268
    %v1650 = vunpack.c.h.b16 %v268
    %v1651 = vunpack.c.l.b16 %v269
    %v1652 = vunpack.c.h.b16 %v269
    %v1653 = vunpack.c.l.b16 %v270
    %v1654 = vunpack.c.h.b16 %v270
    %v1655 = vunpack.c.l.b16 %v271
    %v1656 = vunpack.c.h.b16 %v271
    %v1657 = vunpack.c.l.b16 %v272
    %v1658 = vunpack.c.h.b16 %v272
    %v1659 = vunpack.c.l.b16 %v273
    %v1660 = vunpack.c.h.b16 %v273
    %v1661 = vunpack.c.l.b16 %v274
    %v1662 = vunpack.c.h.b16 %v274
    %v1663 = vunpack.c.l.b16 %v275
    %v1664 = vunpack.c.h.b16 %v275
    %v1665 = vunpack.c.l.b16 %v276
    %v1666 = vunpack.c.h.b16 %v276
    %v1667 = vunpack.c.l.b16 %v277
    %v1668 = vunpack.c.h.b16 %v277
    %v1669 = vunpack.c.l.b16 %v278
    %v1670 = vunpack.c.h.b16 %v278
    %v1671 = vunpack.c.l.b16 %v279
    %v1672 = vunpack.c.h.b16 %v279
    %v1673 = vunpack.c.l.b16 %v280
    %v1674 = vunpack.c.h.b16 %v280
    %v1675 = vunpack.c.l.b16 %v281
    %v1676 = vunpack.c.h.b16 %v281
    %v1677 = vunpack.c.l.b16 %v282
    %v1678 = vunpack.c.h.b16 %v282
    %v1679 = vunpack.c.l.b16 %v283
    %v1680 = vunpack.c.h.b16 %v283
    %v1681 = vunpack.c.l.b16 %v284
    %v1682 = vunpack.c.h.b16 %v284
    %v1683 = vunpack.c.l.b16 %v285
    %v1684 = vunpack.c.h.b16 %v285
    %v1685 = vunpack.c.l.b16 %v286
    %v1686 = vunpack.c.h.b16 %v286
    %v1687 = vunpack.c.l.b16 %v287
    %v1688 = vunpack.c.h.b16 %v287
    %v1689 = vunpack.c.l.b16 %v288
    %v1690 = vunpack.c.h.b16 %v288
    %v1691 = vunpack.c.l.b16 %v289
    %v1692 = vunpack.c.h.b16 %v289
    %v1693 = vunpack.c.l.b16 %v290
    %v1694 = vunpack.c.h.b16 %v290
    %v1695 = vunpack.c.l.b16 %v291
    %v1696 = vunpack.c.h.b16 %v291
    %v1697 = vunpack.c.l.b16 %v292
    %v1698 = vunpack.c.h.b16 %v292
    %v1699 = vunpack.c.l.b16 %v293
    %v1700 = vunpack.c.h.b16 %v293
    %v1701 = vunpack.c.l.b16 %v294
    %v1702 = vunpack.c.h.b16 %v294
    %v1703 = vunpack.c.l.b16 %v295
    %v1704 = vunpack.c.h.b16 %v295
    %v1705 = vunpack.c.l.b16 %v296
    %v1706 = vunpack.c.h.b16 %v296
    %v1707 = vunpack.c.l.b16 %v297
    %v1708 = vunpack.c.h.b16 %v297
    %v1709 = vunpack.c.l.b16 %v298
    %v1710 = vunpack.c.h.b16 %v298
    %v1711 = vunpack.c.l.b16 %v299
    %v1712 = vunpack.c.h.b16 %v299
    %v1713 = vunpack.c.l.b16 %v300
    %v1714 = vunpack.c.h.b16 %v300
    %v1715 = vunpack.c.l.b16 %v301
    %v1716 = vunpack.c.h.b16 %v301
    %v1717 = vunpack.c.l.b16 %v302
    %v1718 = vunpack.c.h.b16 %v302
    %v1719 = vunpack.c.l.b16 %v303
    %v1720 = vunpack.c.h.b16 %v303
    %v1721 = vunpack.c.l.b16 %v304
    %v1722 = vunpack.c.h.b16 %v304
    %v1723 = vunpack.c.l.b16 %v305
    %v1724 = vunpack.c.h.b16 %v305
    %v1725 = vunpack.c.l.b16 %v306
    %v1726 = vunpack.c.h.b16 %v306
    %v1727 = vunpack.c.l.b16 %v307
    %v1728 = vunpack.c.h.b16 %v307
    %v1729 = vunpack.c.l.b16 %v308
    %v1730 = vunpack.c.h.b16 %v308
    %v1731 = vunpack.c.l.b16 %v309
    %v1732 = vunpack.c.h.b16 %v309
    %v1733 = vunpack.c.l.b16 %v310
    %v1734 = vunpack.c.h.b16 %v310
    %v1735 = vunpack.c.l.b16 %v311
    %v1736 = vunpack.c.h.b16 %v311
    %v1737 = vunpack.c.l.b16 %v312
    %v1738 = vunpack.c.h.b16 %v312
    %v1739 = vunpack.c.l.b16 %v313
    %v1740 = vunpack.c.h.b16 %v313
    %v1741 = vunpack.c.l.b16 %v314
    %v1742 = vunpack.c.h.b16 %v314
    %v1743 = vunpack.c.l.b16 %v315
    %v1744 = vunpack.c.h.b16 %v315
    %v1745 = vunpack.c.l.b16 %v316
    %v1746 = vunpack.c.h.b16 %v316
    %v1747 = vunpack.c.l.b16 %v317
    %v1748 = vunpack.c.h.b16 %v317
    %v1749 = vunpack.c.l.b16 %v318
    %v1750 = vunpack.c.h.b16 %v318
    %v1751 = vunpack.c.l.b16 %v319
    %v1752 = vunpack.c.h.b16 %v319
    %v1753 = vunpack.c.l.b16 %v320
    %v1754 = vunpack.c.h.b16 %v320
    %v1755 = vunpack.c.l.b16 %v321
    %v1756 = vunpack.c.h.b16 %v321
    %v1757 = vunpack.c.l.b16 %v322
    %v1758 = vunpack.c.h.b16 %v322
    %v1759 = vunpack.c.l.b16 %v323
    %v1760 = vunpack.c.h.b16 %v323
    %v1761 = vunpack.c.l.b16 %v324
    %v1762 = vunpack.c.h.b16 %v324
    %v1763 = vunpack.c.l.b16 %v325
    %v1764 = vunpack.c.h.b16 %v325
    %v1765 = vunpack.c.l.b16 %v326
    %v1766 = vunpack.c.h.b16 %v326
    %v1767 = vunpack.c.l.b16 %v327
    %v1768 = vunpack.c.h.b16 %v327
    %v1769 = vunpack.c.l.b16 %v328
    %v1770 = vunpack.c.h.b16 %v328
    %v1771 = vunpack.c.l.b16 %v329
    %v1772 = vunpack.c.h.b16 %v329
    %v1773 = vunpack.c.l.b16 %v330
    %v1774 = vunpack.c.h.b16 %v330
    %v1775 = vunpack.c.l.b16 %v331
    %v1776 = vunpack.c.h.b16 %v331
    %v1777 = vunpack.c.l.b16 %v332
    %v1778 = vunpack.c.h.b16 %v332
    %v1779 = vunpack.c.l.b16 %v333
    %v1780 = vunpack.c.h.b16 %v333
    %v1781 = vunpack.c.l.b16 %v334
    %v1782 = vunpack.c.h.b16 %v334
    %v1783 = vunpack.c.l.b16 %v335
    %v1784 = vunpack.c.h.b16 %v335
    %v1785 = vunpack.c.l.b16 %v336
    %v1786 = vunpack.c.h.b16 %v336
    %v1787 = vunpack.c.l.b16 %v337
    %v1788 = vunpack.c.h.b16 %v337
    %v1789 = vunpack.c.l.b16 %v338
    %v1790 = vunpack.c.h.b16 %v338
    %v1791 = vunpack.c.l.b16 %v339
    %v1792 = vunpack.c.h.b16 %v339
    %v1793 = vunpack.c.l.b16 %v340
    %v1794 = vunpack.c.h.b16 %v340
    %v1795 = vunpack.c.l.b16 %v341
    %v1796 = vunpack.c.h.b16 %v341
    %v1797 = vunpack.c.l.b16 %v342
    %v1798 = vunpack.c.h.b16 %v342
    %v1799 = vunpack.c.l.b16 %v343
    %v1800 = vunpack.c.h.b16 %v343
    %v1801 = vunpack.c.l.b16 %v344
    %v1802 = vunpack.c.h.b16 %v344
    %v1803 = vunpack.c.l.b16 %v345
    %v1804 = vunpack.c.h.b16 %v345
    %v1805 = vunpack.c.l.b16 %v346
    %v1806 = vunpack.c.h.b16 %v346
    %v1807 = vunpack.c.l.b16 %v347
    %v1808 = vunpack.c.h.b16 %v347
    %v1809 = vunpack.c.l.b16 %v348
    %v1810 = vunpack.c.h.b16 %v348
    %v1811 = vunpack.c.l.b16 %v349
    %v1812 = vunpack.c.h.b16 %v349
    %v1813 = vunpack.c.l.b16 %v350
    %v1814 = vunpack.c.h.b16 %v350
    %v1815 = vunpack.c.l.b16 %v351
    %v1816 = vunpack.c.h.b16 %v351
    %v1817 = vunpack.c.l.b16 %v352
    %v1818 = vunpack.c.h.b16 %v352
    %v1819 = vunpack.c.l.b16 %v353
    %v1820 = vunpack.c.h.b16 %v353
    %v1821 = vunpack.c.l.b16 %v354
    %v1822 = vunpack.c.h.b16 %v354
    %v1823 = vunpack.c.l.b16 %v355
    %v1824 = vunpack.c.h.b16 %v355
    %v1825 = vunpack.c.l.b16 %v356
    %v1826 = vunpack.c.h.b16 %v356
    %v1827 = vunpack.c.l.b16 %v357
    %v1828 = vunpack.c.h.b16 %v357
    %v1829 = vunpack.c.l.b16 %v358
    %v1830 = vunpack.c.h.b16 %v358
    %v1831 = vunpack.c.l.b16 %v359
    %v1832 = vunpack.c.h.b16 %v359
    %v1833 = vunpack.c.l.b16 %v360
    %v1834 = vunpack.c.h.b16 %v360
    %v1835 = vunpack.c.l.b16 %v361
    %v1836 = vunpack.c.h.b16 %v361
    %v1837 = vunpack.c.l.b16 %v362
    %v1838 = vunpack.c.h.b16 %v362
    %v1839 = vunpack.c.l.b16 %v363
    %v1840 = vunpack.c.h.b16 %v363
    %v1841 = vunpack.c.l.b16 %v364
    %v1842 = vunpack.c.h.b16 %v364
    %v1843 = vunpack.c.l.b16 %v365
    %v1844 = vunpack.c.h.b16 %v365
    %v1845 = vunpack.c.l.b16 %v366
    %v1846 = vunpack.c.h.b16 %v366
    %v1847 = vunpack.c.l.b16 %v367
    %v1848 = vunpack.c.h.b16 %v367
    %v1849 = vunpack.c.l.b16 %v368
    %v1850 = vunpack.c.h.b16 %v368
    %v1851 = vunpack.c.l.b16 %v369
    %v1852 = vunpack.c.h.b16 %v369
    %v1853 = vunpack.c.l.b16 %v370
    %v1854 = vunpack.c.h.b16 %v370
    %v1855 = vunpack.c.l.b16 %v371
    %v1856 = vunpack.c.h.b16 %v371
    %v1857 = vunpack.c.l.b16 %v372
    %v1858 = vunpack.c.h.b16 %v372
    %v1859 = vunpack.c.l.b16 %v373
    %v1860 = vunpack.c.h.b16 %v373
    %v1861 = vunpack.c.l.b16 %v374
    %v1862 = vunpack.c.h.b16 %v374
    %v1863 = vunpack.c.l.b16 %v375
    %v1864 = vunpack.c.h.b16 %v375
    %v1865 = vunpack.c.l.b16 %v376
    %v1866 = vunpack.c.h.b16 %v376
    %v1867 = vunpack.c.l.b16 %v377
    %v1868 = vunpack.c.h.b16 %v377
    %v1869 = vunpack.c.l.b16 %v378
    %v1870 = vunpack.c.h.b16 %v378
    %v1871 = vunpack.c.l.b16 %v379
    %v1872 = vunpack.c.h.b16 %v379
    %v1873 = vunpack.c.l.b16 %v380
    %v1874 = vunpack.c.h.b16 %v380
    %v1875 = vunpack.c.l.b16 %v381
    %v1876 = vunpack.c.h.b16 %v381
    %v1877 = vunpack.c.l.b16 %v382
    %v1878 = vunpack.c.h.b16 %v382
    %v1879 = vunpack.c.l.b16 %v383
    %v1880 = vunpack.c.h.b16 %v383
    %v1881 = vunpack.c.l.b16 %v384
    %v1882 = vunpack.c.h.b16 %v384
    %v1883 = vunpack.c.l.b16 %v385
    %v1884 = vunpack.c.h.b16 %v385
    %v1885 = vunpack.c.l.b16 %v386
    %v1886 = vunpack.c.h.b16 %v386
    %v1887 = vunpack.c.l.b16 %v387
    %v1888 = vunpack.c.h.b16 %v387
    %v1889 = vunpack.c.l.b16 %v388
    %v1890 = vunpack.c.h.b16 %v388
    %v1891 = vunpack.c.l.b16 %v389
    %v1892 = vunpack.c.h.b16 %v389
    %v1893 = vunpack.c.l.b16 %v390
    %v1894 = vunpack.c.h.b16 %v390
    %v1895 = vunpack.c.l.b16 %v391
    %v1896 = vunpack.c.h.b16 %v391
    %v1897 = vunpack.c.l.b16 %v392
    %v1898 = vunpack.c.h.b16 %v392
    %v1899 = vunpack.c.l.b16 %v393
    %v1900 = vunpack.c.h.b16 %v393
    %v1901 = vunpack.c.l.b16 %v394
    %v1902 = vunpack.c.h.b16 %v394
    %v1903 = vunpack.c.l.b16 %v395
    %v1904 = vunpack.c.h.b16 %v395
    %v1905 = vunpack.c.l.b16 %v396
    %v1906 = vunpack.c.h.b16 %v396
    %v1907 = vunpack.c.l.b16 %v397
    %v1908 = vunpack.c.h.b16 %v397
    %v1909 = vunpack.c.l.b16 %v398
    %v1910 = vunpack.c.h.b16 %v398
    %v1911 = vunpack.c.l.b16 %v399
    %v1912 = vunpack.c.h.b16 %v399
    %v1913 = vunpack.c.l.b16 %v400
    %v1914 = vunpack.c.h.b16 %v400
    %v1915 = vunpack.c.l.b16 %v401
    %v1916 = vunpack.c.h.b16 %v401
    %v1917 = vunpack.c.l.b16 %v402
    %v1918 = vunpack.c.h.b16 %v402
    %v1919 = vunpack.c.l.b16 %v403
    %v1920 = vunpack.c.h.b16 %v403
    %v1921 = vunpack.c.l.b16 %v404
    %v1922 = vunpack.c.h.b16 %v404
    %v1923 = vunpack.c.l.b16 %v405
    %v1924 = vunpack.c.h.b16 %v405
    %v1925 = vunpack.c.l.b16 %v406
    %v1926 = vunpack.c.h.b16 %v406
    %v1927 = vunpack.c.l.b16 %v407
    %v1928 = vunpack.c.h.b16 %v407
    %v1929 = vunpack.c.l.b16 %v408
    %v1930 = vunpack.c.h.b16 %v408
    %v1931 = vunpack.c.l.b16 %v409
    %v1932 = vunpack.c.h.b16 %v409
    %v1933 = vunpack.c.l.b16 %v410
    %v1934 = vunpack.c.h.b16 %v410
    %v1935 = vunpack.c.l.b16 %v411
    %v1936 = vunpack.c.h.b16 %v411
    %v1937 = vunpack.c.l.b16 %v412
    %v1938 = vunpack.c.h.b16 %v412
    %v1939 = vunpack.c.l.b16 %v413
    %v1940 = vunpack.c.h.b16 %v413
    %v1941 = vunpack.c.l.b16 %v414
    %v1942 = vunpack.c.h.b16 %v414
    %v1943 = vunpack.c.l.b16 %v415
    %v1944 = vunpack.c.h.b16 %v415
    %v1945 = vunpack.c.l.b16 %v416
    %v1946 = vunpack.c.h.b16 %v416
    %v1947 = vunpack.c.l.b16 %v417
    %v1948 = vunpack.c.h.b16 %v417
    %v1949 = vunpack.c.l.b16 %v418
    %v1950 = vunpack.c.h.b16 %v418
    %v1951 = vunpack.c.l.b16 %v419
    %v1952 = vunpack.c.h.b16 %v419
    %v1953 = vunpack.c.l.b16 %v420
    %v1954 = vunpack.c.h.b16 %v420
    %v1955 = vunpack.c.l.b16 %v421
    %v1956 = vunpack.c.h.b16 %v421
    %v1957 = vunpack.c.l.b16 %v422
    %v1958 = vunpack.c.h.b16 %v422
    %v1959 = vunpack.c.l.b16 %v423
    %v1960 = vunpack.c.h.b16 %v423
    %v1961 = vunpack.c.l.b16 %v424
    %v1962 = vunpack.c.h.b16 %v424
    %v1963 = vunpack.c.l.b16 %v425
    %v1964 = vunpack.c.h.b16 %v425
    %v1965 = vunpack.c.l.b16 %v426
    %v1966 = vunpack.c.h.b16 %v426
    %v1967 = vunpack.c.l.b16 %v427
    %v1968 = vunpack.c.h.b16 %v427
    %v1969 = vunpack.c.l.b16 %v428
    %v1970 = vunpack.c.h.b16 %v428
    %v1971 = vunpack.c.l.b16 %v429
    %v1972 = vunpack.c.h.b16 %v429
    %v1973 = vunpack.c.l.b16 %v430
    %v1974 = vunpack.c.h.b16 %v430
    %v1975 = vunpack.c.l.b16 %v431
    %v1976 = vunpack.c.h.b16 %v431
    %v1977 = vunpack.c.l.b16 %v432
    %v1978 = vunpack.c.h.b16 %v432
    %v1979 = vunpack.c.l.b16 %v433
    %v1980 = vunpack.c.h.b16 %v433
    %v1981 = vunpack.c.l.b16 %v434
    %v1982 = vunpack.c.h.b16 %v434
    %v1983 = vunpack.c.l.b16 %v435
    %v1984 = vunpack.c.h.b16 %v435
    %v1985 = vunpack.c.l.b16 %v436
    %v1986 = vunpack.c.h.b16 %v436
    %v1987 = vunpack.c.l.b16 %v437
    %v1988 = vunpack.c.h.b16 %v437
    %v1989 = vunpack.c.l.b16 %v438
    %v1990 = vunpack.c.h.b16 %v438
    %v1991 = vunpack.c.l.b16 %v439
    %v1992 = vunpack.c.h.b16 %v439
    %v1993 = vunpack.c.l.b16 %v440
    %v1994 = vunpack.c.h.b16 %v440
    %v1995 = vunpack.c.l.b16 %v441
    %v1996 = vunpack.c.h.b16 %v441
    %v1997 = vunpack.c.l.b16 %v442
    %v1998 = vunpack.c.h.b16 %v442
    %v1999 = vunpack.c.l.b16 %v443
    %v2000 = vunpack.c.h.b16 %v443
    %v2001 = vunpack.c.l.b16 %v444
    %v2002 = vunpack.c.h.b16 %v444
    %v2003 = vunpack.c.l.b16 %v445
    %v2004 = vunpack.c.h.b16 %v445
    %v2005 = vunpack.c.l.b16 %v446
    %v2006 = vunpack.c.h.b16 %v446
    %v2007 = vunpack.c.l.b16 %v447
    %v2008 = vunpack.c.h.b16 %v447
    %v2009 = vunpack.c.l.b16 %v448
    %v2010 = vunpack.c.h.b16 %v448
    %v2011 = vunpack.c.l.b16 %v449
    %v2012 = vunpack.c.h.b16 %v449
    %v2013 = vunpack.c.l.b16 %v450
    %v2014 = vunpack.c.h.b16 %v450
    %v2015 = vunpack.c.l.b16 %v451
    %v2016 = vunpack.c.h.b16 %v451
    %v2017 = vunpack.c.l.b16 %v452
    %v2018 = vunpack.c.h.b16 %v452
    %v2019 = vunpack.c.l.b16 %v453
    %v2020 = vunpack.c.h.b16 %v453
    %v2021 = vunpack.c.l.b16 %v454
    %v2022 = vunpack.c.h.b16 %v454
    %v2023 = vunpack.c.l.b16 %v455
    %v2024 = vunpack.c.h.b16 %v455
    %v2025 = vunpack.c.l.b16 %v456
    %v2026 = vunpack.c.h.b16 %v456
    %v2027 = vunpack.c.l.b16 %v457
    %v2028 = vunpack.c.h.b16 %v457
    %v2029 = vunpack.c.l.b16 %v458
    %v2030 = vunpack.c.h.b16 %v458
    %v2031 = vunpack.c.l.b16 %v459
    %v2032 = vunpack.c.h.b16 %v459
    %v2033 = vunpack.c.l.b16 %v460
    %v2034 = vunpack.c.h.b16 %v460
    %v2035 = vunpack.c.l.b16 %v461
    %v2036 = vunpack.c.h.b16 %v461
    %v2037 = vunpack.c.l.b16 %v462
    %v2038 = vunpack.c.h.b16 %v462
    %v2039 = vunpack.c.l.b16 %v463
    %v2040 = vunpack.c.h.b16 %v463
    %v2041 = vunpack.c.l.b16 %v464
    %v2042 = vunpack.c.h.b16 %v464
    %v2043 = vunpack.c.l.b16 %v465
    %v2044 = vunpack.c.h.b16 %v465
    %v2045 = vunpack.c.l.b16 %v466
    %v2046 = vunpack.c.h.b16 %v466
    %v2047 = vunpack.c.l.b16 %v467
    %v2048 = vunpack.c.h.b16 %v467
    %v2049 = vunpack.c.l.b16 %v468
    %v2050 = vunpack.c.h.b16 %v468
    %v2051 = vunpack.c.l.b16 %v469
    %v2052 = vunpack.c.h.b16 %v469
    %v2053 = vunpack.c.l.b16 %v470
    %v2054 = vunpack.c.h.b16 %v470
    %v2055 = vunpack.c.l.b16 %v471
    %v2056 = vunpack.c.h.b16 %v471
    %v2057 = vunpack.c.l.b16 %v472
    %v2058 = vunpack.c.h.b16 %v472
    %v2059 = vunpack.c.l.b16 %v473
    %v2060 = vunpack.c.h.b16 %v473
    %v2061 = vunpack.c.l.b16 %v474
    %v2062 = vunpack.c.h.b16 %v474
    %v2063 = vunpack.c.l.b16 %v475
    %v2064 = vunpack.c.h.b16 %v475
    %v2065 = vunpack.c.l.b16 %v476
    %v2066 = vunpack.c.h.b16 %v476
    %v2067 = vunpack.c.l.b16 %v477
    %v2068 = vunpack.c.h.b16 %v477
    %v2069 = vunpack.c.l.b16 %v478
    %v2070 = vunpack.c.h.b16 %v478
    %v2071 = vunpack.c.l.b16 %v479
    %v2072 = vunpack.c.h.b16 %v479
    %v2073 = vunpack.c.l.b16 %v480
    %v2074 = vunpack.c.h.b16 %v480
    %v2075 = vunpack.c.l.b16 %v481
    %v2076 = vunpack.c.h.b16 %v481
    %v2077 = vunpack.c.l.b16 %v482
    %v2078 = vunpack.c.h.b16 %v482
    %v2079 = vunpack.c.l.b16 %v483
    %v2080 = vunpack.c.h.b16 %v483
    %v2081 = vunpack.c.l.b16 %v484
    %v2082 = vunpack.c.h.b16 %v484
    %v2083 = vunpack.c.l.b16 %v485
    %v2084 = vunpack.c.h.b16 %v485
    %v2085 = vunpack.c.l.b16 %v486
    %v2086 = vunpack.c.h.b16 %v486
    %v2087 = vunpack.c.l.b16 %v487
    %v2088 = vunpack.c.h.b16 %v487
    %v2089 = vunpack.c.l.b16 %v488
    %v2090 = vunpack.c.h.b16 %v488
    %v2091 = vunpack.c.l.b16 %v489
    %v2092 = vunpack.c.h.b16 %v489
    %v2093 = vunpack.c.l.b16 %v490
    %v2094 = vunpack.c.h.b16 %v490
    %v2095 = vunpack.c.l.b16 %v491
    %v2096 = vunpack.c.h.b16 %v491
    %v2097 = vunpack.c.l.b16 %v492
    %v2098 = vunpack.c.h.b16 %v492
    %v2099 = vunpack.c.l.b16 %v493
    %v2100 = vunpack.c.h.b16 %v493
    %v2101 = vunpack.c.l.b16 %v494
    %v2102 = vunpack.c.h.b16 %v494
    %v2103 = vunpack.c.l.b16 %v495
    %v2104 = vunpack.c.h.b16 %v495
    %v2105 = vunpack.c.l.b16 %v496
    %v2106 = vunpack.c.h.b16 %v496
    %v2107 = vunpack.c.l.b16 %v497
    %v2108 = vunpack.c.h.b16 %v497
    %v2109 = vunpack.c.l.b16 %v498
    %v2110 = vunpack.c.h.b16 %v498
    %v2111 = vunpack.c.l.b16 %v499
    %v2112 = vunpack.c.h.b16 %v499
    %v2113 = vunpack.c.l.b16 %v500
    %v2114 = vunpack.c.h.b16 %v500
    %v2115 = vunpack.c.l.b16 %v501
    %v2116 = vunpack.c.h.b16 %v501
    %v2117 = vunpack.c.l.b16 %v502
    %v2118 = vunpack.c.h.b16 %v502
    %v2119 = vunpack.c.l.b16 %v503
    %v2120 = vunpack.c.h.b16 %v503
    %v2121 = vunpack.c.l.b16 %v504
    %v2122 = vunpack.c.h.b16 %v504
    %v2123 = vunpack.c.l.b16 %v505
    %v2124 = vunpack.c.h.b16 %v505
    %v2125 = vunpack.c.l.b16 %v506
    %v2126 = vunpack.c.h.b16 %v506
    %v2127 = vunpack.c.l.b16 %v507
    %v2128 = vunpack.c.h.b16 %v507
    %v2129 = vunpack.c.l.b16 %v508
    %v2130 = vunpack.c.h.b16 %v508
    %v2131 = vunpack.c.l.b16 %v509
    %v2132 = vunpack.c.h.b16 %v509
    %v2133 = vunpack.c.l.b16 %v510
    %v2134 = vunpack.c.h.b16 %v510
    %v2135 = vunpack.c.l.b16 %v511
    %v2136 = vunpack.c.h.b16 %v511
    %v2137 = vunpack.c.l.b16 %v512
    %v2138 = vunpack.c.h.b16 %v512
    %v2139 = vunpack.c.l.b16 %v513
    %v2140 = vunpack.c.h.b16 %v513
    %v2141 = vunpack.c.l.b16 %v514
    %v2142 = vunpack.c.h.b16 %v514
    %v2143 = vunpack.c.l.b16 %v515
    %v2144 = vunpack.c.h.b16 %v515
    %v2145 = vunpack.c.l.b16 %v516
    %v2146 = vunpack.c.h.b16 %v516
    %v2147 = vunpack.c.l.b16 %v517
    %v2148 = vunpack.c.h.b16 %v517
    %v2149 = vunpack.c.l.b16 %v518
    %v2150 = vunpack.c.h.b16 %v518
    %v2151 = vunpack.c.l.b16 %v519
    %v2152 = vunpack.c.h.b16 %v519
    %v2153 = vunpack.c.l.b16 %v520
    %v2154 = vunpack.c.h.b16 %v520
    %v2155 = vunpack.c.l.b16 %v521
    %v2156 = vunpack.c.h.b16 %v521
    %v2157 = vunpack.c.l.b16 %v522
    %v2158 = vunpack.c.h.b16 %v522
    %v2159 = vunpack.c.l.b16 %v523
    %v2160 = vunpack.c.h.b16 %v523
    %v2161 = vpack.c.b16 %v1165, %v1161
    %v2162 = vpack.c.b16 %v1166, %v1162
    %v2163 = vpack.c.b16 %v1167, %v1163
    %v2164 = vpack.c.b16 %v1168, %v1164
    %v2165 = vpack.c.b16 %v1173, %v1169
    %v2166 = vpack.c.b16 %v1174, %v1170
    %v2167 = vpack.c.b16 %v1175, %v1171
    %v2168 = vpack.c.b16 %v1176, %v1172
    %v2169 = vpack.c.b16 %v1181, %v1177
    %v2170 = vpack.c.b16 %v1182, %v1178
    %v2171 = vpack.c.b16 %v1183, %v1179
    %v2172 = vpack.c.b16 %v1184, %v1180
    %v2173 = vpack.c.b16 %v1189, %v1185
    %v2174 = vpack.c.b16 %v1190, %v1186
    %v2175 = vpack.c.b16 %v1191, %v1187
    %v2176 = vpack.c.b16 %v1192, %v1188
    %v2177 = vpack.c.b16 %v1197, %v1193
    %v2178 = vpack.c.b16 %v1198, %v1194
    %v2179 = vpack.c.b16 %v1199, %v1195
    %v2180 = vpack.c.b16 %v1200, %v1196
    %v2181 = vpack.c.b16 %v1205, %v1201
    %v2182 = vpack.c.b16 %v1206, %v1202
    %v2183 = vpack.c.b16 %v1207, %v1203
    %v2184 = vpack.c.b16 %v1208, %v1204
    %v2185 = vpack.c.b16 %v1213, %v1209
    %v2186 = vpack.c.b16 %v1214, %v1210
    %v2187 = vpack.c.b16 %v1215, %v1211
    %v2188 = vpack.c.b16 %v1216, %v1212
    %v2189 = vpack.c.b16 %v1221, %v1217
    %v2190 = vpack.c.b16 %v1222, %v1218
    %v2191 = vpack.c.b16 %v1223, %v1219
    %v2192 = vpack.c.b16 %v1224, %v1220
    %v2193 = vpack.c.b16 %v1229, %v1225
    %v2194 = vpack.c.b16 %v1230, %v1226
    %v2195 = vpack.c.b16 %v1231, %v1227
    %v2196 = vpack.c.b16 %v1232, %v1228
    %v2197 = vpack.c.b16 %v1237, %v1233
    %v2198 = vpack.c.b16 %v1238, %v1234
    %v2199 = vpack.c.b16 %v1239, %v1235
    %v2200 = vpack.c.b16 %v1240, %v1236
    %v2201 = vpack.c.b16 %v1245, %v1241
    %v2202 = vpack.c.b16 %v1246, %v1242
    %v2203 = vpack.c.b16 %v1247, %v1243
    %v2204 = vpack.c.b16 %v1248, %v1244
    %v2205 = vpack.c.b16 %v1253, %v1249
    %v2206 = vpack.c.b16 %v1254, %v1250
    %v2207 = vpack.c.b16 %v1255, %v1251
    %v2208 = vpack.c.b16 %v1256, %v1252
    %v2209 = vpack.c.b16 %v1261, %v1257
    %v2210 = vpack.c.b16 %v1262, %v1258
    %v2211 = vpack.c.b16 %v1263, %v1259
    %v2212 = vpack.c.b16 %v1264, %v1260
    %v2213 = vpack.c.b16 %v1269, %v1265
    %v2214 = vpack.c.b16 %v1270, %v1266
    %v2215 = vpack.c.b16 %v1271, %v1267
    %v2216 = vpack.c.b16 %v1272, %v1268
    %v2217 = vpack.c.b16 %v1277, %v1273
    %v2218 = vpack.c.b16 %v1278, %v1274
    %v2219 = vpack.c.b16 %v1279, %v1275
    %v2220 = vpack.c.b16 %v1280, %v1276
    %v2221 = vpack.c.b16 %v1285, %v1281
    %v2222 = vpack.c.b16 %v1286, %v1282
    %v2223 = vpack.c.b16 %v1287, %v1283
    %v2224 = vpack.c.b16 %v1288, %v1284
    %v2225 = vpack.c.b16 %v1293, %v1289
    %v2226 = vpack.c.b16 %v1294, %v1290
    %v2227 = vpack.c.b16 %v1295, %v1291
    %v2228 = vpack.c.b16 %v1296, %v1292
    %v2229 = vpack.c.b16 %v1301, %v1297
    %v2230 = vpack.c.b16 %v1302, %v1298
    %v2231 = vpack.c.b16 %v1303, %v1299
    %v2232 = vpack.c.b16 %v1304, %v1300
    %v2233 = vpack.c.b16 %v1309, %v1305
    %v2234 = vpack.c.b16 %v1310, %v1306
    %v2235 = vpack.c.b16 %v1311, %v1307
    %v2236 = vpack.c.b16 %v1312, %v1308
    %v2237 = vpack.c.b16 %v1317, %v1313
    %v2238 = vpack.c.b16 %v1318, %v1314
    %v2239 = vpack.c.b16 %v1319, %v1315
    %v2240 = vpack.c.b16 %v1320, %v1316
    %v2241 = vpack.c.b16 %v1325, %v1321
    %v2242 = vpack.c.b16 %v1326, %v1322
    %v2243 = vpack.c.b16 %v1327, %v1323
    %v2244 = vpack.c.b16 %v1328, %v1324
    %v2245 = vpack.c.b16 %v1333, %v1329
    %v2246 = vpack.c.b16 %v1334, %v1330
    %v2247 = vpack.c.b16 %v1335, %v1331
    %v2248 = vpack.c.b16 %v1336, %v1332
    %v2249 = vpack.c.b16 %v1341, %v1337
    %v2250 = vpack.c.b16 %v1342, %v1338
    %v2251 = vpack.c.b16 %v1343, %v1339
    %v2252 = vpack.c.b16 %v1344, %v1340
    %v2253 = vpack.c.b16 %v1349, %v1345
    %v2254 = vpack.c.b16 %v1350, %v1346
    %v2255 = vpack.c.b16 %v1351, %v1347
    %v2256 = vpack.c.b16 %v1352, %v1348
    %v2257 = vpack.c.b16 %v1357, %v1353
    %v2258 = vpack.c.b16 %v1358, %v1354
    %v2259 = vpack.c.b16 %v1359, %v1355
    %v2260 = vpack.c.b16 %v1360, %v1356
    %v2261 = vpack.c.b16 %v1365, %v1361
    %v2262 = vpack.c.b16 %v1366, %v1362
    %v2263 = vpack.c.b16 %v1367, %v1363
    %v2264 = vpack.c.b16 %v1368, %v1364
    %v2265 = vpack.c.b16 %v1373, %v1369
    %v2266 = vpack.c.b16 %v1374, %v1370
    %v2267 = vpack.c.b16 %v1375, %v1371
    %v2268 = vpack.c.b16 %v1376, %v1372
    %v2269 = vpack.c.b16 %v1381, %v1377
    %v2270 = vpack.c.b16 %v1382, %v1378
    %v2271 = vpack.c.b16 %v1383, %v1379
    %v2272 = vpack.c.b16 %v1384, %v1380
    %v2273 = vpack.c.b16 %v1389, %v1385
    %v2274 = vpack.c.b16 %v1390, %v1386
    %v2275 = vpack.c.b16 %v1391, %v1387
    %v2276 = vpack.c.b16 %v1392, %v1388
    %v2277 = vpack.c.b16 %v1397, %v1393
    %v2278 = vpack.c.b16 %v1398, %v1394
    %v2279 = vpack.c.b16 %v1399, %v1395
    %v2280 = vpack.c.b16 %v1400, %v1396
    %v2281 = vpack.c.b16 %v1405, %v1401
    %v2282 = vpack.c.b16 %v1406, %v1402
    %v2283 = vpack.c.b16 %v1407, %v1403
    %v2284 = vpack.c.b16 %v1408, %v1404
    %v2285 = vpack.c.b16 %v1413, %v1409
    %v2286 = vpack.c.b16 %v1414, %v1410
    %v2287 = vpack.c.b16 %v1415, %v1411
    %v2288 = vpack.c.b16 %v1416, %v1412
    %v2289 = vpack.c.b16 %v1421, %v1417
    %v2290 = vpack.c.b16 %v1422, %v1418
    %v2291 = vpack.c.b16 %v1423, %v1419
    %v2292 = vpack.c.b16 %v1424, %v1420
    %v2293 = vpack.c.b16 %v1429, %v1425
    %v2294 = vpack.c.b16 %v1430, %v1426
    %v2295 = vpack.c.b16 %v1431, %v1427
    %v2296 = vpack.c.b16 %v1432, %v1428
    %v2297 = vpack.c.b16 %v1437, %v1433
    %v2298 = vpack.c.b16 %v1438, %v1434
    %v2299 = vpack.c.b16 %v1439, %v1435
    %v2300 = vpack.c.b16 %v1440, %v1436
    %v2301 = vpack.c.b16 %v1445, %v1441
    %v2302 = vpack.c.b16 %v1446, %v1442
    %v2303 = vpack.c.b16 %v1447, %v1443
    %v2304 = vpack.c.b16 %v1448, %v1444
    %v2305 = vpack.c.b16 %v1453, %v1449
    %v2306 = vpack.c.b16 %v1454, %v1450
    %v2307 = vpack.c.b16 %v1455, %v1451
    %v2308 = vpack.c.b16 %v1456, %v1452
    %v2309 = vpack.c.b16 %v1461, %v1457
    %v2310 = vpack.c.b16 %v1462, %v1458
    %v2311 = vpack.c.b16 %v1463, %v1459
    %v2312 = vpack.c.b16 %v1464, %v1460
    %v2313 = vpack.c.b16 %v1469, %v1465
    %v2314 = vpack.c.b16 %v1470, %v1466
    %v2315 = vpack.c.b16 %v1471, %v1467
    %v2316 = vpack.c.b16 %v1472, %v1468
    %v2317 = vpack.c.b16 %v1477, %v1473
    %v2318 = vpack.c.b16 %v1478, %v1474
    %v2319 = vpack.c.b16 %v1479, %v1475
    %v2320 = vpack.c.b16 %v1480, %v1476
    %v2321 = vpack.c.b16 %v1485, %v1481
    %v2322 = vpack.c.b16 %v1486, %v1482
    %v2323 = vpack.c.b16 %v1487, %v1483
    %v2324 = vpack.c.b16 %v1488, %v1484
    %v2325 = vpack.c.b16 %v1493, %v1489
    %v2326 = vpack.c.b16 %v1494, %v1490
    %v2327 = vpack.c.b16 %v1495, %v1491
    %v2328 = vpack.c.b16 %v1496, %v1492
    %v2329 = vpack.c.b16 %v1501, %v1497
    %v2330 = vpack.c.b16 %v1502, %v1498
    %v2331 = vpack.c.b16 %v1503, %v1499
    %v2332 = vpack.c.b16 %v1504, %v1500
    %v2333 = vpack.c.b16 %v1509, %v1505
    %v2334 = vpack.c.b16 %v1510, %v1506
    %v2335 = vpack.c.b16 %v1511, %v1507
    %v2336 = vpack.c.b16 %v1512, %v1508
    %v2337 = vpack.c.b16 %v1517, %v1513
    %v2338 = vpack.c.b16 %v1518, %v1514
    %v2339 = vpack.c.b16 %v1519, %v1515
    %v2340 = vpack.c.b16 %v1520, %v1516
    %v2341 = vpack.c.b16 %v1525, %v1521
    %v2342 = vpack.c.b16 %v1526, %v1522
    %v2343 = vpack.c.b16 %v1527, %v1523
    %v2344 = vpack.c.b16 %v1528, %v1524
    %v2345 = vpack.c.b16 %v1533, %v1529
    %v2346 = vpack.c.b16 %v1534, %v1530
    %v2347 = vpack.c.b16 %v1535, %v1531
    %v2348 = vpack.c.b16 %v1536, %v1532
    %v2349 = vpack.c.b16 %v1541, %v1537
    %v2350 = vpack.c.b16 %v1542, %v1538
    %v2351 = vpack.c.b16 %v1543, %v1539
    %v2352 = vpack.c.b16 %v1544, %v1540
    %v2353 = vpack.c.b16 %v1549, %v1545
    %v2354 = vpack.c.b16 %v1550, %v1546
    %v2355 = vpack.c.b16 %v1551, %v1547
    %v2356 = vpack.c.b16 %v1552, %v1548
    %v2357 = vpack.c.b16 %v1557, %v1553
    %v2358 = vpack.c.b16 %v1558, %v1554
    %v2359 = vpack.c.b16 %v1559, %v1555
    %v2360 = vpack.c.b16 %v1560, %v1556
    %v2361 = vpack.c.b16 %v1565, %v1561
    %v2362 = vpack.c.b16 %v1566, %v1562
    %v2363 = vpack.c.b16 %v1567, %v1563
    %v2364 = vpack.c.b16 %v1568, %v1564
    %v2365 = vpack.c.b16 %v1573, %v1569
    %v2366 = vpack.c.b16 %v1574, %v1570
    %v2367 = vpack.c.b16 %v1575, %v1571
    %v2368 = vpack.c.b16 %v1576, %v1572
    %v2369 = vpack.c.b16 %v1581, %v1577
    %v2370 = vpack.c.b16 %v1582, %v1578
    %v2371 = vpack.c.b16 %v1583, %v1579
    %v2372 = vpack.c.b16 %v1584, %v1580
    %v2373 = vpack.c.b16 %v1589, %v1585
    %v2374 = vpack.c.b16 %v1590, %v1586
    %v2375 = vpack.c.b16 %v1591, %v1587
    %v2376 = vpack.c.b16 %v1592, %v1588
    %v2377 = vpack.c.b16 %v1597, %v1593
    %v2378 = vpack.c.b16 %v1598, %v1594
    %v2379 = vpack.c.b16 %v1599, %v1595
    %v2380 = vpack.c.b16 %v1600, %v1596
    %v2381 = vpack.c.b16 %v1605, %v1601
    %v2382 = vpack.c.b16 %v1606, %v1602
    %v2383 = vpack.c.b16 %v1607, %v1603
    %v2384 = vpack.c.b16 %v1608, %v1604
    %v2385 = vpack.c.b16 %v1613, %v1609
    %v2386 = vpack.c.b16 %v1614, %v1610
    %v2387 = vpack.c.b16 %v1615, %v1611
    %v2388 = vpack.c.b16 %v1616, %v1612
    %v2389 = vpack.c.b16 %v1621, %v1617
    %v2390 = vpack.c.b16 %v1622, %v1618
    %v2391 = vpack.c.b16 %v1623, %v1619
    %v2392 = vpack.c.b16 %v1624, %v1620
    %v2393 = vpack.c.b16 %v1629, %v1625
    %v2394 = vpack.c.b16 %v1630, %v1626
    %v2395 = vpack.c.b16 %v1631, %v1627
    %v2396 = vpack.c.b16 %v1632, %v1628
    %v2397 = vpack.c.b16 %v1637, %v1633
    %v2398 = vpack.c.b16 %v1638, %v1634
    %v2399 = vpack.c.b16 %v1639, %v1635
    %v2400 = vpack.c.b16 %v1640, %v1636
    %v2401 = vpack.c.b16 %v1645, %v1641
    %v2402 = vpack.c.b16 %v1646, %v1642
    %v2403 = vpack.c.b16 %v1647, %v1643
    %v2404 = vpack.c.b16 %v1648, %v1644
    %v2405 = vpack.c.b16 %v1653, %v1649
    %v2406 = vpack.c.b16 %v1654, %v1650
    %v2407 = vpack.c.b16 %v1655, %v1651
    %v2408 = vpack.c.b16 %v1656, %v1652
    %v2409 = vpack.c.b16 %v1661, %v1657
    %v2410 = vpack.c.b16 %v1662, %v1658
    %v2411 = vpack.c.b16 %v1663, %v1659
    %v2412 = vpack.c.b16 %v1664, %v1660
    %v2413 = vpack.c.b16 %v1669, %v1665
    %v2414 = vpack.c.b16 %v1670, %v1666
    %v2415 = vpack.c.b16 %v1671, %v1667
    %v2416 = vpack.c.b16 %v1672, %v1668
    %v2417 = vpack.c.b16 %v1677, %v1673
    %v2418 = vpack.c.b16 %v1678, %v1674
    %v2419 = vpack.c.b16 %v1679, %v1675
    %v2420 = vpack.c.b16 %v1680, %v1676
    %v2421 = vpack.c.b16 %v1685, %v1681
    %v2422 = vpack.c.b16 %v1686, %v1682
    %v2423 = vpack.c.b16 %v1687, %v1683
    %v2424 = vpack.c.b16 %v1688, %v1684
    %v2425 = vpack.c.b16 %v1693, %v1689
    %v2426 = vpack.c.b16 %v1694, %v1690
    %v2427 = vpack.c.b16 %v1695, %v1691
    %v2428 = vpack.c.b16 %v1696, %v1692
    %v2429 = vpack.c.b16 %v1701, %v1697
    %v2430 = vpack.c.b16 %v1702, %v1698
    %v2431 = vpack.c.b16 %v1703, %v1699
    %v2432 = vpack.c.b16 %v1704, %v1700
    %v2433 = vpack.c.b16 %v1709, %v1705
    %v2434 = vpack.c.b16 %v1710, %v1706
    %v2435 = vpack.c.b16 %v1711, %v1707
    %v2436 = vpack.c.b16 %v1712, %v1708
    %v2437 = vpack.c.b16 %v1717, %v1713
    %v2438 = vpack.c.b16 %v1718, %v1714
    %v2439 = vpack.c.b16 %v1719, %v1715
    %v2440 = vpack.c.b16 %v1720, %v1716
    %v2441 = vpack.c.b16 %v1725, %v1721
    %v2442 = vpack.c.b16 %v1726, %v1722
    %v2443 = vpack.c.b16 %v1727, %v1723
    %v2444 = vpack.c.b16 %v1728, %v1724
    %v2445 = vpack.c.b16 %v1733, %v1729
    %v2446 = vpack.c.b16 %v1734, %v1730
    %v2447 = vpack.c.b16 %v1735, %v1731
    %v2448 = vpack.c.b16 %v1736, %v1732
    %v2449 = vpack.c.b16 %v1741, %v1737
    %v2450 = vpack.c.b16 %v1742, %v1738
    %v2451 = vpack.c.b16 %v1743, %v1739
    %v2452 = vpack.c.b16 %v1744, %v1740
    %v2453 = vpack.c.b16 %v1749, %v1745
    %v2454 = vpack.c.b16 %v1750, %v1746
    %v2455 = vpack.c.b16 %v1751, %v1747
    %v2456 = vpack.c.b16 %v1752, %v1748
    %v2457 = vpack.c.b16 %v1757, %v1753
    %v2458 = vpack.c.b16 %v1758, %v1754
    %v2459 = vpack.c.b16 %v1759, %v1755
    %v2460 = vpack.c.b16 %v1760, %v1756
    %v2461 = vpack.c.b16 %v1765, %v1761
    %v2462 = vpack.c.b16 %v1766, %v1762
    %v2463 = vpack.c.b16 %v1767, %v1763
    %v2464 = vpack.c.b16 %v1768, %v1764
    %v2465 = vpack.c.b16 %v1773, %v1769
    %v2466 = vpack.c.b16 %v1774, %v1770
    %v2467 = vpack.c.b16 %v1775, %v1771
    %v2468 = vpack.c.b16 %v1776, %v1772
    %v2469 = vpack.c.b16 %v1781, %v1777
    %v2470 = vpack.c.b16 %v1782, %v1778
    %v2471 = vpack.c.b16 %v1783, %v1779
    %v2472 = vpack.c.b16 %v1784, %v1780
    %v2473 = vpack.c.b16 %v1789, %v1785
    %v2474 = vpack.c.b16 %v1790, %v1786
    %v2475 = vpack.c.b16 %v1791, %v1787
    %v2476 = vpack.c.b16 %v1792, %v1788
    %v2477 = vpack.c.b16 %v1797, %v1793
    %v2478 = vpack.c.b16 %v1798, %v1794
    %v2479 = vpack.c.b16 %v1799, %v1795
    %v2480 = vpack.c.b16 %v1800, %v1796
    %v2481 = vpack.c.b16 %v1805, %v1801
    %v2482 = vpack.c.b16 %v1806, %v1802
    %v2483 = vpack.c.b16 %v1807, %v1803
    %v2484 = vpack.c.b16 %v1808, %v1804
    %v2485 = vpack.c.b16 %v1813, %v1809
    %v2486 = vpack.c.b16 %v1814, %v1810
    %v2487 = vpack.c.b16 %v1815, %v1811
    %v2488 = vpack.c.b16 %v1816, %v1812
    %v2489 = vpack.c.b16 %v1821, %v1817
    %v2490 = vpack.c.b16 %v1822, %v1818
    %v2491 = vpack.c.b16 %v1823, %v1819
    %v2492 = vpack.c.b16 %v1824, %v1820
    %v2493 = vpack.c.b16 %v1829, %v1825
    %v2494 = vpack.c.b16 %v1830, %v1826
    %v2495 = vpack.c.b16 %v1831, %v1827
    %v2496 = vpack.c.b16 %v1832, %v1828
    %v2497 = vpack.c.b16 %v1837, %v1833
    %v2498 = vpack.c.b16 %v1838, %v1834
    %v2499 = vpack.c.b16 %v1839, %v1835
    %v2500 = vpack.c.b16 %v1840, %v1836
    %v2501 = vpack.c.b16 %v1845, %v1841
    %v2502 = vpack.c.b16 %v1846, %v1842
    %v2503 = vpack.c.b16 %v1847, %v1843
    %v2504 = vpack.c.b16 %v1848, %v1844
    %v2505 = vpack.c.b16 %v1853, %v1849
    %v2506 = vpack.c.b16 %v1854, %v1850
    %v2507 = vpack.c.b16 %v1855, %v1851
    %v2508 = vpack.c.b16 %v1856, %v1852
    %v2509 = vpack.c.b16 %v1861, %v1857
    %v2510 = vpack.c.b16 %v1862, %v1858
    %v2511 = vpack.c.b16 %v1863, %v1859
    %v2512 = vpack.c.b16 %v1864, %v1860
    %v2513 = vpack.c.b16 %v1869, %v1865
    %v2514 = vpack.c.b16 %v1870, %v1866
    %v2515 = vpack.c.b16 %v1871, %v1867
    %v2516 = vpack.c.b16 %v1872, %v1868
    %v2517 = vpack.c.b16 %v1877, %v1873
    %v2518 = vpack.c.b16 %v1878, %v1874
    %v2519 = vpack.c.b16 %v1879, %v1875
    %v2520 = vpack.c.b16 %v1880, %v1876
    %v2521 = vpack.c.b16 %v1885, %v1881
    %v2522 = vpack.c.b16 %v1886, %v1882
    %v2523 = vpack.c.b16 %v1887, %v1883
    %v2524 = vpack.c.b16 %v1888, %v1884
    %v2525 = vpack.c.b16 %v1893, %v1889
    %v2526 = vpack.c.b16 %v1894, %v1890
    %v2527 = vpack.c.b16 %v1895, %v1891
    %v2528 = vpack.c.b16 %v1896, %v1892
    %v2529 = vpack.c.b16 %v1901, %v1897
    %v2530 = vpack.c.b16 %v1902, %v1898
    %v2531 = vpack.c.b16 %v1903, %v1899
    %v2532 = vpack.c.b16 %v1904, %v1900
    %v2533 = vpack.c.b16 %v1909, %v1905
    %v2534 = vpack.c.b16 %v1910, %v1906
    %v2535 = vpack.c.b16 %v1911, %v1907
    %v2536 = vpack.c.b16 %v1912, %v1908
    %v2537 = vpack.c.b16 %v1917, %v1913
    %v2538 = vpack.c.b16 %v1918, %v1914
    %v2539 = vpack.c.b16 %v1919, %v1915
    %v2540 = vpack.c.b16 %v1920, %v1916
    %v2541 = vpack.c.b16 %v1925, %v1921
    %v2542 = vpack.c.b16 %v1926, %v1922
    %v2543 = vpack.c.b16 %v1927, %v1923
    %v2544 = vpack.c.b16 %v1928, %v1924
    %v2545 = vpack.c.b16 %v1933, %v1929
    %v2546 = vpack.c.b16 %v1934, %v1930
    %v2547 = vpack.c.b16 %v1935, %v1931
    %v2548 = vpack.c.b16 %v1936, %v1932
    %v2549 = vpack.c.b16 %v1941, %v1937
    %v2550 = vpack.c.b16 %v1942, %v1938
    %v2551 = vpack.c.b16 %v1943, %v1939
    %v2552 = vpack.c.b16 %v1944, %v1940
    %v2553 = vpack.c.b16 %v1949, %v1945
    %v2554 = vpack.c.b16 %v1950, %v1946
    %v2555 = vpack.c.b16 %v1951, %v1947
    %v2556 = vpack.c.b16 %v1952, %v1948
    %v2557 = vpack.c.b16 %v1957, %v1953
    %v2558 = vpack.c.b16 %v1958, %v1954
    %v2559 = vpack.c.b16 %v1959, %v1955
    %v2560 = vpack.c.b16 %v1960, %v1956
    %v2561 = vpack.c.b16 %v1965, %v1961
    %v2562 = vpack.c.b16 %v1966, %v1962
    %v2563 = vpack.c.b16 %v1967, %v1963
    %v2564 = vpack.c.b16 %v1968, %v1964
    %v2565 = vpack.c.b16 %v1973, %v1969
    %v2566 = vpack.c.b16 %v1974, %v1970
    %v2567 = vpack.c.b16 %v1975, %v1971
    %v2568 = vpack.c.b16 %v1976, %v1972
    %v2569 = vpack.c.b16 %v1981, %v1977
    %v2570 = vpack.c.b16 %v1982, %v1978
    %v2571 = vpack.c.b16 %v1983, %v1979
    %v2572 = vpack.c.b16 %v1984, %v1980
    %v2573 = vpack.c.b16 %v1989, %v1985
    %v2574 = vpack.c.b16 %v1990, %v1986
    %v2575 = vpack.c.b16 %v1991, %v1987
    %v2576 = vpack.c.b16 %v1992, %v1988
    %v2577 = vpack.c.b16 %v1997, %v1993
    %v2578 = vpack.c.b16 %v1998, %v1994
    %v2579 = vpack.c.b16 %v1999, %v1995
    %v2580 = vpack.c.b16 %v2000, %v1996
    %v2581 = vpack.c.b16 %v2005, %v2001
    %v2582 = vpack.c.b16 %v2006, %v2002
    %v2583 = vpack.c.b16 %v2007, %v2003
    %v2584 = vpack.c.b16 %v2008, %v2004
    %v2585 = vpack.c.b16 %v2013, %v2009
    %v2586 = vpack.c.b16 %v2014, %v2010
    %v2587 = vpack.c.b16 %v2015, %v2011
    %v2588 = vpack.c.b16 %v2016, %v2012
    %v2589 = vpack.c.b16 %v2021, %v2017
    %v2590 = vpack.c.b16 %v2022, %v2018
    %v2591 = vpack.c.b16 %v2023, %v2019
    %v2592 = vpack.c.b16 %v2024, %v2020
    %v2593 = vpack.c.b16 %v2029, %v2025
    %v2594 = vpack.c.b16 %v2030, %v2026
    %v2595 = vpack.c.b16 %v2031, %v2027
    %v2596 = vpack.c.b16 %v2032, %v2028
    %v2597 = vpack.c.b16 %v2037, %v2033
    %v2598 = vpack.c.b16 %v2038, %v2034
    %v2599 = vpack.c.b16 %v2039, %v2035
    %v2600 = vpack.c.b16 %v2040, %v2036
    %v2601 = vpack.c.b16 %v2045, %v2041
    %v2602 = vpack.c.b16 %v2046, %v2042
    %v2603 = vpack.c.b16 %v2047, %v2043
    %v2604 = vpack.c.b16 %v2048, %v2044
    %v2605 = vpack.c.b16 %v2053, %v2049
    %v2606 = vpack.c.b16 %v2054, %v2050
    %v2607 = vpack.c.b16 %v2055, %v2051
    %v2608 = vpack.c.b16 %v2056, %v2052
    %v2609 = vpack.c.b16 %v2061, %v2057
    %v2610 = vpack.c.b16 %v2062, %v2058
    %v2611 = vpack.c.b16 %v2063, %v2059
    %v2612 = vpack.c.b16 %v2064, %v2060
    %v2613 = vpack.c.b16 %v2069, %v2065
    %v2614 = vpack.c.b16 %v2070, %v2066
    %v2615 = vpack.c.b16 %v2071, %v2067
    %v2616 = vpack.c.b16 %v2072, %v2068
    %v2617 = vpack.c.b16 %v2077, %v2073
    %v2618 = vpack.c.b16 %v2078, %v2074
    %v2619 = vpack.c.b16 %v2079, %v2075
    %v2620 = vpack.c.b16 %v2080, %v2076
    %v2621 = vpack.c.b16 %v2085, %v2081
    %v2622 = vpack.c.b16 %v2086, %v2082
    %v2623 = vpack.c.b16 %v2087, %v2083
    %v2624 = vpack.c.b16 %v2088, %v2084
    %v2625 = vpack.c.b16 %v2093, %v2089
    %v2626 = vpack.c.b16 %v2094, %v2090
    %v2627 = vpack.c.b16 %v2095, %v2091
    %v2628 = vpack.c.b16 %v2096, %v2092
    %v2629 = vpack.c.b16 %v2101, %v2097
    %v2630 = vpack.c.b16 %v2102, %v2098
    %v2631 = vpack.c.b16 %v2103, %v2099
    %v2632 = vpack.c.b16 %v2104, %v2100
    %v2633 = vpack.c.b16 %v2109, %v2105
    %v2634 = vpack.c.b16 %v2110, %v2106
    %v2635 = vpack.c.b16 %v2111, %v2107
    %v2636 = vpack.c.b16 %v2112, %v2108
    %v2637 = vpack.c.b16 %v2117, %v2113
    %v2638 = vpack.c.b16 %v2118, %v2114
    %v2639 = vpack.c.b16 %v2119, %v2115
    %v2640 = vpack.c.b16 %v2120, %v2116
    %v2641 = vpack.c.b16 %v2125, %v2121
    %v2642 = vpack.c.b16 %v2126, %v2122
    %v2643 = vpack.c.b16 %v2127, %v2123
    %v2644 = vpack.c.b16 %v2128, %v2124
    %v2645 = vpack.c.b16 %v2133, %v2129
    %v2646 = vpack.c.b16 %v2134, %v2130
    %v2647 = vpack.c.b16 %v2135, %v2131
    %v2648 = vpack.c.b16 %v2136, %v2132
    %v2649 = vpack.c.b16 %v2141, %v2137
    %v2650 = vpack.c.b16 %v2142, %v2138
    %v2651 = vpack.c.b16 %v2143, %v2139
    %v2652 = vpack.c.b16 %v2144, %v2140
    %v2653 = vpack.c.b16 %v2149, %v2145
    %v2654 = vpack.c.b16 %v2150, %v2146
    %v2655 = vpack.c.b16 %v2151, %v2147
    %v2656 = vpack.c.b16 %v2152, %v2148
    %v2657 = vpack.c.b16 %v2157, %v2153
    %v2658 = vpack.c.b16 %v2158, %v2154
    %v2659 = vpack.c.b16 %v2159, %v2155
    %v2660 = vpack.c.b16 %v2160, %v2156
    %vm3161 = vcmask 654336
    %v3163 = vsel %vm3161, %v645, 0
    %3165 = vmatprep.subr.bf16.mxu0 %v2162
    %3166 = vmatpush1.bf16.msra.mxu0 %v2161
    %3167 = vmatprep.subr.bf16.mxu0 %v2166
    %3168 = vmatpush1.bf16.msra.mxu0 %v2165
    %3169 = vmatprep.subr.bf16.mxu0 %v2170
    %3170 = vmatpush1.bf16.msra.mxu0 %v2169
    %3171 = vmatprep.subr.bf16.mxu0 %v2174
    %3172 = vmatpush1.bf16.msra.mxu0 %v2173
    %3173 = vmatprep.subr.bf16.mxu0 %v2178
    %3174 = vmatpush1.bf16.msra.mxu0 %v2177
    %3175 = vmatprep.subr.bf16.mxu0 %v2182
    %3176 = vmatpush1.bf16.msra.mxu0 %v2181
    %3177 = vmatprep.subr.bf16.mxu0 %v2186
    %3178 = vmatpush1.bf16.msra.mxu0 %v2185
    %3179 = vmatprep.subr.bf16.mxu0 %v2190
    %3180 = vmatpush1.bf16.msra.mxu0 %v2189
    %3181 = vmatprep.subr.bf16.mxu0 %v2194
    %3182 = vmatpush1.bf16.msra.mxu0 %v2193
    %3183 = vmatprep.subr.bf16.mxu0 %v2198
    %3184 = vmatpush1.bf16.msra.mxu0 %v2197
    %3185 = vmatprep.subr.bf16.mxu0 %v2202
    %3186 = vmatpush1.bf16.msra.mxu0 %v2201
    %3187 = vmatprep.subr.bf16.mxu0 %v2206
    %3188 = vmatpush1.bf16.msra.mxu0 %v2205
    %3189 = vmatprep.subr.bf16.mxu0 %v2210
    %3190 = vmatpush1.bf16.msra.mxu0 %v2209
    %3191 = vmatprep.subr.bf16.mxu0 %v2214
    %3192 = vmatpush1.bf16.msra.mxu0 %v2213
    %3193 = vmatprep.subr.bf16.mxu0 %v2218
    %3194 = vmatpush1.bf16.msra.mxu0 %v2217
    %3195 = vmatprep.subr.bf16.mxu0 %v2222
    %3196 = vmatpush1.bf16.msra.mxu0 %v2221
    %3197 = vmatprep.mubr.bf16.mxu0 %v585
    %3198 = vmatmul.mubr.bf16.gmra.mrb[0].mxu0 %v571
    %v3199 = vpop.f32.mrb[0].mxu0
    %v3200 = vadd.f32 %v529, %v3199
    %v3201 = vpop.f32.mrb[0].mxu0
    %v3202 = vadd.f32 %v533, %v3201
    %v3203 = vpop.f32.mrb[0].mxu0
    %v3204 = vpop.f32.mrb[0].mxu0
    %3205 = vdwg.mxu0
    %3206 = vmatprep.subr.bf16.mxu0 %v2226
    %3207 = vmatpush1.bf16.msra.mxu0 %v2225
    %3208 = vmatprep.subr.bf16.mxu0 %v2230
    %3209 = vmatpush1.bf16.msra.mxu0 %v2229
    %3210 = vmatprep.subr.bf16.mxu0 %v2234
    %3211 = vmatpush1.bf16.msra.mxu0 %v2233
    %3212 = vmatprep.subr.bf16.mxu0 %v2238
    %3213 = vmatpush1.bf16.msra.mxu0 %v2237
    %3214 = vmatprep.subr.bf16.mxu0 %v2242
    %3215 = vmatpush1.bf16.msra.mxu0 %v2241
    %3216 = vmatprep.subr.bf16.mxu0 %v2246
    %3217 = vmatpush1.bf16.msra.mxu0 %v2245
    %3218 = vmatprep.subr.bf16.mxu0 %v2250
    %3219 = vmatpush1.bf16.msra.mxu0 %v2249
    %3220 = vmatprep.subr.bf16.mxu0 %v2254
    %3221 = vmatpush1.bf16.msra.mxu0 %v2253
    %3222 = vmatprep.subr.bf16.mxu0 %v2258
    %3223 = vmatpush1.bf16.msra.mxu0 %v2257
    %3224 = vmatprep.subr.bf16.mxu0 %v2262
    %3225 = vmatpush1.bf16.msra.mxu0 %v2261
    %3226 = vmatprep.subr.bf16.mxu0 %v2266
    %3227 = vmatpush1.bf16.msra.mxu0 %v2265
    %3228 = vmatprep.subr.bf16.mxu0 %v2270
    %3229 = vmatpush1.bf16.msra.mxu0 %v2269
    %3230 = vmatprep.subr.bf16.mxu0 %v2274
    %3231 = vmatpush1.bf16.msra.mxu0 %v2273
    %3232 = vmatprep.subr.bf16.mxu0 %v2278
    %3233 = vmatpush1.bf16.msra.mxu0 %v2277
    %3234 = vmatprep.subr.bf16.mxu0 %v2282
    %3235 = vmatpush1.bf16.msra.mxu0 %v2281
    %3236 = vmatprep.subr.bf16.mxu0 %v2286
    %3237 = vmatpush1.bf16.msra.mxu0 %v2285
    %3238 = vmatprep.mubr.bf16.mxu0 %v595
    %3239 = vmatmul.mubr.bf16.gmra.mrb[0].mxu0 %v593
    %v3240 = vpop.f32.mrb[0].mxu0
    %v3241 = vadd.f32 %v3200, %v3240
    %v3242 = vpop.f32.mrb[0].mxu0
    %v3243 = vadd.f32 %v3202, %v3242
    %v3244 = vpop.f32.mrb[0].mxu0
    %v3245 = vpop.f32.mrb[0].mxu0
    %3246 = vdwg.mxu0
    %3247 = vmatprep.subr.bf16.mxu0 %v2290
    %3248 = vmatpush1.bf16.msra.mxu0 %v2289
    %3249 = vmatprep.subr.bf16.mxu0 %v2294
    %3250 = vmatpush1.bf16.msra.mxu0 %v2293
    %3251 = vmatprep.subr.bf16.mxu0 %v2298
    %3252 = vmatpush1.bf16.msra.mxu0 %v2297
    %3253 = vmatprep.subr.bf16.mxu0 %v2302
    %3254 = vmatpush1.bf16.msra.mxu0 %v2301
    %3255 = vmatprep.subr.bf16.mxu0 %v2306
    %3256 = vmatpush1.bf16.msra.mxu0 %v2305
    %3257 = vmatprep.subr.bf16.mxu0 %v2310
    %3258 = vmatpush1.bf16.msra.mxu0 %v2309
    %3259 = vmatprep.subr.bf16.mxu0 %v2314
    %3260 = vmatpush1.bf16.msra.mxu0 %v2313
    %3261 = vmatprep.subr.bf16.mxu0 %v2318
    %3262 = vmatpush1.bf16.msra.mxu0 %v2317
    %3263 = vmatprep.subr.bf16.mxu0 %v2322
    %3264 = vmatpush1.bf16.msra.mxu0 %v2321
    %3265 = vmatprep.subr.bf16.mxu0 %v2326
    %3266 = vmatpush1.bf16.msra.mxu0 %v2325
    %3267 = vmatprep.subr.bf16.mxu0 %v2330
    %3268 = vmatpush1.bf16.msra.mxu0 %v2329
    %3269 = vmatprep.subr.bf16.mxu0 %v2334
    %3270 = vmatpush1.bf16.msra.mxu0 %v2333
    %3271 = vmatprep.subr.bf16.mxu0 %v2338
    %3272 = vmatpush1.bf16.msra.mxu0 %v2337
    %3273 = vmatprep.subr.bf16.mxu0 %v2342
    %3274 = vmatpush1.bf16.msra.mxu0 %v2341
    %3275 = vmatprep.subr.bf16.mxu0 %v2346
    %3276 = vmatpush1.bf16.msra.mxu0 %v2345
    %3277 = vmatprep.subr.bf16.mxu0 %v2350
    %3278 = vmatpush1.bf16.msra.mxu0 %v2349
    %3279 = vmatprep.mubr.bf16.mxu0 %v592
    %3280 = vmatmul.mubr.bf16.gmra.mrb[0].mxu0 %v578
    %v3281 = vpop.f32.mrb[0].mxu0
    %v3282 = vadd.f32 %v3241, %v3281
    %v3283 = vpop.f32.mrb[0].mxu0
    %v3284 = vadd.f32 %v3243, %v3283
    %v3285 = vpop.f32.mrb[0].mxu0
    %v3286 = vpop.f32.mrb[0].mxu0
    %3287 = vdwg.mxu0
    %3288 = vmatprep.subr.bf16.mxu0 %v2354
    %3289 = vmatpush1.bf16.msra.mxu0 %v2353
    %3290 = vmatprep.subr.bf16.mxu0 %v2358
    %3291 = vmatpush1.bf16.msra.mxu0 %v2357
    %3292 = vmatprep.subr.bf16.mxu0 %v2362
    %3293 = vmatpush1.bf16.msra.mxu0 %v2361
    %3294 = vmatprep.subr.bf16.mxu0 %v2366
    %3295 = vmatpush1.bf16.msra.mxu0 %v2365
    %3296 = vmatprep.subr.bf16.mxu0 %v2370
    %3297 = vmatpush1.bf16.msra.mxu0 %v2369
    %3298 = vmatprep.subr.bf16.mxu0 %v2374
    %3299 = vmatpush1.bf16.msra.mxu0 %v2373
    %3300 = vmatprep.subr.bf16.mxu0 %v2378
    %3301 = vmatpush1.bf16.msra.mxu0 %v2377
    %3302 = vmatprep.subr.bf16.mxu0 %v2382
    %3303 = vmatpush1.bf16.msra.mxu0 %v2381
    %3304 = vmatprep.subr.bf16.mxu0 %v2386
    %3305 = vmatpush1.bf16.msra.mxu0 %v2385
    %3306 = vmatprep.subr.bf16.mxu0 %v2390
    %3307 = vmatpush1.bf16.msra.mxu0 %v2389
    %3308 = vmatprep.subr.bf16.mxu0 %v2394
    %3309 = vmatpush1.bf16.msra.mxu0 %v2393
    %3310 = vmatprep.subr.bf16.mxu0 %v2398
    %3311 = vmatpush1.bf16.msra.mxu0 %v2397
    %3312 = vmatprep.subr.bf16.mxu0 %v2402
    %3313 = vmatpush1.bf16.msra.mxu0 %v2401
    %3314 = vmatprep.subr.bf16.mxu0 %v2406
    %3315 = vmatpush1.bf16.msra.mxu0 %v2405
    %3316 = vmatprep.subr.bf16.mxu0 %v2410
    %3317 = vmatpush1.bf16.msra.mxu0 %v2409
    %3318 = vmatprep.subr.bf16.mxu0 %v2414
    %3319 = vmatpush1.bf16.msra.mxu0 %v2413
    %3320 = vmatprep.mubr.bf16.mxu0 %v596
    %3321 = vmatmul.mubr.bf16.gmra.mrb[0].mxu0 %v594
    %v3322 = vpop.f32.mrb[0].mxu0
    %v3323 = vadd.f32 %v3282, %v3322
    %v3324 = vpop.f32.mrb[0].mxu0
    %v3325 = vadd.f32 %v3284, %v3324
    %v3326 = vpop.f32.mrb[0].mxu0
    %v3327 = vpop.f32.mrb[0].mxu0
    %3328 = vdwg.mxu0
    %3329 = vmatprep.subr.bf16.mxu0 %v2418
    %3330 = vmatpush1.bf16.msra.mxu0 %v2417
    %3331 = vmatprep.subr.bf16.mxu0 %v2422
    %3332 = vmatpush1.bf16.msra.mxu0 %v2421
    %3333 = vmatprep.subr.bf16.mxu0 %v2426
    %3334 = vmatpush1.bf16.msra.mxu0 %v2425
    %3335 = vmatprep.subr.bf16.mxu0 %v2430
    %3336 = vmatpush1.bf16.msra.mxu0 %v2429
    %3337 = vmatprep.subr.bf16.mxu0 %v2434
    %3338 = vmatpush1.bf16.msra.mxu0 %v2433
    %3339 = vmatprep.subr.bf16.mxu0 %v2438
    %3340 = vmatpush1.bf16.msra.mxu0 %v2437
    %3341 = vmatprep.subr.bf16.mxu0 %v2442
    %3342 = vmatpush1.bf16.msra.mxu0 %v2441
    %3343 = vmatprep.subr.bf16.mxu0 %v2446
    %3344 = vmatpush1.bf16.msra.mxu0 %v2445
    %3345 = vmatprep.subr.bf16.mxu0 %v2450
    %3346 = vmatpush1.bf16.msra.mxu0 %v2449
    %3347 = vmatprep.subr.bf16.mxu0 %v2454
    %3348 = vmatpush1.bf16.msra.mxu0 %v2453
    %3349 = vmatprep.subr.bf16.mxu0 %v2458
    %3350 = vmatpush1.bf16.msra.mxu0 %v2457
    %3351 = vmatprep.subr.bf16.mxu0 %v2462
    %3352 = vmatpush1.bf16.msra.mxu0 %v2461
    %3353 = vmatprep.subr.bf16.mxu0 %v2466
    %3354 = vmatpush1.bf16.msra.mxu0 %v2465
    %3355 = vmatprep.subr.bf16.mxu0 %v2470
    %3356 = vmatpush1.bf16.msra.mxu0 %v2469
    %3357 = vmatprep.subr.bf16.mxu0 %v2474
    %3358 = vmatpush1.bf16.msra.mxu0 %v2473
    %3359 = vmatprep.subr.bf16.mxu0 %v2478
    %3360 = vmatpush1.bf16.msra.mxu0 %v2477
    %3361 = vmatprep.mubr.bf16.mxu0 %v634
    %3362 = vmatmul.mubr.bf16.gmra.mrb[0].mxu0 %v620
    %v3363 = vpop.f32.mrb[0].mxu0
    %v3364 = vadd.f32 %v3323, %v3363
    %v3365 = vpop.f32.mrb[0].mxu0
    %v3366 = vadd.f32 %v3325, %v3365
    %v3367 = vpop.f32.mrb[0].mxu0
    %v3368 = vpop.f32.mrb[0].mxu0
    %3369 = vdwg.mxu0
    %3370 = vmatprep.subr.bf16.mxu0 %v2482
    %3371 = vmatpush1.bf16.msra.mxu0 %v2481
    %3372 = vmatprep.subr.bf16.mxu0 %v2486
    %3373 = vmatpush1.bf16.msra.mxu0 %v2485
    %3374 = vmatprep.subr.bf16.mxu0 %v2490
    %3375 = vmatpush1.bf16.msra.mxu0 %v2489
    %3376 = vmatprep.subr.bf16.mxu0 %v2494
    %3377 = vmatpush1.bf16.msra.mxu0 %v2493
    %3378 = vmatprep.subr.bf16.mxu0 %v2498
    %3379 = vmatpush1.bf16.msra.mxu0 %v2497
    %3380 = vmatprep.subr.bf16.mxu0 %v2502
    %3381 = vmatpush1.bf16.msra.mxu0 %v2501
    %3382 = vmatprep.subr.bf16.mxu0 %v2506
    %3383 = vmatpush1.bf16.msra.mxu0 %v2505
    %3384 = vmatprep.subr.bf16.mxu0 %v2510
    %3385 = vmatpush1.bf16.msra.mxu0 %v2509
    %3386 = vmatprep.subr.bf16.mxu0 %v2514
    %3387 = vmatpush1.bf16.msra.mxu0 %v2513
    %3388 = vmatprep.subr.bf16.mxu0 %v2518
    %3389 = vmatpush1.bf16.msra.mxu0 %v2517
    %3390 = vmatprep.subr.bf16.mxu0 %v2522
    %3391 = vmatpush1.bf16.msra.mxu0 %v2521
    %3392 = vmatprep.subr.bf16.mxu0 %v2526
    %3393 = vmatpush1.bf16.msra.mxu0 %v2525
    %3394 = vmatprep.subr.bf16.mxu0 %v2530
    %3395 = vmatpush1.bf16.msra.mxu0 %v2529
    %3396 = vmatprep.subr.bf16.mxu0 %v2534
    %3397 = vmatpush1.bf16.msra.mxu0 %v2533
    %3398 = vmatprep.subr.bf16.mxu0 %v2538
    %3399 = vmatpush1.bf16.msra.mxu0 %v2537
    %3400 = vmatprep.subr.bf16.mxu0 %v2542
    %3401 = vmatpush1.bf16.msra.mxu0 %v2541
    %3402 = vmatprep.mubr.bf16.mxu0 %v644
    %3403 = vmatmul.mubr.bf16.gmra.mrb[0].mxu0 %v642
    %v3404 = vpop.f32.mrb[0].mxu0
    %v3405 = vadd.f32 %v3364, %v3404
    %v3406 = vpop.f32.mrb[0].mxu0
    %v3407 = vadd.f32 %v3366, %v3406
    %v3408 = vpop.f32.mrb[0].mxu0
    %v3409 = vpop.f32.mrb[0].mxu0
    %3410 = vdwg.mxu0
    %3411 = vmatprep.subr.bf16.mxu0 %v2546
    %3412 = vmatpush1.bf16.msra.mxu0 %v2545
    %3413 = vmatprep.subr.bf16.mxu0 %v2550
    %3414 = vmatpush1.bf16.msra.mxu0 %v2549
    %3415 = vmatprep.subr.bf16.mxu0 %v2554
    %3416 = vmatpush1.bf16.msra.mxu0 %v2553
    %3417 = vmatprep.subr.bf16.mxu0 %v2558
    %3418 = vmatpush1.bf16.msra.mxu0 %v2557
    %3419 = vmatprep.subr.bf16.mxu0 %v2562
    %3420 = vmatpush1.bf16.msra.mxu0 %v2561
    %3421 = vmatprep.subr.bf16.mxu0 %v2566
    %3422 = vmatpush1.bf16.msra.mxu0 %v2565
    %3423 = vmatprep.subr.bf16.mxu0 %v2570
    %3424 = vmatpush1.bf16.msra.mxu0 %v2569
    %3425 = vmatprep.subr.bf16.mxu0 %v2574
    %3426 = vmatpush1.bf16.msra.mxu0 %v2573
    %3427 = vmatprep.subr.bf16.mxu0 %v2578
    %3428 = vmatpush1.bf16.msra.mxu0 %v2577
    %3429 = vmatprep.subr.bf16.mxu0 %v2582
    %3430 = vmatpush1.bf16.msra.mxu0 %v2581
    %3431 = vmatprep.subr.bf16.mxu0 %v2586
    %3432 = vmatpush1.bf16.msra.mxu0 %v2585
    %3433 = vmatprep.subr.bf16.mxu0 %v2590
    %3434 = vmatpush1.bf16.msra.mxu0 %v2589
    %3435 = vmatprep.subr.bf16.mxu0 %v2594
    %3436 = vmatpush1.bf16.msra.mxu0 %v2593
    %3437 = vmatprep.subr.bf16.mxu0 %v2598
    %3438 = vmatpush1.bf16.msra.mxu0 %v2597
    %3439 = vmatprep.subr.bf16.mxu0 %v2602
    %3440 = vmatpush1.bf16.msra.mxu0 %v2601
    %3441 = vmatprep.subr.bf16.mxu0 %v2606
    %3442 = vmatpush1.bf16.msra.mxu0 %v2605
    %3443 = vmatprep.mubr.bf16.mxu0 %v641
    %3444 = vmatmul.mubr.bf16.gmra.mrb[0].mxu0 %v627
    %v3445 = vpop.f32.mrb[0].mxu0
    %v3446 = vadd.f32 %v3405, %v3445
    %v3447 = vpop.f32.mrb[0].mxu0
    %v3448 = vadd.f32 %v3407, %v3447
    %v3449 = vpop.f32.mrb[0].mxu0
    %v3450 = vpop.f32.mrb[0].mxu0
    %3451 = vdwg.mxu0
    %3452 = vmatprep.subr.bf16.mxu0 %v2610
    %3453 = vmatpush1.bf16.msra.mxu0 %v2609
    %3454 = vmatprep.subr.bf16.mxu0 %v2614
    %3455 = vmatpush1.bf16.msra.mxu0 %v2613
    %3456 = vmatprep.subr.bf16.mxu0 %v2618
    %3457 = vmatpush1.bf16.msra.mxu0 %v2617
    %3458 = vmatprep.subr.bf16.mxu0 %v2622
    %3459 = vmatpush1.bf16.msra.mxu0 %v2621
    %3460 = vmatprep.subr.bf16.mxu0 %v2626
    %3461 = vmatpush1.bf16.msra.mxu0 %v2625
    %3462 = vmatprep.subr.bf16.mxu0 %v2630
    %3463 = vmatpush1.bf16.msra.mxu0 %v2629
    %3464 = vmatprep.subr.bf16.mxu0 %v2634
    %3465 = vmatpush1.bf16.msra.mxu0 %v2633
    %3466 = vmatprep.subr.bf16.mxu0 %v2638
    %3467 = vmatpush1.bf16.msra.mxu0 %v2637
    %3468 = vmatprep.subr.bf16.mxu0 %v2642
    %3469 = vmatpush1.bf16.msra.mxu0 %v2641
    %3470 = vmatprep.subr.bf16.mxu0 %v2646
    %3471 = vmatpush1.bf16.msra.mxu0 %v2645
    %3472 = vmatprep.subr.bf16.mxu0 %v2650
    %3473 = vmatpush1.bf16.msra.mxu0 %v2649
    %3474 = vmatprep.subr.bf16.mxu0 %v2654
    %3475 = vmatpush1.bf16.msra.mxu0 %v2653
    %3476 = vmatprep.subr.bf16.mxu0 %v2658
    %3477 = vmatpush1.bf16.msra.mxu0 %v2657
    %3478 = vmatprep.subr.bf16.mxu0 0
    %3479 = vmatpush1.bf16.msra.mxu0 0
    %3480 = vmatprep.subr.bf16.mxu0 0
    %3481 = vmatpush1.bf16.msra.mxu0 0
    %3482 = vmatprep.subr.bf16.mxu0 0
    %3483 = vmatpush1.bf16.msra.mxu0 0
    %3484 = vmatprep.mubr.bf16.mxu0 %v3163
    %3485 = vmatmul.mubr.bf16.gmra.mrb[0].mxu0 %v643
    %v3486 = vpop.f32.mrb[0].mxu0
    %v3487 = vadd.f32 %v3446, %v3486
    %v3488 = vpop.f32.mrb[0].mxu0
    %v3489 = vadd.f32 %v3448, %v3488
    %v3490 = vpop.f32.mrb[0].mxu0
    %v3491 = vpop.f32.mrb[0].mxu0
    %3492 = vdwg.mxu0
    %3493 = vmatprep.subr.bf16.mxu0 %v2164
    %3494 = vmatpush1.bf16.msra.mxu0 %v2163
    %3495 = vmatprep.subr.bf16.mxu0 %v2168
    %3496 = vmatpush1.bf16.msra.mxu0 %v2167
    %3497 = vmatprep.subr.bf16.mxu0 %v2172
    %3498 = vmatpush1.bf16.msra.mxu0 %v2171
    %3499 = vmatprep.subr.bf16.mxu0 %v2176
    %3500 = vmatpush1.bf16.msra.mxu0 %v2175
    %3501 = vmatprep.subr.bf16.mxu0 %v2180
    %3502 = vmatpush1.bf16.msra.mxu0 %v2179
    %3503 = vmatprep.subr.bf16.mxu0 %v2184
    %3504 = vmatpush1.bf16.msra.mxu0 %v2183
    %3505 = vmatprep.subr.bf16.mxu0 %v2188
    %3506 = vmatpush1.bf16.msra.mxu0 %v2187
    %3507 = vmatprep.subr.bf16.mxu0 %v2192
    %3508 = vmatpush1.bf16.msra.mxu0 %v2191
    %3509 = vmatprep.subr.bf16.mxu0 %v2196
    %3510 = vmatpush1.bf16.msra.mxu0 %v2195
    %3511 = vmatprep.subr.bf16.mxu0 %v2200
    %3512 = vmatpush1.bf16.msra.mxu0 %v2199
    %3513 = vmatprep.subr.bf16.mxu0 %v2204
    %3514 = vmatpush1.bf16.msra.mxu0 %v2203
    %3515 = vmatprep.subr.bf16.mxu0 %v2208
    %3516 = vmatpush1.bf16.msra.mxu0 %v2207
    %3517 = vmatprep.subr.bf16.mxu0 %v2212
    %3518 = vmatpush1.bf16.msra.mxu0 %v2211
    %3519 = vmatprep.subr.bf16.mxu0 %v2216
    %3520 = vmatpush1.bf16.msra.mxu0 %v2215
    %3521 = vmatprep.subr.bf16.mxu0 %v2220
    %3522 = vmatpush1.bf16.msra.mxu0 %v2219
    %3523 = vmatprep.subr.bf16.mxu0 %v2224
    %3524 = vmatpush1.bf16.msra.mxu0 %v2223
    %3525 = vmatprep.mubr.bf16.mxu0 %v585
    %3526 = vmatmul.mubr.bf16.gmra.mrb[0].mxu0 %v571
    %v3527 = vpop.f32.mrb[0].mxu0
    %v3528 = vadd.f32 %v537, %v3527
    %v3529 = vpop.f32.mrb[0].mxu0
    %v3530 = vadd.f32 %v541, %v3529
    %v3531 = vpop.f32.mrb[0].mxu0
    %v3532 = vpop.f32.mrb[0].mxu0
    %3533 = vdwg.mxu0
    %3534 = vmatprep.subr.bf16.mxu0 %v2228
    %3535 = vmatpush1.bf16.msra.mxu0 %v2227
    %3536 = vmatprep.subr.bf16.mxu0 %v2232
    %3537 = vmatpush1.bf16.msra.mxu0 %v2231
    %3538 = vmatprep.subr.bf16.mxu0 %v2236
    %3539 = vmatpush1.bf16.msra.mxu0 %v2235
    %3540 = vmatprep.subr.bf16.mxu0 %v2240
    %3541 = vmatpush1.bf16.msra.mxu0 %v2239
    %3542 = vmatprep.subr.bf16.mxu0 %v2244
    %3543 = vmatpush1.bf16.msra.mxu0 %v2243
    %3544 = vmatprep.subr.bf16.mxu0 %v2248
    %3545 = vmatpush1.bf16.msra.mxu0 %v2247
    %3546 = vmatprep.subr.bf16.mxu0 %v2252
    %3547 = vmatpush1.bf16.msra.mxu0 %v2251
    %3548 = vmatprep.subr.bf16.mxu0 %v2256
    %3549 = vmatpush1.bf16.msra.mxu0 %v2255
    %3550 = vmatprep.subr.bf16.mxu0 %v2260
    %3551 = vmatpush1.bf16.msra.mxu0 %v2259
    %3552 = vmatprep.subr.bf16.mxu0 %v2264
    %3553 = vmatpush1.bf16.msra.mxu0 %v2263
    %3554 = vmatprep.subr.bf16.mxu0 %v2268
    %3555 = vmatpush1.bf16.msra.mxu0 %v2267
    %3556 = vmatprep.subr.bf16.mxu0 %v2272
    %3557 = vmatpush1.bf16.msra.mxu0 %v2271
    %3558 = vmatprep.subr.bf16.mxu0 %v2276
    %3559 = vmatpush1.bf16.msra.mxu0 %v2275
    %3560 = vmatprep.subr.bf16.mxu0 %v2280
    %3561 = vmatpush1.bf16.msra.mxu0 %v2279
    %3562 = vmatprep.subr.bf16.mxu0 %v2284
    %3563 = vmatpush1.bf16.msra.mxu0 %v2283
    %3564 = vmatprep.subr.bf16.mxu0 %v2288
    %3565 = vmatpush1.bf16.msra.mxu0 %v2287
    %3566 = vmatprep.mubr.bf16.mxu0 %v595
    %3567 = vmatmul.mubr.bf16.gmra.mrb[0].mxu0 %v593
    %v3568 = vpop.f32.mrb[0].mxu0
    %v3569 = vadd.f32 %v3528, %v3568
    %v3570 = vpop.f32.mrb[0].mxu0
    %v3571 = vadd.f32 %v3530, %v3570
    %v3572 = vpop.f32.mrb[0].mxu0
    %v3573 = vpop.f32.mrb[0].mxu0
    %3574 = vdwg.mxu0
    %3575 = vmatprep.subr.bf16.mxu0 %v2292
    %3576 = vmatpush1.bf16.msra.mxu0 %v2291
    %3577 = vmatprep.subr.bf16.mxu0 %v2296
    %3578 = vmatpush1.bf16.msra.mxu0 %v2295
    %3579 = vmatprep.subr.bf16.mxu0 %v2300
    %3580 = vmatpush1.bf16.msra.mxu0 %v2299
    %3581 = vmatprep.subr.bf16.mxu0 %v2304
    %3582 = vmatpush1.bf16.msra.mxu0 %v2303
    %3583 = vmatprep.subr.bf16.mxu0 %v2308
    %3584 = vmatpush1.bf16.msra.mxu0 %v2307
    %3585 = vmatprep.subr.bf16.mxu0 %v2312
    %3586 = vmatpush1.bf16.msra.mxu0 %v2311
    %3587 = vmatprep.subr.bf16.mxu0 %v2316
    %3588 = vmatpush1.bf16.msra.mxu0 %v2315
    %3589 = vmatprep.subr.bf16.mxu0 %v2320
    %3590 = vmatpush1.bf16.msra.mxu0 %v2319
    %3591 = vmatprep.subr.bf16.mxu0 %v2324
    %3592 = vmatpush1.bf16.msra.mxu0 %v2323
    %3593 = vmatprep.subr.bf16.mxu0 %v2328
    %3594 = vmatpush1.bf16.msra.mxu0 %v2327
    %3595 = vmatprep.subr.bf16.mxu0 %v2332
    %3596 = vmatpush1.bf16.msra.mxu0 %v2331
    %3597 = vmatprep.subr.bf16.mxu0 %v2336
    %3598 = vmatpush1.bf16.msra.mxu0 %v2335
    %3599 = vmatprep.subr.bf16.mxu0 %v2340
    %3600 = vmatpush1.bf16.msra.mxu0 %v2339
    %3601 = vmatprep.subr.bf16.mxu0 %v2344
    %3602 = vmatpush1.bf16.msra.mxu0 %v2343
    %3603 = vmatprep.subr.bf16.mxu0 %v2348
    %3604 = vmatpush1.bf16.msra.mxu0 %v2347
    %3605 = vmatprep.subr.bf16.mxu0 %v2352
    %3606 = vmatpush1.bf16.msra.mxu0 %v2351
    %3607 = vmatprep.mubr.bf16.mxu0 %v592
    %3608 = vmatmul.mubr.bf16.gmra.mrb[0].mxu0 %v578
    %v3609 = vpop.f32.mrb[0].mxu0
    %v3610 = vadd.f32 %v3569, %v3609
    %v3611 = vpop.f32.mrb[0].mxu0
    %v3612 = vadd.f32 %v3571, %v3611
    %v3613 = vpop.f32.mrb[0].mxu0
    %v3614 = vpop.f32.mrb[0].mxu0
    %3615 = vdwg.mxu0
    %3616 = vmatprep.subr.bf16.mxu0 %v2356
    %3617 = vmatpush1.bf16.msra.mxu0 %v2355
    %3618 = vmatprep.subr.bf16.mxu0 %v2360
    %3619 = vmatpush1.bf16.msra.mxu0 %v2359
    %3620 = vmatprep.subr.bf16.mxu0 %v2364
    %3621 = vmatpush1.bf16.msra.mxu0 %v2363
    %3622 = vmatprep.subr.bf16.mxu0 %v2368
    %3623 = vmatpush1.bf16.msra.mxu0 %v2367
    %3624 = vmatprep.subr.bf16.mxu0 %v2372
    %3625 = vmatpush1.bf16.msra.mxu0 %v2371
    %3626 = vmatprep.subr.bf16.mxu0 %v2376
    %3627 = vmatpush1.bf16.msra.mxu0 %v2375
    %3628 = vmatprep.subr.bf16.mxu0 %v2380
    %3629 = vmatpush1.bf16.msra.mxu0 %v2379
    %3630 = vmatprep.subr.bf16.mxu0 %v2384
    %3631 = vmatpush1.bf16.msra.mxu0 %v2383
    %3632 = vmatprep.subr.bf16.mxu0 %v2388
    %3633 = vmatpush1.bf16.msra.mxu0 %v2387
    %3634 = vmatprep.subr.bf16.mxu0 %v2392
    %3635 = vmatpush1.bf16.msra.mxu0 %v2391
    %3636 = vmatprep.subr.bf16.mxu0 %v2396
    %3637 = vmatpush1.bf16.msra.mxu0 %v2395
    %3638 = vmatprep.subr.bf16.mxu0 %v2400
    %3639 = vmatpush1.bf16.msra.mxu0 %v2399
    %3640 = vmatprep.subr.bf16.mxu0 %v2404
    %3641 = vmatpush1.bf16.msra.mxu0 %v2403
    %3642 = vmatprep.subr.bf16.mxu0 %v2408
    %3643 = vmatpush1.bf16.msra.mxu0 %v2407
    %3644 = vmatprep.subr.bf16.mxu0 %v2412
    %3645 = vmatpush1.bf16.msra.mxu0 %v2411
    %3646 = vmatprep.subr.bf16.mxu0 %v2416
    %3647 = vmatpush1.bf16.msra.mxu0 %v2415
    %3648 = vmatprep.mubr.bf16.mxu0 %v596
    %3649 = vmatmul.mubr.bf16.gmra.mrb[0].mxu0 %v594
    %v3650 = vpop.f32.mrb[0].mxu0
    %v3651 = vadd.f32 %v3610, %v3650
    %v3652 = vpop.f32.mrb[0].mxu0
    %v3653 = vadd.f32 %v3612, %v3652
    %v3654 = vpop.f32.mrb[0].mxu0
    %v3655 = vpop.f32.mrb[0].mxu0
    %3656 = vdwg.mxu0
    %3657 = vmatprep.subr.bf16.mxu0 %v2420
    %3658 = vmatpush1.bf16.msra.mxu0 %v2419
    %3659 = vmatprep.subr.bf16.mxu0 %v2424
    %3660 = vmatpush1.bf16.msra.mxu0 %v2423
    %3661 = vmatprep.subr.bf16.mxu0 %v2428
    %3662 = vmatpush1.bf16.msra.mxu0 %v2427
    %3663 = vmatprep.subr.bf16.mxu0 %v2432
    %3664 = vmatpush1.bf16.msra.mxu0 %v2431
    %3665 = vmatprep.subr.bf16.mxu0 %v2436
    %3666 = vmatpush1.bf16.msra.mxu0 %v2435
    %3667 = vmatprep.subr.bf16.mxu0 %v2440
    %3668 = vmatpush1.bf16.msra.mxu0 %v2439
    %3669 = vmatprep.subr.bf16.mxu0 %v2444
    %3670 = vmatpush1.bf16.msra.mxu0 %v2443
    %3671 = vmatprep.subr.bf16.mxu0 %v2448
    %3672 = vmatpush1.bf16.msra.mxu0 %v2447
    %3673 = vmatprep.subr.bf16.mxu0 %v2452
    %3674 = vmatpush1.bf16.msra.mxu0 %v2451
    %3675 = vmatprep.subr.bf16.mxu0 %v2456
    %3676 = vmatpush1.bf16.msra.mxu0 %v2455
    %3677 = vmatprep.subr.bf16.mxu0 %v2460
    %3678 = vmatpush1.bf16.msra.mxu0 %v2459
    %3679 = vmatprep.subr.bf16.mxu0 %v2464
    %3680 = vmatpush1.bf16.msra.mxu0 %v2463
    %3681 = vmatprep.subr.bf16.mxu0 %v2468
    %3682 = vmatpush1.bf16.msra.mxu0 %v2467
    %3683 = vmatprep.subr.bf16.mxu0 %v2472
    %3684 = vmatpush1.bf16.msra.mxu0 %v2471
    %3685 = vmatprep.subr.bf16.mxu0 %v2476
    %3686 = vmatpush1.bf16.msra.mxu0 %v2475
    %3687 = vmatprep.subr.bf16.mxu0 %v2480
    %3688 = vmatpush1.bf16.msra.mxu0 %v2479
    %3689 = vmatprep.mubr.bf16.mxu0 %v634
    %3690 = vmatmul.mubr.bf16.gmra.mrb[0].mxu0 %v620
    %v3691 = vpop.f32.mrb[0].mxu0
    %v3692 = vadd.f32 %v3651, %v3691
    %v3693 = vpop.f32.mrb[0].mxu0
    %v3694 = vadd.f32 %v3653, %v3693
    %v3695 = vpop.f32.mrb[0].mxu0
    %v3696 = vpop.f32.mrb[0].mxu0
    %3697 = vdwg.mxu0
    %3698 = vmatprep.subr.bf16.mxu0 %v2484
    %3699 = vmatpush1.bf16.msra.mxu0 %v2483
    %3700 = vmatprep.subr.bf16.mxu0 %v2488
    %3701 = vmatpush1.bf16.msra.mxu0 %v2487
    %3702 = vmatprep.subr.bf16.mxu0 %v2492
    %3703 = vmatpush1.bf16.msra.mxu0 %v2491
    %3704 = vmatprep.subr.bf16.mxu0 %v2496
    %3705 = vmatpush1.bf16.msra.mxu0 %v2495
    %3706 = vmatprep.subr.bf16.mxu0 %v2500
    %3707 = vmatpush1.bf16.msra.mxu0 %v2499
    %3708 = vmatprep.subr.bf16.mxu0 %v2504
    %3709 = vmatpush1.bf16.msra.mxu0 %v2503
    %3710 = vmatprep.subr.bf16.mxu0 %v2508
    %3711 = vmatpush1.bf16.msra.mxu0 %v2507
    %3712 = vmatprep.subr.bf16.mxu0 %v2512
    %3713 = vmatpush1.bf16.msra.mxu0 %v2511
    %3714 = vmatprep.subr.bf16.mxu0 %v2516
    %3715 = vmatpush1.bf16.msra.mxu0 %v2515
    %3716 = vmatprep.subr.bf16.mxu0 %v2520
    %3717 = vmatpush1.bf16.msra.mxu0 %v2519
    %3718 = vmatprep.subr.bf16.mxu0 %v2524
    %3719 = vmatpush1.bf16.msra.mxu0 %v2523
    %3720 = vmatprep.subr.bf16.mxu0 %v2528
    %3721 = vmatpush1.bf16.msra.mxu0 %v2527
    %3722 = vmatprep.subr.bf16.mxu0 %v2532
    %3723 = vmatpush1.bf16.msra.mxu0 %v2531
    %3724 = vmatprep.subr.bf16.mxu0 %v2536
    %3725 = vmatpush1.bf16.msra.mxu0 %v2535
    %3726 = vmatprep.subr.bf16.mxu0 %v2540
    %3727 = vmatpush1.bf16.msra.mxu0 %v2539
    %3728 = vmatprep.subr.bf16.mxu0 %v2544
    %3729 = vmatpush1.bf16.msra.mxu0 %v2543
    %3730 = vmatprep.mubr.bf16.mxu0 %v644
    %3731 = vmatmul.mubr.bf16.gmra.mrb[0].mxu0 %v642
    %v3732 = vpop.f32.mrb[0].mxu0
    %v3733 = vadd.f32 %v3692, %v3732
    %v3734 = vpop.f32.mrb[0].mxu0
    %v3735 = vadd.f32 %v3694, %v3734
    %v3736 = vpop.f32.mrb[0].mxu0
    %v3737 = vpop.f32.mrb[0].mxu0
    %3738 = vdwg.mxu0
    %3739 = vmatprep.subr.bf16.mxu0 %v2548
    %3740 = vmatpush1.bf16.msra.mxu0 %v2547
    %3741 = vmatprep.subr.bf16.mxu0 %v2552
    %3742 = vmatpush1.bf16.msra.mxu0 %v2551
    %3743 = vmatprep.subr.bf16.mxu0 %v2556
    %3744 = vmatpush1.bf16.msra.mxu0 %v2555
    %3745 = vmatprep.subr.bf16.mxu0 %v2560
    %3746 = vmatpush1.bf16.msra.mxu0 %v2559
    %3747 = vmatprep.subr.bf16.mxu0 %v2564
    %3748 = vmatpush1.bf16.msra.mxu0 %v2563
    %3749 = vmatprep.subr.bf16.mxu0 %v2568
    %3750 = vmatpush1.bf16.msra.mxu0 %v2567
    %3751 = vmatprep.subr.bf16.mxu0 %v2572
    %3752 = vmatpush1.bf16.msra.mxu0 %v2571
    %3753 = vmatprep.subr.bf16.mxu0 %v2576
    %3754 = vmatpush1.bf16.msra.mxu0 %v2575
    %3755 = vmatprep.subr.bf16.mxu0 %v2580
    %3756 = vmatpush1.bf16.msra.mxu0 %v2579
    %3757 = vmatprep.subr.bf16.mxu0 %v2584
    %3758 = vmatpush1.bf16.msra.mxu0 %v2583
    %3759 = vmatprep.subr.bf16.mxu0 %v2588
    %3760 = vmatpush1.bf16.msra.mxu0 %v2587
    %3761 = vmatprep.subr.bf16.mxu0 %v2592
    %3762 = vmatpush1.bf16.msra.mxu0 %v2591
    %3763 = vmatprep.subr.bf16.mxu0 %v2596
    %3764 = vmatpush1.bf16.msra.mxu0 %v2595
    %3765 = vmatprep.subr.bf16.mxu0 %v2600
    %3766 = vmatpush1.bf16.msra.mxu0 %v2599
    %3767 = vmatprep.subr.bf16.mxu0 %v2604
    %3768 = vmatpush1.bf16.msra.mxu0 %v2603
    %3769 = vmatprep.subr.bf16.mxu0 %v2608
    %3770 = vmatpush1.bf16.msra.mxu0 %v2607
    %3771 = vmatprep.mubr.bf16.mxu0 %v641
    %3772 = vmatmul.mubr.bf16.gmra.mrb[0].mxu0 %v627
    %v3773 = vpop.f32.mrb[0].mxu0
    %v3774 = vadd.f32 %v3733, %v3773
    %v3775 = vpop.f32.mrb[0].mxu0
    %v3776 = vadd.f32 %v3735, %v3775
    %v3777 = vpop.f32.mrb[0].mxu0
    %v3778 = vpop.f32.mrb[0].mxu0
    %3779 = vdwg.mxu0
    %3780 = vmatprep.subr.bf16.mxu0 %v2612
    %3781 = vmatpush1.bf16.msra.mxu0 %v2611
    %3782 = vmatprep.subr.bf16.mxu0 %v2616
    %3783 = vmatpush1.bf16.msra.mxu0 %v2615
    %3784 = vmatprep.subr.bf16.mxu0 %v2620
    %3785 = vmatpush1.bf16.msra.mxu0 %v2619
    %3786 = vmatprep.subr.bf16.mxu0 %v2624
    %3787 = vmatpush1.bf16.msra.mxu0 %v2623
    %3788 = vmatprep.subr.bf16.mxu0 %v2628
    %3789 = vmatpush1.bf16.msra.mxu0 %v2627
    %3790 = vmatprep.subr.bf16.mxu0 %v2632
    %3791 = vmatpush1.bf16.msra.mxu0 %v2631
    %3792 = vmatprep.subr.bf16.mxu0 %v2636
    %3793 = vmatpush1.bf16.msra.mxu0 %v2635
    %3794 = vmatprep.subr.bf16.mxu0 %v2640
    %3795 = vmatpush1.bf16.msra.mxu0 %v2639
    %3796 = vmatprep.subr.bf16.mxu0 %v2644
    %3797 = vmatpush1.bf16.msra.mxu0 %v2643
    %3798 = vmatprep.subr.bf16.mxu0 %v2648
    %3799 = vmatpush1.bf16.msra.mxu0 %v2647
    %3800 = vmatprep.subr.bf16.mxu0 %v2652
    %3801 = vmatpush1.bf16.msra.mxu0 %v2651
    %3802 = vmatprep.subr.bf16.mxu0 %v2656
    %3803 = vmatpush1.bf16.msra.mxu0 %v2655
    %3804 = vmatprep.subr.bf16.mxu0 %v2660
    %3805 = vmatpush1.bf16.msra.mxu0 %v2659
    %3806 = vmatprep.subr.bf16.mxu0 0
    %3807 = vmatpush1.bf16.msra.mxu0 0
    %3808 = vmatprep.subr.bf16.mxu0 0
    %3809 = vmatpush1.bf16.msra.mxu0 0
    %3810 = vmatprep.subr.bf16.mxu0 0
    %3811 = vmatpush1.bf16.msra.mxu0 0
    %3812 = vmatprep.mubr.bf16.mxu0 %v3163
    %3813 = vmatmul.mubr.bf16.gmra.mrb[0].mxu0 %v643
    %v3814 = vpop.f32.mrb[0].mxu0
    %v3815 = vadd.f32 %v3774, %v3814
    %v3816 = vpop.f32.mrb[0].mxu0
    %v3817 = vadd.f32 %v3776, %v3816
    %v3818 = vpop.f32.mrb[0].mxu0
    %v3819 = vpop.f32.mrb[0].mxu0
    %3820 = vdwg.mxu0
    %v3821 = vmax.f32 %v3487, 0.0
    %v3822 = vmax.f32 %v3489, 0.0
    %v3823 = vmax.f32 %v3815, 0.0
    %v3824 = vmax.f32 %v3817, 0.0
    %v3825 = vpack.c.bf16 %v3821, %v3821
    %v3826 = vpack.c.bf16 %v3822, %v3822
    %v3827 = vpack.c.bf16 %v3823, %v3823
    %v3828 = vpack.c.bf16 %v3824, %v3824
    %v3829 = vld [vmem:[%s3] sm:$0xf]
    %v3830 = vld [vmem:[%s3 + $0x4] sm:$0xf]
    %v3831 = vld [vmem:[%s3 + $0x8] sm:$0xf]
    %v3832 = vld [vmem:[%s3 + $0xc] sm:$0xf]
    %v3833 = vld [vmem:[%s3 + $0x10] sm:$0xf]
    %v3834 = vld [vmem:[%s3 + $0x14] sm:$0xf]
    %v3835 = vld [vmem:[%s3 + $0x18] sm:$0xf]
    %v3836 = vld [vmem:[%s3 + $0x1c] sm:$0xf]
    %v3837 = vld [vmem:[%s3 + $0x20] sm:$0xf]
    %v3838 = vld [vmem:[%s3 + $0x24] sm:$0xf]
    %v3839 = vld [vmem:[%s3 + $0x28] sm:$0xf]
    %v3840 = vld [vmem:[%s3 + $0x2c] sm:$0xf]
    %v3841 = vld [vmem:[%s3 + $0x30] sm:$0xf]
    %v3842 = vld [vmem:[%s3 + $0x34] sm:$0xf]
    %v3843 = vld [vmem:[%s3 + $0x38] sm:$0xf]
    %v3844 = vld [vmem:[%s3 + $0x3c] sm:$0xf]
    %v3845 = vld [vmem:[%s3 + $0x40] sm:$0xf]
    %v3846 = vld [vmem:[%s3 + $0x44] sm:$0xf]
    %v3847 = vld [vmem:[%s3 + $0x48] sm:$0xf]
    %v3848 = vld [vmem:[%s3 + $0x4c] sm:$0xf]
    %v3849 = vld [vmem:[%s3 + $0x50] sm:$0xf]
    %v3850 = vld [vmem:[%s3 + $0x54] sm:$0xf]
    %v3851 = vld [vmem:[%s3 + $0x58] sm:$0xf]
    %v3852 = vld [vmem:[%s3 + $0x5c] sm:$0xf]
    %v3853 = vld [vmem:[%s3 + $0x60] sm:$0xf]
    %v3854 = vld [vmem:[%s3 + $0x64] sm:$0xf]
    %v3855 = vld [vmem:[%s3 + $0x68] sm:$0xf]
    %v3856 = vld [vmem:[%s3 + $0x6c] sm:$0xf]
    %v3857 = vld [vmem:[%s3 + $0x70] sm:$0xf]
    %v3858 = vld [vmem:[%s3 + $0x74] sm:$0xf]
    %v3859 = vld [vmem:[%s3 + $0x78] sm:$0xf]
    %v3860 = vld [vmem:[%s3 + $0x7c] sm:$0xf]
    %v3861 = vld [vmem:[%s3 + $0x80] sm:$0xf]
    %v3862 = vld [vmem:[%s3 + $0x84] sm:$0xf]
    %v3863 = vld [vmem:[%s3 + $0x88] sm:$0xf]
    %v3864 = vld [vmem:[%s3 + $0x8c] sm:$0xf]
    %v3865 = vld [vmem:[%s3 + $0x90] sm:$0xf]
    %v3866 = vld [vmem:[%s3 + $0x94] sm:$0xf]
    %v3867 = vld [vmem:[%s3 + $0x98] sm:$0xf]
    %v3868 = vld [vmem:[%s3 + $0x9c] sm:$0xf]
    %v3869 = vld [vmem:[%s3 + $0xa0] sm:$0xf]
    %v3870 = vld [vmem:[%s3 + $0xa4] sm:$0xf]
    %v3871 = vld [vmem:[%s3 + $0xa8] sm:$0xf]
    %v3872 = vld [vmem:[%s3 + $0xac] sm:$0xf]
    %v3873 = vld [vmem:[%s3 + $0xb0] sm:$0xf]
    %v3874 = vld [vmem:[%s3 + $0xb4] sm:$0xf]
    %v3875 = vld [vmem:[%s3 + $0xb8] sm:$0xf]
    %v3876 = vld [vmem:[%s3 + $0xbc] sm:$0xf]
    %v3877 = vld [vmem:[%s3 + $0xc0] sm:$0xf]
    %v3878 = vld [vmem:[%s3 + $0xc4] sm:$0xf]
    %v3879 = vld [vmem:[%s3 + $0xc8] sm:$0xf]
    %v3880 = vld [vmem:[%s3 + $0xcc] sm:$0xf]
    %v3881 = vld [vmem:[%s3 + $0xd0] sm:$0xf]
    %v3882 = vld [vmem:[%s3 + $0xd4] sm:$0xf]
    %v3883 = vld [vmem:[%s3 + $0xd8] sm:$0xf]
    %v3884 = vld [vmem:[%s3 + $0xdc] sm:$0xf]
    %v3885 = vld [vmem:[%s3 + $0xe0] sm:$0xf]
    %v3886 = vld [vmem:[%s3 + $0xe4] sm:$0xf]
    %v3887 = vld [vmem:[%s3 + $0xe8] sm:$0xf]
    %v3888 = vld [vmem:[%s3 + $0xec] sm:$0xf]
    %v3889 = vld [vmem:[%s3 + $0xf0] sm:$0xf]
    %v3890 = vld [vmem:[%s3 + $0xf4] sm:$0xf]
    %v3891 = vld [vmem:[%s3 + $0xf8] sm:$0xf]
    %v3892 = vld [vmem:[%s3 + $0xfc] sm:$0xf]
    %v3893 = vld [vmem:[%s4] sm:$0x1]
    %v3895 = vlaneseq
    %v3896 = vshrl.u32 %v3895, 7
    %v3897 = vsub.s32 0, %v3896
    %v3898 = vrot.slane %v3893, %v3897
    %v3964 = vunpack.c.l.b16 %v3829
    %v3965 = vunpack.c.l.b16 %v3830
    %v3966 = vunpack.c.l.b16 %v3831
    %v3967 = vunpack.c.l.b16 %v3832
    %v3968 = vunpack.c.l.b16 %v3833
    %v3969 = vunpack.c.l.b16 %v3834
    %v3970 = vunpack.c.l.b16 %v3835
    %v3971 = vunpack.c.l.b16 %v3836
    %v3972 = vunpack.c.l.b16 %v3837
    %v3973 = vunpack.c.l.b16 %v3838
    %v3974 = vunpack.c.l.b16 %v3839
    %v3975 = vunpack.c.l.b16 %v3840
    %v3976 = vunpack.c.l.b16 %v3841
    %v3977 = vunpack.c.l.b16 %v3842
    %v3978 = vunpack.c.l.b16 %v3843
    %v3979 = vunpack.c.l.b16 %v3844
    %v3980 = vunpack.c.l.b16 %v3845
    %v3981 = vunpack.c.l.b16 %v3846
    %v3982 = vunpack.c.l.b16 %v3847
    %v3983 = vunpack.c.l.b16 %v3848
    %v3984 = vunpack.c.l.b16 %v3849
    %v3985 = vunpack.c.l.b16 %v3850
    %v3986 = vunpack.c.l.b16 %v3851
    %v3987 = vunpack.c.l.b16 %v3852
    %v3988 = vunpack.c.l.b16 %v3853
    %v3989 = vunpack.c.l.b16 %v3854
    %v3990 = vunpack.c.l.b16 %v3855
    %v3991 = vunpack.c.l.b16 %v3856
    %v3992 = vunpack.c.l.b16 %v3857
    %v3993 = vunpack.c.l.b16 %v3858
    %v3994 = vunpack.c.l.b16 %v3859
    %v3995 = vunpack.c.l.b16 %v3860
    %v3996 = vunpack.c.l.b16 %v3861
    %v3997 = vunpack.c.l.b16 %v3862
    %v3998 = vunpack.c.l.b16 %v3863
    %v3999 = vunpack.c.l.b16 %v3864
    %v4000 = vunpack.c.l.b16 %v3865
    %v4001 = vunpack.c.l.b16 %v3866
    %v4002 = vunpack.c.l.b16 %v3867
    %v4003 = vunpack.c.l.b16 %v3868
    %v4004 = vunpack.c.l.b16 %v3869
    %v4005 = vunpack.c.l.b16 %v3870
    %v4006 = vunpack.c.l.b16 %v3871
    %v4007 = vunpack.c.l.b16 %v3872
    %v4008 = vunpack.c.l.b16 %v3873
    %v4009 = vunpack.c.l.b16 %v3874
    %v4010 = vunpack.c.l.b16 %v3875
    %v4011 = vunpack.c.l.b16 %v3876
    %v4012 = vunpack.c.l.b16 %v3877
    %v4013 = vunpack.c.l.b16 %v3878
    %v4014 = vunpack.c.l.b16 %v3879
    %v4015 = vunpack.c.l.b16 %v3880
    %v4016 = vunpack.c.l.b16 %v3881
    %v4017 = vunpack.c.l.b16 %v3882
    %v4018 = vunpack.c.l.b16 %v3883
    %v4019 = vunpack.c.l.b16 %v3884
    %v4020 = vunpack.c.l.b16 %v3885
    %v4021 = vunpack.c.l.b16 %v3886
    %v4022 = vunpack.c.l.b16 %v3887
    %v4023 = vunpack.c.l.b16 %v3888
    %v4024 = vunpack.c.l.b16 %v3889
    %v4025 = vunpack.c.l.b16 %v3890
    %v4026 = vunpack.c.l.b16 %v3891
    %v4027 = vunpack.c.l.b16 %v3892
    %v4028 = vpack.c.b16 %v3965, %v3964
    %v4029 = vpack.c.b16 %v3967, %v3966
    %v4030 = vpack.c.b16 %v3969, %v3968
    %v4031 = vpack.c.b16 %v3971, %v3970
    %v4032 = vpack.c.b16 %v3973, %v3972
    %v4033 = vpack.c.b16 %v3975, %v3974
    %v4034 = vpack.c.b16 %v3977, %v3976
    %v4035 = vpack.c.b16 %v3979, %v3978
    %v4036 = vpack.c.b16 %v3981, %v3980
    %v4037 = vpack.c.b16 %v3983, %v3982
    %v4038 = vpack.c.b16 %v3985, %v3984
    %v4039 = vpack.c.b16 %v3987, %v3986
    %v4040 = vpack.c.b16 %v3989, %v3988
    %v4041 = vpack.c.b16 %v3991, %v3990
    %v4042 = vpack.c.b16 %v3993, %v3992
    %v4043 = vpack.c.b16 %v3995, %v3994
    %v4044 = vpack.c.b16 %v3997, %v3996
    %v4045 = vpack.c.b16 %v3999, %v3998
    %v4046 = vpack.c.b16 %v4001, %v4000
    %v4047 = vpack.c.b16 %v4003, %v4002
    %v4048 = vpack.c.b16 %v4005, %v4004
    %v4049 = vpack.c.b16 %v4007, %v4006
    %v4050 = vpack.c.b16 %v4009, %v4008
    %v4051 = vpack.c.b16 %v4011, %v4010
    %v4052 = vpack.c.b16 %v4013, %v4012
    %v4053 = vpack.c.b16 %v4015, %v4014
    %v4054 = vpack.c.b16 %v4017, %v4016
    %v4055 = vpack.c.b16 %v4019, %v4018
    %v4056 = vpack.c.b16 %v4021, %v4020
    %v4057 = vpack.c.b16 %v4023, %v4022
    %v4058 = vpack.c.b16 %v4025, %v4024
    %v4059 = vpack.c.b16 %v4027, %v4026
    %4092 = vmatprep.subr.bf16.mxu0 0
    %4093 = vmatpush1.bf16.msra.mxu0 %v4028
    %4094 = vmatprep.subr.bf16.mxu0 0
    %4095 = vmatpush1.bf16.msra.mxu0 %v4029
    %4096 = vmatprep.subr.bf16.mxu0 0
    %4097 = vmatpush1.bf16.msra.mxu0 %v4030
    %4098 = vmatprep.subr.bf16.mxu0 0
    %4099 = vmatpush1.bf16.msra.mxu0 %v4031
    %4100 = vmatprep.subr.bf16.mxu0 0
    %4101 = vmatpush1.bf16.msra.mxu0 %v4032
    %4102 = vmatprep.subr.bf16.mxu0 0
    %4103 = vmatpush1.bf16.msra.mxu0 %v4033
    %4104 = vmatprep.subr.bf16.mxu0 0
    %4105 = vmatpush1.bf16.msra.mxu0 %v4034
    %4106 = vmatprep.subr.bf16.mxu0 0
    %4107 = vmatpush1.bf16.msra.mxu0 %v4035
    %4108 = vmatprep.subr.bf16.mxu0 0
    %4109 = vmatpush1.bf16.msra.mxu0 %v4036
    %4110 = vmatprep.subr.bf16.mxu0 0
    %4111 = vmatpush1.bf16.msra.mxu0 %v4037
    %4112 = vmatprep.subr.bf16.mxu0 0
    %4113 = vmatpush1.bf16.msra.mxu0 %v4038
    %4114 = vmatprep.subr.bf16.mxu0 0
    %4115 = vmatpush1.bf16.msra.mxu0 %v4039
    %4116 = vmatprep.subr.bf16.mxu0 0
    %4117 = vmatpush1.bf16.msra.mxu0 %v4040
    %4118 = vmatprep.subr.bf16.mxu0 0
    %4119 = vmatpush1.bf16.msra.mxu0 %v4041
    %4120 = vmatprep.subr.bf16.mxu0 0
    %4121 = vmatpush1.bf16.msra.mxu0 %v4042
    %4122 = vmatprep.subr.bf16.mxu0 0
    %4123 = vmatpush1.bf16.msra.mxu0 %v4043
    %4124 = vmatprep.mubr.bf16.mxu0 %v3826
    %4125 = vmatmul.mubr.bf16.gmra.mrb[0].mxu0 %v3825
    %v4126 = vpop.f32.mrb[0].mxu0
    %v4127 = vadd.f32 %v3898, %v4126
    %v4128 = vpop.f32.mrb[0].mxu0
    %v4129 = vpop.f32.mrb[0].mxu0
    %v4130 = vpop.f32.mrb[0].mxu0
    %4131 = vdwg.mxu0
    %4132 = vmatprep.subr.bf16.mxu0 0
    %4133 = vmatpush1.bf16.msra.mxu0 %v4044
    %4134 = vmatprep.subr.bf16.mxu0 0
    %4135 = vmatpush1.bf16.msra.mxu0 %v4045
    %4136 = vmatprep.subr.bf16.mxu0 0
    %4137 = vmatpush1.bf16.msra.mxu0 %v4046
    %4138 = vmatprep.subr.bf16.mxu0 0
    %4139 = vmatpush1.bf16.msra.mxu0 %v4047
    %4140 = vmatprep.subr.bf16.mxu0 0
    %4141 = vmatpush1.bf16.msra.mxu0 %v4048
    %4142 = vmatprep.subr.bf16.mxu0 0
    %4143 = vmatpush1.bf16.msra.mxu0 %v4049
    %4144 = vmatprep.subr.bf16.mxu0 0
    %4145 = vmatpush1.bf16.msra.mxu0 %v4050
    %4146 = vmatprep.subr.bf16.mxu0 0
    %4147 = vmatpush1.bf16.msra.mxu0 %v4051
    %4148 = vmatprep.subr.bf16.mxu0 0
    %4149 = vmatpush1.bf16.msra.mxu0 %v4052
    %4150 = vmatprep.subr.bf16.mxu0 0
    %4151 = vmatpush1.bf16.msra.mxu0 %v4053
    %4152 = vmatprep.subr.bf16.mxu0 0
    %4153 = vmatpush1.bf16.msra.mxu0 %v4054
    %4154 = vmatprep.subr.bf16.mxu0 0
    %4155 = vmatpush1.bf16.msra.mxu0 %v4055
    %4156 = vmatprep.subr.bf16.mxu0 0
    %4157 = vmatpush1.bf16.msra.mxu0 %v4056
    %4158 = vmatprep.subr.bf16.mxu0 0
    %4159 = vmatpush1.bf16.msra.mxu0 %v4057
    %4160 = vmatprep.subr.bf16.mxu0 0
    %4161 = vmatpush1.bf16.msra.mxu0 %v4058
    %4162 = vmatprep.subr.bf16.mxu0 0
    %4163 = vmatpush1.bf16.msra.mxu0 %v4059
    %4164 = vmatprep.mubr.bf16.mxu0 %v3828
    %4165 = vmatmul.mubr.bf16.gmra.mrb[0].mxu0 %v3827
    %v4166 = vpop.f32.mrb[0].mxu0
    %v4167 = vadd.f32 %v4127, %v4166
    %v4168 = vpop.f32.mrb[0].mxu0
    %v4169 = vpop.f32.mrb[0].mxu0
    %v4170 = vpop.f32.mrb[0].mxu0
    %4171 = vdwg.mxu0
    %v4172 = vlaneseq
    %v4173 = vand.u32 %v4172, 127
    %vm4174 = vcmp.lt.s32.totalorder %v4173, 10
    %v4175 = vsel %vm4174, %v4167, -1e+30
    %vm4176 = vcmask 1041408
    %v4177 = vsel %vm4176, %v4175, -inf
    %4178 = vmax.xlane.f32.xlu0 %v4177
    %v4179 = vpop.xlane.xlu0 %4178
    %v4180 = vsub.f32 %v4175, %v4179
    %v4181 = vmul.f32 %v4180, 1.442695
    %v4182 = vpow.pop %v4181
    %v4183 = vsel %vm4176, %v4182, 0.0
    %4184 = vadd.xlane.f32.xlu0 %v4183
    %v4185 = vpop.xlane.xlu0 %4184
    %v4186 = vlog2.pop %v4185
    %v4187 = vmul.f32 %v4186, 0.6931472
    %v4188 = vadd.f32 %v4187, %v4179
    %v4189 = vsub.f32 %v4175, %v4188
    %4190 = vst [vmem:[#allocation2] sm:$0x3] %v4189
    // Predicated region
    $region22: #{convnet_forward.3} parent=1 // pred_check
      _
    $region23: #{convnet_forward.3} parent=1 // pred_check_branch
      %4192 = sbr.rel (0) target = $region25
    $region24: #{convnet_forward.3} parent=1 // pred_region
      %s4194 = ssub.s32 32, 32
      %4195 = vsyncadd [#allocation3], %s4194
      %s4197 = sshll.u32 [#allocation2], 4
      %s4198 = int_to_ptr.vmem [resolvable:$true] %s4197
      %4200 = dma.vmem_to_hbm [thread:$0]  %s4198, 32, %s5, [#allocation3]
    $region25: #{convnet_forward.3} parent=1 // pred_fallthru
      _
    // Predicated region
    $region26: #{convnet_forward.3} parent=1 // pred_check
      _
    $region27: #{convnet_forward.3} parent=1 // pred_check_branch
      %4202 = sbr.rel (0) target = $region29
    $region28: #{convnet_forward.3} parent=1 // pred_region
      %4203 = dma.done [#allocation3], 32
    $region29: #{convnet_forward.3} parent=1 // pred_fallthru
      _
    %4204 = vsyncpa [#allocation3], 1

</llo_original>
